<compile_context>
chip_gen: v7x
topology: tpu7x:2x2x1
jax: 0.10.0
libtpu: 0.0.40
codegen_flags: <defaults>
</compile_context>

<pallas_src>
import numpy as np
import jax
import jax.numpy as jnp
from jax.experimental import pallas as pl
from jax.experimental.pallas import tpu as pltpu


# ----------------------------------------------------------------------------
# Geometry (synthetic config: 3-stage backbone OUT_INDICES=(1,2,3),
#           FPN neck IN_CHANNELS=[8,16,32], NUM_CHANNELS=16, NUM_LAYERS=1)
# ----------------------------------------------------------------------------
H0 = W0 = 16          # input spatial
C0 = 4                # input channels
H1, C1 = 8, 8         # stage 1: 3x3 s2 + ReLU
H2, C2 = 4, 16        # stage 2: 3x3 s2 + ReLU
H3, C3 = 2, 32        # stage 3: 3x3 s2 + ReLU
CN = 16               # neck channels

WP0 = H0 + 2          # 18  padded widths (pad=1)
WP1 = H1 + 2          # 10
WP2 = H2 + 2          # 6
WP3 = H3 + 2          # 4

XROWS = WP0 * WP0                 # 324  flattened padded input rows
F1P_ROWS = WP1 * WP1              # 100  padded f1 scratch
F2P_ROWS = WP2 * WP2              # 36   padded f2 scratch
P1P_ROWS = WP1 * WP1 + 2          # 102  (+2 zero rows: smooth over-read stays in-bounds)
P2P_ROWS = WP2 * WP2 + 2          # 38
P3P_ROWS = WP3 * WP3 + 2          # 18

Q_BB1 = (H1 - 1) * WP0 + H1       # 134  "virtual width" output rows, stage 1
Q_BB2 = (H2 - 1) * WP1 + H2       # 34
Q_BB3 = (H3 - 1) * WP2 + H3       # 8
Q_SM1 = H1 * WP1                  # 80   smooth conv output rows (= output block rows)
Q_SM2 = H2 * WP2                  # 24
Q_SM3 = H3 * WP3                  # 8

_PARAM_ORDER = ("bb1", "bb2", "bb3", "lat1", "lat2", "lat3", "sm1", "sm2", "sm3")


# ----------------------------------------------------------------------------
# In-kernel 3x3 conv: 9 shifted slab matmuls over a flattened padded activation
# ----------------------------------------------------------------------------
def _conv3x3(src_ref, w_ref, b_ref, *, wp, q, cin, stride, relu):
    """src_ref: (rows, cin) flattened zero-padded activation (VMEM ref).
    w_ref: (9*cin, cout) with tap-major rows.  Returns (q, cout) f32 value
    where valid outputs sit at rows h*wp + w (w < out_width)."""
    acc = None
    for kh in range(3):
        for kw in range(3):
            off = kh * wp + kw                       # static tap offset
            if stride == 1:
                slab = src_ref[pl.ds(off, q), :]
            else:
                slab = src_ref[pl.ds(off, q, stride=stride), :]
            t = kh * 3 + kw
            w_t = w_ref[pl.ds(t * cin, cin), :]      # static slice of resident weights
            part = jnp.dot(slab, w_t, preferred_element_type=jnp.float32)
            acc = part if acc is None else acc + part
    acc = acc + b_ref[...]
    if relu:
        acc = jnp.maximum(acc, 0.0)
    return acc


# ----------------------------------------------------------------------------
# Fused backbone + neck kernel (one batch element per grid step)
# ----------------------------------------------------------------------------
def _fused_kernel(x_ref,
                  wbb1, bbb1, wbb2, bbb2, wbb3, bbb3,
                  wl1, bl1, wl2, bl2, wl3, bl3,
                  ws1, bs1, ws2, bs2, ws3, bs3,
                  u12_ref, u23_ref,
                  o1_ref, o2_ref, o3_ref,
                  f1p, f2p, p1p, p2p, p3p):
    # Zero the padded scratches (padding rows must be 0 every grid step; the
    # buffers total only a few KB so a full block-zero is the cheapest safe
    # option, and it stays correct when megacore gives each core its own
    # private scratch starting at an arbitrary program id).
    for ref in (f1p, f2p, p1p, p2p, p3p):
        ref[...] = jnp.zeros(ref.shape, ref.dtype)

    # ---------------- Backbone ----------------
    # stage 1: 3x3 s2 4->8 + ReLU
    f1 = _conv3x3(x_ref, wbb1, bbb1, wp=WP0, q=Q_BB1, cin=C0, stride=2, relu=True)
    for h in range(H1):   # scatter valid rows into padded f1 scratch interior
        f1p[pl.ds((h + 1) * WP1 + 1, H1), :] = f1[h * WP0:h * WP0 + H1, :]
    l1 = jnp.dot(f1, wl1[...], preferred_element_type=jnp.float32) + bl1[...]

    # stage 2: 3x3 s2 8->16 + ReLU
    f2 = _conv3x3(f1p, wbb2, bbb2, wp=WP1, q=Q_BB2, cin=C1, stride=2, relu=True)
    for h in range(H2):
        f2p[pl.ds((h + 1) * WP2 + 1, H2), :] = f2[h * WP1:h * WP1 + H2, :]
    l2 = jnp.dot(f2, wl2[...], preferred_element_type=jnp.float32) + bl2[...]

    # stage 3: 3x3 s2 16->32 + ReLU
    f3 = _conv3x3(f2p, wbb3, bbb3, wp=WP2, q=Q_BB3, cin=C2, stride=2, relu=True)
    l3 = jnp.dot(f3, wl3[...], preferred_element_type=jnp.float32) + bl3[...]

    # ---------------- Neck top-down (upsample-as-matmul + add) ----------------
    for h in range(H3):                               # p3 = l3
        p3p[pl.ds((h + 1) * WP3 + 1, H3), :] = l3[h * WP2:h * WP2 + H3, :]
    up23 = jnp.dot(u23_ref[...], p3p[...], preferred_element_type=jnp.float32)
    for h in range(H2):                               # p2 = l2 + up2x(p3)
        p2p[pl.ds((h + 1) * WP2 + 1, H2), :] = (
            l2[h * WP1:h * WP1 + H2, :] + up23[h * H2:(h + 1) * H2, :])
    up12 = jnp.dot(u12_ref[...], p2p[...], preferred_element_type=jnp.float32)
    for h in range(H1):                               # p1 = l1 + up2x(p2)
        p1p[pl.ds((h + 1) * WP1 + 1, H1), :] = (
            l1[h * WP0:h * WP0 + H1, :] + up12[h * H1:(h + 1) * H1, :])

    # ---------------- Neck smoothing (3x3 s1 + ReLU) -> outputs ----------------
    o1_ref[...] = _conv3x3(p1p, ws1, bs1, wp=WP1, q=Q_SM1, cin=CN, stride=1, relu=True)
    o2_ref[...] = _conv3x3(p2p, ws2, bs2, wp=WP2, q=Q_SM2, cin=CN, stride=1, relu=True)
    o3_ref[...] = _conv3x3(p3p, ws3, bs3, wp=WP3, q=Q_SM3, cin=CN, stride=1, relu=True)


def _fused_call(params, xf):
    n = xf.shape[0]
    operands = [xf]
    in_specs = [pl.BlockSpec((None, XROWS, C0), lambda i: (i, 0, 0))]
    for name in _PARAM_ORDER:
        w, b = params[name]
        operands += [w, b]
        # Constant block index => weights DMA'd once and kept resident.
        in_specs += [pl.BlockSpec(w.shape, lambda i: (0, 0)),
                     pl.BlockSpec(b.shape, lambda i: (0, 0))]
    operands += [params["up12"], params["up23"]]
    in_specs += [pl.BlockSpec(params["up12"].shape, lambda i: (0, 0)),
                 pl.BlockSpec(params["up23"].shape, lambda i: (0, 0))]

    out_shape = (jax.ShapeDtypeStruct((n, Q_SM1, CN), jnp.float32),
                 jax.ShapeDtypeStruct((n, Q_SM2, CN), jnp.float32),
                 jax.ShapeDtypeStruct((n, Q_SM3, CN), jnp.float32))
    out_specs = (pl.BlockSpec((None, Q_SM1, CN), lambda i: (i, 0, 0)),
                 pl.BlockSpec((None, Q_SM2, CN), lambda i: (i, 0, 0)),
                 pl.BlockSpec((None, Q_SM3, CN), lambda i: (i, 0, 0)))

    grid_spec = pltpu.PrefetchScalarGridSpec(
        num_scalar_prefetch=0,
        grid=(n,),
        in_specs=in_specs,
        out_specs=out_specs,
        scratch_shapes=[
            pltpu.VMEM((F1P_ROWS, C1), jnp.float32),   # padded f1
            pltpu.VMEM((F2P_ROWS, C2), jnp.float32),   # padded f2
            pltpu.VMEM((P1P_ROWS, CN), jnp.float32),   # padded p1
            pltpu.VMEM((P2P_ROWS, CN), jnp.float32),   # padded p2
            pltpu.VMEM((P3P_ROWS, CN), jnp.float32),   # padded p3
        ],
    )
    return pl.pallas_call(
        _fused_kernel,
        out_shape=out_shape,
        grid_spec=grid_spec,
        compiler_params=pltpu.CompilerParams(
            dimension_semantics=("parallel",)),
    )(*operands)


# ----------------------------------------------------------------------------
# Parameters (deterministic synthetic init, matmul-ready layouts)
# ----------------------------------------------------------------------------
def _conv_init(key, k, cin, cout):
    std = (2.0 / (k * k * cin)) ** 0.5
    w = jax.random.normal(key, (k, k, cin, cout), jnp.float32) * std
    return w.reshape(k * k * cin, cout), jnp.zeros((1, cout), jnp.float32)


def _upsample_matrix(h_src, wp_src, rows_src):
    """One-hot (4*h_src^2, rows_src): dense row-major 2x-upsampled grid from
    the padded-flat source layout (interior at (h+1)*wp_src + w+1)."""
    h_dst = 2 * h_src
    u = np.zeros((h_dst * h_dst, rows_src), np.float32)
    for h in range(h_dst):
        for w in range(h_dst):
            src = (h // 2 + 1) * wp_src + (w // 2 + 1)
            u[h * h_dst + w, src] = 1.0
    return jnp.asarray(u)


def init_params(key):
    ks = jax.random.split(key, 9)
    p = {}
    p["bb1"] = _conv_init(ks[0], 3, C0, C1)
    p["bb2"] = _conv_init(ks[1], 3, C1, C2)
    p["bb3"] = _conv_init(ks[2], 3, C2, C3)
    p["lat1"] = _conv_init(ks[3], 1, C1, CN)
    p["lat2"] = _conv_init(ks[4], 1, C2, CN)
    p["lat3"] = _conv_init(ks[5], 1, C3, CN)
    p["sm1"] = _conv_init(ks[6], 3, CN, CN)
    p["sm2"] = _conv_init(ks[7], 3, CN, CN)
    p["sm3"] = _conv_init(ks[8], 3, CN, CN)
    p["up12"] = _upsample_matrix(H2, WP2, P2P_ROWS)   # (64, 38)
    p["up23"] = _upsample_matrix(H3, WP3, P3P_ROWS)   # (16, 18)
    return p


# ----------------------------------------------------------------------------
# Forward (thin JAX wrapper: layout glue only)
# ----------------------------------------------------------------------------
def backbone_neck_forward(params, x_nchw):
    n = x_nchw.shape[0]
    x = jnp.transpose(x_nchw, (0, 2, 3, 1)).astype(jnp.float32)     # NHWC
    xp = jnp.pad(x, ((0, 0), (1, 1), (1, 1), (0, 0)))               # (N,18,18,4)
    xf = xp.reshape(n, XROWS, C0)
    o1f, o2f, o3f = _fused_call(params, xf)
    # drop virtual-width garbage columns, back to NCHW
    o1 = o1f.reshape(n, H1, WP1, CN)[:, :, :H1, :].transpose(0, 3, 1, 2)
    o2 = o2f.reshape(n, H2, WP2, CN)[:, :, :H2, :].transpose(0, 3, 1, 2)
    o3 = o3f.reshape(n, H3, WP3, CN)[:, :, :H3, :].transpose(0, 3, 1, 2)
    return o1, o2, o3


# ----------------------------------------------------------------------------
# Pure-JAX reference (for correctness check)
# ----------------------------------------------------------------------------
def _ref_conv3x3(x, w2d, b, stride):
    cout = w2d.shape[1]
    cin = w2d.shape[0] // 9
    w = w2d.reshape(3, 3, cin, cout)
    y = jax.lax.conv_general_dilated(
        x, w, window_strides=(stride, stride), padding=((1, 1), (1, 1)),
        dimension_numbers=("NHWC", "HWIO", "NHWC"),
        precision=jax.lax.Precision.HIGHEST)
    return y + b.reshape(1, 1, 1, cout)


def _ref_1x1(x, w, b):
    return jnp.einsum("nhwc,cd->nhwd", x, w,
                      precision=jax.lax.Precision.HIGHEST) + b.reshape(1, 1, 1, -1)


def reference_forward(params, x_nchw):
    x = jnp.transpose(x_nchw, (0, 2, 3, 1)).astype(jnp.float32)
    f1 = jax.nn.relu(_ref_conv3x3(x, *params["bb1"], 2))
    f2 = jax.nn.relu(_ref_conv3x3(f1, *params["bb2"], 2))
    f3 = jax.nn.relu(_ref_conv3x3(f2, *params["bb3"], 2))
    l1 = _ref_1x1(f1, *params["lat1"])
    l2 = _ref_1x1(f2, *params["lat2"])
    l3 = _ref_1x1(f3, *params["lat3"])
    up = lambda t: jnp.repeat(jnp.repeat(t, 2, axis=1), 2, axis=2)
    p3 = l3
    p2 = l2 + up(p3)
    p1 = l1 + up(p2)
    o1 = jax.nn.relu(_ref_conv3x3(p1, *params["sm1"], 1))
    o2 = jax.nn.relu(_ref_conv3x3(p2, *params["sm2"], 1))
    o3 = jax.nn.relu(_ref_conv3x3(p3, *params["sm3"], 1))
    return tuple(jnp.transpose(o, (0, 3, 1, 2)) for o in (o1, o2, o3))


if __name__ == "__main__":
    key = jax.random.PRNGKey(0)
    k_param, k_x = jax.random.split(key)
    params = init_params(k_param)

    x = jax.random.normal(k_x, (2, C0, H0, W0), jnp.float32)   # NCHW (2,4,16,16)

    fwd = jax.jit(backbone_neck_forward)
    outs = jax.block_until_ready(fwd(params, x))

    expected = [(2, CN, H1, H1), (2, CN, H2, H2), (2, CN, H3, H3)]
    assert [tuple(o.shape) for o in outs] == expected, [o.shape for o in outs]
    assert all(bool(jnp.all(jnp.isfinite(o))) for o in outs)

    # numerical check vs pure-JAX reference (loose tol: MXU f32 matmul path)
    refs = reference_forward(params, x)
    for o, r in zip(outs, refs):
        assert bool(jnp.allclose(o, r, atol=1e-1, rtol=1e-1)), \
            float(jnp.max(jnp.abs(o - r)))

    print("KERNEL_OK")
</pallas_src>

<mosaic_0001>
module attributes {stable_mosaic.version = 11 : i64} {
  func.func @_fused_kernel(%arg0: i32, %arg1: memref<1x324x4xf32, #tpu.memory_space<vmem>>, %arg2: memref<36x8xf32, #tpu.memory_space<vmem>>, %arg3: memref<1x8xf32, #tpu.memory_space<vmem>>, %arg4: memref<72x16xf32, #tpu.memory_space<vmem>>, %arg5: memref<1x16xf32, #tpu.memory_space<vmem>>, %arg6: memref<144x32xf32, #tpu.memory_space<vmem>>, %arg7: memref<1x32xf32, #tpu.memory_space<vmem>>, %arg8: memref<8x16xf32, #tpu.memory_space<vmem>>, %arg9: memref<1x16xf32, #tpu.memory_space<vmem>>, %arg10: memref<16x16xf32, #tpu.memory_space<vmem>>, %arg11: memref<1x16xf32, #tpu.memory_space<vmem>>, %arg12: memref<32x16xf32, #tpu.memory_space<vmem>>, %arg13: memref<1x16xf32, #tpu.memory_space<vmem>>, %arg14: memref<144x16xf32, #tpu.memory_space<vmem>>, %arg15: memref<1x16xf32, #tpu.memory_space<vmem>>, %arg16: memref<144x16xf32, #tpu.memory_space<vmem>>, %arg17: memref<1x16xf32, #tpu.memory_space<vmem>>, %arg18: memref<144x16xf32, #tpu.memory_space<vmem>>, %arg19: memref<1x16xf32, #tpu.memory_space<vmem>>, %arg20: memref<64x38xf32, #tpu.memory_space<vmem>>, %arg21: memref<16x18xf32, #tpu.memory_space<vmem>>, %arg22: memref<1x80x16xf32, #tpu.memory_space<vmem>>, %arg23: memref<1x24x16xf32, #tpu.memory_space<vmem>>, %arg24: memref<1x8x16xf32, #tpu.memory_space<vmem>>, %arg25: memref<100x8xf32, #tpu.memory_space<vmem>>, %arg26: memref<36x16xf32, #tpu.memory_space<vmem>>, %arg27: memref<102x16xf32, #tpu.memory_space<vmem>>, %arg28: memref<38x16xf32, #tpu.memory_space<vmem>>, %arg29: memref<18x16xf32, #tpu.memory_space<vmem>>) attributes {dimension_semantics = [#tpu.dimension_semantics<parallel>], iteration_bounds = array<i64: 2>, scalar_prefetch = 0 : i64, scratch_operands = 5 : i64, tpu.core_type = #tpu.core_type<tc>, window_params = [{transform_indices = @transform_0, window_bounds = array<i64: 1, 324, 4>}, {pipeline_mode = #tpu.pipeline_mode<synchronous>, transform_indices = @transform_1, window_bounds = array<i64: 36, 8>}, {pipeline_mode = #tpu.pipeline_mode<synchronous>, transform_indices = @transform_2, window_bounds = array<i64: 1, 8>}, {pipeline_mode = #tpu.pipeline_mode<synchronous>, transform_indices = @transform_3, window_bounds = array<i64: 72, 16>}, {pipeline_mode = #tpu.pipeline_mode<synchronous>, transform_indices = @transform_4, window_bounds = array<i64: 1, 16>}, {pipeline_mode = #tpu.pipeline_mode<synchronous>, transform_indices = @transform_5, window_bounds = array<i64: 144, 32>}, {pipeline_mode = #tpu.pipeline_mode<synchronous>, transform_indices = @transform_6, window_bounds = array<i64: 1, 32>}, {pipeline_mode = #tpu.pipeline_mode<synchronous>, transform_indices = @transform_7, window_bounds = array<i64: 8, 16>}, {pipeline_mode = #tpu.pipeline_mode<synchronous>, transform_indices = @transform_8, window_bounds = array<i64: 1, 16>}, {pipeline_mode = #tpu.pipeline_mode<synchronous>, transform_indices = @transform_9, window_bounds = array<i64: 16, 16>}, {pipeline_mode = #tpu.pipeline_mode<synchronous>, transform_indices = @transform_10, window_bounds = array<i64: 1, 16>}, {pipeline_mode = #tpu.pipeline_mode<synchronous>, transform_indices = @transform_11, window_bounds = array<i64: 32, 16>}, {pipeline_mode = #tpu.pipeline_mode<synchronous>, transform_indices = @transform_12, window_bounds = array<i64: 1, 16>}, {pipeline_mode = #tpu.pipeline_mode<synchronous>, transform_indices = @transform_13, window_bounds = array<i64: 144, 16>}, {pipeline_mode = #tpu.pipeline_mode<synchronous>, transform_indices = @transform_14, window_bounds = array<i64: 1, 16>}, {pipeline_mode = #tpu.pipeline_mode<synchronous>, transform_indices = @transform_15, window_bounds = array<i64: 144, 16>}, {pipeline_mode = #tpu.pipeline_mode<synchronous>, transform_indices = @transform_16, window_bounds = array<i64: 1, 16>}, {pipeline_mode = #tpu.pipeline_mode<synchronous>, transform_indices = @transform_17, window_bounds = array<i64: 144, 16>}, {pipeline_mode = #tpu.pipeline_mode<synchronous>, transform_indices = @transform_18, window_bounds = array<i64: 1, 16>}, {pipeline_mode = #tpu.pipeline_mode<synchronous>, transform_indices = @transform_19, window_bounds = array<i64: 64, 38>}, {pipeline_mode = #tpu.pipeline_mode<synchronous>, transform_indices = @transform_20, window_bounds = array<i64: 16, 18>}, {transform_indices = @transform_21, window_bounds = array<i64: 1, 80, 16>}, {transform_indices = @transform_22, window_bounds = array<i64: 1, 24, 16>}, {transform_indices = @transform_23, window_bounds = array<i64: 1, 8, 16>}]} {
    %cst = arith.constant 0.000000e+00 : f32
    %0 = vector.broadcast %cst : f32 to vector<100x8xf32>
    %c0 = arith.constant 0 : index
    %c0_0 = arith.constant 0 : index
    %1 = vector.load %arg25[%c0, %c0_0] : memref<100x8xf32, #tpu.memory_space<vmem>>, vector<100x8xf32>
    tpu.vector_store %arg25[%c0, %c0_0], %0 {strides = array<i32>} : memref<100x8xf32, #tpu.memory_space<vmem>>, vector<100x8xf32>,
    %cst_1 = arith.constant 0.000000e+00 : f32
    %2 = vector.broadcast %cst_1 : f32 to vector<36x16xf32>
    %c0_2 = arith.constant 0 : index
    %c0_3 = arith.constant 0 : index
    %3 = vector.load %arg26[%c0_2, %c0_3] : memref<36x16xf32, #tpu.memory_space<vmem>>, vector<36x16xf32>
    tpu.vector_store %arg26[%c0_2, %c0_3], %2 {strides = array<i32>} : memref<36x16xf32, #tpu.memory_space<vmem>>, vector<36x16xf32>,
    %cst_4 = arith.constant 0.000000e+00 : f32
    %4 = vector.broadcast %cst_4 : f32 to vector<102x16xf32>
    %c0_5 = arith.constant 0 : index
    %c0_6 = arith.constant 0 : index
    %5 = vector.load %arg27[%c0_5, %c0_6] : memref<102x16xf32, #tpu.memory_space<vmem>>, vector<102x16xf32>
    tpu.vector_store %arg27[%c0_5, %c0_6], %4 {strides = array<i32>} : memref<102x16xf32, #tpu.memory_space<vmem>>, vector<102x16xf32>,
    %cst_7 = arith.constant 0.000000e+00 : f32
    %6 = vector.broadcast %cst_7 : f32 to vector<38x16xf32>
    %c0_8 = arith.constant 0 : index
    %c0_9 = arith.constant 0 : index
    %7 = vector.load %arg28[%c0_8, %c0_9] : memref<38x16xf32, #tpu.memory_space<vmem>>, vector<38x16xf32>
    tpu.vector_store %arg28[%c0_8, %c0_9], %6 {strides = array<i32>} : memref<38x16xf32, #tpu.memory_space<vmem>>, vector<38x16xf32>,
    %cst_10 = arith.constant 0.000000e+00 : f32
    %8 = vector.broadcast %cst_10 : f32 to vector<18x16xf32>
    %c0_11 = arith.constant 0 : index
    %c0_12 = arith.constant 0 : index
    %9 = vector.load %arg29[%c0_11, %c0_12] : memref<18x16xf32, #tpu.memory_space<vmem>>, vector<18x16xf32>
    tpu.vector_store %arg29[%c0_11, %c0_12], %8 {strides = array<i32>} : memref<18x16xf32, #tpu.memory_space<vmem>>, vector<18x16xf32>,
    %c0_13 = arith.constant 0 : index
    %c0_14 = arith.constant 0 : index
    %c0_15 = arith.constant 0 : index
    %10 = tpu.strided_load %arg1[%c0_13, %c0_14, %c0_15] {strides = array<i32: 1, 2, 1>} : memref<1x324x4xf32, #tpu.memory_space<vmem>>, vector<1x134x4xf32>
    %11 = vector.shape_cast %10 : vector<1x134x4xf32> to vector<134x4xf32>
    %c0_16 = arith.constant 0 : index
    %c0_17 = arith.constant 0 : index
    %12 = vector.load %arg2[%c0_16, %c0_17] : memref<36x8xf32, #tpu.memory_space<vmem>>, vector<4x8xf32>
    %cst_18 = arith.constant dense<0.000000e+00> : vector<134x8xf32>
    %13 = tpu.matmul %11, %12, %cst_18 {dimension_numbers = #tpu.dot_dimension_numbers<[1], [0], [0], [1], [0, 0, 1, 1], [], []>} : vector<134x4xf32>, vector<4x8xf32>, vector<134x8xf32> -> vector<134x8xf32>
    %c0_19 = arith.constant 0 : index
    %c1 = arith.constant 1 : index
    %c0_20 = arith.constant 0 : index
    %14 = tpu.strided_load %arg1[%c0_19, %c1, %c0_20] {strides = array<i32: 1, 2, 1>} : memref<1x324x4xf32, #tpu.memory_space<vmem>>, vector<1x134x4xf32>
    %15 = vector.shape_cast %14 : vector<1x134x4xf32> to vector<134x4xf32>
    %c4 = arith.constant 4 : index
    %c0_21 = arith.constant 0 : index
    %16 = vector.load %arg2[%c4, %c0_21] : memref<36x8xf32, #tpu.memory_space<vmem>>, vector<4x8xf32>
    %cst_22 = arith.constant dense<0.000000e+00> : vector<134x8xf32>
    %17 = tpu.matmul %15, %16, %cst_22 {dimension_numbers = #tpu.dot_dimension_numbers<[1], [0], [0], [1], [0, 0, 1, 1], [], []>} : vector<134x4xf32>, vector<4x8xf32>, vector<134x8xf32> -> vector<134x8xf32>
    %18 = arith.addf %13, %17 : vector<134x8xf32>
    %c0_23 = arith.constant 0 : index
    %c2 = arith.constant 2 : index
    %c0_24 = arith.constant 0 : index
    %19 = tpu.strided_load %arg1[%c0_23, %c2, %c0_24] {strides = array<i32: 1, 2, 1>} : memref<1x324x4xf32, #tpu.memory_space<vmem>>, vector<1x134x4xf32>
    %20 = vector.shape_cast %19 : vector<1x134x4xf32> to vector<134x4xf32>
    %c8 = arith.constant 8 : index
    %c0_25 = arith.constant 0 : index
    %21 = vector.load %arg2[%c8, %c0_25] : memref<36x8xf32, #tpu.memory_space<vmem>>, vector<4x8xf32>
    %cst_26 = arith.constant dense<0.000000e+00> : vector<134x8xf32>
    %22 = tpu.matmul %20, %21, %cst_26 {dimension_numbers = #tpu.dot_dimension_numbers<[1], [0], [0], [1], [0, 0, 1, 1], [], []>} : vector<134x4xf32>, vector<4x8xf32>, vector<134x8xf32> -> vector<134x8xf32>
    %23 = arith.addf %18, %22 : vector<134x8xf32>
    %c0_27 = arith.constant 0 : index
    %c18 = arith.constant 18 : index
    %c0_28 = arith.constant 0 : index
    %24 = tpu.strided_load %arg1[%c0_27, %c18, %c0_28] {strides = array<i32: 1, 2, 1>} : memref<1x324x4xf32, #tpu.memory_space<vmem>>, vector<1x134x4xf32>
    %25 = vector.shape_cast %24 : vector<1x134x4xf32> to vector<134x4xf32>
    %c12 = arith.constant 12 : index
    %c0_29 = arith.constant 0 : index
    %26 = vector.load %arg2[%c12, %c0_29] : memref<36x8xf32, #tpu.memory_space<vmem>>, vector<4x8xf32>
    %cst_30 = arith.constant dense<0.000000e+00> : vector<134x8xf32>
    %27 = tpu.matmul %25, %26, %cst_30 {dimension_numbers = #tpu.dot_dimension_numbers<[1], [0], [0], [1], [0, 0, 1, 1], [], []>} : vector<134x4xf32>, vector<4x8xf32>, vector<134x8xf32> -> vector<134x8xf32>
    %28 = arith.addf %23, %27 : vector<134x8xf32>
    %c0_31 = arith.constant 0 : index
    %c19 = arith.constant 19 : index
    %c0_32 = arith.constant 0 : index
    %29 = tpu.strided_load %arg1[%c0_31, %c19, %c0_32] {strides = array<i32: 1, 2, 1>} : memref<1x324x4xf32, #tpu.memory_space<vmem>>, vector<1x134x4xf32>
    %30 = vector.shape_cast %29 : vector<1x134x4xf32> to vector<134x4xf32>
    %c16 = arith.constant 16 : index
    %c0_33 = arith.constant 0 : index
    %31 = vector.load %arg2[%c16, %c0_33] : memref<36x8xf32, #tpu.memory_space<vmem>>, vector<4x8xf32>
    %cst_34 = arith.constant dense<0.000000e+00> : vector<134x8xf32>
    %32 = tpu.matmul %30, %31, %cst_34 {dimension_numbers = #tpu.dot_dimension_numbers<[1], [0], [0], [1], [0, 0, 1, 1], [], []>} : vector<134x4xf32>, vector<4x8xf32>, vector<134x8xf32> -> vector<134x8xf32>
    %33 = arith.addf %28, %32 : vector<134x8xf32>
    %c0_35 = arith.constant 0 : index
    %c20 = arith.constant 20 : index
    %c0_36 = arith.constant 0 : index
    %34 = tpu.strided_load %arg1[%c0_35, %c20, %c0_36] {strides = array<i32: 1, 2, 1>} : memref<1x324x4xf32, #tpu.memory_space<vmem>>, vector<1x134x4xf32>
    %35 = vector.shape_cast %34 : vector<1x134x4xf32> to vector<134x4xf32>
    %c20_37 = arith.constant 20 : index
    %c0_38 = arith.constant 0 : index
    %36 = vector.load %arg2[%c20_37, %c0_38] : memref<36x8xf32, #tpu.memory_space<vmem>>, vector<4x8xf32>
    %cst_39 = arith.constant dense<0.000000e+00> : vector<134x8xf32>
    %37 = tpu.matmul %35, %36, %cst_39 {dimension_numbers = #tpu.dot_dimension_numbers<[1], [0], [0], [1], [0, 0, 1, 1], [], []>} : vector<134x4xf32>, vector<4x8xf32>, vector<134x8xf32> -> vector<134x8xf32>
    %38 = arith.addf %33, %37 : vector<134x8xf32>
    %c0_40 = arith.constant 0 : index
    %c36 = arith.constant 36 : index
    %c0_41 = arith.constant 0 : index
    %39 = tpu.strided_load %arg1[%c0_40, %c36, %c0_41] {strides = array<i32: 1, 2, 1>} : memref<1x324x4xf32, #tpu.memory_space<vmem>>, vector<1x134x4xf32>
    %40 = vector.shape_cast %39 : vector<1x134x4xf32> to vector<134x4xf32>
    %c24 = arith.constant 24 : index
    %c0_42 = arith.constant 0 : index
    %41 = vector.load %arg2[%c24, %c0_42] : memref<36x8xf32, #tpu.memory_space<vmem>>, vector<4x8xf32>
    %cst_43 = arith.constant dense<0.000000e+00> : vector<134x8xf32>
    %42 = tpu.matmul %40, %41, %cst_43 {dimension_numbers = #tpu.dot_dimension_numbers<[1], [0], [0], [1], [0, 0, 1, 1], [], []>} : vector<134x4xf32>, vector<4x8xf32>, vector<134x8xf32> -> vector<134x8xf32>
    %43 = arith.addf %38, %42 : vector<134x8xf32>
    %c0_44 = arith.constant 0 : index
    %c37 = arith.constant 37 : index
    %c0_45 = arith.constant 0 : index
    %44 = tpu.strided_load %arg1[%c0_44, %c37, %c0_45] {strides = array<i32: 1, 2, 1>} : memref<1x324x4xf32, #tpu.memory_space<vmem>>, vector<1x134x4xf32>
    %45 = vector.shape_cast %44 : vector<1x134x4xf32> to vector<134x4xf32>
    %c28 = arith.constant 28 : index
    %c0_46 = arith.constant 0 : index
    %46 = vector.load %arg2[%c28, %c0_46] : memref<36x8xf32, #tpu.memory_space<vmem>>, vector<4x8xf32>
    %cst_47 = arith.constant dense<0.000000e+00> : vector<134x8xf32>
    %47 = tpu.matmul %45, %46, %cst_47 {dimension_numbers = #tpu.dot_dimension_numbers<[1], [0], [0], [1], [0, 0, 1, 1], [], []>} : vector<134x4xf32>, vector<4x8xf32>, vector<134x8xf32> -> vector<134x8xf32>
    %48 = arith.addf %43, %47 : vector<134x8xf32>
    %c0_48 = arith.constant 0 : index
    %c38 = arith.constant 38 : index
    %c0_49 = arith.constant 0 : index
    %49 = tpu.strided_load %arg1[%c0_48, %c38, %c0_49] {strides = array<i32: 1, 2, 1>} : memref<1x324x4xf32, #tpu.memory_space<vmem>>, vector<1x134x4xf32>
    %50 = vector.shape_cast %49 : vector<1x134x4xf32> to vector<134x4xf32>
    %c32 = arith.constant 32 : index
    %c0_50 = arith.constant 0 : index
    %51 = vector.load %arg2[%c32, %c0_50] : memref<36x8xf32, #tpu.memory_space<vmem>>, vector<4x8xf32>
    %cst_51 = arith.constant dense<0.000000e+00> : vector<134x8xf32>
    %52 = tpu.matmul %50, %51, %cst_51 {dimension_numbers = #tpu.dot_dimension_numbers<[1], [0], [0], [1], [0, 0, 1, 1], [], []>} : vector<134x4xf32>, vector<4x8xf32>, vector<134x8xf32> -> vector<134x8xf32>
    %53 = arith.addf %48, %52 : vector<134x8xf32>
    %c0_52 = arith.constant 0 : index
    %c0_53 = arith.constant 0 : index
    %54 = vector.load %arg3[%c0_52, %c0_53] : memref<1x8xf32, #tpu.memory_space<vmem>>, vector<1x8xf32>
    %55 = vector.broadcast %54 : vector<1x8xf32> to vector<134x8xf32>
    %56 = arith.addf %53, %55 : vector<134x8xf32>
    %cst_54 = arith.constant 0.000000e+00 : f32
    %57 = vector.broadcast %cst_54 : f32 to vector<134x8xf32>
    %58 = arith.maximumf %56, %57 : vector<134x8xf32>
    %59 = vector.extract_strided_slice %58 {offsets = [0, 0], sizes = [8, 8], strides = [1, 1]} : vector<134x8xf32> to vector<8x8xf32>
    %c11 = arith.constant 11 : index
    %c0_55 = arith.constant 0 : index
    %60 = vector.load %arg25[%c11, %c0_55] : memref<100x8xf32, #tpu.memory_space<vmem>>, vector<8x8xf32>
    tpu.vector_store %arg25[%c11, %c0_55], %59 {strides = array<i32>} : memref<100x8xf32, #tpu.memory_space<vmem>>, vector<8x8xf32>,
    %61 = vector.extract_strided_slice %58 {offsets = [18, 0], sizes = [8, 8], strides = [1, 1]} : vector<134x8xf32> to vector<8x8xf32>
    %c21 = arith.constant 21 : index
    %c0_56 = arith.constant 0 : index
    %62 = vector.load %arg25[%c21, %c0_56] : memref<100x8xf32, #tpu.memory_space<vmem>>, vector<8x8xf32>
    tpu.vector_store %arg25[%c21, %c0_56], %61 {strides = array<i32>} : memref<100x8xf32, #tpu.memory_space<vmem>>, vector<8x8xf32>,
    %63 = vector.extract_strided_slice %58 {offsets = [36, 0], sizes = [8, 8], strides = [1, 1]} : vector<134x8xf32> to vector<8x8xf32>
    %c31 = arith.constant 31 : index
    %c0_57 = arith.constant 0 : index
    %64 = vector.load %arg25[%c31, %c0_57] : memref<100x8xf32, #tpu.memory_space<vmem>>, vector<8x8xf32>
    tpu.vector_store %arg25[%c31, %c0_57], %63 {strides = array<i32>} : memref<100x8xf32, #tpu.memory_space<vmem>>, vector<8x8xf32>,
    %65 = vector.extract_strided_slice %58 {offsets = [54, 0], sizes = [8, 8], strides = [1, 1]} : vector<134x8xf32> to vector<8x8xf32>
    %c41 = arith.constant 41 : index
    %c0_58 = arith.constant 0 : index
    %66 = vector.load %arg25[%c41, %c0_58] : memref<100x8xf32, #tpu.memory_space<vmem>>, vector<8x8xf32>
    tpu.vector_store %arg25[%c41, %c0_58], %65 {strides = array<i32>} : memref<100x8xf32, #tpu.memory_space<vmem>>, vector<8x8xf32>,
    %67 = vector.extract_strided_slice %58 {offsets = [72, 0], sizes = [8, 8], strides = [1, 1]} : vector<134x8xf32> to vector<8x8xf32>
    %c51 = arith.constant 51 : index
    %c0_59 = arith.constant 0 : index
    %68 = vector.load %arg25[%c51, %c0_59] : memref<100x8xf32, #tpu.memory_space<vmem>>, vector<8x8xf32>
    tpu.vector_store %arg25[%c51, %c0_59], %67 {strides = array<i32>} : memref<100x8xf32, #tpu.memory_space<vmem>>, vector<8x8xf32>,
    %69 = vector.extract_strided_slice %58 {offsets = [90, 0], sizes = [8, 8], strides = [1, 1]} : vector<134x8xf32> to vector<8x8xf32>
    %c61 = arith.constant 61 : index
    %c0_60 = arith.constant 0 : index
    %70 = vector.load %arg25[%c61, %c0_60] : memref<100x8xf32, #tpu.memory_space<vmem>>, vector<8x8xf32>
    tpu.vector_store %arg25[%c61, %c0_60], %69 {strides = array<i32>} : memref<100x8xf32, #tpu.memory_space<vmem>>, vector<8x8xf32>,
    %71 = vector.extract_strided_slice %58 {offsets = [108, 0], sizes = [8, 8], strides = [1, 1]} : vector<134x8xf32> to vector<8x8xf32>
    %c71 = arith.constant 71 : index
    %c0_61 = arith.constant 0 : index
    %72 = vector.load %arg25[%c71, %c0_61] : memref<100x8xf32, #tpu.memory_space<vmem>>, vector<8x8xf32>
    tpu.vector_store %arg25[%c71, %c0_61], %71 {strides = array<i32>} : memref<100x8xf32, #tpu.memory_space<vmem>>, vector<8x8xf32>,
    %73 = vector.extract_strided_slice %58 {offsets = [126, 0], sizes = [8, 8], strides = [1, 1]} : vector<134x8xf32> to vector<8x8xf32>
    %c81 = arith.constant 81 : index
    %c0_62 = arith.constant 0 : index
    %74 = vector.load %arg25[%c81, %c0_62] : memref<100x8xf32, #tpu.memory_space<vmem>>, vector<8x8xf32>
    tpu.vector_store %arg25[%c81, %c0_62], %73 {strides = array<i32>} : memref<100x8xf32, #tpu.memory_space<vmem>>, vector<8x8xf32>,
    %c0_63 = arith.constant 0 : index
    %c0_64 = arith.constant 0 : index
    %75 = vector.load %arg8[%c0_63, %c0_64] : memref<8x16xf32, #tpu.memory_space<vmem>>, vector<8x16xf32>
    %cst_65 = arith.constant dense<0.000000e+00> : vector<134x16xf32>
    %76 = tpu.matmul %58, %75, %cst_65 {dimension_numbers = #tpu.dot_dimension_numbers<[1], [0], [0], [1], [0, 0, 1, 1], [], []>} : vector<134x8xf32>, vector<8x16xf32>, vector<134x16xf32> -> vector<134x16xf32>
    %c0_66 = arith.constant 0 : index
    %c0_67 = arith.constant 0 : index
    %77 = vector.load %arg9[%c0_66, %c0_67] : memref<1x16xf32, #tpu.memory_space<vmem>>, vector<1x16xf32>
    %78 = vector.broadcast %77 : vector<1x16xf32> to vector<134x16xf32>
    %79 = arith.addf %76, %78 : vector<134x16xf32>
    %c0_68 = arith.constant 0 : index
    %c0_69 = arith.constant 0 : index
    %80 = tpu.strided_load %arg25[%c0_68, %c0_69] {strides = array<i32: 2, 1>} : memref<100x8xf32, #tpu.memory_space<vmem>>, vector<34x8xf32>
    %c0_70 = arith.constant 0 : index
    %c0_71 = arith.constant 0 : index
    %81 = vector.load %arg4[%c0_70, %c0_71] : memref<72x16xf32, #tpu.memory_space<vmem>>, vector<8x16xf32>
    %cst_72 = arith.constant dense<0.000000e+00> : vector<34x16xf32>
    %82 = tpu.matmul %80, %81, %cst_72 {dimension_numbers = #tpu.dot_dimension_numbers<[1], [0], [0], [1], [0, 0, 1, 1], [], []>} : vector<34x8xf32>, vector<8x16xf32>, vector<34x16xf32> -> vector<34x16xf32>
    %c1_73 = arith.constant 1 : index
    %c0_74 = arith.constant 0 : index
    %83 = tpu.strided_load %arg25[%c1_73, %c0_74] {strides = array<i32: 2, 1>} : memref<100x8xf32, #tpu.memory_space<vmem>>, vector<34x8xf32>
    %c8_75 = arith.constant 8 : index
    %c0_76 = arith.constant 0 : index
    %84 = vector.load %arg4[%c8_75, %c0_76] : memref<72x16xf32, #tpu.memory_space<vmem>>, vector<8x16xf32>
    %cst_77 = arith.constant dense<0.000000e+00> : vector<34x16xf32>
    %85 = tpu.matmul %83, %84, %cst_77 {dimension_numbers = #tpu.dot_dimension_numbers<[1], [0], [0], [1], [0, 0, 1, 1], [], []>} : vector<34x8xf32>, vector<8x16xf32>, vector<34x16xf32> -> vector<34x16xf32>
    %86 = arith.addf %82, %85 : vector<34x16xf32>
    %c2_78 = arith.constant 2 : index
    %c0_79 = arith.constant 0 : index
    %87 = tpu.strided_load %arg25[%c2_78, %c0_79] {strides = array<i32: 2, 1>} : memref<100x8xf32, #tpu.memory_space<vmem>>, vector<34x8xf32>
    %c16_80 = arith.constant 16 : index
    %c0_81 = arith.constant 0 : index
    %88 = vector.load %arg4[%c16_80, %c0_81] : memref<72x16xf32, #tpu.memory_space<vmem>>, vector<8x16xf32>
    %cst_82 = arith.constant dense<0.000000e+00> : vector<34x16xf32>
    %89 = tpu.matmul %87, %88, %cst_82 {dimension_numbers = #tpu.dot_dimension_numbers<[1], [0], [0], [1], [0, 0, 1, 1], [], []>} : vector<34x8xf32>, vector<8x16xf32>, vector<34x16xf32> -> vector<34x16xf32>
    %90 = arith.addf %86, %89 : vector<34x16xf32>
    %c10 = arith.constant 10 : index
    %c0_83 = arith.constant 0 : index
    %91 = tpu.strided_load %arg25[%c10, %c0_83] {strides = array<i32: 2, 1>} : memref<100x8xf32, #tpu.memory_space<vmem>>, vector<34x8xf32>
    %c24_84 = arith.constant 24 : index
    %c0_85 = arith.constant 0 : index
    %92 = vector.load %arg4[%c24_84, %c0_85] : memref<72x16xf32, #tpu.memory_space<vmem>>, vector<8x16xf32>
    %cst_86 = arith.constant dense<0.000000e+00> : vector<34x16xf32>
    %93 = tpu.matmul %91, %92, %cst_86 {dimension_numbers = #tpu.dot_dimension_numbers<[1], [0], [0], [1], [0, 0, 1, 1], [], []>} : vector<34x8xf32>, vector<8x16xf32>, vector<34x16xf32> -> vector<34x16xf32>
    %94 = arith.addf %90, %93 : vector<34x16xf32>
    %c11_87 = arith.constant 11 : index
    %c0_88 = arith.constant 0 : index
    %95 = tpu.strided_load %arg25[%c11_87, %c0_88] {strides = array<i32: 2, 1>} : memref<100x8xf32, #tpu.memory_space<vmem>>, vector<34x8xf32>
    %c32_89 = arith.constant 32 : index
    %c0_90 = arith.constant 0 : index
    %96 = vector.load %arg4[%c32_89, %c0_90] : memref<72x16xf32, #tpu.memory_space<vmem>>, vector<8x16xf32>
    %cst_91 = arith.constant dense<0.000000e+00> : vector<34x16xf32>
    %97 = tpu.matmul %95, %96, %cst_91 {dimension_numbers = #tpu.dot_dimension_numbers<[1], [0], [0], [1], [0, 0, 1, 1], [], []>} : vector<34x8xf32>, vector<8x16xf32>, vector<34x16xf32> -> vector<34x16xf32>
    %98 = arith.addf %94, %97 : vector<34x16xf32>
    %c12_92 = arith.constant 12 : index
    %c0_93 = arith.constant 0 : index
    %99 = tpu.strided_load %arg25[%c12_92, %c0_93] {strides = array<i32: 2, 1>} : memref<100x8xf32, #tpu.memory_space<vmem>>, vector<34x8xf32>
    %c40 = arith.constant 40 : index
    %c0_94 = arith.constant 0 : index
    %100 = vector.load %arg4[%c40, %c0_94] : memref<72x16xf32, #tpu.memory_space<vmem>>, vector<8x16xf32>
    %cst_95 = arith.constant dense<0.000000e+00> : vector<34x16xf32>
    %101 = tpu.matmul %99, %100, %cst_95 {dimension_numbers = #tpu.dot_dimension_numbers<[1], [0], [0], [1], [0, 0, 1, 1], [], []>} : vector<34x8xf32>, vector<8x16xf32>, vector<34x16xf32> -> vector<34x16xf32>
    %102 = arith.addf %98, %101 : vector<34x16xf32>
    %c20_96 = arith.constant 20 : index
    %c0_97 = arith.constant 0 : index
    %103 = tpu.strided_load %arg25[%c20_96, %c0_97] {strides = array<i32: 2, 1>} : memref<100x8xf32, #tpu.memory_space<vmem>>, vector<34x8xf32>
    %c48 = arith.constant 48 : index
    %c0_98 = arith.constant 0 : index
    %104 = vector.load %arg4[%c48, %c0_98] : memref<72x16xf32, #tpu.memory_space<vmem>>, vector<8x16xf32>
    %cst_99 = arith.constant dense<0.000000e+00> : vector<34x16xf32>
    %105 = tpu.matmul %103, %104, %cst_99 {dimension_numbers = #tpu.dot_dimension_numbers<[1], [0], [0], [1], [0, 0, 1, 1], [], []>} : vector<34x8xf32>, vector<8x16xf32>, vector<34x16xf32> -> vector<34x16xf32>
    %106 = arith.addf %102, %105 : vector<34x16xf32>
    %c21_100 = arith.constant 21 : index
    %c0_101 = arith.constant 0 : index
    %107 = tpu.strided_load %arg25[%c21_100, %c0_101] {strides = array<i32: 2, 1>} : memref<100x8xf32, #tpu.memory_space<vmem>>, vector<34x8xf32>
    %c56 = arith.constant 56 : index
    %c0_102 = arith.constant 0 : index
    %108 = vector.load %arg4[%c56, %c0_102] : memref<72x16xf32, #tpu.memory_space<vmem>>, vector<8x16xf32>
    %cst_103 = arith.constant dense<0.000000e+00> : vector<34x16xf32>
    %109 = tpu.matmul %107, %108, %cst_103 {dimension_numbers = #tpu.dot_dimension_numbers<[1], [0], [0], [1], [0, 0, 1, 1], [], []>} : vector<34x8xf32>, vector<8x16xf32>, vector<34x16xf32> -> vector<34x16xf32>
    %110 = arith.addf %106, %109 : vector<34x16xf32>
    %c22 = arith.constant 22 : index
    %c0_104 = arith.constant 0 : index
    %111 = tpu.strided_load %arg25[%c22, %c0_104] {strides = array<i32: 2, 1>} : memref<100x8xf32, #tpu.memory_space<vmem>>, vector<34x8xf32>
    %c64 = arith.constant 64 : index
    %c0_105 = arith.constant 0 : index
    %112 = vector.load %arg4[%c64, %c0_105] : memref<72x16xf32, #tpu.memory_space<vmem>>, vector<8x16xf32>
    %cst_106 = arith.constant dense<0.000000e+00> : vector<34x16xf32>
    %113 = tpu.matmul %111, %112, %cst_106 {dimension_numbers = #tpu.dot_dimension_numbers<[1], [0], [0], [1], [0, 0, 1, 1], [], []>} : vector<34x8xf32>, vector<8x16xf32>, vector<34x16xf32> -> vector<34x16xf32>
    %114 = arith.addf %110, %113 : vector<34x16xf32>
    %c0_107 = arith.constant 0 : index
    %c0_108 = arith.constant 0 : index
    %115 = vector.load %arg5[%c0_107, %c0_108] : memref<1x16xf32, #tpu.memory_space<vmem>>, vector<1x16xf32>
    %116 = vector.broadcast %115 : vector<1x16xf32> to vector<34x16xf32>
    %117 = arith.addf %114, %116 : vector<34x16xf32>
    %cst_109 = arith.constant 0.000000e+00 : f32
    %118 = vector.broadcast %cst_109 : f32 to vector<34x16xf32>
    %119 = arith.maximumf %117, %118 : vector<34x16xf32>
    %120 = vector.extract_strided_slice %119 {offsets = [0, 0], sizes = [4, 16], strides = [1, 1]} : vector<34x16xf32> to vector<4x16xf32>
    %c7 = arith.constant 7 : index
    %c0_110 = arith.constant 0 : index
    %121 = vector.load %arg26[%c7, %c0_110] : memref<36x16xf32, #tpu.memory_space<vmem>>, vector<4x16xf32>
    tpu.vector_store %arg26[%c7, %c0_110], %120 {strides = array<i32>} : memref<36x16xf32, #tpu.memory_space<vmem>>, vector<4x16xf32>,
    %122 = vector.extract_strided_slice %119 {offsets = [10, 0], sizes = [4, 16], strides = [1, 1]} : vector<34x16xf32> to vector<4x16xf32>
    %c13 = arith.constant 13 : index
    %c0_111 = arith.constant 0 : index
    %123 = vector.load %arg26[%c13, %c0_111] : memref<36x16xf32, #tpu.memory_space<vmem>>, vector<4x16xf32>
    tpu.vector_store %arg26[%c13, %c0_111], %122 {strides = array<i32>} : memref<36x16xf32, #tpu.memory_space<vmem>>, vector<4x16xf32>,
    %124 = vector.extract_strided_slice %119 {offsets = [20, 0], sizes = [4, 16], strides = [1, 1]} : vector<34x16xf32> to vector<4x16xf32>
    %c19_112 = arith.constant 19 : index
    %c0_113 = arith.constant 0 : index
    %125 = vector.load %arg26[%c19_112, %c0_113] : memref<36x16xf32, #tpu.memory_space<vmem>>, vector<4x16xf32>
    tpu.vector_store %arg26[%c19_112, %c0_113], %124 {strides = array<i32>} : memref<36x16xf32, #tpu.memory_space<vmem>>, vector<4x16xf32>,
    %126 = vector.extract_strided_slice %119 {offsets = [30, 0], sizes = [4, 16], strides = [1, 1]} : vector<34x16xf32> to vector<4x16xf32>
    %c25 = arith.constant 25 : index
    %c0_114 = arith.constant 0 : index
    %127 = vector.load %arg26[%c25, %c0_114] : memref<36x16xf32, #tpu.memory_space<vmem>>, vector<4x16xf32>
    tpu.vector_store %arg26[%c25, %c0_114], %126 {strides = array<i32>} : memref<36x16xf32, #tpu.memory_space<vmem>>, vector<4x16xf32>,
    %c0_115 = arith.constant 0 : index
    %c0_116 = arith.constant 0 : index
    %128 = vector.load %arg10[%c0_115, %c0_116] : memref<16x16xf32, #tpu.memory_space<vmem>>, vector<16x16xf32>
    %cst_117 = arith.constant dense<0.000000e+00> : vector<34x16xf32>
    %129 = tpu.matmul %119, %128, %cst_117 {dimension_numbers = #tpu.dot_dimension_numbers<[1], [0], [0], [1], [0, 0, 1, 1], [], []>} : vector<34x16xf32>, vector<16x16xf32>, vector<34x16xf32> -> vector<34x16xf32>
    %c0_118 = arith.constant 0 : index
    %c0_119 = arith.constant 0 : index
    %130 = vector.load %arg11[%c0_118, %c0_119] : memref<1x16xf32, #tpu.memory_space<vmem>>, vector<1x16xf32>
    %131 = vector.broadcast %130 : vector<1x16xf32> to vector<34x16xf32>
    %132 = arith.addf %129, %131 : vector<34x16xf32>
    %c0_120 = arith.constant 0 : index
    %c0_121 = arith.constant 0 : index
    %133 = tpu.strided_load %arg26[%c0_120, %c0_121] {strides = array<i32: 2, 1>} : memref<36x16xf32, #tpu.memory_space<vmem>>, vector<8x16xf32>
    %c0_122 = arith.constant 0 : index
    %c0_123 = arith.constant 0 : index
    %134 = vector.load %arg6[%c0_122, %c0_123] : memref<144x32xf32, #tpu.memory_space<vmem>>, vector<16x32xf32>
    %cst_124 = arith.constant dense<0.000000e+00> : vector<8x32xf32>
    %135 = tpu.matmul %133, %134, %cst_124 {dimension_numbers = #tpu.dot_dimension_numbers<[1], [0], [0], [1], [0, 0, 1, 1], [], []>} : vector<8x16xf32>, vector<16x32xf32>, vector<8x32xf32> -> vector<8x32xf32>
    %c1_125 = arith.constant 1 : index
    %c0_126 = arith.constant 0 : index
    %136 = tpu.strided_load %arg26[%c1_125, %c0_126] {strides = array<i32: 2, 1>} : memref<36x16xf32, #tpu.memory_space<vmem>>, vector<8x16xf32>
    %c16_127 = arith.constant 16 : index
    %c0_128 = arith.constant 0 : index
    %137 = vector.load %arg6[%c16_127, %c0_128] : memref<144x32xf32, #tpu.memory_space<vmem>>, vector<16x32xf32>
    %cst_129 = arith.constant dense<0.000000e+00> : vector<8x32xf32>
    %138 = tpu.matmul %136, %137, %cst_129 {dimension_numbers = #tpu.dot_dimension_numbers<[1], [0], [0], [1], [0, 0, 1, 1], [], []>} : vector<8x16xf32>, vector<16x32xf32>, vector<8x32xf32> -> vector<8x32xf32>
    %139 = arith.addf %135, %138 : vector<8x32xf32>
    %c2_130 = arith.constant 2 : index
    %c0_131 = arith.constant 0 : index
    %140 = tpu.strided_load %arg26[%c2_130, %c0_131] {strides = array<i32: 2, 1>} : memref<36x16xf32, #tpu.memory_space<vmem>>, vector<8x16xf32>
    %c32_132 = arith.constant 32 : index
    %c0_133 = arith.constant 0 : index
    %141 = vector.load %arg6[%c32_132, %c0_133] : memref<144x32xf32, #tpu.memory_space<vmem>>, vector<16x32xf32>
    %cst_134 = arith.constant dense<0.000000e+00> : vector<8x32xf32>
    %142 = tpu.matmul %140, %141, %cst_134 {dimension_numbers = #tpu.dot_dimension_numbers<[1], [0], [0], [1], [0, 0, 1, 1], [], []>} : vector<8x16xf32>, vector<16x32xf32>, vector<8x32xf32> -> vector<8x32xf32>
    %143 = arith.addf %139, %142 : vector<8x32xf32>
    %c6 = arith.constant 6 : index
    %c0_135 = arith.constant 0 : index
    %144 = tpu.strided_load %arg26[%c6, %c0_135] {strides = array<i32: 2, 1>} : memref<36x16xf32, #tpu.memory_space<vmem>>, vector<8x16xf32>
    %c48_136 = arith.constant 48 : index
    %c0_137 = arith.constant 0 : index
    %145 = vector.load %arg6[%c48_136, %c0_137] : memref<144x32xf32, #tpu.memory_space<vmem>>, vector<16x32xf32>
    %cst_138 = arith.constant dense<0.000000e+00> : vector<8x32xf32>
    %146 = tpu.matmul %144, %145, %cst_138 {dimension_numbers = #tpu.dot_dimension_numbers<[1], [0], [0], [1], [0, 0, 1, 1], [], []>} : vector<8x16xf32>, vector<16x32xf32>, vector<8x32xf32> -> vector<8x32xf32>
    %147 = arith.addf %143, %146 : vector<8x32xf32>
    %c7_139 = arith.constant 7 : index
    %c0_140 = arith.constant 0 : index
    %148 = tpu.strided_load %arg26[%c7_139, %c0_140] {strides = array<i32: 2, 1>} : memref<36x16xf32, #tpu.memory_space<vmem>>, vector<8x16xf32>
    %c64_141 = arith.constant 64 : index
    %c0_142 = arith.constant 0 : index
    %149 = vector.load %arg6[%c64_141, %c0_142] : memref<144x32xf32, #tpu.memory_space<vmem>>, vector<16x32xf32>
    %cst_143 = arith.constant dense<0.000000e+00> : vector<8x32xf32>
    %150 = tpu.matmul %148, %149, %cst_143 {dimension_numbers = #tpu.dot_dimension_numbers<[1], [0], [0], [1], [0, 0, 1, 1], [], []>} : vector<8x16xf32>, vector<16x32xf32>, vector<8x32xf32> -> vector<8x32xf32>
    %151 = arith.addf %147, %150 : vector<8x32xf32>
    %c8_144 = arith.constant 8 : index
    %c0_145 = arith.constant 0 : index
    %152 = tpu.strided_load %arg26[%c8_144, %c0_145] {strides = array<i32: 2, 1>} : memref<36x16xf32, #tpu.memory_space<vmem>>, vector<8x16xf32>
    %c80 = arith.constant 80 : index
    %c0_146 = arith.constant 0 : index
    %153 = vector.load %arg6[%c80, %c0_146] : memref<144x32xf32, #tpu.memory_space<vmem>>, vector<16x32xf32>
    %cst_147 = arith.constant dense<0.000000e+00> : vector<8x32xf32>
    %154 = tpu.matmul %152, %153, %cst_147 {dimension_numbers = #tpu.dot_dimension_numbers<[1], [0], [0], [1], [0, 0, 1, 1], [], []>} : vector<8x16xf32>, vector<16x32xf32>, vector<8x32xf32> -> vector<8x32xf32>
    %155 = arith.addf %151, %154 : vector<8x32xf32>
    %c12_148 = arith.constant 12 : index
    %c0_149 = arith.constant 0 : index
    %156 = tpu.strided_load %arg26[%c12_148, %c0_149] {strides = array<i32: 2, 1>} : memref<36x16xf32, #tpu.memory_space<vmem>>, vector<8x16xf32>
    %c96 = arith.constant 96 : index
    %c0_150 = arith.constant 0 : index
    %157 = vector.load %arg6[%c96, %c0_150] : memref<144x32xf32, #tpu.memory_space<vmem>>, vector<16x32xf32>
    %cst_151 = arith.constant dense<0.000000e+00> : vector<8x32xf32>
    %158 = tpu.matmul %156, %157, %cst_151 {dimension_numbers = #tpu.dot_dimension_numbers<[1], [0], [0], [1], [0, 0, 1, 1], [], []>} : vector<8x16xf32>, vector<16x32xf32>, vector<8x32xf32> -> vector<8x32xf32>
    %159 = arith.addf %155, %158 : vector<8x32xf32>
    %c13_152 = arith.constant 13 : index
    %c0_153 = arith.constant 0 : index
    %160 = tpu.strided_load %arg26[%c13_152, %c0_153] {strides = array<i32: 2, 1>} : memref<36x16xf32, #tpu.memory_space<vmem>>, vector<8x16xf32>
    %c112 = arith.constant 112 : index
    %c0_154 = arith.constant 0 : index
    %161 = vector.load %arg6[%c112, %c0_154] : memref<144x32xf32, #tpu.memory_space<vmem>>, vector<16x32xf32>
    %cst_155 = arith.constant dense<0.000000e+00> : vector<8x32xf32>
    %162 = tpu.matmul %160, %161, %cst_155 {dimension_numbers = #tpu.dot_dimension_numbers<[1], [0], [0], [1], [0, 0, 1, 1], [], []>} : vector<8x16xf32>, vector<16x32xf32>, vector<8x32xf32> -> vector<8x32xf32>
    %163 = arith.addf %159, %162 : vector<8x32xf32>
    %c14 = arith.constant 14 : index
    %c0_156 = arith.constant 0 : index
    %164 = tpu.strided_load %arg26[%c14, %c0_156] {strides = array<i32: 2, 1>} : memref<36x16xf32, #tpu.memory_space<vmem>>, vector<8x16xf32>
    %c128 = arith.constant 128 : index
    %c0_157 = arith.constant 0 : index
    %165 = vector.load %arg6[%c128, %c0_157] : memref<144x32xf32, #tpu.memory_space<vmem>>, vector<16x32xf32>
    %cst_158 = arith.constant dense<0.000000e+00> : vector<8x32xf32>
    %166 = tpu.matmul %164, %165, %cst_158 {dimension_numbers = #tpu.dot_dimension_numbers<[1], [0], [0], [1], [0, 0, 1, 1], [], []>} : vector<8x16xf32>, vector<16x32xf32>, vector<8x32xf32> -> vector<8x32xf32>
    %167 = arith.addf %163, %166 : vector<8x32xf32>
    %c0_159 = arith.constant 0 : index
    %c0_160 = arith.constant 0 : index
    %168 = vector.load %arg7[%c0_159, %c0_160] : memref<1x32xf32, #tpu.memory_space<vmem>>, vector<1x32xf32>
    %169 = vector.broadcast %168 : vector<1x32xf32> to vector<8x32xf32>
    %170 = arith.addf %167, %169 : vector<8x32xf32>
    %cst_161 = arith.constant 0.000000e+00 : f32
    %171 = vector.broadcast %cst_161 : f32 to vector<8x32xf32>
    %172 = arith.maximumf %170, %171 : vector<8x32xf32>
    %c0_162 = arith.constant 0 : index
    %c0_163 = arith.constant 0 : index
    %173 = vector.load %arg12[%c0_162, %c0_163] : memref<32x16xf32, #tpu.memory_space<vmem>>, vector<32x16xf32>
    %cst_164 = arith.constant dense<0.000000e+00> : vector<8x16xf32>
    %174 = tpu.matmul %172, %173, %cst_164 {dimension_numbers = #tpu.dot_dimension_numbers<[1], [0], [0], [1], [0, 0, 1, 1], [], []>} : vector<8x32xf32>, vector<32x16xf32>, vector<8x16xf32> -> vector<8x16xf32>
    %c0_165 = arith.constant 0 : index
    %c0_166 = arith.constant 0 : index
    %175 = vector.load %arg13[%c0_165, %c0_166] : memref<1x16xf32, #tpu.memory_space<vmem>>, vector<1x16xf32>
    %176 = vector.broadcast %175 : vector<1x16xf32> to vector<8x16xf32>
    %177 = arith.addf %174, %176 : vector<8x16xf32>
    %178 = vector.extract_strided_slice %177 {offsets = [0, 0], sizes = [2, 16], strides = [1, 1]} : vector<8x16xf32> to vector<2x16xf32>
    %c5 = arith.constant 5 : index
    %c0_167 = arith.constant 0 : index
    %179 = vector.load %arg29[%c5, %c0_167] : memref<18x16xf32, #tpu.memory_space<vmem>>, vector<2x16xf32>
    tpu.vector_store %arg29[%c5, %c0_167], %178 {strides = array<i32>} : memref<18x16xf32, #tpu.memory_space<vmem>>, vector<2x16xf32>,
    %180 = vector.extract_strided_slice %177 {offsets = [6, 0], sizes = [2, 16], strides = [1, 1]} : vector<8x16xf32> to vector<2x16xf32>
    %c9 = arith.constant 9 : index
    %c0_168 = arith.constant 0 : index
    %181 = vector.load %arg29[%c9, %c0_168] : memref<18x16xf32, #tpu.memory_space<vmem>>, vector<2x16xf32>
    tpu.vector_store %arg29[%c9, %c0_168], %180 {strides = array<i32>} : memref<18x16xf32, #tpu.memory_space<vmem>>, vector<2x16xf32>,
    %c0_169 = arith.constant 0 : index
    %c0_170 = arith.constant 0 : index
    %182 = vector.load %arg21[%c0_169, %c0_170] : memref<16x18xf32, #tpu.memory_space<vmem>>, vector<16x18xf32>
    %c0_171 = arith.constant 0 : index
    %c0_172 = arith.constant 0 : index
    %183 = vector.load %arg29[%c0_171, %c0_172] : memref<18x16xf32, #tpu.memory_space<vmem>>, vector<18x16xf32>
    %cst_173 = arith.constant dense<0.000000e+00> : vector<16x16xf32>
    %184 = tpu.matmul %182, %183, %cst_173 {dimension_numbers = #tpu.dot_dimension_numbers<[1], [0], [0], [1], [0, 0, 1, 1], [], []>} : vector<16x18xf32>, vector<18x16xf32>, vector<16x16xf32> -> vector<16x16xf32>
    %185 = vector.extract_strided_slice %132 {offsets = [0, 0], sizes = [4, 16], strides = [1, 1]} : vector<34x16xf32> to vector<4x16xf32>
    %186 = vector.extract_strided_slice %184 {offsets = [0, 0], sizes = [4, 16], strides = [1, 1]} : vector<16x16xf32> to vector<4x16xf32>
    %187 = arith.addf %185, %186 : vector<4x16xf32>
    %c7_174 = arith.constant 7 : index
    %c0_175 = arith.constant 0 : index
    %188 = vector.load %arg28[%c7_174, %c0_175] : memref<38x16xf32, #tpu.memory_space<vmem>>, vector<4x16xf32>
    tpu.vector_store %arg28[%c7_174, %c0_175], %187 {strides = array<i32>} : memref<38x16xf32, #tpu.memory_space<vmem>>, vector<4x16xf32>,
    %189 = vector.extract_strided_slice %132 {offsets = [10, 0], sizes = [4, 16], strides = [1, 1]} : vector<34x16xf32> to vector<4x16xf32>
    %190 = vector.extract_strided_slice %184 {offsets = [4, 0], sizes = [4, 16], strides = [1, 1]} : vector<16x16xf32> to vector<4x16xf32>
    %191 = arith.addf %189, %190 : vector<4x16xf32>
    %c13_176 = arith.constant 13 : index
    %c0_177 = arith.constant 0 : index
    %192 = vector.load %arg28[%c13_176, %c0_177] : memref<38x16xf32, #tpu.memory_space<vmem>>, vector<4x16xf32>
    tpu.vector_store %arg28[%c13_176, %c0_177], %191 {strides = array<i32>} : memref<38x16xf32, #tpu.memory_space<vmem>>, vector<4x16xf32>,
    %193 = vector.extract_strided_slice %132 {offsets = [20, 0], sizes = [4, 16], strides = [1, 1]} : vector<34x16xf32> to vector<4x16xf32>
    %194 = vector.extract_strided_slice %184 {offsets = [8, 0], sizes = [4, 16], strides = [1, 1]} : vector<16x16xf32> to vector<4x16xf32>
    %195 = arith.addf %193, %194 : vector<4x16xf32>
    %c19_178 = arith.constant 19 : index
    %c0_179 = arith.constant 0 : index
    %196 = vector.load %arg28[%c19_178, %c0_179] : memref<38x16xf32, #tpu.memory_space<vmem>>, vector<4x16xf32>
    tpu.vector_store %arg28[%c19_178, %c0_179], %195 {strides = array<i32>} : memref<38x16xf32, #tpu.memory_space<vmem>>, vector<4x16xf32>,
    %197 = vector.extract_strided_slice %132 {offsets = [30, 0], sizes = [4, 16], strides = [1, 1]} : vector<34x16xf32> to vector<4x16xf32>
    %198 = vector.extract_strided_slice %184 {offsets = [12, 0], sizes = [4, 16], strides = [1, 1]} : vector<16x16xf32> to vector<4x16xf32>
    %199 = arith.addf %197, %198 : vector<4x16xf32>
    %c25_180 = arith.constant 25 : index
    %c0_181 = arith.constant 0 : index
    %200 = vector.load %arg28[%c25_180, %c0_181] : memref<38x16xf32, #tpu.memory_space<vmem>>, vector<4x16xf32>
    tpu.vector_store %arg28[%c25_180, %c0_181], %199 {strides = array<i32>} : memref<38x16xf32, #tpu.memory_space<vmem>>, vector<4x16xf32>,
    %c0_182 = arith.constant 0 : index
    %c0_183 = arith.constant 0 : index
    %201 = vector.load %arg20[%c0_182, %c0_183] : memref<64x38xf32, #tpu.memory_space<vmem>>, vector<64x38xf32>
    %c0_184 = arith.constant 0 : index
    %c0_185 = arith.constant 0 : index
    %202 = vector.load %arg28[%c0_184, %c0_185] : memref<38x16xf32, #tpu.memory_space<vmem>>, vector<38x16xf32>
    %cst_186 = arith.constant dense<0.000000e+00> : vector<64x16xf32>
    %203 = tpu.matmul %201, %202, %cst_186 {dimension_numbers = #tpu.dot_dimension_numbers<[1], [0], [0], [1], [0, 0, 1, 1], [], []>} : vector<64x38xf32>, vector<38x16xf32>, vector<64x16xf32> -> vector<64x16xf32>
    %204 = vector.extract_strided_slice %79 {offsets = [0, 0], sizes = [8, 16], strides = [1, 1]} : vector<134x16xf32> to vector<8x16xf32>
    %205 = vector.extract_strided_slice %203 {offsets = [0, 0], sizes = [8, 16], strides = [1, 1]} : vector<64x16xf32> to vector<8x16xf32>
    %206 = arith.addf %204, %205 : vector<8x16xf32>
    %c11_187 = arith.constant 11 : index
    %c0_188 = arith.constant 0 : index
    %207 = vector.load %arg27[%c11_187, %c0_188] : memref<102x16xf32, #tpu.memory_space<vmem>>, vector<8x16xf32>
    tpu.vector_store %arg27[%c11_187, %c0_188], %206 {strides = array<i32>} : memref<102x16xf32, #tpu.memory_space<vmem>>, vector<8x16xf32>,
    %208 = vector.extract_strided_slice %79 {offsets = [18, 0], sizes = [8, 16], strides = [1, 1]} : vector<134x16xf32> to vector<8x16xf32>
    %209 = vector.extract_strided_slice %203 {offsets = [8, 0], sizes = [8, 16], strides = [1, 1]} : vector<64x16xf32> to vector<8x16xf32>
    %210 = arith.addf %208, %209 : vector<8x16xf32>
    %c21_189 = arith.constant 21 : index
    %c0_190 = arith.constant 0 : index
    %211 = vector.load %arg27[%c21_189, %c0_190] : memref<102x16xf32, #tpu.memory_space<vmem>>, vector<8x16xf32>
    tpu.vector_store %arg27[%c21_189, %c0_190], %210 {strides = array<i32>} : memref<102x16xf32, #tpu.memory_space<vmem>>, vector<8x16xf32>,
    %212 = vector.extract_strided_slice %79 {offsets = [36, 0], sizes = [8, 16], strides = [1, 1]} : vector<134x16xf32> to vector<8x16xf32>
    %213 = vector.extract_strided_slice %203 {offsets = [16, 0], sizes = [8, 16], strides = [1, 1]} : vector<64x16xf32> to vector<8x16xf32>
    %214 = arith.addf %212, %213 : vector<8x16xf32>
    %c31_191 = arith.constant 31 : index
    %c0_192 = arith.constant 0 : index
    %215 = vector.load %arg27[%c31_191, %c0_192] : memref<102x16xf32, #tpu.memory_space<vmem>>, vector<8x16xf32>
    tpu.vector_store %arg27[%c31_191, %c0_192], %214 {strides = array<i32>} : memref<102x16xf32, #tpu.memory_space<vmem>>, vector<8x16xf32>,
    %216 = vector.extract_strided_slice %79 {offsets = [54, 0], sizes = [8, 16], strides = [1, 1]} : vector<134x16xf32> to vector<8x16xf32>
    %217 = vector.extract_strided_slice %203 {offsets = [24, 0], sizes = [8, 16], strides = [1, 1]} : vector<64x16xf32> to vector<8x16xf32>
    %218 = arith.addf %216, %217 : vector<8x16xf32>
    %c41_193 = arith.constant 41 : index
    %c0_194 = arith.constant 0 : index
    %219 = vector.load %arg27[%c41_193, %c0_194] : memref<102x16xf32, #tpu.memory_space<vmem>>, vector<8x16xf32>
    tpu.vector_store %arg27[%c41_193, %c0_194], %218 {strides = array<i32>} : memref<102x16xf32, #tpu.memory_space<vmem>>, vector<8x16xf32>,
    %220 = vector.extract_strided_slice %79 {offsets = [72, 0], sizes = [8, 16], strides = [1, 1]} : vector<134x16xf32> to vector<8x16xf32>
    %221 = vector.extract_strided_slice %203 {offsets = [32, 0], sizes = [8, 16], strides = [1, 1]} : vector<64x16xf32> to vector<8x16xf32>
    %222 = arith.addf %220, %221 : vector<8x16xf32>
    %c51_195 = arith.constant 51 : index
    %c0_196 = arith.constant 0 : index
    %223 = vector.load %arg27[%c51_195, %c0_196] : memref<102x16xf32, #tpu.memory_space<vmem>>, vector<8x16xf32>
    tpu.vector_store %arg27[%c51_195, %c0_196], %222 {strides = array<i32>} : memref<102x16xf32, #tpu.memory_space<vmem>>, vector<8x16xf32>,
    %224 = vector.extract_strided_slice %79 {offsets = [90, 0], sizes = [8, 16], strides = [1, 1]} : vector<134x16xf32> to vector<8x16xf32>
    %225 = vector.extract_strided_slice %203 {offsets = [40, 0], sizes = [8, 16], strides = [1, 1]} : vector<64x16xf32> to vector<8x16xf32>
    %226 = arith.addf %224, %225 : vector<8x16xf32>
    %c61_197 = arith.constant 61 : index
    %c0_198 = arith.constant 0 : index
    %227 = vector.load %arg27[%c61_197, %c0_198] : memref<102x16xf32, #tpu.memory_space<vmem>>, vector<8x16xf32>
    tpu.vector_store %arg27[%c61_197, %c0_198], %226 {strides = array<i32>} : memref<102x16xf32, #tpu.memory_space<vmem>>, vector<8x16xf32>,
    %228 = vector.extract_strided_slice %79 {offsets = [108, 0], sizes = [8, 16], strides = [1, 1]} : vector<134x16xf32> to vector<8x16xf32>
    %229 = vector.extract_strided_slice %203 {offsets = [48, 0], sizes = [8, 16], strides = [1, 1]} : vector<64x16xf32> to vector<8x16xf32>
    %230 = arith.addf %228, %229 : vector<8x16xf32>
    %c71_199 = arith.constant 71 : index
    %c0_200 = arith.constant 0 : index
    %231 = vector.load %arg27[%c71_199, %c0_200] : memref<102x16xf32, #tpu.memory_space<vmem>>, vector<8x16xf32>
    tpu.vector_store %arg27[%c71_199, %c0_200], %230 {strides = array<i32>} : memref<102x16xf32, #tpu.memory_space<vmem>>, vector<8x16xf32>,
    %232 = vector.extract_strided_slice %79 {offsets = [126, 0], sizes = [8, 16], strides = [1, 1]} : vector<134x16xf32> to vector<8x16xf32>
    %233 = vector.extract_strided_slice %203 {offsets = [56, 0], sizes = [8, 16], strides = [1, 1]} : vector<64x16xf32> to vector<8x16xf32>
    %234 = arith.addf %232, %233 : vector<8x16xf32>
    %c81_201 = arith.constant 81 : index
    %c0_202 = arith.constant 0 : index
    %235 = vector.load %arg27[%c81_201, %c0_202] : memref<102x16xf32, #tpu.memory_space<vmem>>, vector<8x16xf32>
    tpu.vector_store %arg27[%c81_201, %c0_202], %234 {strides = array<i32>} : memref<102x16xf32, #tpu.memory_space<vmem>>, vector<8x16xf32>,
    %c0_203 = arith.constant 0 : index
    %c0_204 = arith.constant 0 : index
    %236 = vector.load %arg27[%c0_203, %c0_204] : memref<102x16xf32, #tpu.memory_space<vmem>>, vector<80x16xf32>
    %c0_205 = arith.constant 0 : index
    %c0_206 = arith.constant 0 : index
    %237 = vector.load %arg14[%c0_205, %c0_206] : memref<144x16xf32, #tpu.memory_space<vmem>>, vector<16x16xf32>
    %cst_207 = arith.constant dense<0.000000e+00> : vector<80x16xf32>
    %238 = tpu.matmul %236, %237, %cst_207 {dimension_numbers = #tpu.dot_dimension_numbers<[1], [0], [0], [1], [0, 0, 1, 1], [], []>} : vector<80x16xf32>, vector<16x16xf32>, vector<80x16xf32> -> vector<80x16xf32>
    %c1_208 = arith.constant 1 : index
    %c0_209 = arith.constant 0 : index
    %239 = vector.load %arg27[%c1_208, %c0_209] : memref<102x16xf32, #tpu.memory_space<vmem>>, vector<80x16xf32>
    %c16_210 = arith.constant 16 : index
    %c0_211 = arith.constant 0 : index
    %240 = vector.load %arg14[%c16_210, %c0_211] : memref<144x16xf32, #tpu.memory_space<vmem>>, vector<16x16xf32>
    %cst_212 = arith.constant dense<0.000000e+00> : vector<80x16xf32>
    %241 = tpu.matmul %239, %240, %cst_212 {dimension_numbers = #tpu.dot_dimension_numbers<[1], [0], [0], [1], [0, 0, 1, 1], [], []>} : vector<80x16xf32>, vector<16x16xf32>, vector<80x16xf32> -> vector<80x16xf32>
    %242 = arith.addf %238, %241 : vector<80x16xf32>
    %c2_213 = arith.constant 2 : index
    %c0_214 = arith.constant 0 : index
    %243 = vector.load %arg27[%c2_213, %c0_214] : memref<102x16xf32, #tpu.memory_space<vmem>>, vector<80x16xf32>
    %c32_215 = arith.constant 32 : index
    %c0_216 = arith.constant 0 : index
    %244 = vector.load %arg14[%c32_215, %c0_216] : memref<144x16xf32, #tpu.memory_space<vmem>>, vector<16x16xf32>
    %cst_217 = arith.constant dense<0.000000e+00> : vector<80x16xf32>
    %245 = tpu.matmul %243, %244, %cst_217 {dimension_numbers = #tpu.dot_dimension_numbers<[1], [0], [0], [1], [0, 0, 1, 1], [], []>} : vector<80x16xf32>, vector<16x16xf32>, vector<80x16xf32> -> vector<80x16xf32>
    %246 = arith.addf %242, %245 : vector<80x16xf32>
    %c10_218 = arith.constant 10 : index
    %c0_219 = arith.constant 0 : index
    %247 = vector.load %arg27[%c10_218, %c0_219] : memref<102x16xf32, #tpu.memory_space<vmem>>, vector<80x16xf32>
    %c48_220 = arith.constant 48 : index
    %c0_221 = arith.constant 0 : index
    %248 = vector.load %arg14[%c48_220, %c0_221] : memref<144x16xf32, #tpu.memory_space<vmem>>, vector<16x16xf32>
    %cst_222 = arith.constant dense<0.000000e+00> : vector<80x16xf32>
    %249 = tpu.matmul %247, %248, %cst_222 {dimension_numbers = #tpu.dot_dimension_numbers<[1], [0], [0], [1], [0, 0, 1, 1], [], []>} : vector<80x16xf32>, vector<16x16xf32>, vector<80x16xf32> -> vector<80x16xf32>
    %250 = arith.addf %246, %249 : vector<80x16xf32>
    %c11_223 = arith.constant 11 : index
    %c0_224 = arith.constant 0 : index
    %251 = vector.load %arg27[%c11_223, %c0_224] : memref<102x16xf32, #tpu.memory_space<vmem>>, vector<80x16xf32>
    %c64_225 = arith.constant 64 : index
    %c0_226 = arith.constant 0 : index
    %252 = vector.load %arg14[%c64_225, %c0_226] : memref<144x16xf32, #tpu.memory_space<vmem>>, vector<16x16xf32>
    %cst_227 = arith.constant dense<0.000000e+00> : vector<80x16xf32>
    %253 = tpu.matmul %251, %252, %cst_227 {dimension_numbers = #tpu.dot_dimension_numbers<[1], [0], [0], [1], [0, 0, 1, 1], [], []>} : vector<80x16xf32>, vector<16x16xf32>, vector<80x16xf32> -> vector<80x16xf32>
    %254 = arith.addf %250, %253 : vector<80x16xf32>
    %c12_228 = arith.constant 12 : index
    %c0_229 = arith.constant 0 : index
    %255 = vector.load %arg27[%c12_228, %c0_229] : memref<102x16xf32, #tpu.memory_space<vmem>>, vector<80x16xf32>
    %c80_230 = arith.constant 80 : index
    %c0_231 = arith.constant 0 : index
    %256 = vector.load %arg14[%c80_230, %c0_231] : memref<144x16xf32, #tpu.memory_space<vmem>>, vector<16x16xf32>
    %cst_232 = arith.constant dense<0.000000e+00> : vector<80x16xf32>
    %257 = tpu.matmul %255, %256, %cst_232 {dimension_numbers = #tpu.dot_dimension_numbers<[1], [0], [0], [1], [0, 0, 1, 1], [], []>} : vector<80x16xf32>, vector<16x16xf32>, vector<80x16xf32> -> vector<80x16xf32>
    %258 = arith.addf %254, %257 : vector<80x16xf32>
    %c20_233 = arith.constant 20 : index
    %c0_234 = arith.constant 0 : index
    %259 = vector.load %arg27[%c20_233, %c0_234] : memref<102x16xf32, #tpu.memory_space<vmem>>, vector<80x16xf32>
    %c96_235 = arith.constant 96 : index
    %c0_236 = arith.constant 0 : index
    %260 = vector.load %arg14[%c96_235, %c0_236] : memref<144x16xf32, #tpu.memory_space<vmem>>, vector<16x16xf32>
    %cst_237 = arith.constant dense<0.000000e+00> : vector<80x16xf32>
    %261 = tpu.matmul %259, %260, %cst_237 {dimension_numbers = #tpu.dot_dimension_numbers<[1], [0], [0], [1], [0, 0, 1, 1], [], []>} : vector<80x16xf32>, vector<16x16xf32>, vector<80x16xf32> -> vector<80x16xf32>
    %262 = arith.addf %258, %261 : vector<80x16xf32>
    %c21_238 = arith.constant 21 : index
    %c0_239 = arith.constant 0 : index
    %263 = vector.load %arg27[%c21_238, %c0_239] : memref<102x16xf32, #tpu.memory_space<vmem>>, vector<80x16xf32>
    %c112_240 = arith.constant 112 : index
    %c0_241 = arith.constant 0 : index
    %264 = vector.load %arg14[%c112_240, %c0_241] : memref<144x16xf32, #tpu.memory_space<vmem>>, vector<16x16xf32>
    %cst_242 = arith.constant dense<0.000000e+00> : vector<80x16xf32>
    %265 = tpu.matmul %263, %264, %cst_242 {dimension_numbers = #tpu.dot_dimension_numbers<[1], [0], [0], [1], [0, 0, 1, 1], [], []>} : vector<80x16xf32>, vector<16x16xf32>, vector<80x16xf32> -> vector<80x16xf32>
    %266 = arith.addf %262, %265 : vector<80x16xf32>
    %c22_243 = arith.constant 22 : index
    %c0_244 = arith.constant 0 : index
    %267 = vector.load %arg27[%c22_243, %c0_244] : memref<102x16xf32, #tpu.memory_space<vmem>>, vector<80x16xf32>
    %c128_245 = arith.constant 128 : index
    %c0_246 = arith.constant 0 : index
    %268 = vector.load %arg14[%c128_245, %c0_246] : memref<144x16xf32, #tpu.memory_space<vmem>>, vector<16x16xf32>
    %cst_247 = arith.constant dense<0.000000e+00> : vector<80x16xf32>
    %269 = tpu.matmul %267, %268, %cst_247 {dimension_numbers = #tpu.dot_dimension_numbers<[1], [0], [0], [1], [0, 0, 1, 1], [], []>} : vector<80x16xf32>, vector<16x16xf32>, vector<80x16xf32> -> vector<80x16xf32>
    %270 = arith.addf %266, %269 : vector<80x16xf32>
    %c0_248 = arith.constant 0 : index
    %c0_249 = arith.constant 0 : index
    %271 = vector.load %arg15[%c0_248, %c0_249] : memref<1x16xf32, #tpu.memory_space<vmem>>, vector<1x16xf32>
    %272 = vector.broadcast %271 : vector<1x16xf32> to vector<80x16xf32>
    %273 = arith.addf %270, %272 : vector<80x16xf32>
    %cst_250 = arith.constant 0.000000e+00 : f32
    %274 = vector.broadcast %cst_250 : f32 to vector<80x16xf32>
    %275 = arith.maximumf %273, %274 : vector<80x16xf32>
    %c0_251 = arith.constant 0 : index
    %c0_252 = arith.constant 0 : index
    %c0_253 = arith.constant 0 : index
    %276 = vector.load %arg22[%c0_251, %c0_252, %c0_253] : memref<1x80x16xf32, #tpu.memory_space<vmem>>, vector<1x80x16xf32>
    %277 = vector.shape_cast %276 : vector<1x80x16xf32> to vector<80x16xf32>
    %278 = vector.shape_cast %275 : vector<80x16xf32> to vector<1x80x16xf32>
    tpu.vector_store %arg22[%c0_251, %c0_252, %c0_253], %278 {strides = array<i32>} : memref<1x80x16xf32, #tpu.memory_space<vmem>>, vector<1x80x16xf32>,
    %c0_254 = arith.constant 0 : index
    %c0_255 = arith.constant 0 : index
    %279 = vector.load %arg28[%c0_254, %c0_255] : memref<38x16xf32, #tpu.memory_space<vmem>>, vector<24x16xf32>
    %c0_256 = arith.constant 0 : index
    %c0_257 = arith.constant 0 : index
    %280 = vector.load %arg16[%c0_256, %c0_257] : memref<144x16xf32, #tpu.memory_space<vmem>>, vector<16x16xf32>
    %cst_258 = arith.constant dense<0.000000e+00> : vector<24x16xf32>
    %281 = tpu.matmul %279, %280, %cst_258 {dimension_numbers = #tpu.dot_dimension_numbers<[1], [0], [0], [1], [0, 0, 1, 1], [], []>} : vector<24x16xf32>, vector<16x16xf32>, vector<24x16xf32> -> vector<24x16xf32>
    %c1_259 = arith.constant 1 : index
    %c0_260 = arith.constant 0 : index
    %282 = vector.load %arg28[%c1_259, %c0_260] : memref<38x16xf32, #tpu.memory_space<vmem>>, vector<24x16xf32>
    %c16_261 = arith.constant 16 : index
    %c0_262 = arith.constant 0 : index
    %283 = vector.load %arg16[%c16_261, %c0_262] : memref<144x16xf32, #tpu.memory_space<vmem>>, vector<16x16xf32>
    %cst_263 = arith.constant dense<0.000000e+00> : vector<24x16xf32>
    %284 = tpu.matmul %282, %283, %cst_263 {dimension_numbers = #tpu.dot_dimension_numbers<[1], [0], [0], [1], [0, 0, 1, 1], [], []>} : vector<24x16xf32>, vector<16x16xf32>, vector<24x16xf32> -> vector<24x16xf32>
    %285 = arith.addf %281, %284 : vector<24x16xf32>
    %c2_264 = arith.constant 2 : index
    %c0_265 = arith.constant 0 : index
    %286 = vector.load %arg28[%c2_264, %c0_265] : memref<38x16xf32, #tpu.memory_space<vmem>>, vector<24x16xf32>
    %c32_266 = arith.constant 32 : index
    %c0_267 = arith.constant 0 : index
    %287 = vector.load %arg16[%c32_266, %c0_267] : memref<144x16xf32, #tpu.memory_space<vmem>>, vector<16x16xf32>
    %cst_268 = arith.constant dense<0.000000e+00> : vector<24x16xf32>
    %288 = tpu.matmul %286, %287, %cst_268 {dimension_numbers = #tpu.dot_dimension_numbers<[1], [0], [0], [1], [0, 0, 1, 1], [], []>} : vector<24x16xf32>, vector<16x16xf32>, vector<24x16xf32> -> vector<24x16xf32>
    %289 = arith.addf %285, %288 : vector<24x16xf32>
    %c6_269 = arith.constant 6 : index
    %c0_270 = arith.constant 0 : index
    %290 = vector.load %arg28[%c6_269, %c0_270] : memref<38x16xf32, #tpu.memory_space<vmem>>, vector<24x16xf32>
    %c48_271 = arith.constant 48 : index
    %c0_272 = arith.constant 0 : index
    %291 = vector.load %arg16[%c48_271, %c0_272] : memref<144x16xf32, #tpu.memory_space<vmem>>, vector<16x16xf32>
    %cst_273 = arith.constant dense<0.000000e+00> : vector<24x16xf32>
    %292 = tpu.matmul %290, %291, %cst_273 {dimension_numbers = #tpu.dot_dimension_numbers<[1], [0], [0], [1], [0, 0, 1, 1], [], []>} : vector<24x16xf32>, vector<16x16xf32>, vector<24x16xf32> -> vector<24x16xf32>
    %293 = arith.addf %289, %292 : vector<24x16xf32>
    %c7_274 = arith.constant 7 : index
    %c0_275 = arith.constant 0 : index
    %294 = vector.load %arg28[%c7_274, %c0_275] : memref<38x16xf32, #tpu.memory_space<vmem>>, vector<24x16xf32>
    %c64_276 = arith.constant 64 : index
    %c0_277 = arith.constant 0 : index
    %295 = vector.load %arg16[%c64_276, %c0_277] : memref<144x16xf32, #tpu.memory_space<vmem>>, vector<16x16xf32>
    %cst_278 = arith.constant dense<0.000000e+00> : vector<24x16xf32>
    %296 = tpu.matmul %294, %295, %cst_278 {dimension_numbers = #tpu.dot_dimension_numbers<[1], [0], [0], [1], [0, 0, 1, 1], [], []>} : vector<24x16xf32>, vector<16x16xf32>, vector<24x16xf32> -> vector<24x16xf32>
    %297 = arith.addf %293, %296 : vector<24x16xf32>
    %c8_279 = arith.constant 8 : index
    %c0_280 = arith.constant 0 : index
    %298 = vector.load %arg28[%c8_279, %c0_280] : memref<38x16xf32, #tpu.memory_space<vmem>>, vector<24x16xf32>
    %c80_281 = arith.constant 80 : index
    %c0_282 = arith.constant 0 : index
    %299 = vector.load %arg16[%c80_281, %c0_282] : memref<144x16xf32, #tpu.memory_space<vmem>>, vector<16x16xf32>
    %cst_283 = arith.constant dense<0.000000e+00> : vector<24x16xf32>
    %300 = tpu.matmul %298, %299, %cst_283 {dimension_numbers = #tpu.dot_dimension_numbers<[1], [0], [0], [1], [0, 0, 1, 1], [], []>} : vector<24x16xf32>, vector<16x16xf32>, vector<24x16xf32> -> vector<24x16xf32>
    %301 = arith.addf %297, %300 : vector<24x16xf32>
    %c12_284 = arith.constant 12 : index
    %c0_285 = arith.constant 0 : index
    %302 = vector.load %arg28[%c12_284, %c0_285] : memref<38x16xf32, #tpu.memory_space<vmem>>, vector<24x16xf32>
    %c96_286 = arith.constant 96 : index
    %c0_287 = arith.constant 0 : index
    %303 = vector.load %arg16[%c96_286, %c0_287] : memref<144x16xf32, #tpu.memory_space<vmem>>, vector<16x16xf32>
    %cst_288 = arith.constant dense<0.000000e+00> : vector<24x16xf32>
    %304 = tpu.matmul %302, %303, %cst_288 {dimension_numbers = #tpu.dot_dimension_numbers<[1], [0], [0], [1], [0, 0, 1, 1], [], []>} : vector<24x16xf32>, vector<16x16xf32>, vector<24x16xf32> -> vector<24x16xf32>
    %305 = arith.addf %301, %304 : vector<24x16xf32>
    %c13_289 = arith.constant 13 : index
    %c0_290 = arith.constant 0 : index
    %306 = vector.load %arg28[%c13_289, %c0_290] : memref<38x16xf32, #tpu.memory_space<vmem>>, vector<24x16xf32>
    %c112_291 = arith.constant 112 : index
    %c0_292 = arith.constant 0 : index
    %307 = vector.load %arg16[%c112_291, %c0_292] : memref<144x16xf32, #tpu.memory_space<vmem>>, vector<16x16xf32>
    %cst_293 = arith.constant dense<0.000000e+00> : vector<24x16xf32>
    %308 = tpu.matmul %306, %307, %cst_293 {dimension_numbers = #tpu.dot_dimension_numbers<[1], [0], [0], [1], [0, 0, 1, 1], [], []>} : vector<24x16xf32>, vector<16x16xf32>, vector<24x16xf32> -> vector<24x16xf32>
    %309 = arith.addf %305, %308 : vector<24x16xf32>
    %c14_294 = arith.constant 14 : index
    %c0_295 = arith.constant 0 : index
    %310 = vector.load %arg28[%c14_294, %c0_295] : memref<38x16xf32, #tpu.memory_space<vmem>>, vector<24x16xf32>
    %c128_296 = arith.constant 128 : index
    %c0_297 = arith.constant 0 : index
    %311 = vector.load %arg16[%c128_296, %c0_297] : memref<144x16xf32, #tpu.memory_space<vmem>>, vector<16x16xf32>
    %cst_298 = arith.constant dense<0.000000e+00> : vector<24x16xf32>
    %312 = tpu.matmul %310, %311, %cst_298 {dimension_numbers = #tpu.dot_dimension_numbers<[1], [0], [0], [1], [0, 0, 1, 1], [], []>} : vector<24x16xf32>, vector<16x16xf32>, vector<24x16xf32> -> vector<24x16xf32>
    %313 = arith.addf %309, %312 : vector<24x16xf32>
    %c0_299 = arith.constant 0 : index
    %c0_300 = arith.constant 0 : index
    %314 = vector.load %arg17[%c0_299, %c0_300] : memref<1x16xf32, #tpu.memory_space<vmem>>, vector<1x16xf32>
    %315 = vector.broadcast %314 : vector<1x16xf32> to vector<24x16xf32>
    %316 = arith.addf %313, %315 : vector<24x16xf32>
    %cst_301 = arith.constant 0.000000e+00 : f32
    %317 = vector.broadcast %cst_301 : f32 to vector<24x16xf32>
    %318 = arith.maximumf %316, %317 : vector<24x16xf32>
    %c0_302 = arith.constant 0 : index
    %c0_303 = arith.constant 0 : index
    %c0_304 = arith.constant 0 : index
    %319 = vector.load %arg23[%c0_302, %c0_303, %c0_304] : memref<1x24x16xf32, #tpu.memory_space<vmem>>, vector<1x24x16xf32>
    %320 = vector.shape_cast %319 : vector<1x24x16xf32> to vector<24x16xf32>
    %321 = vector.shape_cast %318 : vector<24x16xf32> to vector<1x24x16xf32>
    tpu.vector_store %arg23[%c0_302, %c0_303, %c0_304], %321 {strides = array<i32>} : memref<1x24x16xf32, #tpu.memory_space<vmem>>, vector<1x24x16xf32>,
    %c0_305 = arith.constant 0 : index
    %c0_306 = arith.constant 0 : index
    %322 = vector.load %arg29[%c0_305, %c0_306] : memref<18x16xf32, #tpu.memory_space<vmem>>, vector<8x16xf32>
    %c0_307 = arith.constant 0 : index
    %c0_308 = arith.constant 0 : index
    %323 = vector.load %arg18[%c0_307, %c0_308] : memref<144x16xf32, #tpu.memory_space<vmem>>, vector<16x16xf32>
    %cst_309 = arith.constant dense<0.000000e+00> : vector<8x16xf32>
    %324 = tpu.matmul %322, %323, %cst_309 {dimension_numbers = #tpu.dot_dimension_numbers<[1], [0], [0], [1], [0, 0, 1, 1], [], []>} : vector<8x16xf32>, vector<16x16xf32>, vector<8x16xf32> -> vector<8x16xf32>
    %c1_310 = arith.constant 1 : index
    %c0_311 = arith.constant 0 : index
    %325 = vector.load %arg29[%c1_310, %c0_311] : memref<18x16xf32, #tpu.memory_space<vmem>>, vector<8x16xf32>
    %c16_312 = arith.constant 16 : index
    %c0_313 = arith.constant 0 : index
    %326 = vector.load %arg18[%c16_312, %c0_313] : memref<144x16xf32, #tpu.memory_space<vmem>>, vector<16x16xf32>
    %cst_314 = arith.constant dense<0.000000e+00> : vector<8x16xf32>
    %327 = tpu.matmul %325, %326, %cst_314 {dimension_numbers = #tpu.dot_dimension_numbers<[1], [0], [0], [1], [0, 0, 1, 1], [], []>} : vector<8x16xf32>, vector<16x16xf32>, vector<8x16xf32> -> vector<8x16xf32>
    %328 = arith.addf %324, %327 : vector<8x16xf32>
    %c2_315 = arith.constant 2 : index
    %c0_316 = arith.constant 0 : index
    %329 = vector.load %arg29[%c2_315, %c0_316] : memref<18x16xf32, #tpu.memory_space<vmem>>, vector<8x16xf32>
    %c32_317 = arith.constant 32 : index
    %c0_318 = arith.constant 0 : index
    %330 = vector.load %arg18[%c32_317, %c0_318] : memref<144x16xf32, #tpu.memory_space<vmem>>, vector<16x16xf32>
    %cst_319 = arith.constant dense<0.000000e+00> : vector<8x16xf32>
    %331 = tpu.matmul %329, %330, %cst_319 {dimension_numbers = #tpu.dot_dimension_numbers<[1], [0], [0], [1], [0, 0, 1, 1], [], []>} : vector<8x16xf32>, vector<16x16xf32>, vector<8x16xf32> -> vector<8x16xf32>
    %332 = arith.addf %328, %331 : vector<8x16xf32>
    %c4_320 = arith.constant 4 : index
    %c0_321 = arith.constant 0 : index
    %333 = vector.load %arg29[%c4_320, %c0_321] : memref<18x16xf32, #tpu.memory_space<vmem>>, vector<8x16xf32>
    %c48_322 = arith.constant 48 : index
    %c0_323 = arith.constant 0 : index
    %334 = vector.load %arg18[%c48_322, %c0_323] : memref<144x16xf32, #tpu.memory_space<vmem>>, vector<16x16xf32>
    %cst_324 = arith.constant dense<0.000000e+00> : vector<8x16xf32>
    %335 = tpu.matmul %333, %334, %cst_324 {dimension_numbers = #tpu.dot_dimension_numbers<[1], [0], [0], [1], [0, 0, 1, 1], [], []>} : vector<8x16xf32>, vector<16x16xf32>, vector<8x16xf32> -> vector<8x16xf32>
    %336 = arith.addf %332, %335 : vector<8x16xf32>
    %c5_325 = arith.constant 5 : index
    %c0_326 = arith.constant 0 : index
    %337 = vector.load %arg29[%c5_325, %c0_326] : memref<18x16xf32, #tpu.memory_space<vmem>>, vector<8x16xf32>
    %c64_327 = arith.constant 64 : index
    %c0_328 = arith.constant 0 : index
    %338 = vector.load %arg18[%c64_327, %c0_328] : memref<144x16xf32, #tpu.memory_space<vmem>>, vector<16x16xf32>
    %cst_329 = arith.constant dense<0.000000e+00> : vector<8x16xf32>
    %339 = tpu.matmul %337, %338, %cst_329 {dimension_numbers = #tpu.dot_dimension_numbers<[1], [0], [0], [1], [0, 0, 1, 1], [], []>} : vector<8x16xf32>, vector<16x16xf32>, vector<8x16xf32> -> vector<8x16xf32>
    %340 = arith.addf %336, %339 : vector<8x16xf32>
    %c6_330 = arith.constant 6 : index
    %c0_331 = arith.constant 0 : index
    %341 = vector.load %arg29[%c6_330, %c0_331] : memref<18x16xf32, #tpu.memory_space<vmem>>, vector<8x16xf32>
    %c80_332 = arith.constant 80 : index
    %c0_333 = arith.constant 0 : index
    %342 = vector.load %arg18[%c80_332, %c0_333] : memref<144x16xf32, #tpu.memory_space<vmem>>, vector<16x16xf32>
    %cst_334 = arith.constant dense<0.000000e+00> : vector<8x16xf32>
    %343 = tpu.matmul %341, %342, %cst_334 {dimension_numbers = #tpu.dot_dimension_numbers<[1], [0], [0], [1], [0, 0, 1, 1], [], []>} : vector<8x16xf32>, vector<16x16xf32>, vector<8x16xf32> -> vector<8x16xf32>
    %344 = arith.addf %340, %343 : vector<8x16xf32>
    %c8_335 = arith.constant 8 : index
    %c0_336 = arith.constant 0 : index
    %345 = vector.load %arg29[%c8_335, %c0_336] : memref<18x16xf32, #tpu.memory_space<vmem>>, vector<8x16xf32>
    %c96_337 = arith.constant 96 : index
    %c0_338 = arith.constant 0 : index
    %346 = vector.load %arg18[%c96_337, %c0_338] : memref<144x16xf32, #tpu.memory_space<vmem>>, vector<16x16xf32>
    %cst_339 = arith.constant dense<0.000000e+00> : vector<8x16xf32>
    %347 = tpu.matmul %345, %346, %cst_339 {dimension_numbers = #tpu.dot_dimension_numbers<[1], [0], [0], [1], [0, 0, 1, 1], [], []>} : vector<8x16xf32>, vector<16x16xf32>, vector<8x16xf32> -> vector<8x16xf32>
    %348 = arith.addf %344, %347 : vector<8x16xf32>
    %c9_340 = arith.constant 9 : index
    %c0_341 = arith.constant 0 : index
    %349 = vector.load %arg29[%c9_340, %c0_341] : memref<18x16xf32, #tpu.memory_space<vmem>>, vector<8x16xf32>
    %c112_342 = arith.constant 112 : index
    %c0_343 = arith.constant 0 : index
    %350 = vector.load %arg18[%c112_342, %c0_343] : memref<144x16xf32, #tpu.memory_space<vmem>>, vector<16x16xf32>
    %cst_344 = arith.constant dense<0.000000e+00> : vector<8x16xf32>
    %351 = tpu.matmul %349, %350, %cst_344 {dimension_numbers = #tpu.dot_dimension_numbers<[1], [0], [0], [1], [0, 0, 1, 1], [], []>} : vector<8x16xf32>, vector<16x16xf32>, vector<8x16xf32> -> vector<8x16xf32>
    %352 = arith.addf %348, %351 : vector<8x16xf32>
    %c10_345 = arith.constant 10 : index
    %c0_346 = arith.constant 0 : index
    %353 = vector.load %arg29[%c10_345, %c0_346] : memref<18x16xf32, #tpu.memory_space<vmem>>, vector<8x16xf32>
    %c128_347 = arith.constant 128 : index
    %c0_348 = arith.constant 0 : index
    %354 = vector.load %arg18[%c128_347, %c0_348] : memref<144x16xf32, #tpu.memory_space<vmem>>, vector<16x16xf32>
    %cst_349 = arith.constant dense<0.000000e+00> : vector<8x16xf32>
    %355 = tpu.matmul %353, %354, %cst_349 {dimension_numbers = #tpu.dot_dimension_numbers<[1], [0], [0], [1], [0, 0, 1, 1], [], []>} : vector<8x16xf32>, vector<16x16xf32>, vector<8x16xf32> -> vector<8x16xf32>
    %356 = arith.addf %352, %355 : vector<8x16xf32>
    %c0_350 = arith.constant 0 : index
    %c0_351 = arith.constant 0 : index
    %357 = vector.load %arg19[%c0_350, %c0_351] : memref<1x16xf32, #tpu.memory_space<vmem>>, vector<1x16xf32>
    %358 = vector.broadcast %357 : vector<1x16xf32> to vector<8x16xf32>
    %359 = arith.addf %356, %358 : vector<8x16xf32>
    %cst_352 = arith.constant 0.000000e+00 : f32
    %360 = vector.broadcast %cst_352 : f32 to vector<8x16xf32>
    %361 = arith.maximumf %359, %360 : vector<8x16xf32>
    %c0_353 = arith.constant 0 : index
    %c0_354 = arith.constant 0 : index
    %c0_355 = arith.constant 0 : index
    %362 = vector.load %arg24[%c0_353, %c0_354, %c0_355] : memref<1x8x16xf32, #tpu.memory_space<vmem>>, vector<1x8x16xf32>
    %363 = vector.shape_cast %362 : vector<1x8x16xf32> to vector<8x16xf32>
    %364 = vector.shape_cast %361 : vector<8x16xf32> to vector<1x8x16xf32>
    tpu.vector_store %arg24[%c0_353, %c0_354, %c0_355], %364 {strides = array<i32>} : memref<1x8x16xf32, #tpu.memory_space<vmem>>, vector<1x8x16xf32>,
    return
  }
  func.func @transform_0(%arg0: i32) -> (i32, i32, i32) {
    %c0_i32 = arith.constant 0 : i32
    %c0_i32_0 = arith.constant 0 : i32
    %c0_i32_1 = arith.constant 0 : i32
    return %arg0, %c0_i32, %c0_i32_0 : i32, i32, i32
  }
  func.func @transform_1(%arg0: i32) -> (i32, i32) {
    %c0_i32 = arith.constant 0 : i32
    %c0_i32_0 = arith.constant 0 : i32
    %c0_i32_1 = arith.constant 0 : i32
    return %c0_i32, %c0_i32_0 : i32, i32
  }
  func.func @transform_2(%arg0: i32) -> (i32, i32) {
    %c0_i32 = arith.constant 0 : i32
    %c0_i32_0 = arith.constant 0 : i32
    %c0_i32_1 = arith.constant 0 : i32
    return %c0_i32, %c0_i32_0 : i32, i32
  }
  func.func @transform_3(%arg0: i32) -> (i32, i32) {
    %c0_i32 = arith.constant 0 : i32
    %c0_i32_0 = arith.constant 0 : i32
    %c0_i32_1 = arith.constant 0 : i32
    return %c0_i32, %c0_i32_0 : i32, i32
  }
  func.func @transform_4(%arg0: i32) -> (i32, i32) {
    %c0_i32 = arith.constant 0 : i32
    %c0_i32_0 = arith.constant 0 : i32
    %c0_i32_1 = arith.constant 0 : i32
    return %c0_i32, %c0_i32_0 : i32, i32
  }
  func.func @transform_5(%arg0: i32) -> (i32, i32) {
    %c0_i32 = arith.constant 0 : i32
    %c0_i32_0 = arith.constant 0 : i32
    %c0_i32_1 = arith.constant 0 : i32
    return %c0_i32, %c0_i32_0 : i32, i32
  }
  func.func @transform_6(%arg0: i32) -> (i32, i32) {
    %c0_i32 = arith.constant 0 : i32
    %c0_i32_0 = arith.constant 0 : i32
    %c0_i32_1 = arith.constant 0 : i32
    return %c0_i32, %c0_i32_0 : i32, i32
  }
  func.func @transform_7(%arg0: i32) -> (i32, i32) {
    %c0_i32 = arith.constant 0 : i32
    %c0_i32_0 = arith.constant 0 : i32
    %c0_i32_1 = arith.constant 0 : i32
    return %c0_i32, %c0_i32_0 : i32, i32
  }
  func.func @transform_8(%arg0: i32) -> (i32, i32) {
    %c0_i32 = arith.constant 0 : i32
    %c0_i32_0 = arith.constant 0 : i32
    %c0_i32_1 = arith.constant 0 : i32
    return %c0_i32, %c0_i32_0 : i32, i32
  }
  func.func @transform_9(%arg0: i32) -> (i32, i32) {
    %c0_i32 = arith.constant 0 : i32
    %c0_i32_0 = arith.constant 0 : i32
    %c0_i32_1 = arith.constant 0 : i32
    return %c0_i32, %c0_i32_0 : i32, i32
  }
  func.func @transform_10(%arg0: i32) -> (i32, i32) {
    %c0_i32 = arith.constant 0 : i32
    %c0_i32_0 = arith.constant 0 : i32
    %c0_i32_1 = arith.constant 0 : i32
    return %c0_i32, %c0_i32_0 : i32, i32
  }
  func.func @transform_11(%arg0: i32) -> (i32, i32) {
    %c0_i32 = arith.constant 0 : i32
    %c0_i32_0 = arith.constant 0 : i32
    %c0_i32_1 = arith.constant 0 : i32
    return %c0_i32, %c0_i32_0 : i32, i32
  }
  func.func @transform_12(%arg0: i32) -> (i32, i32) {
    %c0_i32 = arith.constant 0 : i32
    %c0_i32_0 = arith.constant 0 : i32
    %c0_i32_1 = arith.constant 0 : i32
    return %c0_i32, %c0_i32_0 : i32, i32
  }
  func.func @transform_13(%arg0: i32) -> (i32, i32) {
    %c0_i32 = arith.constant 0 : i32
    %c0_i32_0 = arith.constant 0 : i32
    %c0_i32_1 = arith.constant 0 : i32
    return %c0_i32, %c0_i32_0 : i32, i32
  }
  func.func @transform_14(%arg0: i32) -> (i32, i32) {
    %c0_i32 = arith.constant 0 : i32
    %c0_i32_0 = arith.constant 0 : i32
    %c0_i32_1 = arith.constant 0 : i32
    return %c0_i32, %c0_i32_0 : i32, i32
  }
  func.func @transform_15(%arg0: i32) -> (i32, i32) {
    %c0_i32 = arith.constant 0 : i32
    %c0_i32_0 = arith.constant 0 : i32
    %c0_i32_1 = arith.constant 0 : i32
    return %c0_i32, %c0_i32_0 : i32, i32
  }
  func.func @transform_16(%arg0: i32) -> (i32, i32) {
    %c0_i32 = arith.constant 0 : i32
    %c0_i32_0 = arith.constant 0 : i32
    %c0_i32_1 = arith.constant 0 : i32
    return %c0_i32, %c0_i32_0 : i32, i32
  }
  func.func @transform_17(%arg0: i32) -> (i32, i32) {
    %c0_i32 = arith.constant 0 : i32
    %c0_i32_0 = arith.constant 0 : i32
    %c0_i32_1 = arith.constant 0 : i32
    return %c0_i32, %c0_i32_0 : i32, i32
  }
  func.func @transform_18(%arg0: i32) -> (i32, i32) {
    %c0_i32 = arith.constant 0 : i32
    %c0_i32_0 = arith.constant 0 : i32
    %c0_i32_1 = arith.constant 0 : i32
    return %c0_i32, %c0_i32_0 : i32, i32
  }
  func.func @transform_19(%arg0: i32) -> (i32, i32) {
    %c0_i32 = arith.constant 0 : i32
    %c0_i32_0 = arith.constant 0 : i32
    %c0_i32_1 = arith.constant 0 : i32
    return %c0_i32, %c0_i32_0 : i32, i32
  }
  func.func @transform_20(%arg0: i32) -> (i32, i32) {
    %c0_i32 = arith.constant 0 : i32
    %c0_i32_0 = arith.constant 0 : i32
    %c0_i32_1 = arith.constant 0 : i32
    return %c0_i32, %c0_i32_0 : i32, i32
  }
  func.func @transform_21(%arg0: i32) -> (i32, i32, i32) {
    %c0_i32 = arith.constant 0 : i32
    %c0_i32_0 = arith.constant 0 : i32
    %c0_i32_1 = arith.constant 0 : i32
    return %arg0, %c0_i32, %c0_i32_0 : i32, i32, i32
  }
  func.func @transform_22(%arg0: i32) -> (i32, i32, i32) {
    %c0_i32 = arith.constant 0 : i32
    %c0_i32_0 = arith.constant 0 : i32
    %c0_i32_1 = arith.constant 0 : i32
    return %arg0, %c0_i32, %c0_i32_0 : i32, i32, i32
  }
  func.func @transform_23(%arg0: i32) -> (i32, i32, i32) {
    %c0_i32 = arith.constant 0 : i32
    %c0_i32_0 = arith.constant 0 : i32
    %c0_i32_1 = arith.constant 0 : i32
    return %arg0, %c0_i32, %c0_i32_0 : i32, i32, i32
  }
}

</mosaic_0001>

<llo_original>
// kernel: backbone_neck_forward.1
$region0: #{backbone_neck_forward.1}
  #allocation0 [shape = 'u32[]', space=smem, size = 0x4, offset = 0x4, fixed_abs, tag = 'smem constant byte address 0x4 - core index']
  #allocation1 [shape = 'u32[144,128]{1,0:T(1,128)}', space=vmem, size = 0x12000, scoped, tag = 'internal scratch']
  #allocation2 [shape = 'f32[100,8]{1,0:T(8,128)}', space=vmem, size = 0xd000, scoped, tag = 'scratch operand']
  #allocation3 [shape = 'f32[36,16]{1,0:T(8,128)}', space=vmem, size = 0x5000, scoped, tag = 'scratch operand']
  #allocation4 [shape = 'f32[102,16]{1,0:T(8,128)}', space=vmem, size = 0xd000, scoped, tag = 'scratch operand']
  #allocation5 [shape = 'f32[38,16]{1,0:T(8,128)}', space=vmem, size = 0x5000, scoped, tag = 'scratch operand']
  #allocation6 [shape = 'f32[18,16]{1,0:T(8,128)}', space=vmem, size = 0x3000, scoped, tag = 'scratch operand']
  %s0 = inlined_call_operand.vmem [shape: f32[2,324,4], index: 0, kind: input, shape index: {}]
  %s1 = inlined_call_operand.vmem [shape: f32[36,8], index: 1, kind: input, shape index: {}]
  %s2 = inlined_call_operand.vmem [shape: f32[1,8], index: 2, kind: input, shape index: {}]
  %s3 = inlined_call_operand.vmem [shape: f32[72,16], index: 3, kind: input, shape index: {}]
  %s4 = inlined_call_operand.vmem [shape: f32[1,16], index: 4, kind: input, shape index: {}]
  %s5 = inlined_call_operand.vmem [shape: f32[144,32], index: 5, kind: input, shape index: {}]
  %s6 = inlined_call_operand.vmem [shape: f32[1,32], index: 6, kind: input, shape index: {}]
  %s7 = inlined_call_operand.vmem [shape: f32[8,16], index: 7, kind: input, shape index: {}]
  %s8 = inlined_call_operand.vmem [shape: f32[1,16], index: 8, kind: input, shape index: {}]
  %s9 = inlined_call_operand.vmem [shape: f32[16,16], index: 9, kind: input, shape index: {}]
  %s10 = inlined_call_operand.vmem [shape: f32[1,16], index: 10, kind: input, shape index: {}]
  %s11 = inlined_call_operand.vmem [shape: f32[32,16], index: 11, kind: input, shape index: {}]
  %s12 = inlined_call_operand.vmem [shape: f32[1,16], index: 12, kind: input, shape index: {}]
  %s13 = inlined_call_operand.vmem [shape: f32[144,16], index: 13, kind: input, shape index: {}]
  %s14 = inlined_call_operand.vmem [shape: f32[1,16], index: 14, kind: input, shape index: {}]
  %s15 = inlined_call_operand.vmem [shape: f32[144,16], index: 15, kind: input, shape index: {}]
  %s16 = inlined_call_operand.vmem [shape: f32[1,16], index: 16, kind: input, shape index: {}]
  %s17 = inlined_call_operand.vmem [shape: f32[144,16], index: 17, kind: input, shape index: {}]
  %s18 = inlined_call_operand.vmem [shape: f32[1,16], index: 18, kind: input, shape index: {}]
  %s19 = inlined_call_operand.vmem [shape: f32[64,38], index: 19, kind: input, shape index: {}]
  %s20 = inlined_call_operand.vmem [shape: f32[16,18], index: 20, kind: input, shape index: {}]
  %s21 = inlined_call_operand.vmem [shape: f32[2,80,16], index: 21, kind: output, shape index: {0}]
  %s22 = inlined_call_operand.vmem [shape: f32[2,24,16], index: 22, kind: output, shape index: {1}]
  %s23 = inlined_call_operand.vmem [shape: f32[2,8,16], index: 23, kind: output, shape index: {2}]
  %24 = xla_tuple %s21, %s22, %s23
  %s25 = sld [smem:[#allocation0]]
  $region133: #{backbone_neck_forward.1} parent=0
    _
  %s27 = ssub.s32 1, %s25
  %s28 = scalar_select 0, %s27, %s25
  loop: start=0, step=1, limit=4
  $region2: #{backbone_neck_forward.1} parent=0 // loop_pre_header
    _
  $region3: #{backbone_neck_forward.1} parent=0 // loop_header
    %s30 = sphi 0, %s34
    %p31 = scmp.ge.s32.totalorder %s30, 4
    %s40 = sphi 0, %s42
    %s43 = sphi 0, %s40
    %s44 = sphi 0, %s43
    %s60 = sphi 0, %s44
    %s64 = sphi 0, %s64
    %s66 = sphi 0, %s64
    %s67 = sphi 0, %s66
    %s81 = sphi 0, %s67
    %s85 = sphi 0, %s85
    %s87 = sphi 0, %s85
    %s88 = sphi 0, %s87
    %s102 = sphi 0, %s88
    %s106 = sphi 0, %s106
    %s108 = sphi 0, %s106
    %s109 = sphi 0, %s108
    %s123 = sphi 0, %s109
    %s127 = sphi 0, %s127
    %s129 = sphi 0, %s127
    %s130 = sphi 0, %s129
    %s144 = sphi 0, %s130
    %s148 = sphi 0, %s148
    %s150 = sphi 0, %s148
    %s151 = sphi 0, %s150
    %s165 = sphi 0, %s151
    %s169 = sphi 0, %s169
    %s171 = sphi 0, %s169
    %s172 = sphi 0, %s171
    %s186 = sphi 0, %s172
    %s190 = sphi 0, %s190
    %s192 = sphi 0, %s190
    %s193 = sphi 0, %s192
    %s207 = sphi 0, %s193
    %s211 = sphi 0, %s211
    %s213 = sphi 0, %s211
    %s214 = sphi 0, %s213
    %s228 = sphi 0, %s214
    %s232 = sphi 0, %s232
    %s234 = sphi 0, %s232
    %s235 = sphi 0, %s234
    %s249 = sphi 0, %s235
    %s253 = sphi 0, %s253
    %s255 = sphi 0, %s253
    %s256 = sphi 0, %s255
    %s270 = sphi 0, %s256
    %s274 = sphi 0, %s274
    %s276 = sphi 0, %s274
    %s277 = sphi 0, %s276
    %s291 = sphi 0, %s277
    %s295 = sphi 0, %s295
    %s297 = sphi 0, %s295
    %s298 = sphi 0, %s297
    %s312 = sphi 0, %s298
    %s316 = sphi 0, %s316
    %s318 = sphi 0, %s316
    %s319 = sphi 0, %s318
    %s333 = sphi 0, %s319
    %s337 = sphi 0, %s337
    %s339 = sphi 0, %s337
    %s340 = sphi 0, %s339
    %s354 = sphi 0, %s340
    %s358 = sphi 0, %s358
    %s360 = sphi 0, %s358
    %s361 = sphi 0, %s360
    %s375 = sphi 0, %s361
    %s379 = sphi 0, %s379
    %s381 = sphi 0, %s379
    %s382 = sphi 0, %s381
    %s396 = sphi 0, %s382
    %s400 = sphi 0, %s400
    %s402 = sphi 0, %s400
    %s403 = sphi 0, %s402
    %s417 = sphi 0, %s403
    %s421 = sphi 0, %s421
    %s423 = sphi 0, %s421
    %s424 = sphi 0, %s423
    %s438 = sphi 0, %s424
    %s442 = sphi 0, %s442
    %s444 = sphi 0, %s442
    %s445 = sphi 0, %s444
    %s459 = sphi 0, %s445
    %s463 = sphi 0, %s463
    %s465 = sphi 0, %s463
    %s466 = sphi 0, %s465
    %s480 = sphi 0, %s466
    %s486 = sphi 0, %s488
    %s489 = sphi 0, %s486
    %s490 = sphi 0, %s489
    %s506 = sphi 0, %s490
    %s512 = sphi 0, %s514
    %s515 = sphi 0, %s512
    %s516 = sphi 0, %s515
    %s532 = sphi 0, %s516
    %s538 = sphi 0, %s540
    %s541 = sphi 0, %s538
    %s542 = sphi 0, %s541
    %s558 = sphi 0, %s542
  $region4: #{backbone_neck_forward.1} parent=0 // loop_header_branch
    %33 = sbr.rel (%p31) target = $region8
  $region5: #{backbone_neck_forward.1} parent=0 // loop_body
    %s35 = ssub.s32 %s30, 1
    %s36 = ssub.s32 %s30, 2
    %s37 = sadd.s32 %s30, 1
    %s38 = ssub.s32 %s30, %s37
    %p39 = scmp.eq.s32.totalorder %s38, 0
    %s41 = sadd.s32 %s40, 1
    %s42 = scalar_select %p39, %s40, %s41
    %p45 = pneg %p39
    %p46 = scmp.eq.s32.totalorder %s30, 1
    %p47 = por %p45, %p46
    %p48 = scmp.ne.s32.totalorder %s40, %s43
    %p49 = scmp.eq.s32.totalorder %s30, 0
    %p50 = por %p48, %p49
    %p51 = scmp.ne.s32.totalorder %s40, %s43
    %p52 = scmp.eq.s32.totalorder %s35, 1
    %p53 = por %p51, %p52
    %p54 = scmp.ne.s32.totalorder %s43, %s44
    %p55 = scmp.eq.s32.totalorder %s35, 0
    %p56 = por %p54, %p55
    %p57 = scmp.ne.s32.totalorder %s43, %s44
    %p58 = scmp.eq.s32.totalorder %s36, 1
    %p59 = por %p57, %p58
    %p61 = scmp.ne.s32.totalorder %s44, %s60
    %p62 = scmp.eq.s32.totalorder %s36, 0
    %p63 = por %p61, %p62
    %s65 = sadd.s32 %s64, 1
    %p68 = scmp.eq.s32.totalorder %s30, 1
    %p69 = scmp.ne.s32.totalorder %s64, %s66
    %p70 = scmp.eq.s32.totalorder %s30, 0
    %p71 = por %p69, %p70
    %p72 = scmp.ne.s32.totalorder %s64, %s66
    %p73 = scmp.eq.s32.totalorder %s35, 1
    %p74 = por %p72, %p73
    %p75 = scmp.ne.s32.totalorder %s66, %s67
    %p76 = scmp.eq.s32.totalorder %s35, 0
    %p77 = por %p75, %p76
    %p78 = scmp.ne.s32.totalorder %s66, %s67
    %p79 = scmp.eq.s32.totalorder %s36, 1
    %p80 = por %p78, %p79
    %p82 = scmp.ne.s32.totalorder %s67, %s81
    %p83 = scmp.eq.s32.totalorder %s36, 0
    %p84 = por %p82, %p83
    %s86 = sadd.s32 %s85, 1
    %p89 = scmp.eq.s32.totalorder %s30, 1
    %p90 = scmp.ne.s32.totalorder %s85, %s87
    %p91 = scmp.eq.s32.totalorder %s30, 0
    %p92 = por %p90, %p91
    %p93 = scmp.ne.s32.totalorder %s85, %s87
    %p94 = scmp.eq.s32.totalorder %s35, 1
    %p95 = por %p93, %p94
    %p96 = scmp.ne.s32.totalorder %s87, %s88
    %p97 = scmp.eq.s32.totalorder %s35, 0
    %p98 = por %p96, %p97
    %p99 = scmp.ne.s32.totalorder %s87, %s88
    %p100 = scmp.eq.s32.totalorder %s36, 1
    %p101 = por %p99, %p100
    %p103 = scmp.ne.s32.totalorder %s88, %s102
    %p104 = scmp.eq.s32.totalorder %s36, 0
    %p105 = por %p103, %p104
    %s107 = sadd.s32 %s106, 1
    %p110 = scmp.eq.s32.totalorder %s30, 1
    %p111 = scmp.ne.s32.totalorder %s106, %s108
    %p112 = scmp.eq.s32.totalorder %s30, 0
    %p113 = por %p111, %p112
    %p114 = scmp.ne.s32.totalorder %s106, %s108
    %p115 = scmp.eq.s32.totalorder %s35, 1
    %p116 = por %p114, %p115
    %p117 = scmp.ne.s32.totalorder %s108, %s109
    %p118 = scmp.eq.s32.totalorder %s35, 0
    %p119 = por %p117, %p118
    %p120 = scmp.ne.s32.totalorder %s108, %s109
    %p121 = scmp.eq.s32.totalorder %s36, 1
    %p122 = por %p120, %p121
    %p124 = scmp.ne.s32.totalorder %s109, %s123
    %p125 = scmp.eq.s32.totalorder %s36, 0
    %p126 = por %p124, %p125
    %s128 = sadd.s32 %s127, 1
    %p131 = scmp.eq.s32.totalorder %s30, 1
    %p132 = scmp.ne.s32.totalorder %s127, %s129
    %p133 = scmp.eq.s32.totalorder %s30, 0
    %p134 = por %p132, %p133
    %p135 = scmp.ne.s32.totalorder %s127, %s129
    %p136 = scmp.eq.s32.totalorder %s35, 1
    %p137 = por %p135, %p136
    %p138 = scmp.ne.s32.totalorder %s129, %s130
    %p139 = scmp.eq.s32.totalorder %s35, 0
    %p140 = por %p138, %p139
    %p141 = scmp.ne.s32.totalorder %s129, %s130
    %p142 = scmp.eq.s32.totalorder %s36, 1
    %p143 = por %p141, %p142
    %p145 = scmp.ne.s32.totalorder %s130, %s144
    %p146 = scmp.eq.s32.totalorder %s36, 0
    %p147 = por %p145, %p146
    %s149 = sadd.s32 %s148, 1
    %p152 = scmp.eq.s32.totalorder %s30, 1
    %p153 = scmp.ne.s32.totalorder %s148, %s150
    %p154 = scmp.eq.s32.totalorder %s30, 0
    %p155 = por %p153, %p154
    %p156 = scmp.ne.s32.totalorder %s148, %s150
    %p157 = scmp.eq.s32.totalorder %s35, 1
    %p158 = por %p156, %p157
    %p159 = scmp.ne.s32.totalorder %s150, %s151
    %p160 = scmp.eq.s32.totalorder %s35, 0
    %p161 = por %p159, %p160
    %p162 = scmp.ne.s32.totalorder %s150, %s151
    %p163 = scmp.eq.s32.totalorder %s36, 1
    %p164 = por %p162, %p163
    %p166 = scmp.ne.s32.totalorder %s151, %s165
    %p167 = scmp.eq.s32.totalorder %s36, 0
    %p168 = por %p166, %p167
    %s170 = sadd.s32 %s169, 1
    %p173 = scmp.eq.s32.totalorder %s30, 1
    %p174 = scmp.ne.s32.totalorder %s169, %s171
    %p175 = scmp.eq.s32.totalorder %s30, 0
    %p176 = por %p174, %p175
    %p177 = scmp.ne.s32.totalorder %s169, %s171
    %p178 = scmp.eq.s32.totalorder %s35, 1
    %p179 = por %p177, %p178
    %p180 = scmp.ne.s32.totalorder %s171, %s172
    %p181 = scmp.eq.s32.totalorder %s35, 0
    %p182 = por %p180, %p181
    %p183 = scmp.ne.s32.totalorder %s171, %s172
    %p184 = scmp.eq.s32.totalorder %s36, 1
    %p185 = por %p183, %p184
    %p187 = scmp.ne.s32.totalorder %s172, %s186
    %p188 = scmp.eq.s32.totalorder %s36, 0
    %p189 = por %p187, %p188
    %s191 = sadd.s32 %s190, 1
    %p194 = scmp.eq.s32.totalorder %s30, 1
    %p195 = scmp.ne.s32.totalorder %s190, %s192
    %p196 = scmp.eq.s32.totalorder %s30, 0
    %p197 = por %p195, %p196
    %p198 = scmp.ne.s32.totalorder %s190, %s192
    %p199 = scmp.eq.s32.totalorder %s35, 1
    %p200 = por %p198, %p199
    %p201 = scmp.ne.s32.totalorder %s192, %s193
    %p202 = scmp.eq.s32.totalorder %s35, 0
    %p203 = por %p201, %p202
    %p204 = scmp.ne.s32.totalorder %s192, %s193
    %p205 = scmp.eq.s32.totalorder %s36, 1
    %p206 = por %p204, %p205
    %p208 = scmp.ne.s32.totalorder %s193, %s207
    %p209 = scmp.eq.s32.totalorder %s36, 0
    %p210 = por %p208, %p209
    %s212 = sadd.s32 %s211, 1
    %p215 = scmp.eq.s32.totalorder %s30, 1
    %p216 = scmp.ne.s32.totalorder %s211, %s213
    %p217 = scmp.eq.s32.totalorder %s30, 0
    %p218 = por %p216, %p217
    %p219 = scmp.ne.s32.totalorder %s211, %s213
    %p220 = scmp.eq.s32.totalorder %s35, 1
    %p221 = por %p219, %p220
    %p222 = scmp.ne.s32.totalorder %s213, %s214
    %p223 = scmp.eq.s32.totalorder %s35, 0
    %p224 = por %p222, %p223
    %p225 = scmp.ne.s32.totalorder %s213, %s214
    %p226 = scmp.eq.s32.totalorder %s36, 1
    %p227 = por %p225, %p226
    %p229 = scmp.ne.s32.totalorder %s214, %s228
    %p230 = scmp.eq.s32.totalorder %s36, 0
    %p231 = por %p229, %p230
    %s233 = sadd.s32 %s232, 1
    %p236 = scmp.eq.s32.totalorder %s30, 1
    %p237 = scmp.ne.s32.totalorder %s232, %s234
    %p238 = scmp.eq.s32.totalorder %s30, 0
    %p239 = por %p237, %p238
    %p240 = scmp.ne.s32.totalorder %s232, %s234
    %p241 = scmp.eq.s32.totalorder %s35, 1
    %p242 = por %p240, %p241
    %p243 = scmp.ne.s32.totalorder %s234, %s235
    %p244 = scmp.eq.s32.totalorder %s35, 0
    %p245 = por %p243, %p244
    %p246 = scmp.ne.s32.totalorder %s234, %s235
    %p247 = scmp.eq.s32.totalorder %s36, 1
    %p248 = por %p246, %p247
    %p250 = scmp.ne.s32.totalorder %s235, %s249
    %p251 = scmp.eq.s32.totalorder %s36, 0
    %p252 = por %p250, %p251
    %s254 = sadd.s32 %s253, 1
    %p257 = scmp.eq.s32.totalorder %s30, 1
    %p258 = scmp.ne.s32.totalorder %s253, %s255
    %p259 = scmp.eq.s32.totalorder %s30, 0
    %p260 = por %p258, %p259
    %p261 = scmp.ne.s32.totalorder %s253, %s255
    %p262 = scmp.eq.s32.totalorder %s35, 1
    %p263 = por %p261, %p262
    %p264 = scmp.ne.s32.totalorder %s255, %s256
    %p265 = scmp.eq.s32.totalorder %s35, 0
    %p266 = por %p264, %p265
    %p267 = scmp.ne.s32.totalorder %s255, %s256
    %p268 = scmp.eq.s32.totalorder %s36, 1
    %p269 = por %p267, %p268
    %p271 = scmp.ne.s32.totalorder %s256, %s270
    %p272 = scmp.eq.s32.totalorder %s36, 0
    %p273 = por %p271, %p272
    %s275 = sadd.s32 %s274, 1
    %p278 = scmp.eq.s32.totalorder %s30, 1
    %p279 = scmp.ne.s32.totalorder %s274, %s276
    %p280 = scmp.eq.s32.totalorder %s30, 0
    %p281 = por %p279, %p280
    %p282 = scmp.ne.s32.totalorder %s274, %s276
    %p283 = scmp.eq.s32.totalorder %s35, 1
    %p284 = por %p282, %p283
    %p285 = scmp.ne.s32.totalorder %s276, %s277
    %p286 = scmp.eq.s32.totalorder %s35, 0
    %p287 = por %p285, %p286
    %p288 = scmp.ne.s32.totalorder %s276, %s277
    %p289 = scmp.eq.s32.totalorder %s36, 1
    %p290 = por %p288, %p289
    %p292 = scmp.ne.s32.totalorder %s277, %s291
    %p293 = scmp.eq.s32.totalorder %s36, 0
    %p294 = por %p292, %p293
    %s296 = sadd.s32 %s295, 1
    %p299 = scmp.eq.s32.totalorder %s30, 1
    %p300 = scmp.ne.s32.totalorder %s295, %s297
    %p301 = scmp.eq.s32.totalorder %s30, 0
    %p302 = por %p300, %p301
    %p303 = scmp.ne.s32.totalorder %s295, %s297
    %p304 = scmp.eq.s32.totalorder %s35, 1
    %p305 = por %p303, %p304
    %p306 = scmp.ne.s32.totalorder %s297, %s298
    %p307 = scmp.eq.s32.totalorder %s35, 0
    %p308 = por %p306, %p307
    %p309 = scmp.ne.s32.totalorder %s297, %s298
    %p310 = scmp.eq.s32.totalorder %s36, 1
    %p311 = por %p309, %p310
    %p313 = scmp.ne.s32.totalorder %s298, %s312
    %p314 = scmp.eq.s32.totalorder %s36, 0
    %p315 = por %p313, %p314
    %s317 = sadd.s32 %s316, 1
    %p320 = scmp.eq.s32.totalorder %s30, 1
    %p321 = scmp.ne.s32.totalorder %s316, %s318
    %p322 = scmp.eq.s32.totalorder %s30, 0
    %p323 = por %p321, %p322
    %p324 = scmp.ne.s32.totalorder %s316, %s318
    %p325 = scmp.eq.s32.totalorder %s35, 1
    %p326 = por %p324, %p325
    %p327 = scmp.ne.s32.totalorder %s318, %s319
    %p328 = scmp.eq.s32.totalorder %s35, 0
    %p329 = por %p327, %p328
    %p330 = scmp.ne.s32.totalorder %s318, %s319
    %p331 = scmp.eq.s32.totalorder %s36, 1
    %p332 = por %p330, %p331
    %p334 = scmp.ne.s32.totalorder %s319, %s333
    %p335 = scmp.eq.s32.totalorder %s36, 0
    %p336 = por %p334, %p335
    %s338 = sadd.s32 %s337, 1
    %p341 = scmp.eq.s32.totalorder %s30, 1
    %p342 = scmp.ne.s32.totalorder %s337, %s339
    %p343 = scmp.eq.s32.totalorder %s30, 0
    %p344 = por %p342, %p343
    %p345 = scmp.ne.s32.totalorder %s337, %s339
    %p346 = scmp.eq.s32.totalorder %s35, 1
    %p347 = por %p345, %p346
    %p348 = scmp.ne.s32.totalorder %s339, %s340
    %p349 = scmp.eq.s32.totalorder %s35, 0
    %p350 = por %p348, %p349
    %p351 = scmp.ne.s32.totalorder %s339, %s340
    %p352 = scmp.eq.s32.totalorder %s36, 1
    %p353 = por %p351, %p352
    %p355 = scmp.ne.s32.totalorder %s340, %s354
    %p356 = scmp.eq.s32.totalorder %s36, 0
    %p357 = por %p355, %p356
    %s359 = sadd.s32 %s358, 1
    %p362 = scmp.eq.s32.totalorder %s30, 1
    %p363 = scmp.ne.s32.totalorder %s358, %s360
    %p364 = scmp.eq.s32.totalorder %s30, 0
    %p365 = por %p363, %p364
    %p366 = scmp.ne.s32.totalorder %s358, %s360
    %p367 = scmp.eq.s32.totalorder %s35, 1
    %p368 = por %p366, %p367
    %p369 = scmp.ne.s32.totalorder %s360, %s361
    %p370 = scmp.eq.s32.totalorder %s35, 0
    %p371 = por %p369, %p370
    %p372 = scmp.ne.s32.totalorder %s360, %s361
    %p373 = scmp.eq.s32.totalorder %s36, 1
    %p374 = por %p372, %p373
    %p376 = scmp.ne.s32.totalorder %s361, %s375
    %p377 = scmp.eq.s32.totalorder %s36, 0
    %p378 = por %p376, %p377
    %s380 = sadd.s32 %s379, 1
    %p383 = scmp.eq.s32.totalorder %s30, 1
    %p384 = scmp.ne.s32.totalorder %s379, %s381
    %p385 = scmp.eq.s32.totalorder %s30, 0
    %p386 = por %p384, %p385
    %p387 = scmp.ne.s32.totalorder %s379, %s381
    %p388 = scmp.eq.s32.totalorder %s35, 1
    %p389 = por %p387, %p388
    %p390 = scmp.ne.s32.totalorder %s381, %s382
    %p391 = scmp.eq.s32.totalorder %s35, 0
    %p392 = por %p390, %p391
    %p393 = scmp.ne.s32.totalorder %s381, %s382
    %p394 = scmp.eq.s32.totalorder %s36, 1
    %p395 = por %p393, %p394
    %p397 = scmp.ne.s32.totalorder %s382, %s396
    %p398 = scmp.eq.s32.totalorder %s36, 0
    %p399 = por %p397, %p398
    %s401 = sadd.s32 %s400, 1
    %p404 = scmp.eq.s32.totalorder %s30, 1
    %p405 = scmp.ne.s32.totalorder %s400, %s402
    %p406 = scmp.eq.s32.totalorder %s30, 0
    %p407 = por %p405, %p406
    %p408 = scmp.ne.s32.totalorder %s400, %s402
    %p409 = scmp.eq.s32.totalorder %s35, 1
    %p410 = por %p408, %p409
    %p411 = scmp.ne.s32.totalorder %s402, %s403
    %p412 = scmp.eq.s32.totalorder %s35, 0
    %p413 = por %p411, %p412
    %p414 = scmp.ne.s32.totalorder %s402, %s403
    %p415 = scmp.eq.s32.totalorder %s36, 1
    %p416 = por %p414, %p415
    %p418 = scmp.ne.s32.totalorder %s403, %s417
    %p419 = scmp.eq.s32.totalorder %s36, 0
    %p420 = por %p418, %p419
    %s422 = sadd.s32 %s421, 1
    %p425 = scmp.eq.s32.totalorder %s30, 1
    %p426 = scmp.ne.s32.totalorder %s421, %s423
    %p427 = scmp.eq.s32.totalorder %s30, 0
    %p428 = por %p426, %p427
    %p429 = scmp.ne.s32.totalorder %s421, %s423
    %p430 = scmp.eq.s32.totalorder %s35, 1
    %p431 = por %p429, %p430
    %p432 = scmp.ne.s32.totalorder %s423, %s424
    %p433 = scmp.eq.s32.totalorder %s35, 0
    %p434 = por %p432, %p433
    %p435 = scmp.ne.s32.totalorder %s423, %s424
    %p436 = scmp.eq.s32.totalorder %s36, 1
    %p437 = por %p435, %p436
    %p439 = scmp.ne.s32.totalorder %s424, %s438
    %p440 = scmp.eq.s32.totalorder %s36, 0
    %p441 = por %p439, %p440
    %s443 = sadd.s32 %s442, 1
    %p446 = scmp.eq.s32.totalorder %s30, 1
    %p447 = scmp.ne.s32.totalorder %s442, %s444
    %p448 = scmp.eq.s32.totalorder %s30, 0
    %p449 = por %p447, %p448
    %p450 = scmp.ne.s32.totalorder %s442, %s444
    %p451 = scmp.eq.s32.totalorder %s35, 1
    %p452 = por %p450, %p451
    %p453 = scmp.ne.s32.totalorder %s444, %s445
    %p454 = scmp.eq.s32.totalorder %s35, 0
    %p455 = por %p453, %p454
    %p456 = scmp.ne.s32.totalorder %s444, %s445
    %p457 = scmp.eq.s32.totalorder %s36, 1
    %p458 = por %p456, %p457
    %p460 = scmp.ne.s32.totalorder %s445, %s459
    %p461 = scmp.eq.s32.totalorder %s36, 0
    %p462 = por %p460, %p461
    %s464 = sadd.s32 %s463, 1
    %p467 = scmp.eq.s32.totalorder %s30, 1
    %p468 = scmp.ne.s32.totalorder %s463, %s465
    %p469 = scmp.eq.s32.totalorder %s30, 0
    %p470 = por %p468, %p469
    %p471 = scmp.ne.s32.totalorder %s463, %s465
    %p472 = scmp.eq.s32.totalorder %s35, 1
    %p473 = por %p471, %p472
    %p474 = scmp.ne.s32.totalorder %s465, %s466
    %p475 = scmp.eq.s32.totalorder %s35, 0
    %p476 = por %p474, %p475
    %p477 = scmp.ne.s32.totalorder %s465, %s466
    %p478 = scmp.eq.s32.totalorder %s36, 1
    %p479 = por %p477, %p478
    %p481 = scmp.ne.s32.totalorder %s466, %s480
    %p482 = scmp.eq.s32.totalorder %s36, 0
    %p483 = por %p481, %p482
    %s484 = ssub.s32 %s30, %s37
    %p485 = scmp.eq.s32.totalorder %s484, 0
    %s487 = sadd.s32 %s486, 1
    %s488 = scalar_select %p485, %s486, %s487
    %p491 = pneg %p485
    %p492 = scmp.eq.s32.totalorder %s30, 1
    %p493 = por %p491, %p492
    %p494 = scmp.ne.s32.totalorder %s486, %s489
    %p495 = scmp.eq.s32.totalorder %s30, 0
    %p496 = por %p494, %p495
    %p497 = scmp.ne.s32.totalorder %s486, %s489
    %p498 = scmp.eq.s32.totalorder %s35, 1
    %p499 = por %p497, %p498
    %p500 = scmp.ne.s32.totalorder %s489, %s490
    %p501 = scmp.eq.s32.totalorder %s35, 0
    %p502 = por %p500, %p501
    %p503 = scmp.ne.s32.totalorder %s489, %s490
    %p504 = scmp.eq.s32.totalorder %s36, 1
    %p505 = por %p503, %p504
    %p507 = scmp.ne.s32.totalorder %s490, %s506
    %p508 = scmp.eq.s32.totalorder %s36, 0
    %p509 = por %p507, %p508
    %s510 = ssub.s32 %s30, %s37
    %p511 = scmp.eq.s32.totalorder %s510, 0
    %s513 = sadd.s32 %s512, 1
    %s514 = scalar_select %p511, %s512, %s513
    %p517 = pneg %p511
    %p518 = scmp.eq.s32.totalorder %s30, 1
    %p519 = por %p517, %p518
    %p520 = scmp.ne.s32.totalorder %s512, %s515
    %p521 = scmp.eq.s32.totalorder %s30, 0
    %p522 = por %p520, %p521
    %p523 = scmp.ne.s32.totalorder %s512, %s515
    %p524 = scmp.eq.s32.totalorder %s35, 1
    %p525 = por %p523, %p524
    %p526 = scmp.ne.s32.totalorder %s515, %s516
    %p527 = scmp.eq.s32.totalorder %s35, 0
    %p528 = por %p526, %p527
    %p529 = scmp.ne.s32.totalorder %s515, %s516
    %p530 = scmp.eq.s32.totalorder %s36, 1
    %p531 = por %p529, %p530
    %p533 = scmp.ne.s32.totalorder %s516, %s532
    %p534 = scmp.eq.s32.totalorder %s36, 0
    %p535 = por %p533, %p534
    %s536 = ssub.s32 %s30, %s37
    %p537 = scmp.eq.s32.totalorder %s536, 0
    %s539 = sadd.s32 %s538, 1
    %s540 = scalar_select %p537, %s538, %s539
    %p543 = pneg %p537
    %p544 = scmp.eq.s32.totalorder %s30, 1
    %p545 = por %p543, %p544
    %p546 = scmp.ne.s32.totalorder %s538, %s541
    %p547 = scmp.eq.s32.totalorder %s30, 0
    %p548 = por %p546, %p547
    %p549 = scmp.ne.s32.totalorder %s538, %s541
    %p550 = scmp.eq.s32.totalorder %s35, 1
    %p551 = por %p549, %p550
    %p552 = scmp.ne.s32.totalorder %s541, %s542
    %p553 = scmp.eq.s32.totalorder %s35, 0
    %p554 = por %p552, %p553
    %p555 = scmp.ne.s32.totalorder %s541, %s542
    %p556 = scmp.eq.s32.totalorder %s36, 1
    %p557 = por %p555, %p556
    %p559 = scmp.ne.s32.totalorder %s542, %s558
    %p560 = scmp.eq.s32.totalorder %s36, 0
    %p561 = por %p559, %p560
    %p562 = scmp.le.s32.totalorder 1, %s30
    %p563 = scmp.lt.s32.totalorder %s30, 3
    %p564 = pnand %p562, %p563
    %p565 = pneg %p564
    // Predicated region
    $region9: #{backbone_neck_forward.1} parent=5 // pred_check
      _
    $region10: #{backbone_neck_forward.1} parent=5 // pred_check_branch
      %567 = sbr.rel (%p564) target = $region12
    $region11: #{backbone_neck_forward.1} parent=5 // pred_region
      %s568 = ssub.s32 %s30, 1
      // Predicated region
      $region13: #{backbone_neck_forward.1} parent=11 // pred_check
        %p569 = pneg %p77
      $region14: #{backbone_neck_forward.1} parent=11 // pred_check_branch
        %571 = sbr.rel (%p569) target = $region16
      $region15: #{backbone_neck_forward.1} parent=11 // pred_region
        _
      $region16: #{backbone_neck_forward.1} parent=11 // pred_fallthru
        _
      // Predicated region
      $region17: #{backbone_neck_forward.1} parent=11 // pred_check
        %p572 = pneg %p98
      $region18: #{backbone_neck_forward.1} parent=11 // pred_check_branch
        %574 = sbr.rel (%p572) target = $region20
      $region19: #{backbone_neck_forward.1} parent=11 // pred_region
        _
      $region20: #{backbone_neck_forward.1} parent=11 // pred_fallthru
        _
      // Predicated region
      $region21: #{backbone_neck_forward.1} parent=11 // pred_check
        %p575 = pneg %p119
      $region22: #{backbone_neck_forward.1} parent=11 // pred_check_branch
        %577 = sbr.rel (%p575) target = $region24
      $region23: #{backbone_neck_forward.1} parent=11 // pred_region
        _
      $region24: #{backbone_neck_forward.1} parent=11 // pred_fallthru
        _
      // Predicated region
      $region25: #{backbone_neck_forward.1} parent=11 // pred_check
        %p578 = pneg %p140
      $region26: #{backbone_neck_forward.1} parent=11 // pred_check_branch
        %580 = sbr.rel (%p578) target = $region28
      $region27: #{backbone_neck_forward.1} parent=11 // pred_region
        _
      $region28: #{backbone_neck_forward.1} parent=11 // pred_fallthru
        _
      // Predicated region
      $region29: #{backbone_neck_forward.1} parent=11 // pred_check
        %p581 = pneg %p161
      $region30: #{backbone_neck_forward.1} parent=11 // pred_check_branch
        %583 = sbr.rel (%p581) target = $region32
      $region31: #{backbone_neck_forward.1} parent=11 // pred_region
        _
      $region32: #{backbone_neck_forward.1} parent=11 // pred_fallthru
        _
      // Predicated region
      $region33: #{backbone_neck_forward.1} parent=11 // pred_check
        %p584 = pneg %p182
      $region34: #{backbone_neck_forward.1} parent=11 // pred_check_branch
        %586 = sbr.rel (%p584) target = $region36
      $region35: #{backbone_neck_forward.1} parent=11 // pred_region
        _
      $region36: #{backbone_neck_forward.1} parent=11 // pred_fallthru
        _
      // Predicated region
      $region37: #{backbone_neck_forward.1} parent=11 // pred_check
        %p587 = pneg %p203
      $region38: #{backbone_neck_forward.1} parent=11 // pred_check_branch
        %589 = sbr.rel (%p587) target = $region40
      $region39: #{backbone_neck_forward.1} parent=11 // pred_region
        _
      $region40: #{backbone_neck_forward.1} parent=11 // pred_fallthru
        _
      // Predicated region
      $region41: #{backbone_neck_forward.1} parent=11 // pred_check
        %p590 = pneg %p224
      $region42: #{backbone_neck_forward.1} parent=11 // pred_check_branch
        %592 = sbr.rel (%p590) target = $region44
      $region43: #{backbone_neck_forward.1} parent=11 // pred_region
        _
      $region44: #{backbone_neck_forward.1} parent=11 // pred_fallthru
        _
      // Predicated region
      $region45: #{backbone_neck_forward.1} parent=11 // pred_check
        %p593 = pneg %p245
      $region46: #{backbone_neck_forward.1} parent=11 // pred_check_branch
        %595 = sbr.rel (%p593) target = $region48
      $region47: #{backbone_neck_forward.1} parent=11 // pred_region
        _
      $region48: #{backbone_neck_forward.1} parent=11 // pred_fallthru
        _
      // Predicated region
      $region49: #{backbone_neck_forward.1} parent=11 // pred_check
        %p596 = pneg %p266
      $region50: #{backbone_neck_forward.1} parent=11 // pred_check_branch
        %598 = sbr.rel (%p596) target = $region52
      $region51: #{backbone_neck_forward.1} parent=11 // pred_region
        _
      $region52: #{backbone_neck_forward.1} parent=11 // pred_fallthru
        _
      // Predicated region
      $region53: #{backbone_neck_forward.1} parent=11 // pred_check
        %p599 = pneg %p287
      $region54: #{backbone_neck_forward.1} parent=11 // pred_check_branch
        %601 = sbr.rel (%p599) target = $region56
      $region55: #{backbone_neck_forward.1} parent=11 // pred_region
        _
      $region56: #{backbone_neck_forward.1} parent=11 // pred_fallthru
        _
      // Predicated region
      $region57: #{backbone_neck_forward.1} parent=11 // pred_check
        %p602 = pneg %p308
      $region58: #{backbone_neck_forward.1} parent=11 // pred_check_branch
        %604 = sbr.rel (%p602) target = $region60
      $region59: #{backbone_neck_forward.1} parent=11 // pred_region
        _
      $region60: #{backbone_neck_forward.1} parent=11 // pred_fallthru
        _
      // Predicated region
      $region61: #{backbone_neck_forward.1} parent=11 // pred_check
        %p605 = pneg %p329
      $region62: #{backbone_neck_forward.1} parent=11 // pred_check_branch
        %607 = sbr.rel (%p605) target = $region64
      $region63: #{backbone_neck_forward.1} parent=11 // pred_region
        _
      $region64: #{backbone_neck_forward.1} parent=11 // pred_fallthru
        _
      // Predicated region
      $region65: #{backbone_neck_forward.1} parent=11 // pred_check
        %p608 = pneg %p350
      $region66: #{backbone_neck_forward.1} parent=11 // pred_check_branch
        %610 = sbr.rel (%p608) target = $region68
      $region67: #{backbone_neck_forward.1} parent=11 // pred_region
        _
      $region68: #{backbone_neck_forward.1} parent=11 // pred_fallthru
        _
      // Predicated region
      $region69: #{backbone_neck_forward.1} parent=11 // pred_check
        %p611 = pneg %p371
      $region70: #{backbone_neck_forward.1} parent=11 // pred_check_branch
        %613 = sbr.rel (%p611) target = $region72
      $region71: #{backbone_neck_forward.1} parent=11 // pred_region
        _
      $region72: #{backbone_neck_forward.1} parent=11 // pred_fallthru
        _
      // Predicated region
      $region73: #{backbone_neck_forward.1} parent=11 // pred_check
        %p614 = pneg %p392
      $region74: #{backbone_neck_forward.1} parent=11 // pred_check_branch
        %616 = sbr.rel (%p614) target = $region76
      $region75: #{backbone_neck_forward.1} parent=11 // pred_region
        _
      $region76: #{backbone_neck_forward.1} parent=11 // pred_fallthru
        _
      // Predicated region
      $region77: #{backbone_neck_forward.1} parent=11 // pred_check
        %p617 = pneg %p413
      $region78: #{backbone_neck_forward.1} parent=11 // pred_check_branch
        %619 = sbr.rel (%p617) target = $region80
      $region79: #{backbone_neck_forward.1} parent=11 // pred_region
        _
      $region80: #{backbone_neck_forward.1} parent=11 // pred_fallthru
        _
      // Predicated region
      $region81: #{backbone_neck_forward.1} parent=11 // pred_check
        %p620 = pneg %p434
      $region82: #{backbone_neck_forward.1} parent=11 // pred_check_branch
        %622 = sbr.rel (%p620) target = $region84
      $region83: #{backbone_neck_forward.1} parent=11 // pred_region
        _
      $region84: #{backbone_neck_forward.1} parent=11 // pred_fallthru
        _
      // Predicated region
      $region85: #{backbone_neck_forward.1} parent=11 // pred_check
        %p623 = pneg %p455
      $region86: #{backbone_neck_forward.1} parent=11 // pred_check_branch
        %625 = sbr.rel (%p623) target = $region88
      $region87: #{backbone_neck_forward.1} parent=11 // pred_region
        _
      $region88: #{backbone_neck_forward.1} parent=11 // pred_fallthru
        _
      // Predicated region
      $region89: #{backbone_neck_forward.1} parent=11 // pred_check
        %p626 = pneg %p476
      $region90: #{backbone_neck_forward.1} parent=11 // pred_check_branch
        %628 = sbr.rel (%p626) target = $region92
      $region91: #{backbone_neck_forward.1} parent=11 // pred_region
        _
      $region92: #{backbone_neck_forward.1} parent=11 // pred_fallthru
        _
    $region12: #{backbone_neck_forward.1} parent=5 // pred_fallthru
      _
    %p629 = scmp.lt.s32.totalorder %s30, 2
    // Predicated region
    $region93: #{backbone_neck_forward.1} parent=5 // pred_check
      %p630 = pneg %p629
    $region94: #{backbone_neck_forward.1} parent=5 // pred_check_branch
      %632 = sbr.rel (%p630) target = $region96
    $region95: #{backbone_neck_forward.1} parent=5 // pred_region
      // Predicated region
      $region97: #{backbone_neck_forward.1} parent=95 // pred_check
        %p633 = pneg %p50
      $region98: #{backbone_neck_forward.1} parent=95 // pred_check_branch
        %635 = sbr.rel (%p633) target = $region100
      $region99: #{backbone_neck_forward.1} parent=95 // pred_region
        %p636 = scmp.lt.s32.totalorder %s30, 1
        %s637 = scalar_select %p636, %s30, 1
        %s638 = smul.addr %s637, 41
        %s639 = smul.addr %s638, 8
        %s640 = scalar_lea.vmem %s0, %s639
      $region100: #{backbone_neck_forward.1} parent=95 // pred_fallthru
        _
    $region96: #{backbone_neck_forward.1} parent=5 // pred_fallthru
      _
    %p641 = scmp.le.s32.totalorder 1, %s30
    %p642 = scmp.lt.s32.totalorder %s30, 3
    %p643 = pnand %p641, %p642
    %p644 = pneg %p643
    // Predicated region
    $region101: #{backbone_neck_forward.1} parent=5 // pred_check
      _
    $region102: #{backbone_neck_forward.1} parent=5 // pred_check_branch
      %646 = sbr.rel (%p643) target = $region104
    $region103: #{backbone_neck_forward.1} parent=5 // pred_region
      %s647 = ssub.s32 %s30, 1
      %p648 = scmp.lt.s32.totalorder %s35, 1
      %s649 = scalar_select %p648, %s35, 1
      %s650 = smul.addr %s649, 41
      %s651 = smul.addr %s650, 8
      %s652 = scalar_lea.vmem %s0, %s651
      %p653 = pneg %p56
      %p654 = pneg %p53
      %p655 = pneg %p77
      %p656 = pneg %p74
      %p657 = pneg %p98
      %p658 = pneg %p95
      %p659 = pneg %p119
      %p660 = pneg %p116
      %p661 = pneg %p140
      %p662 = pneg %p137
      %p663 = pneg %p161
      %p664 = pneg %p158
      %p665 = pneg %p182
      %p666 = pneg %p179
      %p667 = pneg %p203
      %p668 = pneg %p200
      %p669 = pneg %p224
      %p670 = pneg %p221
      %p671 = pneg %p245
      %p672 = pneg %p242
      %p673 = pneg %p266
      %p674 = pneg %p263
      %p675 = pneg %p287
      %p676 = pneg %p284
      %p677 = pneg %p308
      %p678 = pneg %p305
      %p679 = pneg %p329
      %p680 = pneg %p326
      %p681 = pneg %p350
      %p682 = pneg %p347
      %p683 = pneg %p371
      %p684 = pneg %p368
      %p685 = pneg %p392
      %p686 = pneg %p389
      %p687 = pneg %p413
      %p688 = pneg %p410
      %p689 = pneg %p434
      %p690 = pneg %p431
      %p691 = pneg %p455
      %p692 = pneg %p452
      %p693 = pneg %p476
      %p694 = pneg %p473
      %p695 = pneg %p502
      %p696 = pneg %p499
      %p697 = scmp.lt.s32.totalorder %s35, 1
      %s698 = scalar_select %p697, %s35, 1
      %s699 = smul.addr %s698, 10
      %s700 = smul.addr %s699, 8
      %s701 = scalar_lea.vmem %s21, %s700
      %p702 = pneg %p528
      %p703 = pneg %p525
      %p704 = scmp.lt.s32.totalorder %s35, 1
      %s705 = scalar_select %p704, %s35, 1
      %s706 = smul.addr %s705, 3
      %s707 = smul.addr %s706, 8
      %s708 = scalar_lea.vmem %s22, %s707
      %p709 = pneg %p554
      %p710 = pneg %p551
      %p711 = scmp.lt.s32.totalorder %s35, 1
      %s712 = scalar_select %p711, %s35, 1
      %s713 = smul.addr %s712, 8
      %s714 = scalar_lea.vmem %s23, %s713
      %p715 = scmp.lt.s32.totalorder %s35, 1
      %s716 = scalar_select %p715, %s35, 1
      %s717 = smul.addr %s716, 41
      %s718 = smul.addr %s717, 8
      %s719 = scalar_lea.vmem %s0, %s718
      %p720 = scmp.lt.s32.totalorder %s35, 1
      %s721 = scalar_select %p720, %s35, 1
      %s722 = smul.addr %s721, 10
      %s723 = smul.addr %s722, 8
      %s724 = scalar_lea.vmem %s21, %s723
      %p725 = scmp.lt.s32.totalorder %s35, 1
      %s726 = scalar_select %p725, %s35, 1
      %s727 = smul.addr %s726, 3
      %s728 = smul.addr %s727, 8
      %s729 = scalar_lea.vmem %s22, %s728
      %p730 = scmp.lt.s32.totalorder %s35, 1
      %s731 = scalar_select %p730, %s35, 1
      %s732 = smul.addr %s731, 8
      %s733 = scalar_lea.vmem %s23, %s732
      %vm734 = vcmask 64512
      %735 = vst.msk [vmem:[#allocation2] sm:$0xff] %vm734, 0.0
      %736 = vst.msk [vmem:[#allocation2 + $0x8] sm:$0xff] %vm734, 0.0
      %737 = vst.msk [vmem:[#allocation2 + $0x10] sm:$0xff] %vm734, 0.0
      %738 = vst.msk [vmem:[#allocation2 + $0x18] sm:$0xff] %vm734, 0.0
      %739 = vst.msk [vmem:[#allocation2 + $0x20] sm:$0xff] %vm734, 0.0
      %740 = vst.msk [vmem:[#allocation2 + $0x28] sm:$0xff] %vm734, 0.0
      %741 = vst.msk [vmem:[#allocation2 + $0x30] sm:$0xff] %vm734, 0.0
      %742 = vst.msk [vmem:[#allocation2 + $0x38] sm:$0xff] %vm734, 0.0
      %743 = vst.msk [vmem:[#allocation2 + $0x40] sm:$0xff] %vm734, 0.0
      %744 = vst.msk [vmem:[#allocation2 + $0x48] sm:$0xff] %vm734, 0.0
      %745 = vst.msk [vmem:[#allocation2 + $0x50] sm:$0xff] %vm734, 0.0
      %746 = vst.msk [vmem:[#allocation2 + $0x58] sm:$0xff] %vm734, 0.0
      %vm747 = vcmask 60416
      %748 = vst.msk [vmem:[#allocation2 + $0x60] sm:$0xf] %vm747, 0.0
      %vm749 = vcmask 130048
      %750 = vst.msk [vmem:[#allocation3] sm:$0xff] %vm749, 0.0
      %751 = vst.msk [vmem:[#allocation3 + $0x8] sm:$0xff] %vm749, 0.0
      %752 = vst.msk [vmem:[#allocation3 + $0x10] sm:$0xff] %vm749, 0.0
      %753 = vst.msk [vmem:[#allocation3 + $0x18] sm:$0xff] %vm749, 0.0
      %vm754 = vcmask 125952
      %755 = vst.msk [vmem:[#allocation3 + $0x20] sm:$0xf] %vm754, 0.0
      %756 = vst.msk [vmem:[#allocation4] sm:$0xff] %vm749, 0.0
      %757 = vst.msk [vmem:[#allocation4 + $0x8] sm:$0xff] %vm749, 0.0
      %758 = vst.msk [vmem:[#allocation4 + $0x10] sm:$0xff] %vm749, 0.0
      %759 = vst.msk [vmem:[#allocation4 + $0x18] sm:$0xff] %vm749, 0.0
      %760 = vst.msk [vmem:[#allocation4 + $0x20] sm:$0xff] %vm749, 0.0
      %761 = vst.msk [vmem:[#allocation4 + $0x28] sm:$0xff] %vm749, 0.0
      %762 = vst.msk [vmem:[#allocation4 + $0x30] sm:$0xff] %vm749, 0.0
      %763 = vst.msk [vmem:[#allocation4 + $0x38] sm:$0xff] %vm749, 0.0
      %764 = vst.msk [vmem:[#allocation4 + $0x40] sm:$0xff] %vm749, 0.0
      %765 = vst.msk [vmem:[#allocation4 + $0x48] sm:$0xff] %vm749, 0.0
      %766 = vst.msk [vmem:[#allocation4 + $0x50] sm:$0xff] %vm749, 0.0
      %767 = vst.msk [vmem:[#allocation4 + $0x58] sm:$0xff] %vm749, 0.0
      %vm768 = vcmask 128000
      %769 = vst.msk [vmem:[#allocation4 + $0x60] sm:$0x3f] %vm768, 0.0
      %770 = vst.msk [vmem:[#allocation5] sm:$0xff] %vm749, 0.0
      %771 = vst.msk [vmem:[#allocation5 + $0x8] sm:$0xff] %vm749, 0.0
      %772 = vst.msk [vmem:[#allocation5 + $0x10] sm:$0xff] %vm749, 0.0
      %773 = vst.msk [vmem:[#allocation5 + $0x18] sm:$0xff] %vm749, 0.0
      %774 = vst.msk [vmem:[#allocation5 + $0x20] sm:$0x3f] %vm768, 0.0
      %775 = vst.msk [vmem:[#allocation6] sm:$0xff] %vm749, 0.0
      %776 = vst.msk [vmem:[#allocation6 + $0x8] sm:$0xff] %vm749, 0.0
      %vm777 = vcmask 123904
      %778 = vst.msk [vmem:[#allocation6 + $0x10] sm:$0x3] %vm777, 0.0
      %v779 = vld [vmem:[%s719] ss:$2 sm:$0xff]
      %s780 = scalar_lea.vmem %s719, 16
      %v781 = vld [vmem:[%s780] ss:$2 sm:$0xff]
      %s782 = scalar_lea.vmem %s719, 32
      %v783 = vld [vmem:[%s782] ss:$2 sm:$0xff]
      %s784 = scalar_lea.vmem %s719, 48
      %v785 = vld [vmem:[%s784] ss:$2 sm:$0xff]
      %s786 = scalar_lea.vmem %s719, 64
      %v787 = vld [vmem:[%s786] ss:$2 sm:$0xff]
      %s788 = scalar_lea.vmem %s719, 80
      %v789 = vld [vmem:[%s788] ss:$2 sm:$0xff]
      %s790 = scalar_lea.vmem %s719, 96
      %v791 = vld [vmem:[%s790] ss:$2 sm:$0xff]
      %s792 = scalar_lea.vmem %s719, 112
      %v793 = vld [vmem:[%s792] ss:$2 sm:$0xff]
      %s794 = scalar_lea.vmem %s719, 128
      %v795 = vld [vmem:[%s794] ss:$2 sm:$0xff]
      %s796 = scalar_lea.vmem %s719, 144
      %v797 = vld [vmem:[%s796] ss:$2 sm:$0xff]
      %s798 = scalar_lea.vmem %s719, 160
      %v799 = vld [vmem:[%s798] ss:$2 sm:$0xff]
      %s800 = scalar_lea.vmem %s719, 176
      %v801 = vld [vmem:[%s800] ss:$2 sm:$0xff]
      %s802 = scalar_lea.vmem %s719, 192
      %v803 = vld [vmem:[%s802] ss:$2 sm:$0xff]
      %s804 = scalar_lea.vmem %s719, 208
      %v805 = vld [vmem:[%s804] ss:$2 sm:$0xff]
      %s806 = scalar_lea.vmem %s719, 224
      %v807 = vld [vmem:[%s806] ss:$2 sm:$0xff]
      %s808 = scalar_lea.vmem %s719, 240
      %v809 = vld [vmem:[%s808] ss:$2 sm:$0xff]
      %s810 = scalar_lea.vmem %s719, 256
      %v811 = vld [vmem:[%s810] ss:$2 sm:$0x3f]
      %v812 = vld [vmem:[%s1] sm:$0xf]
      %s813 = scalar_lea.vmem %s719, 1
      %v814 = vld [vmem:[%s813] ss:$2 sm:$0xff]
      %s815 = scalar_lea.vmem %s719, 17
      %v816 = vld [vmem:[%s815] ss:$2 sm:$0xff]
      %s817 = scalar_lea.vmem %s719, 33
      %v818 = vld [vmem:[%s817] ss:$2 sm:$0xff]
      %s819 = scalar_lea.vmem %s719, 49
      %v820 = vld [vmem:[%s819] ss:$2 sm:$0xff]
      %s821 = scalar_lea.vmem %s719, 65
      %v822 = vld [vmem:[%s821] ss:$2 sm:$0xff]
      %s823 = scalar_lea.vmem %s719, 81
      %v824 = vld [vmem:[%s823] ss:$2 sm:$0xff]
      %s825 = scalar_lea.vmem %s719, 97
      %v826 = vld [vmem:[%s825] ss:$2 sm:$0xff]
      %s827 = scalar_lea.vmem %s719, 113
      %v828 = vld [vmem:[%s827] ss:$2 sm:$0xff]
      %s829 = scalar_lea.vmem %s719, 129
      %v830 = vld [vmem:[%s829] ss:$2 sm:$0xff]
      %s831 = scalar_lea.vmem %s719, 145
      %v832 = vld [vmem:[%s831] ss:$2 sm:$0xff]
      %s833 = scalar_lea.vmem %s719, 161
      %v834 = vld [vmem:[%s833] ss:$2 sm:$0xff]
      %s835 = scalar_lea.vmem %s719, 177
      %v836 = vld [vmem:[%s835] ss:$2 sm:$0xff]
      %s837 = scalar_lea.vmem %s719, 193
      %v838 = vld [vmem:[%s837] ss:$2 sm:$0xff]
      %s839 = scalar_lea.vmem %s719, 209
      %v840 = vld [vmem:[%s839] ss:$2 sm:$0xff]
      %s841 = scalar_lea.vmem %s719, 225
      %v842 = vld [vmem:[%s841] ss:$2 sm:$0xff]
      %s843 = scalar_lea.vmem %s719, 241
      %v844 = vld [vmem:[%s843] ss:$2 sm:$0xff]
      %s845 = scalar_lea.vmem %s719, 257
      %v846 = vld [vmem:[%s845] ss:$2 sm:$0x3f]
      %v847 = vld [vmem:[%s1 + $0x4] sm:$0xf]
      %vm848 = vcmask 31744
      %v850 = vsel %vm848, %v814, 0
      %v853 = vsel %vm848, %v816, 0
      %v856 = vsel %vm848, %v818, 0
      %v859 = vsel %vm848, %v820, 0
      %v862 = vsel %vm848, %v822, 0
      %v865 = vsel %vm848, %v824, 0
      %v868 = vsel %vm848, %v826, 0
      %v871 = vsel %vm848, %v828, 0
      %v874 = vsel %vm848, %v830, 0
      %v877 = vsel %vm848, %v832, 0
      %v880 = vsel %vm848, %v834, 0
      %v883 = vsel %vm848, %v836, 0
      %v886 = vsel %vm848, %v838, 0
      %v889 = vsel %vm848, %v840, 0
      %v892 = vsel %vm848, %v842, 0
      %v895 = vsel %vm848, %v844, 0
      %v898 = vsel %vm848, %v846, 0
      %vm900 = vcmask 1043456
      %v902 = vsel %vm900, %v847, 0
      %904 = vmatprep.subr.mxu0 0.0
      %905 = vmatpush1.msra.mxu0 %v902
      %906 = vmatprep.subr.mxu0 0.0
      %907 = vmatpush1.msra.mxu0 0.0
      %908 = vmatprep.subr.mxu0 0.0
      %909 = vmatpush1.msra.mxu0 0.0
      %910 = vmatprep.subr.mxu0 0.0
      %911 = vmatpush1.msra.mxu0 0.0
      %912 = vmatprep.subr.mxu0 0.0
      %913 = vmatpush1.msra.mxu0 0.0
      %914 = vmatprep.subr.mxu0 0.0
      %915 = vmatpush1.msra.mxu0 0.0
      %916 = vmatprep.subr.mxu0 0.0
      %917 = vmatpush1.msra.mxu0 0.0
      %918 = vmatprep.subr.mxu0 0.0
      %919 = vmatpush1.msra.mxu0 0.0
      %920 = vmatprep.subr.mxu0 0.0
      %921 = vmatpush1.msra.mxu0 0.0
      %922 = vmatprep.subr.mxu0 0.0
      %923 = vmatpush1.msra.mxu0 0.0
      %924 = vmatprep.subr.mxu0 0.0
      %925 = vmatpush1.msra.mxu0 0.0
      %926 = vmatprep.subr.mxu0 0.0
      %927 = vmatpush1.msra.mxu0 0.0
      %928 = vmatprep.subr.mxu0 0.0
      %929 = vmatpush1.msra.mxu0 0.0
      %930 = vmatprep.subr.mxu0 0.0
      %931 = vmatpush1.msra.mxu0 0.0
      %932 = vmatprep.subr.mxu0 0.0
      %933 = vmatpush1.msra.mxu0 0.0
      %934 = vmatprep.subr.mxu0 0.0
      %935 = vmatpush1.msra.mxu0 0.0
      %936 = vmatprep.subr.mxu0 0.0
      %937 = vmatpush1.msra.mxu0 0.0
      %938 = vmatprep.subr.mxu0 0.0
      %939 = vmatpush1.msra.mxu0 0.0
      %940 = vmatprep.subr.mxu0 0.0
      %941 = vmatpush1.msra.mxu0 0.0
      %942 = vmatprep.subr.mxu0 0.0
      %943 = vmatpush1.msra.mxu0 0.0
      %944 = vmatprep.subr.mxu0 0.0
      %945 = vmatpush1.msra.mxu0 0.0
      %946 = vmatprep.subr.mxu0 0.0
      %947 = vmatpush1.msra.mxu0 0.0
      %948 = vmatprep.subr.mxu0 0.0
      %949 = vmatpush1.msra.mxu0 0.0
      %950 = vmatprep.subr.mxu0 0.0
      %951 = vmatpush1.msra.mxu0 0.0
      %952 = vmatprep.subr.mxu0 0.0
      %953 = vmatpush1.msra.mxu0 0.0
      %954 = vmatprep.subr.mxu0 0.0
      %955 = vmatpush1.msra.mxu0 0.0
      %956 = vmatprep.subr.mxu0 0.0
      %957 = vmatpush1.msra.mxu0 0.0
      %958 = vmatprep.subr.mxu0 0.0
      %959 = vmatpush1.msra.mxu0 0.0
      %960 = vmatprep.subr.mxu0 0.0
      %961 = vmatpush1.msra.mxu0 0.0
      %962 = vmatprep.subr.mxu0 0.0
      %963 = vmatpush1.msra.mxu0 0.0
      %964 = vmatprep.subr.mxu0 0.0
      %965 = vmatpush1.msra.mxu0 0.0
      %966 = vmatprep.subr.mxu0 0.0
      %967 = vmatpush1.msra.mxu0 0.0
      %968 = vmatprep.mubr.f32.mxu0 0.0
      %969 = vmatmul.mubr.f32.gmra.mrb[0].mxu0 %v850
      %v970 = vpop.f32.mrb[0].mxu0
      %v971 = vadd.f32 0.0, %v970
      %v972 = vpop.f32.mrb[0].mxu0
      %973 = vmatprep.mubr.f32.mxu0 0.0
      %974 = vmatmul.mubr.f32.gmra.mrb[0].mxu0 %v853
      %v975 = vpop.f32.mrb[0].mxu0
      %v976 = vadd.f32 0.0, %v975
      %v977 = vpop.f32.mrb[0].mxu0
      %978 = vmatprep.mubr.f32.mxu0 0.0
      %979 = vmatmul.mubr.f32.gmra.mrb[0].mxu0 %v856
      %v980 = vpop.f32.mrb[0].mxu0
      %v981 = vadd.f32 0.0, %v980
      %v982 = vpop.f32.mrb[0].mxu0
      %983 = vmatprep.mubr.f32.mxu0 0.0
      %984 = vmatmul.mubr.f32.gmra.mrb[0].mxu0 %v859
      %v985 = vpop.f32.mrb[0].mxu0
      %v986 = vadd.f32 0.0, %v985
      %v987 = vpop.f32.mrb[0].mxu0
      %988 = vmatprep.mubr.f32.mxu0 0.0
      %989 = vmatmul.mubr.f32.gmra.mrb[0].mxu0 %v862
      %v990 = vpop.f32.mrb[0].mxu0
      %v991 = vadd.f32 0.0, %v990
      %v992 = vpop.f32.mrb[0].mxu0
      %993 = vmatprep.mubr.f32.mxu0 0.0
      %994 = vmatmul.mubr.f32.gmra.mrb[0].mxu0 %v865
      %v995 = vpop.f32.mrb[0].mxu0
      %v996 = vadd.f32 0.0, %v995
      %v997 = vpop.f32.mrb[0].mxu0
      %998 = vmatprep.mubr.f32.mxu0 0.0
      %999 = vmatmul.mubr.f32.gmra.mrb[0].mxu0 %v868
      %v1000 = vpop.f32.mrb[0].mxu0
      %v1001 = vadd.f32 0.0, %v1000
      %v1002 = vpop.f32.mrb[0].mxu0
      %1003 = vmatprep.mubr.f32.mxu0 0.0
      %1004 = vmatmul.mubr.f32.gmra.mrb[0].mxu0 %v871
      %v1005 = vpop.f32.mrb[0].mxu0
      %v1006 = vadd.f32 0.0, %v1005
      %v1007 = vpop.f32.mrb[0].mxu0
      %1008 = vmatprep.mubr.f32.mxu0 0.0
      %1009 = vmatmul.mubr.f32.gmra.mrb[0].mxu0 %v874
      %v1010 = vpop.f32.mrb[0].mxu0
      %v1011 = vadd.f32 0.0, %v1010
      %v1012 = vpop.f32.mrb[0].mxu0
      %1013 = vmatprep.mubr.f32.mxu0 0.0
      %1014 = vmatmul.mubr.f32.gmra.mrb[0].mxu0 %v877
      %v1015 = vpop.f32.mrb[0].mxu0
      %v1016 = vadd.f32 0.0, %v1015
      %v1017 = vpop.f32.mrb[0].mxu0
      %1018 = vmatprep.mubr.f32.mxu0 0.0
      %1019 = vmatmul.mubr.f32.gmra.mrb[0].mxu0 %v880
      %v1020 = vpop.f32.mrb[0].mxu0
      %v1021 = vadd.f32 0.0, %v1020
      %v1022 = vpop.f32.mrb[0].mxu0
      %1023 = vmatprep.mubr.f32.mxu0 0.0
      %1024 = vmatmul.mubr.f32.gmra.mrb[0].mxu0 %v883
      %v1025 = vpop.f32.mrb[0].mxu0
      %v1026 = vadd.f32 0.0, %v1025
      %v1027 = vpop.f32.mrb[0].mxu0
      %1028 = vmatprep.mubr.f32.mxu0 0.0
      %1029 = vmatmul.mubr.f32.gmra.mrb[0].mxu0 %v886
      %v1030 = vpop.f32.mrb[0].mxu0
      %v1031 = vadd.f32 0.0, %v1030
      %v1032 = vpop.f32.mrb[0].mxu0
      %1033 = vmatprep.mubr.f32.mxu0 0.0
      %1034 = vmatmul.mubr.f32.gmra.mrb[0].mxu0 %v889
      %v1035 = vpop.f32.mrb[0].mxu0
      %v1036 = vadd.f32 0.0, %v1035
      %v1037 = vpop.f32.mrb[0].mxu0
      %1038 = vmatprep.mubr.f32.mxu0 0.0
      %1039 = vmatmul.mubr.f32.gmra.mrb[0].mxu0 %v892
      %v1040 = vpop.f32.mrb[0].mxu0
      %v1041 = vadd.f32 0.0, %v1040
      %v1042 = vpop.f32.mrb[0].mxu0
      %1043 = vmatprep.mubr.f32.mxu0 0.0
      %1044 = vmatmul.mubr.f32.gmra.mrb[0].mxu0 %v895
      %v1045 = vpop.f32.mrb[0].mxu0
      %v1046 = vadd.f32 0.0, %v1045
      %v1047 = vpop.f32.mrb[0].mxu0
      %1048 = vmatprep.mubr.f32.mxu0 0.0
      %1049 = vmatmul.mubr.f32.gmra.mrb[0].mxu0 %v898
      %v1050 = vpop.f32.mrb[0].mxu0
      %v1051 = vadd.f32 0.0, %v1050
      %v1052 = vpop.f32.mrb[0].mxu0
      %1053 = vdwg.mxu0
      %v1055 = vsel %vm848, %v779, 0
      %v1058 = vsel %vm848, %v781, 0
      %v1061 = vsel %vm848, %v783, 0
      %v1064 = vsel %vm848, %v785, 0
      %v1067 = vsel %vm848, %v787, 0
      %v1070 = vsel %vm848, %v789, 0
      %v1073 = vsel %vm848, %v791, 0
      %v1076 = vsel %vm848, %v793, 0
      %v1079 = vsel %vm848, %v795, 0
      %v1082 = vsel %vm848, %v797, 0
      %v1085 = vsel %vm848, %v799, 0
      %v1088 = vsel %vm848, %v801, 0
      %v1091 = vsel %vm848, %v803, 0
      %v1094 = vsel %vm848, %v805, 0
      %v1097 = vsel %vm848, %v807, 0
      %v1100 = vsel %vm848, %v809, 0
      %v1103 = vsel %vm848, %v811, 0
      %v1106 = vsel %vm900, %v812, 0
      %1108 = vmatprep.subr.mxu0 0.0
      %1109 = vmatpush1.msra.mxu0 %v1106
      %1110 = vmatprep.subr.mxu0 0.0
      %1111 = vmatpush1.msra.mxu0 0.0
      %1112 = vmatprep.subr.mxu0 0.0
      %1113 = vmatpush1.msra.mxu0 0.0
      %1114 = vmatprep.subr.mxu0 0.0
      %1115 = vmatpush1.msra.mxu0 0.0
      %1116 = vmatprep.subr.mxu0 0.0
      %1117 = vmatpush1.msra.mxu0 0.0
      %1118 = vmatprep.subr.mxu0 0.0
      %1119 = vmatpush1.msra.mxu0 0.0
      %1120 = vmatprep.subr.mxu0 0.0
      %1121 = vmatpush1.msra.mxu0 0.0
      %1122 = vmatprep.subr.mxu0 0.0
      %1123 = vmatpush1.msra.mxu0 0.0
      %1124 = vmatprep.subr.mxu0 0.0
      %1125 = vmatpush1.msra.mxu0 0.0
      %1126 = vmatprep.subr.mxu0 0.0
      %1127 = vmatpush1.msra.mxu0 0.0
      %1128 = vmatprep.subr.mxu0 0.0
      %1129 = vmatpush1.msra.mxu0 0.0
      %1130 = vmatprep.subr.mxu0 0.0
      %1131 = vmatpush1.msra.mxu0 0.0
      %1132 = vmatprep.subr.mxu0 0.0
      %1133 = vmatpush1.msra.mxu0 0.0
      %1134 = vmatprep.subr.mxu0 0.0
      %1135 = vmatpush1.msra.mxu0 0.0
      %1136 = vmatprep.subr.mxu0 0.0
      %1137 = vmatpush1.msra.mxu0 0.0
      %1138 = vmatprep.subr.mxu0 0.0
      %1139 = vmatpush1.msra.mxu0 0.0
      %1140 = vmatprep.subr.mxu0 0.0
      %1141 = vmatpush1.msra.mxu0 0.0
      %1142 = vmatprep.subr.mxu0 0.0
      %1143 = vmatpush1.msra.mxu0 0.0
      %1144 = vmatprep.subr.mxu0 0.0
      %1145 = vmatpush1.msra.mxu0 0.0
      %1146 = vmatprep.subr.mxu0 0.0
      %1147 = vmatpush1.msra.mxu0 0.0
      %1148 = vmatprep.subr.mxu0 0.0
      %1149 = vmatpush1.msra.mxu0 0.0
      %1150 = vmatprep.subr.mxu0 0.0
      %1151 = vmatpush1.msra.mxu0 0.0
      %1152 = vmatprep.subr.mxu0 0.0
      %1153 = vmatpush1.msra.mxu0 0.0
      %1154 = vmatprep.subr.mxu0 0.0
      %1155 = vmatpush1.msra.mxu0 0.0
      %1156 = vmatprep.subr.mxu0 0.0
      %1157 = vmatpush1.msra.mxu0 0.0
      %1158 = vmatprep.subr.mxu0 0.0
      %1159 = vmatpush1.msra.mxu0 0.0
      %1160 = vmatprep.subr.mxu0 0.0
      %1161 = vmatpush1.msra.mxu0 0.0
      %1162 = vmatprep.subr.mxu0 0.0
      %1163 = vmatpush1.msra.mxu0 0.0
      %1164 = vmatprep.subr.mxu0 0.0
      %1165 = vmatpush1.msra.mxu0 0.0
      %1166 = vmatprep.subr.mxu0 0.0
      %1167 = vmatpush1.msra.mxu0 0.0
      %1168 = vmatprep.subr.mxu0 0.0
      %1169 = vmatpush1.msra.mxu0 0.0
      %1170 = vmatprep.subr.mxu0 0.0
      %1171 = vmatpush1.msra.mxu0 0.0
      %1172 = vmatprep.mubr.f32.mxu0 0.0
      %1173 = vmatmul.mubr.f32.gmra.mrb[0].mxu0 %v1055
      %v1174 = vpop.f32.mrb[0].mxu0
      %v1175 = vadd.f32 %v971, %v1174
      %v1176 = vpop.f32.mrb[0].mxu0
      %1177 = vmatprep.mubr.f32.mxu0 0.0
      %1178 = vmatmul.mubr.f32.gmra.mrb[0].mxu0 %v1058
      %v1179 = vpop.f32.mrb[0].mxu0
      %v1180 = vadd.f32 %v976, %v1179
      %v1181 = vpop.f32.mrb[0].mxu0
      %1182 = vmatprep.mubr.f32.mxu0 0.0
      %1183 = vmatmul.mubr.f32.gmra.mrb[0].mxu0 %v1061
      %v1184 = vpop.f32.mrb[0].mxu0
      %v1185 = vadd.f32 %v981, %v1184
      %v1186 = vpop.f32.mrb[0].mxu0
      %1187 = vmatprep.mubr.f32.mxu0 0.0
      %1188 = vmatmul.mubr.f32.gmra.mrb[0].mxu0 %v1064
      %v1189 = vpop.f32.mrb[0].mxu0
      %v1190 = vadd.f32 %v986, %v1189
      %v1191 = vpop.f32.mrb[0].mxu0
      %1192 = vmatprep.mubr.f32.mxu0 0.0
      %1193 = vmatmul.mubr.f32.gmra.mrb[0].mxu0 %v1067
      %v1194 = vpop.f32.mrb[0].mxu0
      %v1195 = vadd.f32 %v991, %v1194
      %v1196 = vpop.f32.mrb[0].mxu0
      %1197 = vmatprep.mubr.f32.mxu0 0.0
      %1198 = vmatmul.mubr.f32.gmra.mrb[0].mxu0 %v1070
      %v1199 = vpop.f32.mrb[0].mxu0
      %v1200 = vadd.f32 %v996, %v1199
      %v1201 = vpop.f32.mrb[0].mxu0
      %1202 = vmatprep.mubr.f32.mxu0 0.0
      %1203 = vmatmul.mubr.f32.gmra.mrb[0].mxu0 %v1073
      %v1204 = vpop.f32.mrb[0].mxu0
      %v1205 = vadd.f32 %v1001, %v1204
      %v1206 = vpop.f32.mrb[0].mxu0
      %1207 = vmatprep.mubr.f32.mxu0 0.0
      %1208 = vmatmul.mubr.f32.gmra.mrb[0].mxu0 %v1076
      %v1209 = vpop.f32.mrb[0].mxu0
      %v1210 = vadd.f32 %v1006, %v1209
      %v1211 = vpop.f32.mrb[0].mxu0
      %1212 = vmatprep.mubr.f32.mxu0 0.0
      %1213 = vmatmul.mubr.f32.gmra.mrb[0].mxu0 %v1079
      %v1214 = vpop.f32.mrb[0].mxu0
      %v1215 = vadd.f32 %v1011, %v1214
      %v1216 = vpop.f32.mrb[0].mxu0
      %1217 = vmatprep.mubr.f32.mxu0 0.0
      %1218 = vmatmul.mubr.f32.gmra.mrb[0].mxu0 %v1082
      %v1219 = vpop.f32.mrb[0].mxu0
      %v1220 = vadd.f32 %v1016, %v1219
      %v1221 = vpop.f32.mrb[0].mxu0
      %1222 = vmatprep.mubr.f32.mxu0 0.0
      %1223 = vmatmul.mubr.f32.gmra.mrb[0].mxu0 %v1085
      %v1224 = vpop.f32.mrb[0].mxu0
      %v1225 = vadd.f32 %v1021, %v1224
      %v1226 = vpop.f32.mrb[0].mxu0
      %1227 = vmatprep.mubr.f32.mxu0 0.0
      %1228 = vmatmul.mubr.f32.gmra.mrb[0].mxu0 %v1088
      %v1229 = vpop.f32.mrb[0].mxu0
      %v1230 = vadd.f32 %v1026, %v1229
      %v1231 = vpop.f32.mrb[0].mxu0
      %1232 = vmatprep.mubr.f32.mxu0 0.0
      %1233 = vmatmul.mubr.f32.gmra.mrb[0].mxu0 %v1091
      %v1234 = vpop.f32.mrb[0].mxu0
      %v1235 = vadd.f32 %v1031, %v1234
      %v1236 = vpop.f32.mrb[0].mxu0
      %1237 = vmatprep.mubr.f32.mxu0 0.0
      %1238 = vmatmul.mubr.f32.gmra.mrb[0].mxu0 %v1094
      %v1239 = vpop.f32.mrb[0].mxu0
      %v1240 = vadd.f32 %v1036, %v1239
      %v1241 = vpop.f32.mrb[0].mxu0
      %1242 = vmatprep.mubr.f32.mxu0 0.0
      %1243 = vmatmul.mubr.f32.gmra.mrb[0].mxu0 %v1097
      %v1244 = vpop.f32.mrb[0].mxu0
      %v1245 = vadd.f32 %v1041, %v1244
      %v1246 = vpop.f32.mrb[0].mxu0
      %1247 = vmatprep.mubr.f32.mxu0 0.0
      %1248 = vmatmul.mubr.f32.gmra.mrb[0].mxu0 %v1100
      %v1249 = vpop.f32.mrb[0].mxu0
      %v1250 = vadd.f32 %v1046, %v1249
      %v1251 = vpop.f32.mrb[0].mxu0
      %1252 = vmatprep.mubr.f32.mxu0 0.0
      %1253 = vmatmul.mubr.f32.gmra.mrb[0].mxu0 %v1103
      %v1254 = vpop.f32.mrb[0].mxu0
      %v1255 = vadd.f32 %v1051, %v1254
      %v1256 = vpop.f32.mrb[0].mxu0
      %1257 = vdwg.mxu0
      %s1258 = scalar_lea.vmem %s719, 2
      %v1259 = vld [vmem:[%s1258] ss:$2 sm:$0xff]
      %s1260 = scalar_lea.vmem %s719, 18
      %v1261 = vld [vmem:[%s1260] ss:$2 sm:$0xff]
      %s1262 = scalar_lea.vmem %s719, 34
      %v1263 = vld [vmem:[%s1262] ss:$2 sm:$0xff]
      %s1264 = scalar_lea.vmem %s719, 50
      %v1265 = vld [vmem:[%s1264] ss:$2 sm:$0xff]
      %s1266 = scalar_lea.vmem %s719, 66
      %v1267 = vld [vmem:[%s1266] ss:$2 sm:$0xff]
      %s1268 = scalar_lea.vmem %s719, 82
      %v1269 = vld [vmem:[%s1268] ss:$2 sm:$0xff]
      %s1270 = scalar_lea.vmem %s719, 98
      %v1271 = vld [vmem:[%s1270] ss:$2 sm:$0xff]
      %s1272 = scalar_lea.vmem %s719, 114
      %v1273 = vld [vmem:[%s1272] ss:$2 sm:$0xff]
      %s1274 = scalar_lea.vmem %s719, 130
      %v1275 = vld [vmem:[%s1274] ss:$2 sm:$0xff]
      %s1276 = scalar_lea.vmem %s719, 146
      %v1277 = vld [vmem:[%s1276] ss:$2 sm:$0xff]
      %s1278 = scalar_lea.vmem %s719, 162
      %v1279 = vld [vmem:[%s1278] ss:$2 sm:$0xff]
      %s1280 = scalar_lea.vmem %s719, 178
      %v1281 = vld [vmem:[%s1280] ss:$2 sm:$0xff]
      %s1282 = scalar_lea.vmem %s719, 194
      %v1283 = vld [vmem:[%s1282] ss:$2 sm:$0xff]
      %s1284 = scalar_lea.vmem %s719, 210
      %v1285 = vld [vmem:[%s1284] ss:$2 sm:$0xff]
      %s1286 = scalar_lea.vmem %s719, 226
      %v1287 = vld [vmem:[%s1286] ss:$2 sm:$0xff]
      %s1288 = scalar_lea.vmem %s719, 242
      %v1289 = vld [vmem:[%s1288] ss:$2 sm:$0xff]
      %s1290 = scalar_lea.vmem %s719, 258
      %v1291 = vld [vmem:[%s1290] ss:$2 sm:$0x3f]
      %v1292 = vld [vmem:[%s1 + $0x8] sm:$0xf]
      %v1294 = vsel %vm848, %v1259, 0
      %v1297 = vsel %vm848, %v1261, 0
      %v1300 = vsel %vm848, %v1263, 0
      %v1303 = vsel %vm848, %v1265, 0
      %v1306 = vsel %vm848, %v1267, 0
      %v1309 = vsel %vm848, %v1269, 0
      %v1312 = vsel %vm848, %v1271, 0
      %v1315 = vsel %vm848, %v1273, 0
      %v1318 = vsel %vm848, %v1275, 0
      %v1321 = vsel %vm848, %v1277, 0
      %v1324 = vsel %vm848, %v1279, 0
      %v1327 = vsel %vm848, %v1281, 0
      %v1330 = vsel %vm848, %v1283, 0
      %v1333 = vsel %vm848, %v1285, 0
      %v1336 = vsel %vm848, %v1287, 0
      %v1339 = vsel %vm848, %v1289, 0
      %v1342 = vsel %vm848, %v1291, 0
      %v1345 = vsel %vm900, %v1292, 0
      %1347 = vmatprep.subr.mxu0 0.0
      %1348 = vmatpush1.msra.mxu0 %v1345
      %1349 = vmatprep.subr.mxu0 0.0
      %1350 = vmatpush1.msra.mxu0 0.0
      %1351 = vmatprep.subr.mxu0 0.0
      %1352 = vmatpush1.msra.mxu0 0.0
      %1353 = vmatprep.subr.mxu0 0.0
      %1354 = vmatpush1.msra.mxu0 0.0
      %1355 = vmatprep.subr.mxu0 0.0
      %1356 = vmatpush1.msra.mxu0 0.0
      %1357 = vmatprep.subr.mxu0 0.0
      %1358 = vmatpush1.msra.mxu0 0.0
      %1359 = vmatprep.subr.mxu0 0.0
      %1360 = vmatpush1.msra.mxu0 0.0
      %1361 = vmatprep.subr.mxu0 0.0
      %1362 = vmatpush1.msra.mxu0 0.0
      %1363 = vmatprep.subr.mxu0 0.0
      %1364 = vmatpush1.msra.mxu0 0.0
      %1365 = vmatprep.subr.mxu0 0.0
      %1366 = vmatpush1.msra.mxu0 0.0
      %1367 = vmatprep.subr.mxu0 0.0
      %1368 = vmatpush1.msra.mxu0 0.0
      %1369 = vmatprep.subr.mxu0 0.0
      %1370 = vmatpush1.msra.mxu0 0.0
      %1371 = vmatprep.subr.mxu0 0.0
      %1372 = vmatpush1.msra.mxu0 0.0
      %1373 = vmatprep.subr.mxu0 0.0
      %1374 = vmatpush1.msra.mxu0 0.0
      %1375 = vmatprep.subr.mxu0 0.0
      %1376 = vmatpush1.msra.mxu0 0.0
      %1377 = vmatprep.subr.mxu0 0.0
      %1378 = vmatpush1.msra.mxu0 0.0
      %1379 = vmatprep.subr.mxu0 0.0
      %1380 = vmatpush1.msra.mxu0 0.0
      %1381 = vmatprep.subr.mxu0 0.0
      %1382 = vmatpush1.msra.mxu0 0.0
      %1383 = vmatprep.subr.mxu0 0.0
      %1384 = vmatpush1.msra.mxu0 0.0
      %1385 = vmatprep.subr.mxu0 0.0
      %1386 = vmatpush1.msra.mxu0 0.0
      %1387 = vmatprep.subr.mxu0 0.0
      %1388 = vmatpush1.msra.mxu0 0.0
      %1389 = vmatprep.subr.mxu0 0.0
      %1390 = vmatpush1.msra.mxu0 0.0
      %1391 = vmatprep.subr.mxu0 0.0
      %1392 = vmatpush1.msra.mxu0 0.0
      %1393 = vmatprep.subr.mxu0 0.0
      %1394 = vmatpush1.msra.mxu0 0.0
      %1395 = vmatprep.subr.mxu0 0.0
      %1396 = vmatpush1.msra.mxu0 0.0
      %1397 = vmatprep.subr.mxu0 0.0
      %1398 = vmatpush1.msra.mxu0 0.0
      %1399 = vmatprep.subr.mxu0 0.0
      %1400 = vmatpush1.msra.mxu0 0.0
      %1401 = vmatprep.subr.mxu0 0.0
      %1402 = vmatpush1.msra.mxu0 0.0
      %1403 = vmatprep.subr.mxu0 0.0
      %1404 = vmatpush1.msra.mxu0 0.0
      %1405 = vmatprep.subr.mxu0 0.0
      %1406 = vmatpush1.msra.mxu0 0.0
      %1407 = vmatprep.subr.mxu0 0.0
      %1408 = vmatpush1.msra.mxu0 0.0
      %1409 = vmatprep.subr.mxu0 0.0
      %1410 = vmatpush1.msra.mxu0 0.0
      %1411 = vmatprep.mubr.f32.mxu0 0.0
      %1412 = vmatmul.mubr.f32.gmra.mrb[0].mxu0 %v1294
      %v1413 = vpop.f32.mrb[0].mxu0
      %v1414 = vadd.f32 0.0, %v1413
      %v1415 = vpop.f32.mrb[0].mxu0
      %1416 = vmatprep.mubr.f32.mxu0 0.0
      %1417 = vmatmul.mubr.f32.gmra.mrb[0].mxu0 %v1297
      %v1418 = vpop.f32.mrb[0].mxu0
      %v1419 = vadd.f32 0.0, %v1418
      %v1420 = vpop.f32.mrb[0].mxu0
      %1421 = vmatprep.mubr.f32.mxu0 0.0
      %1422 = vmatmul.mubr.f32.gmra.mrb[0].mxu0 %v1300
      %v1423 = vpop.f32.mrb[0].mxu0
      %v1424 = vadd.f32 0.0, %v1423
      %v1425 = vpop.f32.mrb[0].mxu0
      %1426 = vmatprep.mubr.f32.mxu0 0.0
      %1427 = vmatmul.mubr.f32.gmra.mrb[0].mxu0 %v1303
      %v1428 = vpop.f32.mrb[0].mxu0
      %v1429 = vadd.f32 0.0, %v1428
      %v1430 = vpop.f32.mrb[0].mxu0
      %1431 = vmatprep.mubr.f32.mxu0 0.0
      %1432 = vmatmul.mubr.f32.gmra.mrb[0].mxu0 %v1306
      %v1433 = vpop.f32.mrb[0].mxu0
      %v1434 = vadd.f32 0.0, %v1433
      %v1435 = vpop.f32.mrb[0].mxu0
      %1436 = vmatprep.mubr.f32.mxu0 0.0
      %1437 = vmatmul.mubr.f32.gmra.mrb[0].mxu0 %v1309
      %v1438 = vpop.f32.mrb[0].mxu0
      %v1439 = vadd.f32 0.0, %v1438
      %v1440 = vpop.f32.mrb[0].mxu0
      %1441 = vmatprep.mubr.f32.mxu0 0.0
      %1442 = vmatmul.mubr.f32.gmra.mrb[0].mxu0 %v1312
      %v1443 = vpop.f32.mrb[0].mxu0
      %v1444 = vadd.f32 0.0, %v1443
      %v1445 = vpop.f32.mrb[0].mxu0
      %1446 = vmatprep.mubr.f32.mxu0 0.0
      %1447 = vmatmul.mubr.f32.gmra.mrb[0].mxu0 %v1315
      %v1448 = vpop.f32.mrb[0].mxu0
      %v1449 = vadd.f32 0.0, %v1448
      %v1450 = vpop.f32.mrb[0].mxu0
      %1451 = vmatprep.mubr.f32.mxu0 0.0
      %1452 = vmatmul.mubr.f32.gmra.mrb[0].mxu0 %v1318
      %v1453 = vpop.f32.mrb[0].mxu0
      %v1454 = vadd.f32 0.0, %v1453
      %v1455 = vpop.f32.mrb[0].mxu0
      %1456 = vmatprep.mubr.f32.mxu0 0.0
      %1457 = vmatmul.mubr.f32.gmra.mrb[0].mxu0 %v1321
      %v1458 = vpop.f32.mrb[0].mxu0
      %v1459 = vadd.f32 0.0, %v1458
      %v1460 = vpop.f32.mrb[0].mxu0
      %1461 = vmatprep.mubr.f32.mxu0 0.0
      %1462 = vmatmul.mubr.f32.gmra.mrb[0].mxu0 %v1324
      %v1463 = vpop.f32.mrb[0].mxu0
      %v1464 = vadd.f32 0.0, %v1463
      %v1465 = vpop.f32.mrb[0].mxu0
      %1466 = vmatprep.mubr.f32.mxu0 0.0
      %1467 = vmatmul.mubr.f32.gmra.mrb[0].mxu0 %v1327
      %v1468 = vpop.f32.mrb[0].mxu0
      %v1469 = vadd.f32 0.0, %v1468
      %v1470 = vpop.f32.mrb[0].mxu0
      %1471 = vmatprep.mubr.f32.mxu0 0.0
      %1472 = vmatmul.mubr.f32.gmra.mrb[0].mxu0 %v1330
      %v1473 = vpop.f32.mrb[0].mxu0
      %v1474 = vadd.f32 0.0, %v1473
      %v1475 = vpop.f32.mrb[0].mxu0
      %1476 = vmatprep.mubr.f32.mxu0 0.0
      %1477 = vmatmul.mubr.f32.gmra.mrb[0].mxu0 %v1333
      %v1478 = vpop.f32.mrb[0].mxu0
      %v1479 = vadd.f32 0.0, %v1478
      %v1480 = vpop.f32.mrb[0].mxu0
      %1481 = vmatprep.mubr.f32.mxu0 0.0
      %1482 = vmatmul.mubr.f32.gmra.mrb[0].mxu0 %v1336
      %v1483 = vpop.f32.mrb[0].mxu0
      %v1484 = vadd.f32 0.0, %v1483
      %v1485 = vpop.f32.mrb[0].mxu0
      %1486 = vmatprep.mubr.f32.mxu0 0.0
      %1487 = vmatmul.mubr.f32.gmra.mrb[0].mxu0 %v1339
      %v1488 = vpop.f32.mrb[0].mxu0
      %v1489 = vadd.f32 0.0, %v1488
      %v1490 = vpop.f32.mrb[0].mxu0
      %1491 = vmatprep.mubr.f32.mxu0 0.0
      %1492 = vmatmul.mubr.f32.gmra.mrb[0].mxu0 %v1342
      %v1493 = vpop.f32.mrb[0].mxu0
      %v1494 = vadd.f32 0.0, %v1493
      %v1495 = vpop.f32.mrb[0].mxu0
      %1496 = vdwg.mxu0
      %v1497 = vadd.f32 %v1175, %v1414
      %v1498 = vadd.f32 %v1180, %v1419
      %v1499 = vadd.f32 %v1185, %v1424
      %v1500 = vadd.f32 %v1190, %v1429
      %v1501 = vadd.f32 %v1195, %v1434
      %v1502 = vadd.f32 %v1200, %v1439
      %v1503 = vadd.f32 %v1205, %v1444
      %v1504 = vadd.f32 %v1210, %v1449
      %v1505 = vadd.f32 %v1215, %v1454
      %v1506 = vadd.f32 %v1220, %v1459
      %v1507 = vadd.f32 %v1225, %v1464
      %v1508 = vadd.f32 %v1230, %v1469
      %v1509 = vadd.f32 %v1235, %v1474
      %v1510 = vadd.f32 %v1240, %v1479
      %v1511 = vadd.f32 %v1245, %v1484
      %v1512 = vadd.f32 %v1250, %v1489
      %v1513 = vadd.f32 %v1255, %v1494
      %v1514 = vld [vmem:[%s1260] ss:$2 sm:$0xff]
      %v1515 = vld [vmem:[%s1262] ss:$2 sm:$0xff]
      %v1516 = vld [vmem:[%s1264] ss:$2 sm:$0xff]
      %v1517 = vld [vmem:[%s1266] ss:$2 sm:$0xff]
      %v1518 = vld [vmem:[%s1268] ss:$2 sm:$0xff]
      %v1519 = vld [vmem:[%s1270] ss:$2 sm:$0xff]
      %v1520 = vld [vmem:[%s1272] ss:$2 sm:$0xff]
      %v1521 = vld [vmem:[%s1274] ss:$2 sm:$0xff]
      %v1522 = vld [vmem:[%s1276] ss:$2 sm:$0xff]
      %v1523 = vld [vmem:[%s1278] ss:$2 sm:$0xff]
      %v1524 = vld [vmem:[%s1280] ss:$2 sm:$0xff]
      %v1525 = vld [vmem:[%s1282] ss:$2 sm:$0xff]
      %v1526 = vld [vmem:[%s1284] ss:$2 sm:$0xff]
      %v1527 = vld [vmem:[%s1286] ss:$2 sm:$0xff]
      %v1528 = vld [vmem:[%s1288] ss:$2 sm:$0xff]
      %v1529 = vld [vmem:[%s1290] ss:$2 sm:$0xff]
      %s1530 = scalar_lea.vmem %s719, 274
      %v1531 = vld [vmem:[%s1530] ss:$2 sm:$0x3f]
      %v1532 = vld [vmem:[%s1 + $0xc] sm:$0xf]
      %v1534 = vsel %vm848, %v1514, 0
      %v1537 = vsel %vm848, %v1515, 0
      %v1540 = vsel %vm848, %v1516, 0
      %v1543 = vsel %vm848, %v1517, 0
      %v1546 = vsel %vm848, %v1518, 0
      %v1549 = vsel %vm848, %v1519, 0
      %v1552 = vsel %vm848, %v1520, 0
      %v1555 = vsel %vm848, %v1521, 0
      %v1558 = vsel %vm848, %v1522, 0
      %v1561 = vsel %vm848, %v1523, 0
      %v1564 = vsel %vm848, %v1524, 0
      %v1567 = vsel %vm848, %v1525, 0
      %v1570 = vsel %vm848, %v1526, 0
      %v1573 = vsel %vm848, %v1527, 0
      %v1576 = vsel %vm848, %v1528, 0
      %v1579 = vsel %vm848, %v1529, 0
      %v1582 = vsel %vm848, %v1531, 0
      %v1585 = vsel %vm900, %v1532, 0
      %1587 = vmatprep.subr.mxu0 0.0
      %1588 = vmatpush1.msra.mxu0 %v1585
      %1589 = vmatprep.subr.mxu0 0.0
      %1590 = vmatpush1.msra.mxu0 0.0
      %1591 = vmatprep.subr.mxu0 0.0
      %1592 = vmatpush1.msra.mxu0 0.0
      %1593 = vmatprep.subr.mxu0 0.0
      %1594 = vmatpush1.msra.mxu0 0.0
      %1595 = vmatprep.subr.mxu0 0.0
      %1596 = vmatpush1.msra.mxu0 0.0
      %1597 = vmatprep.subr.mxu0 0.0
      %1598 = vmatpush1.msra.mxu0 0.0
      %1599 = vmatprep.subr.mxu0 0.0
      %1600 = vmatpush1.msra.mxu0 0.0
      %1601 = vmatprep.subr.mxu0 0.0
      %1602 = vmatpush1.msra.mxu0 0.0
      %1603 = vmatprep.subr.mxu0 0.0
      %1604 = vmatpush1.msra.mxu0 0.0
      %1605 = vmatprep.subr.mxu0 0.0
      %1606 = vmatpush1.msra.mxu0 0.0
      %1607 = vmatprep.subr.mxu0 0.0
      %1608 = vmatpush1.msra.mxu0 0.0
      %1609 = vmatprep.subr.mxu0 0.0
      %1610 = vmatpush1.msra.mxu0 0.0
      %1611 = vmatprep.subr.mxu0 0.0
      %1612 = vmatpush1.msra.mxu0 0.0
      %1613 = vmatprep.subr.mxu0 0.0
      %1614 = vmatpush1.msra.mxu0 0.0
      %1615 = vmatprep.subr.mxu0 0.0
      %1616 = vmatpush1.msra.mxu0 0.0
      %1617 = vmatprep.subr.mxu0 0.0
      %1618 = vmatpush1.msra.mxu0 0.0
      %1619 = vmatprep.subr.mxu0 0.0
      %1620 = vmatpush1.msra.mxu0 0.0
      %1621 = vmatprep.subr.mxu0 0.0
      %1622 = vmatpush1.msra.mxu0 0.0
      %1623 = vmatprep.subr.mxu0 0.0
      %1624 = vmatpush1.msra.mxu0 0.0
      %1625 = vmatprep.subr.mxu0 0.0
      %1626 = vmatpush1.msra.mxu0 0.0
      %1627 = vmatprep.subr.mxu0 0.0
      %1628 = vmatpush1.msra.mxu0 0.0
      %1629 = vmatprep.subr.mxu0 0.0
      %1630 = vmatpush1.msra.mxu0 0.0
      %1631 = vmatprep.subr.mxu0 0.0
      %1632 = vmatpush1.msra.mxu0 0.0
      %1633 = vmatprep.subr.mxu0 0.0
      %1634 = vmatpush1.msra.mxu0 0.0
      %1635 = vmatprep.subr.mxu0 0.0
      %1636 = vmatpush1.msra.mxu0 0.0
      %1637 = vmatprep.subr.mxu0 0.0
      %1638 = vmatpush1.msra.mxu0 0.0
      %1639 = vmatprep.subr.mxu0 0.0
      %1640 = vmatpush1.msra.mxu0 0.0
      %1641 = vmatprep.subr.mxu0 0.0
      %1642 = vmatpush1.msra.mxu0 0.0
      %1643 = vmatprep.subr.mxu0 0.0
      %1644 = vmatpush1.msra.mxu0 0.0
      %1645 = vmatprep.subr.mxu0 0.0
      %1646 = vmatpush1.msra.mxu0 0.0
      %1647 = vmatprep.subr.mxu0 0.0
      %1648 = vmatpush1.msra.mxu0 0.0
      %1649 = vmatprep.subr.mxu0 0.0
      %1650 = vmatpush1.msra.mxu0 0.0
      %1651 = vmatprep.mubr.f32.mxu0 0.0
      %1652 = vmatmul.mubr.f32.gmra.mrb[0].mxu0 %v1534
      %v1653 = vpop.f32.mrb[0].mxu0
      %v1654 = vadd.f32 0.0, %v1653
      %v1655 = vpop.f32.mrb[0].mxu0
      %1656 = vmatprep.mubr.f32.mxu0 0.0
      %1657 = vmatmul.mubr.f32.gmra.mrb[0].mxu0 %v1537
      %v1658 = vpop.f32.mrb[0].mxu0
      %v1659 = vadd.f32 0.0, %v1658
      %v1660 = vpop.f32.mrb[0].mxu0
      %1661 = vmatprep.mubr.f32.mxu0 0.0
      %1662 = vmatmul.mubr.f32.gmra.mrb[0].mxu0 %v1540
      %v1663 = vpop.f32.mrb[0].mxu0
      %v1664 = vadd.f32 0.0, %v1663
      %v1665 = vpop.f32.mrb[0].mxu0
      %1666 = vmatprep.mubr.f32.mxu0 0.0
      %1667 = vmatmul.mubr.f32.gmra.mrb[0].mxu0 %v1543
      %v1668 = vpop.f32.mrb[0].mxu0
      %v1669 = vadd.f32 0.0, %v1668
      %v1670 = vpop.f32.mrb[0].mxu0
      %1671 = vmatprep.mubr.f32.mxu0 0.0
      %1672 = vmatmul.mubr.f32.gmra.mrb[0].mxu0 %v1546
      %v1673 = vpop.f32.mrb[0].mxu0
      %v1674 = vadd.f32 0.0, %v1673
      %v1675 = vpop.f32.mrb[0].mxu0
      %1676 = vmatprep.mubr.f32.mxu0 0.0
      %1677 = vmatmul.mubr.f32.gmra.mrb[0].mxu0 %v1549
      %v1678 = vpop.f32.mrb[0].mxu0
      %v1679 = vadd.f32 0.0, %v1678
      %v1680 = vpop.f32.mrb[0].mxu0
      %1681 = vmatprep.mubr.f32.mxu0 0.0
      %1682 = vmatmul.mubr.f32.gmra.mrb[0].mxu0 %v1552
      %v1683 = vpop.f32.mrb[0].mxu0
      %v1684 = vadd.f32 0.0, %v1683
      %v1685 = vpop.f32.mrb[0].mxu0
      %1686 = vmatprep.mubr.f32.mxu0 0.0
      %1687 = vmatmul.mubr.f32.gmra.mrb[0].mxu0 %v1555
      %v1688 = vpop.f32.mrb[0].mxu0
      %v1689 = vadd.f32 0.0, %v1688
      %v1690 = vpop.f32.mrb[0].mxu0
      %1691 = vmatprep.mubr.f32.mxu0 0.0
      %1692 = vmatmul.mubr.f32.gmra.mrb[0].mxu0 %v1558
      %v1693 = vpop.f32.mrb[0].mxu0
      %v1694 = vadd.f32 0.0, %v1693
      %v1695 = vpop.f32.mrb[0].mxu0
      %1696 = vmatprep.mubr.f32.mxu0 0.0
      %1697 = vmatmul.mubr.f32.gmra.mrb[0].mxu0 %v1561
      %v1698 = vpop.f32.mrb[0].mxu0
      %v1699 = vadd.f32 0.0, %v1698
      %v1700 = vpop.f32.mrb[0].mxu0
      %1701 = vmatprep.mubr.f32.mxu0 0.0
      %1702 = vmatmul.mubr.f32.gmra.mrb[0].mxu0 %v1564
      %v1703 = vpop.f32.mrb[0].mxu0
      %v1704 = vadd.f32 0.0, %v1703
      %v1705 = vpop.f32.mrb[0].mxu0
      %1706 = vmatprep.mubr.f32.mxu0 0.0
      %1707 = vmatmul.mubr.f32.gmra.mrb[0].mxu0 %v1567
      %v1708 = vpop.f32.mrb[0].mxu0
      %v1709 = vadd.f32 0.0, %v1708
      %v1710 = vpop.f32.mrb[0].mxu0
      %1711 = vmatprep.mubr.f32.mxu0 0.0
      %1712 = vmatmul.mubr.f32.gmra.mrb[0].mxu0 %v1570
      %v1713 = vpop.f32.mrb[0].mxu0
      %v1714 = vadd.f32 0.0, %v1713
      %v1715 = vpop.f32.mrb[0].mxu0
      %1716 = vmatprep.mubr.f32.mxu0 0.0
      %1717 = vmatmul.mubr.f32.gmra.mrb[0].mxu0 %v1573
      %v1718 = vpop.f32.mrb[0].mxu0
      %v1719 = vadd.f32 0.0, %v1718
      %v1720 = vpop.f32.mrb[0].mxu0
      %1721 = vmatprep.mubr.f32.mxu0 0.0
      %1722 = vmatmul.mubr.f32.gmra.mrb[0].mxu0 %v1576
      %v1723 = vpop.f32.mrb[0].mxu0
      %v1724 = vadd.f32 0.0, %v1723
      %v1725 = vpop.f32.mrb[0].mxu0
      %1726 = vmatprep.mubr.f32.mxu0 0.0
      %1727 = vmatmul.mubr.f32.gmra.mrb[0].mxu0 %v1579
      %v1728 = vpop.f32.mrb[0].mxu0
      %v1729 = vadd.f32 0.0, %v1728
      %v1730 = vpop.f32.mrb[0].mxu0
      %1731 = vmatprep.mubr.f32.mxu0 0.0
      %1732 = vmatmul.mubr.f32.gmra.mrb[0].mxu0 %v1582
      %v1733 = vpop.f32.mrb[0].mxu0
      %v1734 = vadd.f32 0.0, %v1733
      %v1735 = vpop.f32.mrb[0].mxu0
      %1736 = vdwg.mxu0
      %v1737 = vadd.f32 %v1497, %v1654
      %v1738 = vadd.f32 %v1498, %v1659
      %v1739 = vadd.f32 %v1499, %v1664
      %v1740 = vadd.f32 %v1500, %v1669
      %v1741 = vadd.f32 %v1501, %v1674
      %v1742 = vadd.f32 %v1502, %v1679
      %v1743 = vadd.f32 %v1503, %v1684
      %v1744 = vadd.f32 %v1504, %v1689
      %v1745 = vadd.f32 %v1505, %v1694
      %v1746 = vadd.f32 %v1506, %v1699
      %v1747 = vadd.f32 %v1507, %v1704
      %v1748 = vadd.f32 %v1508, %v1709
      %v1749 = vadd.f32 %v1509, %v1714
      %v1750 = vadd.f32 %v1510, %v1719
      %v1751 = vadd.f32 %v1511, %v1724
      %v1752 = vadd.f32 %v1512, %v1729
      %v1753 = vadd.f32 %v1513, %v1734
      %s1754 = scalar_lea.vmem %s719, 19
      %v1755 = vld [vmem:[%s1754] ss:$2 sm:$0xff]
      %s1756 = scalar_lea.vmem %s719, 35
      %v1757 = vld [vmem:[%s1756] ss:$2 sm:$0xff]
      %s1758 = scalar_lea.vmem %s719, 51
      %v1759 = vld [vmem:[%s1758] ss:$2 sm:$0xff]
      %s1760 = scalar_lea.vmem %s719, 67
      %v1761 = vld [vmem:[%s1760] ss:$2 sm:$0xff]
      %s1762 = scalar_lea.vmem %s719, 83
      %v1763 = vld [vmem:[%s1762] ss:$2 sm:$0xff]
      %s1764 = scalar_lea.vmem %s719, 99
      %v1765 = vld [vmem:[%s1764] ss:$2 sm:$0xff]
      %s1766 = scalar_lea.vmem %s719, 115
      %v1767 = vld [vmem:[%s1766] ss:$2 sm:$0xff]
      %s1768 = scalar_lea.vmem %s719, 131
      %v1769 = vld [vmem:[%s1768] ss:$2 sm:$0xff]
      %s1770 = scalar_lea.vmem %s719, 147
      %v1771 = vld [vmem:[%s1770] ss:$2 sm:$0xff]
      %s1772 = scalar_lea.vmem %s719, 163
      %v1773 = vld [vmem:[%s1772] ss:$2 sm:$0xff]
      %s1774 = scalar_lea.vmem %s719, 179
      %v1775 = vld [vmem:[%s1774] ss:$2 sm:$0xff]
      %s1776 = scalar_lea.vmem %s719, 195
      %v1777 = vld [vmem:[%s1776] ss:$2 sm:$0xff]
      %s1778 = scalar_lea.vmem %s719, 211
      %v1779 = vld [vmem:[%s1778] ss:$2 sm:$0xff]
      %s1780 = scalar_lea.vmem %s719, 227
      %v1781 = vld [vmem:[%s1780] ss:$2 sm:$0xff]
      %s1782 = scalar_lea.vmem %s719, 243
      %v1783 = vld [vmem:[%s1782] ss:$2 sm:$0xff]
      %s1784 = scalar_lea.vmem %s719, 259
      %v1785 = vld [vmem:[%s1784] ss:$2 sm:$0xff]
      %s1786 = scalar_lea.vmem %s719, 275
      %v1787 = vld [vmem:[%s1786] ss:$2 sm:$0x3f]
      %v1788 = vld [vmem:[%s1 + $0x10] sm:$0xf]
      %v1790 = vsel %vm848, %v1755, 0
      %v1793 = vsel %vm848, %v1757, 0
      %v1796 = vsel %vm848, %v1759, 0
      %v1799 = vsel %vm848, %v1761, 0
      %v1802 = vsel %vm848, %v1763, 0
      %v1805 = vsel %vm848, %v1765, 0
      %v1808 = vsel %vm848, %v1767, 0
      %v1811 = vsel %vm848, %v1769, 0
      %v1814 = vsel %vm848, %v1771, 0
      %v1817 = vsel %vm848, %v1773, 0
      %v1820 = vsel %vm848, %v1775, 0
      %v1823 = vsel %vm848, %v1777, 0
      %v1826 = vsel %vm848, %v1779, 0
      %v1829 = vsel %vm848, %v1781, 0
      %v1832 = vsel %vm848, %v1783, 0
      %v1835 = vsel %vm848, %v1785, 0
      %v1838 = vsel %vm848, %v1787, 0
      %v1841 = vsel %vm900, %v1788, 0
      %1843 = vmatprep.subr.mxu0 0.0
      %1844 = vmatpush1.msra.mxu0 %v1841
      %1845 = vmatprep.subr.mxu0 0.0
      %1846 = vmatpush1.msra.mxu0 0.0
      %1847 = vmatprep.subr.mxu0 0.0
      %1848 = vmatpush1.msra.mxu0 0.0
      %1849 = vmatprep.subr.mxu0 0.0
      %1850 = vmatpush1.msra.mxu0 0.0
      %1851 = vmatprep.subr.mxu0 0.0
      %1852 = vmatpush1.msra.mxu0 0.0
      %1853 = vmatprep.subr.mxu0 0.0
      %1854 = vmatpush1.msra.mxu0 0.0
      %1855 = vmatprep.subr.mxu0 0.0
      %1856 = vmatpush1.msra.mxu0 0.0
      %1857 = vmatprep.subr.mxu0 0.0
      %1858 = vmatpush1.msra.mxu0 0.0
      %1859 = vmatprep.subr.mxu0 0.0
      %1860 = vmatpush1.msra.mxu0 0.0
      %1861 = vmatprep.subr.mxu0 0.0
      %1862 = vmatpush1.msra.mxu0 0.0
      %1863 = vmatprep.subr.mxu0 0.0
      %1864 = vmatpush1.msra.mxu0 0.0
      %1865 = vmatprep.subr.mxu0 0.0
      %1866 = vmatpush1.msra.mxu0 0.0
      %1867 = vmatprep.subr.mxu0 0.0
      %1868 = vmatpush1.msra.mxu0 0.0
      %1869 = vmatprep.subr.mxu0 0.0
      %1870 = vmatpush1.msra.mxu0 0.0
      %1871 = vmatprep.subr.mxu0 0.0
      %1872 = vmatpush1.msra.mxu0 0.0
      %1873 = vmatprep.subr.mxu0 0.0
      %1874 = vmatpush1.msra.mxu0 0.0
      %1875 = vmatprep.subr.mxu0 0.0
      %1876 = vmatpush1.msra.mxu0 0.0
      %1877 = vmatprep.subr.mxu0 0.0
      %1878 = vmatpush1.msra.mxu0 0.0
      %1879 = vmatprep.subr.mxu0 0.0
      %1880 = vmatpush1.msra.mxu0 0.0
      %1881 = vmatprep.subr.mxu0 0.0
      %1882 = vmatpush1.msra.mxu0 0.0
      %1883 = vmatprep.subr.mxu0 0.0
      %1884 = vmatpush1.msra.mxu0 0.0
      %1885 = vmatprep.subr.mxu0 0.0
      %1886 = vmatpush1.msra.mxu0 0.0
      %1887 = vmatprep.subr.mxu0 0.0
      %1888 = vmatpush1.msra.mxu0 0.0
      %1889 = vmatprep.subr.mxu0 0.0
      %1890 = vmatpush1.msra.mxu0 0.0
      %1891 = vmatprep.subr.mxu0 0.0
      %1892 = vmatpush1.msra.mxu0 0.0
      %1893 = vmatprep.subr.mxu0 0.0
      %1894 = vmatpush1.msra.mxu0 0.0
      %1895 = vmatprep.subr.mxu0 0.0
      %1896 = vmatpush1.msra.mxu0 0.0
      %1897 = vmatprep.subr.mxu0 0.0
      %1898 = vmatpush1.msra.mxu0 0.0
      %1899 = vmatprep.subr.mxu0 0.0
      %1900 = vmatpush1.msra.mxu0 0.0
      %1901 = vmatprep.subr.mxu0 0.0
      %1902 = vmatpush1.msra.mxu0 0.0
      %1903 = vmatprep.subr.mxu0 0.0
      %1904 = vmatpush1.msra.mxu0 0.0
      %1905 = vmatprep.subr.mxu0 0.0
      %1906 = vmatpush1.msra.mxu0 0.0
      %1907 = vmatprep.mubr.f32.mxu0 0.0
      %1908 = vmatmul.mubr.f32.gmra.mrb[0].mxu0 %v1790
      %v1909 = vpop.f32.mrb[0].mxu0
      %v1910 = vadd.f32 0.0, %v1909
      %v1911 = vpop.f32.mrb[0].mxu0
      %1912 = vmatprep.mubr.f32.mxu0 0.0
      %1913 = vmatmul.mubr.f32.gmra.mrb[0].mxu0 %v1793
      %v1914 = vpop.f32.mrb[0].mxu0
      %v1915 = vadd.f32 0.0, %v1914
      %v1916 = vpop.f32.mrb[0].mxu0
      %1917 = vmatprep.mubr.f32.mxu0 0.0
      %1918 = vmatmul.mubr.f32.gmra.mrb[0].mxu0 %v1796
      %v1919 = vpop.f32.mrb[0].mxu0
      %v1920 = vadd.f32 0.0, %v1919
      %v1921 = vpop.f32.mrb[0].mxu0
      %1922 = vmatprep.mubr.f32.mxu0 0.0
      %1923 = vmatmul.mubr.f32.gmra.mrb[0].mxu0 %v1799
      %v1924 = vpop.f32.mrb[0].mxu0
      %v1925 = vadd.f32 0.0, %v1924
      %v1926 = vpop.f32.mrb[0].mxu0
      %1927 = vmatprep.mubr.f32.mxu0 0.0
      %1928 = vmatmul.mubr.f32.gmra.mrb[0].mxu0 %v1802
      %v1929 = vpop.f32.mrb[0].mxu0
      %v1930 = vadd.f32 0.0, %v1929
      %v1931 = vpop.f32.mrb[0].mxu0
      %1932 = vmatprep.mubr.f32.mxu0 0.0
      %1933 = vmatmul.mubr.f32.gmra.mrb[0].mxu0 %v1805
      %v1934 = vpop.f32.mrb[0].mxu0
      %v1935 = vadd.f32 0.0, %v1934
      %v1936 = vpop.f32.mrb[0].mxu0
      %1937 = vmatprep.mubr.f32.mxu0 0.0
      %1938 = vmatmul.mubr.f32.gmra.mrb[0].mxu0 %v1808
      %v1939 = vpop.f32.mrb[0].mxu0
      %v1940 = vadd.f32 0.0, %v1939
      %v1941 = vpop.f32.mrb[0].mxu0
      %1942 = vmatprep.mubr.f32.mxu0 0.0
      %1943 = vmatmul.mubr.f32.gmra.mrb[0].mxu0 %v1811
      %v1944 = vpop.f32.mrb[0].mxu0
      %v1945 = vadd.f32 0.0, %v1944
      %v1946 = vpop.f32.mrb[0].mxu0
      %1947 = vmatprep.mubr.f32.mxu0 0.0
      %1948 = vmatmul.mubr.f32.gmra.mrb[0].mxu0 %v1814
      %v1949 = vpop.f32.mrb[0].mxu0
      %v1950 = vadd.f32 0.0, %v1949
      %v1951 = vpop.f32.mrb[0].mxu0
      %1952 = vmatprep.mubr.f32.mxu0 0.0
      %1953 = vmatmul.mubr.f32.gmra.mrb[0].mxu0 %v1817
      %v1954 = vpop.f32.mrb[0].mxu0
      %v1955 = vadd.f32 0.0, %v1954
      %v1956 = vpop.f32.mrb[0].mxu0
      %1957 = vmatprep.mubr.f32.mxu0 0.0
      %1958 = vmatmul.mubr.f32.gmra.mrb[0].mxu0 %v1820
      %v1959 = vpop.f32.mrb[0].mxu0
      %v1960 = vadd.f32 0.0, %v1959
      %v1961 = vpop.f32.mrb[0].mxu0
      %1962 = vmatprep.mubr.f32.mxu0 0.0
      %1963 = vmatmul.mubr.f32.gmra.mrb[0].mxu0 %v1823
      %v1964 = vpop.f32.mrb[0].mxu0
      %v1965 = vadd.f32 0.0, %v1964
      %v1966 = vpop.f32.mrb[0].mxu0
      %1967 = vmatprep.mubr.f32.mxu0 0.0
      %1968 = vmatmul.mubr.f32.gmra.mrb[0].mxu0 %v1826
      %v1969 = vpop.f32.mrb[0].mxu0
      %v1970 = vadd.f32 0.0, %v1969
      %v1971 = vpop.f32.mrb[0].mxu0
      %1972 = vmatprep.mubr.f32.mxu0 0.0
      %1973 = vmatmul.mubr.f32.gmra.mrb[0].mxu0 %v1829
      %v1974 = vpop.f32.mrb[0].mxu0
      %v1975 = vadd.f32 0.0, %v1974
      %v1976 = vpop.f32.mrb[0].mxu0
      %1977 = vmatprep.mubr.f32.mxu0 0.0
      %1978 = vmatmul.mubr.f32.gmra.mrb[0].mxu0 %v1832
      %v1979 = vpop.f32.mrb[0].mxu0
      %v1980 = vadd.f32 0.0, %v1979
      %v1981 = vpop.f32.mrb[0].mxu0
      %1982 = vmatprep.mubr.f32.mxu0 0.0
      %1983 = vmatmul.mubr.f32.gmra.mrb[0].mxu0 %v1835
      %v1984 = vpop.f32.mrb[0].mxu0
      %v1985 = vadd.f32 0.0, %v1984
      %v1986 = vpop.f32.mrb[0].mxu0
      %1987 = vmatprep.mubr.f32.mxu0 0.0
      %1988 = vmatmul.mubr.f32.gmra.mrb[0].mxu0 %v1838
      %v1989 = vpop.f32.mrb[0].mxu0
      %v1990 = vadd.f32 0.0, %v1989
      %v1991 = vpop.f32.mrb[0].mxu0
      %1992 = vdwg.mxu0
      %v1993 = vadd.f32 %v1737, %v1910
      %v1994 = vadd.f32 %v1738, %v1915
      %v1995 = vadd.f32 %v1739, %v1920
      %v1996 = vadd.f32 %v1740, %v1925
      %v1997 = vadd.f32 %v1741, %v1930
      %v1998 = vadd.f32 %v1742, %v1935
      %v1999 = vadd.f32 %v1743, %v1940
      %v2000 = vadd.f32 %v1744, %v1945
      %v2001 = vadd.f32 %v1745, %v1950
      %v2002 = vadd.f32 %v1746, %v1955
      %v2003 = vadd.f32 %v1747, %v1960
      %v2004 = vadd.f32 %v1748, %v1965
      %v2005 = vadd.f32 %v1749, %v1970
      %v2006 = vadd.f32 %v1750, %v1975
      %v2007 = vadd.f32 %v1751, %v1980
      %v2008 = vadd.f32 %v1752, %v1985
      %v2009 = vadd.f32 %v1753, %v1990
      %s2010 = scalar_lea.vmem %s719, 20
      %v2011 = vld [vmem:[%s2010] ss:$2 sm:$0xff]
      %s2012 = scalar_lea.vmem %s719, 36
      %v2013 = vld [vmem:[%s2012] ss:$2 sm:$0xff]
      %s2014 = scalar_lea.vmem %s719, 52
      %v2015 = vld [vmem:[%s2014] ss:$2 sm:$0xff]
      %s2016 = scalar_lea.vmem %s719, 68
      %v2017 = vld [vmem:[%s2016] ss:$2 sm:$0xff]
      %s2018 = scalar_lea.vmem %s719, 84
      %v2019 = vld [vmem:[%s2018] ss:$2 sm:$0xff]
      %s2020 = scalar_lea.vmem %s719, 100
      %v2021 = vld [vmem:[%s2020] ss:$2 sm:$0xff]
      %s2022 = scalar_lea.vmem %s719, 116
      %v2023 = vld [vmem:[%s2022] ss:$2 sm:$0xff]
      %s2024 = scalar_lea.vmem %s719, 132
      %v2025 = vld [vmem:[%s2024] ss:$2 sm:$0xff]
      %s2026 = scalar_lea.vmem %s719, 148
      %v2027 = vld [vmem:[%s2026] ss:$2 sm:$0xff]
      %s2028 = scalar_lea.vmem %s719, 164
      %v2029 = vld [vmem:[%s2028] ss:$2 sm:$0xff]
      %s2030 = scalar_lea.vmem %s719, 180
      %v2031 = vld [vmem:[%s2030] ss:$2 sm:$0xff]
      %s2032 = scalar_lea.vmem %s719, 196
      %v2033 = vld [vmem:[%s2032] ss:$2 sm:$0xff]
      %s2034 = scalar_lea.vmem %s719, 212
      %v2035 = vld [vmem:[%s2034] ss:$2 sm:$0xff]
      %s2036 = scalar_lea.vmem %s719, 228
      %v2037 = vld [vmem:[%s2036] ss:$2 sm:$0xff]
      %s2038 = scalar_lea.vmem %s719, 244
      %v2039 = vld [vmem:[%s2038] ss:$2 sm:$0xff]
      %s2040 = scalar_lea.vmem %s719, 260
      %v2041 = vld [vmem:[%s2040] ss:$2 sm:$0xff]
      %s2042 = scalar_lea.vmem %s719, 276
      %v2043 = vld [vmem:[%s2042] ss:$2 sm:$0x3f]
      %v2044 = vld [vmem:[%s1 + $0x14] sm:$0xf]
      %v2046 = vsel %vm848, %v2011, 0
      %v2049 = vsel %vm848, %v2013, 0
      %v2052 = vsel %vm848, %v2015, 0
      %v2055 = vsel %vm848, %v2017, 0
      %v2058 = vsel %vm848, %v2019, 0
      %v2061 = vsel %vm848, %v2021, 0
      %v2064 = vsel %vm848, %v2023, 0
      %v2067 = vsel %vm848, %v2025, 0
      %v2070 = vsel %vm848, %v2027, 0
      %v2073 = vsel %vm848, %v2029, 0
      %v2076 = vsel %vm848, %v2031, 0
      %v2079 = vsel %vm848, %v2033, 0
      %v2082 = vsel %vm848, %v2035, 0
      %v2085 = vsel %vm848, %v2037, 0
      %v2088 = vsel %vm848, %v2039, 0
      %v2091 = vsel %vm848, %v2041, 0
      %v2094 = vsel %vm848, %v2043, 0
      %v2097 = vsel %vm900, %v2044, 0
      %2099 = vmatprep.subr.mxu0 0.0
      %2100 = vmatpush1.msra.mxu0 %v2097
      %2101 = vmatprep.subr.mxu0 0.0
      %2102 = vmatpush1.msra.mxu0 0.0
      %2103 = vmatprep.subr.mxu0 0.0
      %2104 = vmatpush1.msra.mxu0 0.0
      %2105 = vmatprep.subr.mxu0 0.0
      %2106 = vmatpush1.msra.mxu0 0.0
      %2107 = vmatprep.subr.mxu0 0.0
      %2108 = vmatpush1.msra.mxu0 0.0
      %2109 = vmatprep.subr.mxu0 0.0
      %2110 = vmatpush1.msra.mxu0 0.0
      %2111 = vmatprep.subr.mxu0 0.0
      %2112 = vmatpush1.msra.mxu0 0.0
      %2113 = vmatprep.subr.mxu0 0.0
      %2114 = vmatpush1.msra.mxu0 0.0
      %2115 = vmatprep.subr.mxu0 0.0
      %2116 = vmatpush1.msra.mxu0 0.0
      %2117 = vmatprep.subr.mxu0 0.0
      %2118 = vmatpush1.msra.mxu0 0.0
      %2119 = vmatprep.subr.mxu0 0.0
      %2120 = vmatpush1.msra.mxu0 0.0
      %2121 = vmatprep.subr.mxu0 0.0
      %2122 = vmatpush1.msra.mxu0 0.0
      %2123 = vmatprep.subr.mxu0 0.0
      %2124 = vmatpush1.msra.mxu0 0.0
      %2125 = vmatprep.subr.mxu0 0.0
      %2126 = vmatpush1.msra.mxu0 0.0
      %2127 = vmatprep.subr.mxu0 0.0
      %2128 = vmatpush1.msra.mxu0 0.0
      %2129 = vmatprep.subr.mxu0 0.0
      %2130 = vmatpush1.msra.mxu0 0.0
      %2131 = vmatprep.subr.mxu0 0.0
      %2132 = vmatpush1.msra.mxu0 0.0
      %2133 = vmatprep.subr.mxu0 0.0
      %2134 = vmatpush1.msra.mxu0 0.0
      %2135 = vmatprep.subr.mxu0 0.0
      %2136 = vmatpush1.msra.mxu0 0.0
      %2137 = vmatprep.subr.mxu0 0.0
      %2138 = vmatpush1.msra.mxu0 0.0
      %2139 = vmatprep.subr.mxu0 0.0
      %2140 = vmatpush1.msra.mxu0 0.0
      %2141 = vmatprep.subr.mxu0 0.0
      %2142 = vmatpush1.msra.mxu0 0.0
      %2143 = vmatprep.subr.mxu0 0.0
      %2144 = vmatpush1.msra.mxu0 0.0
      %2145 = vmatprep.subr.mxu0 0.0
      %2146 = vmatpush1.msra.mxu0 0.0
      %2147 = vmatprep.subr.mxu0 0.0
      %2148 = vmatpush1.msra.mxu0 0.0
      %2149 = vmatprep.subr.mxu0 0.0
      %2150 = vmatpush1.msra.mxu0 0.0
      %2151 = vmatprep.subr.mxu0 0.0
      %2152 = vmatpush1.msra.mxu0 0.0
      %2153 = vmatprep.subr.mxu0 0.0
      %2154 = vmatpush1.msra.mxu0 0.0
      %2155 = vmatprep.subr.mxu0 0.0
      %2156 = vmatpush1.msra.mxu0 0.0
      %2157 = vmatprep.subr.mxu0 0.0
      %2158 = vmatpush1.msra.mxu0 0.0
      %2159 = vmatprep.subr.mxu0 0.0
      %2160 = vmatpush1.msra.mxu0 0.0
      %2161 = vmatprep.subr.mxu0 0.0
      %2162 = vmatpush1.msra.mxu0 0.0
      %2163 = vmatprep.mubr.f32.mxu0 0.0
      %2164 = vmatmul.mubr.f32.gmra.mrb[0].mxu0 %v2046
      %v2165 = vpop.f32.mrb[0].mxu0
      %v2166 = vadd.f32 0.0, %v2165
      %v2167 = vpop.f32.mrb[0].mxu0
      %2168 = vmatprep.mubr.f32.mxu0 0.0
      %2169 = vmatmul.mubr.f32.gmra.mrb[0].mxu0 %v2049
      %v2170 = vpop.f32.mrb[0].mxu0
      %v2171 = vadd.f32 0.0, %v2170
      %v2172 = vpop.f32.mrb[0].mxu0
      %2173 = vmatprep.mubr.f32.mxu0 0.0
      %2174 = vmatmul.mubr.f32.gmra.mrb[0].mxu0 %v2052
      %v2175 = vpop.f32.mrb[0].mxu0
      %v2176 = vadd.f32 0.0, %v2175
      %v2177 = vpop.f32.mrb[0].mxu0
      %2178 = vmatprep.mubr.f32.mxu0 0.0
      %2179 = vmatmul.mubr.f32.gmra.mrb[0].mxu0 %v2055
      %v2180 = vpop.f32.mrb[0].mxu0
      %v2181 = vadd.f32 0.0, %v2180
      %v2182 = vpop.f32.mrb[0].mxu0
      %2183 = vmatprep.mubr.f32.mxu0 0.0
      %2184 = vmatmul.mubr.f32.gmra.mrb[0].mxu0 %v2058
      %v2185 = vpop.f32.mrb[0].mxu0
      %v2186 = vadd.f32 0.0, %v2185
      %v2187 = vpop.f32.mrb[0].mxu0
      %2188 = vmatprep.mubr.f32.mxu0 0.0
      %2189 = vmatmul.mubr.f32.gmra.mrb[0].mxu0 %v2061
      %v2190 = vpop.f32.mrb[0].mxu0
      %v2191 = vadd.f32 0.0, %v2190
      %v2192 = vpop.f32.mrb[0].mxu0
      %2193 = vmatprep.mubr.f32.mxu0 0.0
      %2194 = vmatmul.mubr.f32.gmra.mrb[0].mxu0 %v2064
      %v2195 = vpop.f32.mrb[0].mxu0
      %v2196 = vadd.f32 0.0, %v2195
      %v2197 = vpop.f32.mrb[0].mxu0
      %2198 = vmatprep.mubr.f32.mxu0 0.0
      %2199 = vmatmul.mubr.f32.gmra.mrb[0].mxu0 %v2067
      %v2200 = vpop.f32.mrb[0].mxu0
      %v2201 = vadd.f32 0.0, %v2200
      %v2202 = vpop.f32.mrb[0].mxu0
      %2203 = vmatprep.mubr.f32.mxu0 0.0
      %2204 = vmatmul.mubr.f32.gmra.mrb[0].mxu0 %v2070
      %v2205 = vpop.f32.mrb[0].mxu0
      %v2206 = vadd.f32 0.0, %v2205
      %v2207 = vpop.f32.mrb[0].mxu0
      %2208 = vmatprep.mubr.f32.mxu0 0.0
      %2209 = vmatmul.mubr.f32.gmra.mrb[0].mxu0 %v2073
      %v2210 = vpop.f32.mrb[0].mxu0
      %v2211 = vadd.f32 0.0, %v2210
      %v2212 = vpop.f32.mrb[0].mxu0
      %2213 = vmatprep.mubr.f32.mxu0 0.0
      %2214 = vmatmul.mubr.f32.gmra.mrb[0].mxu0 %v2076
      %v2215 = vpop.f32.mrb[0].mxu0
      %v2216 = vadd.f32 0.0, %v2215
      %v2217 = vpop.f32.mrb[0].mxu0
      %2218 = vmatprep.mubr.f32.mxu0 0.0
      %2219 = vmatmul.mubr.f32.gmra.mrb[0].mxu0 %v2079
      %v2220 = vpop.f32.mrb[0].mxu0
      %v2221 = vadd.f32 0.0, %v2220
      %v2222 = vpop.f32.mrb[0].mxu0
      %2223 = vmatprep.mubr.f32.mxu0 0.0
      %2224 = vmatmul.mubr.f32.gmra.mrb[0].mxu0 %v2082
      %v2225 = vpop.f32.mrb[0].mxu0
      %v2226 = vadd.f32 0.0, %v2225
      %v2227 = vpop.f32.mrb[0].mxu0
      %2228 = vmatprep.mubr.f32.mxu0 0.0
      %2229 = vmatmul.mubr.f32.gmra.mrb[0].mxu0 %v2085
      %v2230 = vpop.f32.mrb[0].mxu0
      %v2231 = vadd.f32 0.0, %v2230
      %v2232 = vpop.f32.mrb[0].mxu0
      %2233 = vmatprep.mubr.f32.mxu0 0.0
      %2234 = vmatmul.mubr.f32.gmra.mrb[0].mxu0 %v2088
      %v2235 = vpop.f32.mrb[0].mxu0
      %v2236 = vadd.f32 0.0, %v2235
      %v2237 = vpop.f32.mrb[0].mxu0
      %2238 = vmatprep.mubr.f32.mxu0 0.0
      %2239 = vmatmul.mubr.f32.gmra.mrb[0].mxu0 %v2091
      %v2240 = vpop.f32.mrb[0].mxu0
      %v2241 = vadd.f32 0.0, %v2240
      %v2242 = vpop.f32.mrb[0].mxu0
      %2243 = vmatprep.mubr.f32.mxu0 0.0
      %2244 = vmatmul.mubr.f32.gmra.mrb[0].mxu0 %v2094
      %v2245 = vpop.f32.mrb[0].mxu0
      %v2246 = vadd.f32 0.0, %v2245
      %v2247 = vpop.f32.mrb[0].mxu0
      %2248 = vdwg.mxu0
      %v2249 = vadd.f32 %v1993, %v2166
      %v2250 = vadd.f32 %v1994, %v2171
      %v2251 = vadd.f32 %v1995, %v2176
      %v2252 = vadd.f32 %v1996, %v2181
      %v2253 = vadd.f32 %v1997, %v2186
      %v2254 = vadd.f32 %v1998, %v2191
      %v2255 = vadd.f32 %v1999, %v2196
      %v2256 = vadd.f32 %v2000, %v2201
      %v2257 = vadd.f32 %v2001, %v2206
      %v2258 = vadd.f32 %v2002, %v2211
      %v2259 = vadd.f32 %v2003, %v2216
      %v2260 = vadd.f32 %v2004, %v2221
      %v2261 = vadd.f32 %v2005, %v2226
      %v2262 = vadd.f32 %v2006, %v2231
      %v2263 = vadd.f32 %v2007, %v2236
      %v2264 = vadd.f32 %v2008, %v2241
      %v2265 = vadd.f32 %v2009, %v2246
      %v2266 = vld [vmem:[%s2012] ss:$2 sm:$0xff]
      %v2267 = vld [vmem:[%s2014] ss:$2 sm:$0xff]
      %v2268 = vld [vmem:[%s2016] ss:$2 sm:$0xff]
      %v2269 = vld [vmem:[%s2018] ss:$2 sm:$0xff]
      %v2270 = vld [vmem:[%s2020] ss:$2 sm:$0xff]
      %v2271 = vld [vmem:[%s2022] ss:$2 sm:$0xff]
      %v2272 = vld [vmem:[%s2024] ss:$2 sm:$0xff]
      %v2273 = vld [vmem:[%s2026] ss:$2 sm:$0xff]
      %v2274 = vld [vmem:[%s2028] ss:$2 sm:$0xff]
      %v2275 = vld [vmem:[%s2030] ss:$2 sm:$0xff]
      %v2276 = vld [vmem:[%s2032] ss:$2 sm:$0xff]
      %v2277 = vld [vmem:[%s2034] ss:$2 sm:$0xff]
      %v2278 = vld [vmem:[%s2036] ss:$2 sm:$0xff]
      %v2279 = vld [vmem:[%s2038] ss:$2 sm:$0xff]
      %v2280 = vld [vmem:[%s2040] ss:$2 sm:$0xff]
      %v2281 = vld [vmem:[%s2042] ss:$2 sm:$0xff]
      %s2282 = scalar_lea.vmem %s719, 292
      %v2283 = vld [vmem:[%s2282] ss:$2 sm:$0x3f]
      %v2284 = vld [vmem:[%s1 + $0x18] sm:$0xf]
      %v2286 = vsel %vm848, %v2266, 0
      %v2289 = vsel %vm848, %v2267, 0
      %v2292 = vsel %vm848, %v2268, 0
      %v2295 = vsel %vm848, %v2269, 0
      %v2298 = vsel %vm848, %v2270, 0
      %v2301 = vsel %vm848, %v2271, 0
      %v2304 = vsel %vm848, %v2272, 0
      %v2307 = vsel %vm848, %v2273, 0
      %v2310 = vsel %vm848, %v2274, 0
      %v2313 = vsel %vm848, %v2275, 0
      %v2316 = vsel %vm848, %v2276, 0
      %v2319 = vsel %vm848, %v2277, 0
      %v2322 = vsel %vm848, %v2278, 0
      %v2325 = vsel %vm848, %v2279, 0
      %v2328 = vsel %vm848, %v2280, 0
      %v2331 = vsel %vm848, %v2281, 0
      %v2334 = vsel %vm848, %v2283, 0
      %v2337 = vsel %vm900, %v2284, 0
      %2339 = vmatprep.subr.mxu0 0.0
      %2340 = vmatpush1.msra.mxu0 %v2337
      %2341 = vmatprep.subr.mxu0 0.0
      %2342 = vmatpush1.msra.mxu0 0.0
      %2343 = vmatprep.subr.mxu0 0.0
      %2344 = vmatpush1.msra.mxu0 0.0
      %2345 = vmatprep.subr.mxu0 0.0
      %2346 = vmatpush1.msra.mxu0 0.0
      %2347 = vmatprep.subr.mxu0 0.0
      %2348 = vmatpush1.msra.mxu0 0.0
      %2349 = vmatprep.subr.mxu0 0.0
      %2350 = vmatpush1.msra.mxu0 0.0
      %2351 = vmatprep.subr.mxu0 0.0
      %2352 = vmatpush1.msra.mxu0 0.0
      %2353 = vmatprep.subr.mxu0 0.0
      %2354 = vmatpush1.msra.mxu0 0.0
      %2355 = vmatprep.subr.mxu0 0.0
      %2356 = vmatpush1.msra.mxu0 0.0
      %2357 = vmatprep.subr.mxu0 0.0
      %2358 = vmatpush1.msra.mxu0 0.0
      %2359 = vmatprep.subr.mxu0 0.0
      %2360 = vmatpush1.msra.mxu0 0.0
      %2361 = vmatprep.subr.mxu0 0.0
      %2362 = vmatpush1.msra.mxu0 0.0
      %2363 = vmatprep.subr.mxu0 0.0
      %2364 = vmatpush1.msra.mxu0 0.0
      %2365 = vmatprep.subr.mxu0 0.0
      %2366 = vmatpush1.msra.mxu0 0.0
      %2367 = vmatprep.subr.mxu0 0.0
      %2368 = vmatpush1.msra.mxu0 0.0
      %2369 = vmatprep.subr.mxu0 0.0
      %2370 = vmatpush1.msra.mxu0 0.0
      %2371 = vmatprep.subr.mxu0 0.0
      %2372 = vmatpush1.msra.mxu0 0.0
      %2373 = vmatprep.subr.mxu0 0.0
      %2374 = vmatpush1.msra.mxu0 0.0
      %2375 = vmatprep.subr.mxu0 0.0
      %2376 = vmatpush1.msra.mxu0 0.0
      %2377 = vmatprep.subr.mxu0 0.0
      %2378 = vmatpush1.msra.mxu0 0.0
      %2379 = vmatprep.subr.mxu0 0.0
      %2380 = vmatpush1.msra.mxu0 0.0
      %2381 = vmatprep.subr.mxu0 0.0
      %2382 = vmatpush1.msra.mxu0 0.0
      %2383 = vmatprep.subr.mxu0 0.0
      %2384 = vmatpush1.msra.mxu0 0.0
      %2385 = vmatprep.subr.mxu0 0.0
      %2386 = vmatpush1.msra.mxu0 0.0
      %2387 = vmatprep.subr.mxu0 0.0
      %2388 = vmatpush1.msra.mxu0 0.0
      %2389 = vmatprep.subr.mxu0 0.0
      %2390 = vmatpush1.msra.mxu0 0.0
      %2391 = vmatprep.subr.mxu0 0.0
      %2392 = vmatpush1.msra.mxu0 0.0
      %2393 = vmatprep.subr.mxu0 0.0
      %2394 = vmatpush1.msra.mxu0 0.0
      %2395 = vmatprep.subr.mxu0 0.0
      %2396 = vmatpush1.msra.mxu0 0.0
      %2397 = vmatprep.subr.mxu0 0.0
      %2398 = vmatpush1.msra.mxu0 0.0
      %2399 = vmatprep.subr.mxu0 0.0
      %2400 = vmatpush1.msra.mxu0 0.0
      %2401 = vmatprep.subr.mxu0 0.0
      %2402 = vmatpush1.msra.mxu0 0.0
      %2403 = vmatprep.mubr.f32.mxu0 0.0
      %2404 = vmatmul.mubr.f32.gmra.mrb[0].mxu0 %v2286
      %v2405 = vpop.f32.mrb[0].mxu0
      %v2406 = vadd.f32 0.0, %v2405
      %v2407 = vpop.f32.mrb[0].mxu0
      %2408 = vmatprep.mubr.f32.mxu0 0.0
      %2409 = vmatmul.mubr.f32.gmra.mrb[0].mxu0 %v2289
      %v2410 = vpop.f32.mrb[0].mxu0
      %v2411 = vadd.f32 0.0, %v2410
      %v2412 = vpop.f32.mrb[0].mxu0
      %2413 = vmatprep.mubr.f32.mxu0 0.0
      %2414 = vmatmul.mubr.f32.gmra.mrb[0].mxu0 %v2292
      %v2415 = vpop.f32.mrb[0].mxu0
      %v2416 = vadd.f32 0.0, %v2415
      %v2417 = vpop.f32.mrb[0].mxu0
      %2418 = vmatprep.mubr.f32.mxu0 0.0
      %2419 = vmatmul.mubr.f32.gmra.mrb[0].mxu0 %v2295
      %v2420 = vpop.f32.mrb[0].mxu0
      %v2421 = vadd.f32 0.0, %v2420
      %v2422 = vpop.f32.mrb[0].mxu0
      %2423 = vmatprep.mubr.f32.mxu0 0.0
      %2424 = vmatmul.mubr.f32.gmra.mrb[0].mxu0 %v2298
      %v2425 = vpop.f32.mrb[0].mxu0
      %v2426 = vadd.f32 0.0, %v2425
      %v2427 = vpop.f32.mrb[0].mxu0
      %2428 = vmatprep.mubr.f32.mxu0 0.0
      %2429 = vmatmul.mubr.f32.gmra.mrb[0].mxu0 %v2301
      %v2430 = vpop.f32.mrb[0].mxu0
      %v2431 = vadd.f32 0.0, %v2430
      %v2432 = vpop.f32.mrb[0].mxu0
      %2433 = vmatprep.mubr.f32.mxu0 0.0
      %2434 = vmatmul.mubr.f32.gmra.mrb[0].mxu0 %v2304
      %v2435 = vpop.f32.mrb[0].mxu0
      %v2436 = vadd.f32 0.0, %v2435
      %v2437 = vpop.f32.mrb[0].mxu0
      %2438 = vmatprep.mubr.f32.mxu0 0.0
      %2439 = vmatmul.mubr.f32.gmra.mrb[0].mxu0 %v2307
      %v2440 = vpop.f32.mrb[0].mxu0
      %v2441 = vadd.f32 0.0, %v2440
      %v2442 = vpop.f32.mrb[0].mxu0
      %2443 = vmatprep.mubr.f32.mxu0 0.0
      %2444 = vmatmul.mubr.f32.gmra.mrb[0].mxu0 %v2310
      %v2445 = vpop.f32.mrb[0].mxu0
      %v2446 = vadd.f32 0.0, %v2445
      %v2447 = vpop.f32.mrb[0].mxu0
      %2448 = vmatprep.mubr.f32.mxu0 0.0
      %2449 = vmatmul.mubr.f32.gmra.mrb[0].mxu0 %v2313
      %v2450 = vpop.f32.mrb[0].mxu0
      %v2451 = vadd.f32 0.0, %v2450
      %v2452 = vpop.f32.mrb[0].mxu0
      %2453 = vmatprep.mubr.f32.mxu0 0.0
      %2454 = vmatmul.mubr.f32.gmra.mrb[0].mxu0 %v2316
      %v2455 = vpop.f32.mrb[0].mxu0
      %v2456 = vadd.f32 0.0, %v2455
      %v2457 = vpop.f32.mrb[0].mxu0
      %2458 = vmatprep.mubr.f32.mxu0 0.0
      %2459 = vmatmul.mubr.f32.gmra.mrb[0].mxu0 %v2319
      %v2460 = vpop.f32.mrb[0].mxu0
      %v2461 = vadd.f32 0.0, %v2460
      %v2462 = vpop.f32.mrb[0].mxu0
      %2463 = vmatprep.mubr.f32.mxu0 0.0
      %2464 = vmatmul.mubr.f32.gmra.mrb[0].mxu0 %v2322
      %v2465 = vpop.f32.mrb[0].mxu0
      %v2466 = vadd.f32 0.0, %v2465
      %v2467 = vpop.f32.mrb[0].mxu0
      %2468 = vmatprep.mubr.f32.mxu0 0.0
      %2469 = vmatmul.mubr.f32.gmra.mrb[0].mxu0 %v2325
      %v2470 = vpop.f32.mrb[0].mxu0
      %v2471 = vadd.f32 0.0, %v2470
      %v2472 = vpop.f32.mrb[0].mxu0
      %2473 = vmatprep.mubr.f32.mxu0 0.0
      %2474 = vmatmul.mubr.f32.gmra.mrb[0].mxu0 %v2328
      %v2475 = vpop.f32.mrb[0].mxu0
      %v2476 = vadd.f32 0.0, %v2475
      %v2477 = vpop.f32.mrb[0].mxu0
      %2478 = vmatprep.mubr.f32.mxu0 0.0
      %2479 = vmatmul.mubr.f32.gmra.mrb[0].mxu0 %v2331
      %v2480 = vpop.f32.mrb[0].mxu0
      %v2481 = vadd.f32 0.0, %v2480
      %v2482 = vpop.f32.mrb[0].mxu0
      %2483 = vmatprep.mubr.f32.mxu0 0.0
      %2484 = vmatmul.mubr.f32.gmra.mrb[0].mxu0 %v2334
      %v2485 = vpop.f32.mrb[0].mxu0
      %v2486 = vadd.f32 0.0, %v2485
      %v2487 = vpop.f32.mrb[0].mxu0
      %2488 = vdwg.mxu0
      %v2489 = vadd.f32 %v2249, %v2406
      %v2490 = vadd.f32 %v2250, %v2411
      %v2491 = vadd.f32 %v2251, %v2416
      %v2492 = vadd.f32 %v2252, %v2421
      %v2493 = vadd.f32 %v2253, %v2426
      %v2494 = vadd.f32 %v2254, %v2431
      %v2495 = vadd.f32 %v2255, %v2436
      %v2496 = vadd.f32 %v2256, %v2441
      %v2497 = vadd.f32 %v2257, %v2446
      %v2498 = vadd.f32 %v2258, %v2451
      %v2499 = vadd.f32 %v2259, %v2456
      %v2500 = vadd.f32 %v2260, %v2461
      %v2501 = vadd.f32 %v2261, %v2466
      %v2502 = vadd.f32 %v2262, %v2471
      %v2503 = vadd.f32 %v2263, %v2476
      %v2504 = vadd.f32 %v2264, %v2481
      %v2505 = vadd.f32 %v2265, %v2486
      %s2506 = scalar_lea.vmem %s719, 37
      %v2507 = vld [vmem:[%s2506] ss:$2 sm:$0xff]
      %s2508 = scalar_lea.vmem %s719, 53
      %v2509 = vld [vmem:[%s2508] ss:$2 sm:$0xff]
      %s2510 = scalar_lea.vmem %s719, 69
      %v2511 = vld [vmem:[%s2510] ss:$2 sm:$0xff]
      %s2512 = scalar_lea.vmem %s719, 85
      %v2513 = vld [vmem:[%s2512] ss:$2 sm:$0xff]
      %s2514 = scalar_lea.vmem %s719, 101
      %v2515 = vld [vmem:[%s2514] ss:$2 sm:$0xff]
      %s2516 = scalar_lea.vmem %s719, 117
      %v2517 = vld [vmem:[%s2516] ss:$2 sm:$0xff]
      %s2518 = scalar_lea.vmem %s719, 133
      %v2519 = vld [vmem:[%s2518] ss:$2 sm:$0xff]
      %s2520 = scalar_lea.vmem %s719, 149
      %v2521 = vld [vmem:[%s2520] ss:$2 sm:$0xff]
      %s2522 = scalar_lea.vmem %s719, 165
      %v2523 = vld [vmem:[%s2522] ss:$2 sm:$0xff]
      %s2524 = scalar_lea.vmem %s719, 181
      %v2525 = vld [vmem:[%s2524] ss:$2 sm:$0xff]
      %s2526 = scalar_lea.vmem %s719, 197
      %v2527 = vld [vmem:[%s2526] ss:$2 sm:$0xff]
      %s2528 = scalar_lea.vmem %s719, 213
      %v2529 = vld [vmem:[%s2528] ss:$2 sm:$0xff]
      %s2530 = scalar_lea.vmem %s719, 229
      %v2531 = vld [vmem:[%s2530] ss:$2 sm:$0xff]
      %s2532 = scalar_lea.vmem %s719, 245
      %v2533 = vld [vmem:[%s2532] ss:$2 sm:$0xff]
      %s2534 = scalar_lea.vmem %s719, 261
      %v2535 = vld [vmem:[%s2534] ss:$2 sm:$0xff]
      %s2536 = scalar_lea.vmem %s719, 277
      %v2537 = vld [vmem:[%s2536] ss:$2 sm:$0xff]
      %s2538 = scalar_lea.vmem %s719, 293
      %v2539 = vld [vmem:[%s2538] ss:$2 sm:$0x3f]
      %v2540 = vld [vmem:[%s1 + $0x1c] sm:$0xf]
      %v2542 = vsel %vm848, %v2507, 0
      %v2545 = vsel %vm848, %v2509, 0
      %v2548 = vsel %vm848, %v2511, 0
      %v2551 = vsel %vm848, %v2513, 0
      %v2554 = vsel %vm848, %v2515, 0
      %v2557 = vsel %vm848, %v2517, 0
      %v2560 = vsel %vm848, %v2519, 0
      %v2563 = vsel %vm848, %v2521, 0
      %v2566 = vsel %vm848, %v2523, 0
      %v2569 = vsel %vm848, %v2525, 0
      %v2572 = vsel %vm848, %v2527, 0
      %v2575 = vsel %vm848, %v2529, 0
      %v2578 = vsel %vm848, %v2531, 0
      %v2581 = vsel %vm848, %v2533, 0
      %v2584 = vsel %vm848, %v2535, 0
      %v2587 = vsel %vm848, %v2537, 0
      %v2590 = vsel %vm848, %v2539, 0
      %v2593 = vsel %vm900, %v2540, 0
      %2595 = vmatprep.subr.mxu0 0.0
      %2596 = vmatpush1.msra.mxu0 %v2593
      %2597 = vmatprep.subr.mxu0 0.0
      %2598 = vmatpush1.msra.mxu0 0.0
      %2599 = vmatprep.subr.mxu0 0.0
      %2600 = vmatpush1.msra.mxu0 0.0
      %2601 = vmatprep.subr.mxu0 0.0
      %2602 = vmatpush1.msra.mxu0 0.0
      %2603 = vmatprep.subr.mxu0 0.0
      %2604 = vmatpush1.msra.mxu0 0.0
      %2605 = vmatprep.subr.mxu0 0.0
      %2606 = vmatpush1.msra.mxu0 0.0
      %2607 = vmatprep.subr.mxu0 0.0
      %2608 = vmatpush1.msra.mxu0 0.0
      %2609 = vmatprep.subr.mxu0 0.0
      %2610 = vmatpush1.msra.mxu0 0.0
      %2611 = vmatprep.subr.mxu0 0.0
      %2612 = vmatpush1.msra.mxu0 0.0
      %2613 = vmatprep.subr.mxu0 0.0
      %2614 = vmatpush1.msra.mxu0 0.0
      %2615 = vmatprep.subr.mxu0 0.0
      %2616 = vmatpush1.msra.mxu0 0.0
      %2617 = vmatprep.subr.mxu0 0.0
      %2618 = vmatpush1.msra.mxu0 0.0
      %2619 = vmatprep.subr.mxu0 0.0
      %2620 = vmatpush1.msra.mxu0 0.0
      %2621 = vmatprep.subr.mxu0 0.0
      %2622 = vmatpush1.msra.mxu0 0.0
      %2623 = vmatprep.subr.mxu0 0.0
      %2624 = vmatpush1.msra.mxu0 0.0
      %2625 = vmatprep.subr.mxu0 0.0
      %2626 = vmatpush1.msra.mxu0 0.0
      %2627 = vmatprep.subr.mxu0 0.0
      %2628 = vmatpush1.msra.mxu0 0.0
      %2629 = vmatprep.subr.mxu0 0.0
      %2630 = vmatpush1.msra.mxu0 0.0
      %2631 = vmatprep.subr.mxu0 0.0
      %2632 = vmatpush1.msra.mxu0 0.0
      %2633 = vmatprep.subr.mxu0 0.0
      %2634 = vmatpush1.msra.mxu0 0.0
      %2635 = vmatprep.subr.mxu0 0.0
      %2636 = vmatpush1.msra.mxu0 0.0
      %2637 = vmatprep.subr.mxu0 0.0
      %2638 = vmatpush1.msra.mxu0 0.0
      %2639 = vmatprep.subr.mxu0 0.0
      %2640 = vmatpush1.msra.mxu0 0.0
      %2641 = vmatprep.subr.mxu0 0.0
      %2642 = vmatpush1.msra.mxu0 0.0
      %2643 = vmatprep.subr.mxu0 0.0
      %2644 = vmatpush1.msra.mxu0 0.0
      %2645 = vmatprep.subr.mxu0 0.0
      %2646 = vmatpush1.msra.mxu0 0.0
      %2647 = vmatprep.subr.mxu0 0.0
      %2648 = vmatpush1.msra.mxu0 0.0
      %2649 = vmatprep.subr.mxu0 0.0
      %2650 = vmatpush1.msra.mxu0 0.0
      %2651 = vmatprep.subr.mxu0 0.0
      %2652 = vmatpush1.msra.mxu0 0.0
      %2653 = vmatprep.subr.mxu0 0.0
      %2654 = vmatpush1.msra.mxu0 0.0
      %2655 = vmatprep.subr.mxu0 0.0
      %2656 = vmatpush1.msra.mxu0 0.0
      %2657 = vmatprep.subr.mxu0 0.0
      %2658 = vmatpush1.msra.mxu0 0.0
      %2659 = vmatprep.mubr.f32.mxu0 0.0
      %2660 = vmatmul.mubr.f32.gmra.mrb[0].mxu0 %v2542
      %v2661 = vpop.f32.mrb[0].mxu0
      %v2662 = vadd.f32 0.0, %v2661
      %v2663 = vpop.f32.mrb[0].mxu0
      %2664 = vmatprep.mubr.f32.mxu0 0.0
      %2665 = vmatmul.mubr.f32.gmra.mrb[0].mxu0 %v2545
      %v2666 = vpop.f32.mrb[0].mxu0
      %v2667 = vadd.f32 0.0, %v2666
      %v2668 = vpop.f32.mrb[0].mxu0
      %2669 = vmatprep.mubr.f32.mxu0 0.0
      %2670 = vmatmul.mubr.f32.gmra.mrb[0].mxu0 %v2548
      %v2671 = vpop.f32.mrb[0].mxu0
      %v2672 = vadd.f32 0.0, %v2671
      %v2673 = vpop.f32.mrb[0].mxu0
      %2674 = vmatprep.mubr.f32.mxu0 0.0
      %2675 = vmatmul.mubr.f32.gmra.mrb[0].mxu0 %v2551
      %v2676 = vpop.f32.mrb[0].mxu0
      %v2677 = vadd.f32 0.0, %v2676
      %v2678 = vpop.f32.mrb[0].mxu0
      %2679 = vmatprep.mubr.f32.mxu0 0.0
      %2680 = vmatmul.mubr.f32.gmra.mrb[0].mxu0 %v2554
      %v2681 = vpop.f32.mrb[0].mxu0
      %v2682 = vadd.f32 0.0, %v2681
      %v2683 = vpop.f32.mrb[0].mxu0
      %2684 = vmatprep.mubr.f32.mxu0 0.0
      %2685 = vmatmul.mubr.f32.gmra.mrb[0].mxu0 %v2557
      %v2686 = vpop.f32.mrb[0].mxu0
      %v2687 = vadd.f32 0.0, %v2686
      %v2688 = vpop.f32.mrb[0].mxu0
      %2689 = vmatprep.mubr.f32.mxu0 0.0
      %2690 = vmatmul.mubr.f32.gmra.mrb[0].mxu0 %v2560
      %v2691 = vpop.f32.mrb[0].mxu0
      %v2692 = vadd.f32 0.0, %v2691
      %v2693 = vpop.f32.mrb[0].mxu0
      %2694 = vmatprep.mubr.f32.mxu0 0.0
      %2695 = vmatmul.mubr.f32.gmra.mrb[0].mxu0 %v2563
      %v2696 = vpop.f32.mrb[0].mxu0
      %v2697 = vadd.f32 0.0, %v2696
      %v2698 = vpop.f32.mrb[0].mxu0
      %2699 = vmatprep.mubr.f32.mxu0 0.0
      %2700 = vmatmul.mubr.f32.gmra.mrb[0].mxu0 %v2566
      %v2701 = vpop.f32.mrb[0].mxu0
      %v2702 = vadd.f32 0.0, %v2701
      %v2703 = vpop.f32.mrb[0].mxu0
      %2704 = vmatprep.mubr.f32.mxu0 0.0
      %2705 = vmatmul.mubr.f32.gmra.mrb[0].mxu0 %v2569
      %v2706 = vpop.f32.mrb[0].mxu0
      %v2707 = vadd.f32 0.0, %v2706
      %v2708 = vpop.f32.mrb[0].mxu0
      %2709 = vmatprep.mubr.f32.mxu0 0.0
      %2710 = vmatmul.mubr.f32.gmra.mrb[0].mxu0 %v2572
      %v2711 = vpop.f32.mrb[0].mxu0
      %v2712 = vadd.f32 0.0, %v2711
      %v2713 = vpop.f32.mrb[0].mxu0
      %2714 = vmatprep.mubr.f32.mxu0 0.0
      %2715 = vmatmul.mubr.f32.gmra.mrb[0].mxu0 %v2575
      %v2716 = vpop.f32.mrb[0].mxu0
      %v2717 = vadd.f32 0.0, %v2716
      %v2718 = vpop.f32.mrb[0].mxu0
      %2719 = vmatprep.mubr.f32.mxu0 0.0
      %2720 = vmatmul.mubr.f32.gmra.mrb[0].mxu0 %v2578
      %v2721 = vpop.f32.mrb[0].mxu0
      %v2722 = vadd.f32 0.0, %v2721
      %v2723 = vpop.f32.mrb[0].mxu0
      %2724 = vmatprep.mubr.f32.mxu0 0.0
      %2725 = vmatmul.mubr.f32.gmra.mrb[0].mxu0 %v2581
      %v2726 = vpop.f32.mrb[0].mxu0
      %v2727 = vadd.f32 0.0, %v2726
      %v2728 = vpop.f32.mrb[0].mxu0
      %2729 = vmatprep.mubr.f32.mxu0 0.0
      %2730 = vmatmul.mubr.f32.gmra.mrb[0].mxu0 %v2584
      %v2731 = vpop.f32.mrb[0].mxu0
      %v2732 = vadd.f32 0.0, %v2731
      %v2733 = vpop.f32.mrb[0].mxu0
      %2734 = vmatprep.mubr.f32.mxu0 0.0
      %2735 = vmatmul.mubr.f32.gmra.mrb[0].mxu0 %v2587
      %v2736 = vpop.f32.mrb[0].mxu0
      %v2737 = vadd.f32 0.0, %v2736
      %v2738 = vpop.f32.mrb[0].mxu0
      %2739 = vmatprep.mubr.f32.mxu0 0.0
      %2740 = vmatmul.mubr.f32.gmra.mrb[0].mxu0 %v2590
      %v2741 = vpop.f32.mrb[0].mxu0
      %v2742 = vadd.f32 0.0, %v2741
      %v2743 = vpop.f32.mrb[0].mxu0
      %2744 = vdwg.mxu0
      %v2745 = vadd.f32 %v2489, %v2662
      %v2746 = vadd.f32 %v2490, %v2667
      %v2747 = vadd.f32 %v2491, %v2672
      %v2748 = vadd.f32 %v2492, %v2677
      %v2749 = vadd.f32 %v2493, %v2682
      %v2750 = vadd.f32 %v2494, %v2687
      %v2751 = vadd.f32 %v2495, %v2692
      %v2752 = vadd.f32 %v2496, %v2697
      %v2753 = vadd.f32 %v2497, %v2702
      %v2754 = vadd.f32 %v2498, %v2707
      %v2755 = vadd.f32 %v2499, %v2712
      %v2756 = vadd.f32 %v2500, %v2717
      %v2757 = vadd.f32 %v2501, %v2722
      %v2758 = vadd.f32 %v2502, %v2727
      %v2759 = vadd.f32 %v2503, %v2732
      %v2760 = vadd.f32 %v2504, %v2737
      %v2761 = vadd.f32 %v2505, %v2742
      %s2762 = scalar_lea.vmem %s719, 38
      %v2763 = vld [vmem:[%s2762] ss:$2 sm:$0xff]
      %s2764 = scalar_lea.vmem %s719, 54
      %v2765 = vld [vmem:[%s2764] ss:$2 sm:$0xff]
      %s2766 = scalar_lea.vmem %s719, 70
      %v2767 = vld [vmem:[%s2766] ss:$2 sm:$0xff]
      %s2768 = scalar_lea.vmem %s719, 86
      %v2769 = vld [vmem:[%s2768] ss:$2 sm:$0xff]
      %s2770 = scalar_lea.vmem %s719, 102
      %v2771 = vld [vmem:[%s2770] ss:$2 sm:$0xff]
      %s2772 = scalar_lea.vmem %s719, 118
      %v2773 = vld [vmem:[%s2772] ss:$2 sm:$0xff]
      %s2774 = scalar_lea.vmem %s719, 134
      %v2775 = vld [vmem:[%s2774] ss:$2 sm:$0xff]
      %s2776 = scalar_lea.vmem %s719, 150
      %v2777 = vld [vmem:[%s2776] ss:$2 sm:$0xff]
      %s2778 = scalar_lea.vmem %s719, 166
      %v2779 = vld [vmem:[%s2778] ss:$2 sm:$0xff]
      %s2780 = scalar_lea.vmem %s719, 182
      %v2781 = vld [vmem:[%s2780] ss:$2 sm:$0xff]
      %s2782 = scalar_lea.vmem %s719, 198
      %v2783 = vld [vmem:[%s2782] ss:$2 sm:$0xff]
      %s2784 = scalar_lea.vmem %s719, 214
      %v2785 = vld [vmem:[%s2784] ss:$2 sm:$0xff]
      %s2786 = scalar_lea.vmem %s719, 230
      %v2787 = vld [vmem:[%s2786] ss:$2 sm:$0xff]
      %s2788 = scalar_lea.vmem %s719, 246
      %v2789 = vld [vmem:[%s2788] ss:$2 sm:$0xff]
      %s2790 = scalar_lea.vmem %s719, 262
      %v2791 = vld [vmem:[%s2790] ss:$2 sm:$0xff]
      %s2792 = scalar_lea.vmem %s719, 278
      %v2793 = vld [vmem:[%s2792] ss:$2 sm:$0xff]
      %s2794 = scalar_lea.vmem %s719, 294
      %v2795 = vld [vmem:[%s2794] ss:$2 sm:$0x3f]
      %v2796 = vld [vmem:[%s1 + $0x20] sm:$0xf]
      %v2798 = vsel %vm848, %v2763, 0
      %v2801 = vsel %vm848, %v2765, 0
      %v2804 = vsel %vm848, %v2767, 0
      %v2807 = vsel %vm848, %v2769, 0
      %v2810 = vsel %vm848, %v2771, 0
      %v2813 = vsel %vm848, %v2773, 0
      %v2816 = vsel %vm848, %v2775, 0
      %v2819 = vsel %vm848, %v2777, 0
      %v2822 = vsel %vm848, %v2779, 0
      %v2825 = vsel %vm848, %v2781, 0
      %v2828 = vsel %vm848, %v2783, 0
      %v2831 = vsel %vm848, %v2785, 0
      %v2834 = vsel %vm848, %v2787, 0
      %v2837 = vsel %vm848, %v2789, 0
      %v2840 = vsel %vm848, %v2791, 0
      %v2843 = vsel %vm848, %v2793, 0
      %v2846 = vsel %vm848, %v2795, 0
      %v2849 = vsel %vm900, %v2796, 0
      %2851 = vmatprep.subr.mxu0 0.0
      %2852 = vmatpush1.msra.mxu0 %v2849
      %2853 = vmatprep.subr.mxu0 0.0
      %2854 = vmatpush1.msra.mxu0 0.0
      %2855 = vmatprep.subr.mxu0 0.0
      %2856 = vmatpush1.msra.mxu0 0.0
      %2857 = vmatprep.subr.mxu0 0.0
      %2858 = vmatpush1.msra.mxu0 0.0
      %2859 = vmatprep.subr.mxu0 0.0
      %2860 = vmatpush1.msra.mxu0 0.0
      %2861 = vmatprep.subr.mxu0 0.0
      %2862 = vmatpush1.msra.mxu0 0.0
      %2863 = vmatprep.subr.mxu0 0.0
      %2864 = vmatpush1.msra.mxu0 0.0
      %2865 = vmatprep.subr.mxu0 0.0
      %2866 = vmatpush1.msra.mxu0 0.0
      %2867 = vmatprep.subr.mxu0 0.0
      %2868 = vmatpush1.msra.mxu0 0.0
      %2869 = vmatprep.subr.mxu0 0.0
      %2870 = vmatpush1.msra.mxu0 0.0
      %2871 = vmatprep.subr.mxu0 0.0
      %2872 = vmatpush1.msra.mxu0 0.0
      %2873 = vmatprep.subr.mxu0 0.0
      %2874 = vmatpush1.msra.mxu0 0.0
      %2875 = vmatprep.subr.mxu0 0.0
      %2876 = vmatpush1.msra.mxu0 0.0
      %2877 = vmatprep.subr.mxu0 0.0
      %2878 = vmatpush1.msra.mxu0 0.0
      %2879 = vmatprep.subr.mxu0 0.0
      %2880 = vmatpush1.msra.mxu0 0.0
      %2881 = vmatprep.subr.mxu0 0.0
      %2882 = vmatpush1.msra.mxu0 0.0
      %2883 = vmatprep.subr.mxu0 0.0
      %2884 = vmatpush1.msra.mxu0 0.0
      %2885 = vmatprep.subr.mxu0 0.0
      %2886 = vmatpush1.msra.mxu0 0.0
      %2887 = vmatprep.subr.mxu0 0.0
      %2888 = vmatpush1.msra.mxu0 0.0
      %2889 = vmatprep.subr.mxu0 0.0
      %2890 = vmatpush1.msra.mxu0 0.0
      %2891 = vmatprep.subr.mxu0 0.0
      %2892 = vmatpush1.msra.mxu0 0.0
      %2893 = vmatprep.subr.mxu0 0.0
      %2894 = vmatpush1.msra.mxu0 0.0
      %2895 = vmatprep.subr.mxu0 0.0
      %2896 = vmatpush1.msra.mxu0 0.0
      %2897 = vmatprep.subr.mxu0 0.0
      %2898 = vmatpush1.msra.mxu0 0.0
      %2899 = vmatprep.subr.mxu0 0.0
      %2900 = vmatpush1.msra.mxu0 0.0
      %2901 = vmatprep.subr.mxu0 0.0
      %2902 = vmatpush1.msra.mxu0 0.0
      %2903 = vmatprep.subr.mxu0 0.0
      %2904 = vmatpush1.msra.mxu0 0.0
      %2905 = vmatprep.subr.mxu0 0.0
      %2906 = vmatpush1.msra.mxu0 0.0
      %2907 = vmatprep.subr.mxu0 0.0
      %2908 = vmatpush1.msra.mxu0 0.0
      %2909 = vmatprep.subr.mxu0 0.0
      %2910 = vmatpush1.msra.mxu0 0.0
      %2911 = vmatprep.subr.mxu0 0.0
      %2912 = vmatpush1.msra.mxu0 0.0
      %2913 = vmatprep.subr.mxu0 0.0
      %2914 = vmatpush1.msra.mxu0 0.0
      %2915 = vmatprep.mubr.f32.mxu0 0.0
      %2916 = vmatmul.mubr.f32.gmra.mrb[0].mxu0 %v2798
      %v2917 = vpop.f32.mrb[0].mxu0
      %v2918 = vadd.f32 0.0, %v2917
      %v2919 = vpop.f32.mrb[0].mxu0
      %2920 = vmatprep.mubr.f32.mxu0 0.0
      %2921 = vmatmul.mubr.f32.gmra.mrb[0].mxu0 %v2801
      %v2922 = vpop.f32.mrb[0].mxu0
      %v2923 = vadd.f32 0.0, %v2922
      %v2924 = vpop.f32.mrb[0].mxu0
      %2925 = vmatprep.mubr.f32.mxu0 0.0
      %2926 = vmatmul.mubr.f32.gmra.mrb[0].mxu0 %v2804
      %v2927 = vpop.f32.mrb[0].mxu0
      %v2928 = vadd.f32 0.0, %v2927
      %v2929 = vpop.f32.mrb[0].mxu0
      %2930 = vmatprep.mubr.f32.mxu0 0.0
      %2931 = vmatmul.mubr.f32.gmra.mrb[0].mxu0 %v2807
      %v2932 = vpop.f32.mrb[0].mxu0
      %v2933 = vadd.f32 0.0, %v2932
      %v2934 = vpop.f32.mrb[0].mxu0
      %2935 = vmatprep.mubr.f32.mxu0 0.0
      %2936 = vmatmul.mubr.f32.gmra.mrb[0].mxu0 %v2810
      %v2937 = vpop.f32.mrb[0].mxu0
      %v2938 = vadd.f32 0.0, %v2937
      %v2939 = vpop.f32.mrb[0].mxu0
      %2940 = vmatprep.mubr.f32.mxu0 0.0
      %2941 = vmatmul.mubr.f32.gmra.mrb[0].mxu0 %v2813
      %v2942 = vpop.f32.mrb[0].mxu0
      %v2943 = vadd.f32 0.0, %v2942
      %v2944 = vpop.f32.mrb[0].mxu0
      %2945 = vmatprep.mubr.f32.mxu0 0.0
      %2946 = vmatmul.mubr.f32.gmra.mrb[0].mxu0 %v2816
      %v2947 = vpop.f32.mrb[0].mxu0
      %v2948 = vadd.f32 0.0, %v2947
      %v2949 = vpop.f32.mrb[0].mxu0
      %2950 = vmatprep.mubr.f32.mxu0 0.0
      %2951 = vmatmul.mubr.f32.gmra.mrb[0].mxu0 %v2819
      %v2952 = vpop.f32.mrb[0].mxu0
      %v2953 = vadd.f32 0.0, %v2952
      %v2954 = vpop.f32.mrb[0].mxu0
      %2955 = vmatprep.mubr.f32.mxu0 0.0
      %2956 = vmatmul.mubr.f32.gmra.mrb[0].mxu0 %v2822
      %v2957 = vpop.f32.mrb[0].mxu0
      %v2958 = vadd.f32 0.0, %v2957
      %v2959 = vpop.f32.mrb[0].mxu0
      %2960 = vmatprep.mubr.f32.mxu0 0.0
      %2961 = vmatmul.mubr.f32.gmra.mrb[0].mxu0 %v2825
      %v2962 = vpop.f32.mrb[0].mxu0
      %v2963 = vadd.f32 0.0, %v2962
      %v2964 = vpop.f32.mrb[0].mxu0
      %2965 = vmatprep.mubr.f32.mxu0 0.0
      %2966 = vmatmul.mubr.f32.gmra.mrb[0].mxu0 %v2828
      %v2967 = vpop.f32.mrb[0].mxu0
      %v2968 = vadd.f32 0.0, %v2967
      %v2969 = vpop.f32.mrb[0].mxu0
      %2970 = vmatprep.mubr.f32.mxu0 0.0
      %2971 = vmatmul.mubr.f32.gmra.mrb[0].mxu0 %v2831
      %v2972 = vpop.f32.mrb[0].mxu0
      %v2973 = vadd.f32 0.0, %v2972
      %v2974 = vpop.f32.mrb[0].mxu0
      %2975 = vmatprep.mubr.f32.mxu0 0.0
      %2976 = vmatmul.mubr.f32.gmra.mrb[0].mxu0 %v2834
      %v2977 = vpop.f32.mrb[0].mxu0
      %v2978 = vadd.f32 0.0, %v2977
      %v2979 = vpop.f32.mrb[0].mxu0
      %2980 = vmatprep.mubr.f32.mxu0 0.0
      %2981 = vmatmul.mubr.f32.gmra.mrb[0].mxu0 %v2837
      %v2982 = vpop.f32.mrb[0].mxu0
      %v2983 = vadd.f32 0.0, %v2982
      %v2984 = vpop.f32.mrb[0].mxu0
      %2985 = vmatprep.mubr.f32.mxu0 0.0
      %2986 = vmatmul.mubr.f32.gmra.mrb[0].mxu0 %v2840
      %v2987 = vpop.f32.mrb[0].mxu0
      %v2988 = vadd.f32 0.0, %v2987
      %v2989 = vpop.f32.mrb[0].mxu0
      %2990 = vmatprep.mubr.f32.mxu0 0.0
      %2991 = vmatmul.mubr.f32.gmra.mrb[0].mxu0 %v2843
      %v2992 = vpop.f32.mrb[0].mxu0
      %v2993 = vadd.f32 0.0, %v2992
      %v2994 = vpop.f32.mrb[0].mxu0
      %2995 = vmatprep.mubr.f32.mxu0 0.0
      %2996 = vmatmul.mubr.f32.gmra.mrb[0].mxu0 %v2846
      %v2997 = vpop.f32.mrb[0].mxu0
      %v2998 = vadd.f32 0.0, %v2997
      %v2999 = vpop.f32.mrb[0].mxu0
      %3000 = vdwg.mxu0
      %v3001 = vadd.f32 %v2745, %v2918
      %v3002 = vadd.f32 %v2746, %v2923
      %v3003 = vadd.f32 %v2747, %v2928
      %v3004 = vadd.f32 %v2748, %v2933
      %v3005 = vadd.f32 %v2749, %v2938
      %v3006 = vadd.f32 %v2750, %v2943
      %v3007 = vadd.f32 %v2751, %v2948
      %v3008 = vadd.f32 %v2752, %v2953
      %v3009 = vadd.f32 %v2753, %v2958
      %v3010 = vadd.f32 %v2754, %v2963
      %v3011 = vadd.f32 %v2755, %v2968
      %v3012 = vadd.f32 %v2756, %v2973
      %v3013 = vadd.f32 %v2757, %v2978
      %v3014 = vadd.f32 %v2758, %v2983
      %v3015 = vadd.f32 %v2759, %v2988
      %v3016 = vadd.f32 %v2760, %v2993
      %v3017 = vadd.f32 %v2761, %v2998
      %v3018 = vld [vmem:[%s2] sm:$0x1]
      %v3020 = vlaneseq
      %v3021 = vshrl.u32 %v3020, 7
      %v3022 = vsub.s32 0, %v3021
      %v3023 = vrot.slane %v3018, %v3022
      %v3025 = vadd.f32 %v3001, %v3023
      %v3026 = vadd.f32 %v3002, %v3023
      %v3027 = vadd.f32 %v3003, %v3023
      %v3028 = vadd.f32 %v3004, %v3023
      %v3029 = vadd.f32 %v3005, %v3023
      %v3030 = vadd.f32 %v3006, %v3023
      %v3031 = vadd.f32 %v3007, %v3023
      %v3032 = vadd.f32 %v3008, %v3023
      %v3033 = vadd.f32 %v3009, %v3023
      %v3034 = vadd.f32 %v3010, %v3023
      %v3035 = vadd.f32 %v3011, %v3023
      %v3036 = vadd.f32 %v3012, %v3023
      %v3037 = vadd.f32 %v3013, %v3023
      %v3038 = vadd.f32 %v3014, %v3023
      %v3039 = vadd.f32 %v3015, %v3023
      %v3040 = vadd.f32 %v3016, %v3023
      %v3041 = vadd.f32 %v3017, %v3023
      %v3042 = vmax.f32 %v3025, 0.0
      %v3043 = vmax.f32 %v3026, 0.0
      %v3044 = vmax.f32 %v3027, 0.0
      %v3045 = vmax.f32 %v3028, 0.0
      %v3046 = vmax.f32 %v3029, 0.0
      %v3047 = vmax.f32 %v3030, 0.0
      %v3048 = vmax.f32 %v3031, 0.0
      %v3049 = vmax.f32 %v3032, 0.0
      %v3050 = vmax.f32 %v3033, 0.0
      %v3051 = vmax.f32 %v3034, 0.0
      %v3052 = vmax.f32 %v3035, 0.0
      %v3053 = vmax.f32 %v3036, 0.0
      %v3054 = vmax.f32 %v3037, 0.0
      %v3055 = vmax.f32 %v3038, 0.0
      %v3056 = vmax.f32 %v3039, 0.0
      %v3057 = vmax.f32 %v3040, 0.0
      %v3058 = vmax.f32 %v3041, 0.0
      %3059 = vst.msk [vmem:[#allocation2 + $0xb] sm:$0xff] %vm734, %v3042
      %vm3060 = vcmask 64514
      %3061 = vst.msk [vmem:[#allocation2 + $0x13] sm:$0xfc] %vm3060, %v3044
      %vm3062 = vcmask 58368
      %3063 = vst.msk [vmem:[#allocation2 + $0x1b] sm:$0x3] %vm3062, %v3045
      %vm3064 = vcmask 64516
      %3065 = vst.msk [vmem:[#allocation2 + $0x1b] sm:$0xf0] %vm3064, %v3046
      %3066 = vst.msk [vmem:[#allocation2 + $0x23] sm:$0xf] %vm747, %v3047
      %vm3067 = vcmask 64518
      %3068 = vst.msk [vmem:[#allocation2 + $0x23] sm:$0xc0] %vm3067, %v3048
      %vm3069 = vcmask 62464
      %3070 = vst.msk [vmem:[#allocation2 + $0x2b] sm:$0x3f] %vm3069, %v3049
      %3071 = vst.msk [vmem:[#allocation2 + $0x33] sm:$0xff] %vm734, %v3051
      %3072 = vst.msk [vmem:[#allocation2 + $0x3b] sm:$0xfc] %vm3060, %v3053
      %3073 = vst.msk [vmem:[#allocation2 + $0x43] sm:$0x3] %vm3062, %v3054
      %3074 = vst.msk [vmem:[#allocation2 + $0x43] sm:$0xf0] %vm3064, %v3055
      %3075 = vst.msk [vmem:[#allocation2 + $0x4b] sm:$0xf] %vm747, %v3056
      %3076 = vst.msk [vmem:[#allocation2 + $0x4b] sm:$0xc0] %vm3067, %v3057
      %3077 = vst.msk [vmem:[#allocation2 + $0x53] sm:$0x3f] %vm3069, %v3058
      %v3078 = vld [vmem:[%s7] sm:$0xff]
      %v3079 = vld [vmem:[%s8] sm:$0x1]
      %v3081 = vlaneseq
      %v3082 = vshrl.u32 %v3081, 7
      %v3083 = vsub.s32 0, %v3082
      %v3084 = vrot.slane %v3079, %v3083
      %v3087 = vsel %vm734, %v3042, 0
      %v3090 = vsel %vm734, %v3043, 0
      %v3093 = vsel %vm734, %v3044, 0
      %v3096 = vsel %vm734, %v3045, 0
      %v3099 = vsel %vm734, %v3046, 0
      %v3102 = vsel %vm734, %v3047, 0
      %v3105 = vsel %vm734, %v3048, 0
      %v3108 = vsel %vm734, %v3049, 0
      %v3111 = vsel %vm734, %v3050, 0
      %v3114 = vsel %vm734, %v3051, 0
      %v3117 = vsel %vm734, %v3052, 0
      %v3120 = vsel %vm734, %v3053, 0
      %v3123 = vsel %vm734, %v3054, 0
      %v3126 = vsel %vm734, %v3055, 0
      %v3129 = vsel %vm734, %v3056, 0
      %v3132 = vsel %vm734, %v3057, 0
      %v3135 = vsel %vm734, %v3058, 0
      %3137 = vmatprep.subr.mxu0 0.0
      %3138 = vmatpush1.msra.mxu0 %v3078
      %3139 = vmatprep.subr.mxu0 0.0
      %3140 = vmatpush1.msra.mxu0 0.0
      %3141 = vmatprep.subr.mxu0 0.0
      %3142 = vmatpush1.msra.mxu0 0.0
      %3143 = vmatprep.subr.mxu0 0.0
      %3144 = vmatpush1.msra.mxu0 0.0
      %3145 = vmatprep.subr.mxu0 0.0
      %3146 = vmatpush1.msra.mxu0 0.0
      %3147 = vmatprep.subr.mxu0 0.0
      %3148 = vmatpush1.msra.mxu0 0.0
      %3149 = vmatprep.subr.mxu0 0.0
      %3150 = vmatpush1.msra.mxu0 0.0
      %3151 = vmatprep.subr.mxu0 0.0
      %3152 = vmatpush1.msra.mxu0 0.0
      %3153 = vmatprep.subr.mxu0 0.0
      %3154 = vmatpush1.msra.mxu0 0.0
      %3155 = vmatprep.subr.mxu0 0.0
      %3156 = vmatpush1.msra.mxu0 0.0
      %3157 = vmatprep.subr.mxu0 0.0
      %3158 = vmatpush1.msra.mxu0 0.0
      %3159 = vmatprep.subr.mxu0 0.0
      %3160 = vmatpush1.msra.mxu0 0.0
      %3161 = vmatprep.subr.mxu0 0.0
      %3162 = vmatpush1.msra.mxu0 0.0
      %3163 = vmatprep.subr.mxu0 0.0
      %3164 = vmatpush1.msra.mxu0 0.0
      %3165 = vmatprep.subr.mxu0 0.0
      %3166 = vmatpush1.msra.mxu0 0.0
      %3167 = vmatprep.subr.mxu0 0.0
      %3168 = vmatpush1.msra.mxu0 0.0
      %3169 = vmatprep.subr.mxu0 0.0
      %3170 = vmatpush1.msra.mxu0 0.0
      %3171 = vmatprep.subr.mxu0 0.0
      %3172 = vmatpush1.msra.mxu0 0.0
      %3173 = vmatprep.subr.mxu0 0.0
      %3174 = vmatpush1.msra.mxu0 0.0
      %3175 = vmatprep.subr.mxu0 0.0
      %3176 = vmatpush1.msra.mxu0 0.0
      %3177 = vmatprep.subr.mxu0 0.0
      %3178 = vmatpush1.msra.mxu0 0.0
      %3179 = vmatprep.subr.mxu0 0.0
      %3180 = vmatpush1.msra.mxu0 0.0
      %3181 = vmatprep.subr.mxu0 0.0
      %3182 = vmatpush1.msra.mxu0 0.0
      %3183 = vmatprep.subr.mxu0 0.0
      %3184 = vmatpush1.msra.mxu0 0.0
      %3185 = vmatprep.subr.mxu0 0.0
      %3186 = vmatpush1.msra.mxu0 0.0
      %3187 = vmatprep.subr.mxu0 0.0
      %3188 = vmatpush1.msra.mxu0 0.0
      %3189 = vmatprep.subr.mxu0 0.0
      %3190 = vmatpush1.msra.mxu0 0.0
      %3191 = vmatprep.subr.mxu0 0.0
      %3192 = vmatpush1.msra.mxu0 0.0
      %3193 = vmatprep.subr.mxu0 0.0
      %3194 = vmatpush1.msra.mxu0 0.0
      %3195 = vmatprep.subr.mxu0 0.0
      %3196 = vmatpush1.msra.mxu0 0.0
      %3197 = vmatprep.subr.mxu0 0.0
      %3198 = vmatpush1.msra.mxu0 0.0
      %3199 = vmatprep.subr.mxu0 0.0
      %3200 = vmatpush1.msra.mxu0 0.0
      %3201 = vmatprep.mubr.f32.mxu0 0.0
      %3202 = vmatmul.mubr.f32.gmra.mrb[0].mxu0 %v3087
      %v3203 = vpop.f32.mrb[0].mxu0
      %v3204 = vadd.f32 %v3084, %v3203
      %v3205 = vpop.f32.mrb[0].mxu0
      %3206 = vmatprep.mubr.f32.mxu0 0.0
      %3207 = vmatmul.mubr.f32.gmra.mrb[0].mxu0 %v3090
      %v3208 = vpop.f32.mrb[0].mxu0
      %v3209 = vpop.f32.mrb[0].mxu0
      %3210 = vmatprep.mubr.f32.mxu0 0.0
      %3211 = vmatmul.mubr.f32.gmra.mrb[0].mxu0 %v3093
      %v3212 = vpop.f32.mrb[0].mxu0
      %v3213 = vadd.f32 %v3084, %v3212
      %v3214 = vpop.f32.mrb[0].mxu0
      %3215 = vmatprep.mubr.f32.mxu0 0.0
      %3216 = vmatmul.mubr.f32.gmra.mrb[0].mxu0 %v3096
      %v3217 = vpop.f32.mrb[0].mxu0
      %v3218 = vadd.f32 %v3084, %v3217
      %v3219 = vpop.f32.mrb[0].mxu0
      %3220 = vmatprep.mubr.f32.mxu0 0.0
      %3221 = vmatmul.mubr.f32.gmra.mrb[0].mxu0 %v3099
      %v3222 = vpop.f32.mrb[0].mxu0
      %v3223 = vadd.f32 %v3084, %v3222
      %v3224 = vpop.f32.mrb[0].mxu0
      %3225 = vmatprep.mubr.f32.mxu0 0.0
      %3226 = vmatmul.mubr.f32.gmra.mrb[0].mxu0 %v3102
      %v3227 = vpop.f32.mrb[0].mxu0
      %v3228 = vadd.f32 %v3084, %v3227
      %v3229 = vpop.f32.mrb[0].mxu0
      %3230 = vmatprep.mubr.f32.mxu0 0.0
      %3231 = vmatmul.mubr.f32.gmra.mrb[0].mxu0 %v3105
      %v3232 = vpop.f32.mrb[0].mxu0
      %v3233 = vadd.f32 %v3084, %v3232
      %v3234 = vpop.f32.mrb[0].mxu0
      %3235 = vmatprep.mubr.f32.mxu0 0.0
      %3236 = vmatmul.mubr.f32.gmra.mrb[0].mxu0 %v3108
      %v3237 = vpop.f32.mrb[0].mxu0
      %v3238 = vadd.f32 %v3084, %v3237
      %v3239 = vpop.f32.mrb[0].mxu0
      %3240 = vmatprep.mubr.f32.mxu0 0.0
      %3241 = vmatmul.mubr.f32.gmra.mrb[0].mxu0 %v3111
      %v3242 = vpop.f32.mrb[0].mxu0
      %v3243 = vpop.f32.mrb[0].mxu0
      %3244 = vmatprep.mubr.f32.mxu0 0.0
      %3245 = vmatmul.mubr.f32.gmra.mrb[0].mxu0 %v3114
      %v3246 = vpop.f32.mrb[0].mxu0
      %v3247 = vadd.f32 %v3084, %v3246
      %v3248 = vpop.f32.mrb[0].mxu0
      %3249 = vmatprep.mubr.f32.mxu0 0.0
      %3250 = vmatmul.mubr.f32.gmra.mrb[0].mxu0 %v3117
      %v3251 = vpop.f32.mrb[0].mxu0
      %v3252 = vpop.f32.mrb[0].mxu0
      %3253 = vmatprep.mubr.f32.mxu0 0.0
      %3254 = vmatmul.mubr.f32.gmra.mrb[0].mxu0 %v3120
      %v3255 = vpop.f32.mrb[0].mxu0
      %v3256 = vadd.f32 %v3084, %v3255
      %v3257 = vpop.f32.mrb[0].mxu0
      %3258 = vmatprep.mubr.f32.mxu0 0.0
      %3259 = vmatmul.mubr.f32.gmra.mrb[0].mxu0 %v3123
      %v3260 = vpop.f32.mrb[0].mxu0
      %v3261 = vadd.f32 %v3084, %v3260
      %v3262 = vpop.f32.mrb[0].mxu0
      %3263 = vmatprep.mubr.f32.mxu0 0.0
      %3264 = vmatmul.mubr.f32.gmra.mrb[0].mxu0 %v3126
      %v3265 = vpop.f32.mrb[0].mxu0
      %v3266 = vadd.f32 %v3084, %v3265
      %v3267 = vpop.f32.mrb[0].mxu0
      %3268 = vmatprep.mubr.f32.mxu0 0.0
      %3269 = vmatmul.mubr.f32.gmra.mrb[0].mxu0 %v3129
      %v3270 = vpop.f32.mrb[0].mxu0
      %v3271 = vadd.f32 %v3084, %v3270
      %v3272 = vpop.f32.mrb[0].mxu0
      %3273 = vmatprep.mubr.f32.mxu0 0.0
      %3274 = vmatmul.mubr.f32.gmra.mrb[0].mxu0 %v3132
      %v3275 = vpop.f32.mrb[0].mxu0
      %v3276 = vadd.f32 %v3084, %v3275
      %v3277 = vpop.f32.mrb[0].mxu0
      %3278 = vmatprep.mubr.f32.mxu0 0.0
      %3279 = vmatmul.mubr.f32.gmra.mrb[0].mxu0 %v3135
      %v3280 = vpop.f32.mrb[0].mxu0
      %v3281 = vadd.f32 %v3084, %v3280
      %v3282 = vpop.f32.mrb[0].mxu0
      %3283 = vdwg.mxu0
      %v3284 = vld [vmem:[#allocation2] ss:$2 sm:$0xff]
      %s3285 = scalar_lea.vmem [#allocation2], 16
      %v3286 = vld [vmem:[%s3285] ss:$2 sm:$0xff]
      %s3287 = scalar_lea.vmem [#allocation2], 32
      %v3288 = vld [vmem:[%s3287] ss:$2 sm:$0xff]
      %s3289 = scalar_lea.vmem [#allocation2], 48
      %v3290 = vld [vmem:[%s3289] ss:$2 sm:$0xff]
      %s3291 = scalar_lea.vmem [#allocation2], 64
      %v3292 = vld [vmem:[%s3291] ss:$2 sm:$0x3]
      %v3293 = vld [vmem:[%s3] sm:$0xff]
      %s3294 = scalar_lea.vmem [#allocation2], 1
      %v3295 = vld [vmem:[%s3294] ss:$2 sm:$0xff]
      %s3296 = scalar_lea.vmem [#allocation2], 17
      %v3297 = vld [vmem:[%s3296] ss:$2 sm:$0xff]
      %s3298 = scalar_lea.vmem [#allocation2], 33
      %v3299 = vld [vmem:[%s3298] ss:$2 sm:$0xff]
      %s3300 = scalar_lea.vmem [#allocation2], 49
      %v3301 = vld [vmem:[%s3300] ss:$2 sm:$0xff]
      %s3302 = scalar_lea.vmem [#allocation2], 65
      %v3303 = vld [vmem:[%s3302] ss:$2 sm:$0x3]
      %v3304 = vld [vmem:[%s3 + $0x8] sm:$0xff]
      %v3306 = vsel %vm734, %v3295, 0
      %v3309 = vsel %vm734, %v3297, 0
      %v3312 = vsel %vm734, %v3299, 0
      %v3315 = vsel %vm734, %v3301, 0
      %v3318 = vsel %vm734, %v3303, 0
      %3320 = vmatprep.subr.mxu0 0.0
      %3321 = vmatpush1.msra.mxu0 %v3304
      %3322 = vmatprep.subr.mxu0 0.0
      %3323 = vmatpush1.msra.mxu0 0.0
      %3324 = vmatprep.subr.mxu0 0.0
      %3325 = vmatpush1.msra.mxu0 0.0
      %3326 = vmatprep.subr.mxu0 0.0
      %3327 = vmatpush1.msra.mxu0 0.0
      %3328 = vmatprep.subr.mxu0 0.0
      %3329 = vmatpush1.msra.mxu0 0.0
      %3330 = vmatprep.subr.mxu0 0.0
      %3331 = vmatpush1.msra.mxu0 0.0
      %3332 = vmatprep.subr.mxu0 0.0
      %3333 = vmatpush1.msra.mxu0 0.0
      %3334 = vmatprep.subr.mxu0 0.0
      %3335 = vmatpush1.msra.mxu0 0.0
      %3336 = vmatprep.subr.mxu0 0.0
      %3337 = vmatpush1.msra.mxu0 0.0
      %3338 = vmatprep.subr.mxu0 0.0
      %3339 = vmatpush1.msra.mxu0 0.0
      %3340 = vmatprep.subr.mxu0 0.0
      %3341 = vmatpush1.msra.mxu0 0.0
      %3342 = vmatprep.subr.mxu0 0.0
      %3343 = vmatpush1.msra.mxu0 0.0
      %3344 = vmatprep.subr.mxu0 0.0
      %3345 = vmatpush1.msra.mxu0 0.0
      %3346 = vmatprep.subr.mxu0 0.0
      %3347 = vmatpush1.msra.mxu0 0.0
      %3348 = vmatprep.subr.mxu0 0.0
      %3349 = vmatpush1.msra.mxu0 0.0
      %3350 = vmatprep.subr.mxu0 0.0
      %3351 = vmatpush1.msra.mxu0 0.0
      %3352 = vmatprep.subr.mxu0 0.0
      %3353 = vmatpush1.msra.mxu0 0.0
      %3354 = vmatprep.subr.mxu0 0.0
      %3355 = vmatpush1.msra.mxu0 0.0
      %3356 = vmatprep.subr.mxu0 0.0
      %3357 = vmatpush1.msra.mxu0 0.0
      %3358 = vmatprep.subr.mxu0 0.0
      %3359 = vmatpush1.msra.mxu0 0.0
      %3360 = vmatprep.subr.mxu0 0.0
      %3361 = vmatpush1.msra.mxu0 0.0
      %3362 = vmatprep.subr.mxu0 0.0
      %3363 = vmatpush1.msra.mxu0 0.0
      %3364 = vmatprep.subr.mxu0 0.0
      %3365 = vmatpush1.msra.mxu0 0.0
      %3366 = vmatprep.subr.mxu0 0.0
      %3367 = vmatpush1.msra.mxu0 0.0
      %3368 = vmatprep.subr.mxu0 0.0
      %3369 = vmatpush1.msra.mxu0 0.0
      %3370 = vmatprep.subr.mxu0 0.0
      %3371 = vmatpush1.msra.mxu0 0.0
      %3372 = vmatprep.subr.mxu0 0.0
      %3373 = vmatpush1.msra.mxu0 0.0
      %3374 = vmatprep.subr.mxu0 0.0
      %3375 = vmatpush1.msra.mxu0 0.0
      %3376 = vmatprep.subr.mxu0 0.0
      %3377 = vmatpush1.msra.mxu0 0.0
      %3378 = vmatprep.subr.mxu0 0.0
      %3379 = vmatpush1.msra.mxu0 0.0
      %3380 = vmatprep.subr.mxu0 0.0
      %3381 = vmatpush1.msra.mxu0 0.0
      %3382 = vmatprep.subr.mxu0 0.0
      %3383 = vmatpush1.msra.mxu0 0.0
      %3384 = vmatprep.mubr.f32.mxu0 0.0
      %3385 = vmatmul.mubr.f32.gmra.mrb[0].mxu0 %v3306
      %v3386 = vpop.f32.mrb[0].mxu0
      %v3387 = vadd.f32 0.0, %v3386
      %v3388 = vpop.f32.mrb[0].mxu0
      %3389 = vmatprep.mubr.f32.mxu0 0.0
      %3390 = vmatmul.mubr.f32.gmra.mrb[0].mxu0 %v3309
      %v3391 = vpop.f32.mrb[0].mxu0
      %v3392 = vadd.f32 0.0, %v3391
      %v3393 = vpop.f32.mrb[0].mxu0
      %3394 = vmatprep.mubr.f32.mxu0 0.0
      %3395 = vmatmul.mubr.f32.gmra.mrb[0].mxu0 %v3312
      %v3396 = vpop.f32.mrb[0].mxu0
      %v3397 = vadd.f32 0.0, %v3396
      %v3398 = vpop.f32.mrb[0].mxu0
      %3399 = vmatprep.mubr.f32.mxu0 0.0
      %3400 = vmatmul.mubr.f32.gmra.mrb[0].mxu0 %v3315
      %v3401 = vpop.f32.mrb[0].mxu0
      %v3402 = vadd.f32 0.0, %v3401
      %v3403 = vpop.f32.mrb[0].mxu0
      %3404 = vmatprep.mubr.f32.mxu0 0.0
      %3405 = vmatmul.mubr.f32.gmra.mrb[0].mxu0 %v3318
      %v3406 = vpop.f32.mrb[0].mxu0
      %v3407 = vadd.f32 0.0, %v3406
      %v3408 = vpop.f32.mrb[0].mxu0
      %3409 = vdwg.mxu0
      %v3411 = vsel %vm734, %v3284, 0
      %v3414 = vsel %vm734, %v3286, 0
      %v3417 = vsel %vm734, %v3288, 0
      %v3420 = vsel %vm734, %v3290, 0
      %v3423 = vsel %vm734, %v3292, 0
      %3425 = vmatprep.subr.mxu0 0.0
      %3426 = vmatpush1.msra.mxu0 %v3293
      %3427 = vmatprep.subr.mxu0 0.0
      %3428 = vmatpush1.msra.mxu0 0.0
      %3429 = vmatprep.subr.mxu0 0.0
      %3430 = vmatpush1.msra.mxu0 0.0
      %3431 = vmatprep.subr.mxu0 0.0
      %3432 = vmatpush1.msra.mxu0 0.0
      %3433 = vmatprep.subr.mxu0 0.0
      %3434 = vmatpush1.msra.mxu0 0.0
      %3435 = vmatprep.subr.mxu0 0.0
      %3436 = vmatpush1.msra.mxu0 0.0
      %3437 = vmatprep.subr.mxu0 0.0
      %3438 = vmatpush1.msra.mxu0 0.0
      %3439 = vmatprep.subr.mxu0 0.0
      %3440 = vmatpush1.msra.mxu0 0.0
      %3441 = vmatprep.subr.mxu0 0.0
      %3442 = vmatpush1.msra.mxu0 0.0
      %3443 = vmatprep.subr.mxu0 0.0
      %3444 = vmatpush1.msra.mxu0 0.0
      %3445 = vmatprep.subr.mxu0 0.0
      %3446 = vmatpush1.msra.mxu0 0.0
      %3447 = vmatprep.subr.mxu0 0.0
      %3448 = vmatpush1.msra.mxu0 0.0
      %3449 = vmatprep.subr.mxu0 0.0
      %3450 = vmatpush1.msra.mxu0 0.0
      %3451 = vmatprep.subr.mxu0 0.0
      %3452 = vmatpush1.msra.mxu0 0.0
      %3453 = vmatprep.subr.mxu0 0.0
      %3454 = vmatpush1.msra.mxu0 0.0
      %3455 = vmatprep.subr.mxu0 0.0
      %3456 = vmatpush1.msra.mxu0 0.0
      %3457 = vmatprep.subr.mxu0 0.0
      %3458 = vmatpush1.msra.mxu0 0.0
      %3459 = vmatprep.subr.mxu0 0.0
      %3460 = vmatpush1.msra.mxu0 0.0
      %3461 = vmatprep.subr.mxu0 0.0
      %3462 = vmatpush1.msra.mxu0 0.0
      %3463 = vmatprep.subr.mxu0 0.0
      %3464 = vmatpush1.msra.mxu0 0.0
      %3465 = vmatprep.subr.mxu0 0.0
      %3466 = vmatpush1.msra.mxu0 0.0
      %3467 = vmatprep.subr.mxu0 0.0
      %3468 = vmatpush1.msra.mxu0 0.0
      %3469 = vmatprep.subr.mxu0 0.0
      %3470 = vmatpush1.msra.mxu0 0.0
      %3471 = vmatprep.subr.mxu0 0.0
      %3472 = vmatpush1.msra.mxu0 0.0
      %3473 = vmatprep.subr.mxu0 0.0
      %3474 = vmatpush1.msra.mxu0 0.0
      %3475 = vmatprep.subr.mxu0 0.0
      %3476 = vmatpush1.msra.mxu0 0.0
      %3477 = vmatprep.subr.mxu0 0.0
      %3478 = vmatpush1.msra.mxu0 0.0
      %3479 = vmatprep.subr.mxu0 0.0
      %3480 = vmatpush1.msra.mxu0 0.0
      %3481 = vmatprep.subr.mxu0 0.0
      %3482 = vmatpush1.msra.mxu0 0.0
      %3483 = vmatprep.subr.mxu0 0.0
      %3484 = vmatpush1.msra.mxu0 0.0
      %3485 = vmatprep.subr.mxu0 0.0
      %3486 = vmatpush1.msra.mxu0 0.0
      %3487 = vmatprep.subr.mxu0 0.0
      %3488 = vmatpush1.msra.mxu0 0.0
      %3489 = vmatprep.mubr.f32.mxu0 0.0
      %3490 = vmatmul.mubr.f32.gmra.mrb[0].mxu0 %v3411
      %v3491 = vpop.f32.mrb[0].mxu0
      %v3492 = vadd.f32 %v3387, %v3491
      %v3493 = vpop.f32.mrb[0].mxu0
      %3494 = vmatprep.mubr.f32.mxu0 0.0
      %3495 = vmatmul.mubr.f32.gmra.mrb[0].mxu0 %v3414
      %v3496 = vpop.f32.mrb[0].mxu0
      %v3497 = vadd.f32 %v3392, %v3496
      %v3498 = vpop.f32.mrb[0].mxu0
      %3499 = vmatprep.mubr.f32.mxu0 0.0
      %3500 = vmatmul.mubr.f32.gmra.mrb[0].mxu0 %v3417
      %v3501 = vpop.f32.mrb[0].mxu0
      %v3502 = vadd.f32 %v3397, %v3501
      %v3503 = vpop.f32.mrb[0].mxu0
      %3504 = vmatprep.mubr.f32.mxu0 0.0
      %3505 = vmatmul.mubr.f32.gmra.mrb[0].mxu0 %v3420
      %v3506 = vpop.f32.mrb[0].mxu0
      %v3507 = vadd.f32 %v3402, %v3506
      %v3508 = vpop.f32.mrb[0].mxu0
      %3509 = vmatprep.mubr.f32.mxu0 0.0
      %3510 = vmatmul.mubr.f32.gmra.mrb[0].mxu0 %v3423
      %v3511 = vpop.f32.mrb[0].mxu0
      %v3512 = vadd.f32 %v3407, %v3511
      %v3513 = vpop.f32.mrb[0].mxu0
      %3514 = vdwg.mxu0
      %s3515 = scalar_lea.vmem [#allocation2], 2
      %v3516 = vld [vmem:[%s3515] ss:$2 sm:$0xff]
      %s3517 = scalar_lea.vmem [#allocation2], 18
      %v3518 = vld [vmem:[%s3517] ss:$2 sm:$0xff]
      %s3519 = scalar_lea.vmem [#allocation2], 34
      %v3520 = vld [vmem:[%s3519] ss:$2 sm:$0xff]
      %s3521 = scalar_lea.vmem [#allocation2], 50
      %v3522 = vld [vmem:[%s3521] ss:$2 sm:$0xff]
      %s3523 = scalar_lea.vmem [#allocation2], 66
      %v3524 = vld [vmem:[%s3523] ss:$2 sm:$0x3]
      %v3525 = vld [vmem:[%s3 + $0x10] sm:$0xff]
      %v3527 = vsel %vm734, %v3516, 0
      %v3530 = vsel %vm734, %v3518, 0
      %v3533 = vsel %vm734, %v3520, 0
      %v3536 = vsel %vm734, %v3522, 0
      %v3539 = vsel %vm734, %v3524, 0
      %3541 = vmatprep.subr.mxu0 0.0
      %3542 = vmatpush1.msra.mxu0 %v3525
      %3543 = vmatprep.subr.mxu0 0.0
      %3544 = vmatpush1.msra.mxu0 0.0
      %3545 = vmatprep.subr.mxu0 0.0
      %3546 = vmatpush1.msra.mxu0 0.0
      %3547 = vmatprep.subr.mxu0 0.0
      %3548 = vmatpush1.msra.mxu0 0.0
      %3549 = vmatprep.subr.mxu0 0.0
      %3550 = vmatpush1.msra.mxu0 0.0
      %3551 = vmatprep.subr.mxu0 0.0
      %3552 = vmatpush1.msra.mxu0 0.0
      %3553 = vmatprep.subr.mxu0 0.0
      %3554 = vmatpush1.msra.mxu0 0.0
      %3555 = vmatprep.subr.mxu0 0.0
      %3556 = vmatpush1.msra.mxu0 0.0
      %3557 = vmatprep.subr.mxu0 0.0
      %3558 = vmatpush1.msra.mxu0 0.0
      %3559 = vmatprep.subr.mxu0 0.0
      %3560 = vmatpush1.msra.mxu0 0.0
      %3561 = vmatprep.subr.mxu0 0.0
      %3562 = vmatpush1.msra.mxu0 0.0
      %3563 = vmatprep.subr.mxu0 0.0
      %3564 = vmatpush1.msra.mxu0 0.0
      %3565 = vmatprep.subr.mxu0 0.0
      %3566 = vmatpush1.msra.mxu0 0.0
      %3567 = vmatprep.subr.mxu0 0.0
      %3568 = vmatpush1.msra.mxu0 0.0
      %3569 = vmatprep.subr.mxu0 0.0
      %3570 = vmatpush1.msra.mxu0 0.0
      %3571 = vmatprep.subr.mxu0 0.0
      %3572 = vmatpush1.msra.mxu0 0.0
      %3573 = vmatprep.subr.mxu0 0.0
      %3574 = vmatpush1.msra.mxu0 0.0
      %3575 = vmatprep.subr.mxu0 0.0
      %3576 = vmatpush1.msra.mxu0 0.0
      %3577 = vmatprep.subr.mxu0 0.0
      %3578 = vmatpush1.msra.mxu0 0.0
      %3579 = vmatprep.subr.mxu0 0.0
      %3580 = vmatpush1.msra.mxu0 0.0
      %3581 = vmatprep.subr.mxu0 0.0
      %3582 = vmatpush1.msra.mxu0 0.0
      %3583 = vmatprep.subr.mxu0 0.0
      %3584 = vmatpush1.msra.mxu0 0.0
      %3585 = vmatprep.subr.mxu0 0.0
      %3586 = vmatpush1.msra.mxu0 0.0
      %3587 = vmatprep.subr.mxu0 0.0
      %3588 = vmatpush1.msra.mxu0 0.0
      %3589 = vmatprep.subr.mxu0 0.0
      %3590 = vmatpush1.msra.mxu0 0.0
      %3591 = vmatprep.subr.mxu0 0.0
      %3592 = vmatpush1.msra.mxu0 0.0
      %3593 = vmatprep.subr.mxu0 0.0
      %3594 = vmatpush1.msra.mxu0 0.0
      %3595 = vmatprep.subr.mxu0 0.0
      %3596 = vmatpush1.msra.mxu0 0.0
      %3597 = vmatprep.subr.mxu0 0.0
      %3598 = vmatpush1.msra.mxu0 0.0
      %3599 = vmatprep.subr.mxu0 0.0
      %3600 = vmatpush1.msra.mxu0 0.0
      %3601 = vmatprep.subr.mxu0 0.0
      %3602 = vmatpush1.msra.mxu0 0.0
      %3603 = vmatprep.subr.mxu0 0.0
      %3604 = vmatpush1.msra.mxu0 0.0
      %3605 = vmatprep.mubr.f32.mxu0 0.0
      %3606 = vmatmul.mubr.f32.gmra.mrb[0].mxu0 %v3527
      %v3607 = vpop.f32.mrb[0].mxu0
      %v3608 = vadd.f32 0.0, %v3607
      %v3609 = vpop.f32.mrb[0].mxu0
      %3610 = vmatprep.mubr.f32.mxu0 0.0
      %3611 = vmatmul.mubr.f32.gmra.mrb[0].mxu0 %v3530
      %v3612 = vpop.f32.mrb[0].mxu0
      %v3613 = vadd.f32 0.0, %v3612
      %v3614 = vpop.f32.mrb[0].mxu0
      %3615 = vmatprep.mubr.f32.mxu0 0.0
      %3616 = vmatmul.mubr.f32.gmra.mrb[0].mxu0 %v3533
      %v3617 = vpop.f32.mrb[0].mxu0
      %v3618 = vadd.f32 0.0, %v3617
      %v3619 = vpop.f32.mrb[0].mxu0
      %3620 = vmatprep.mubr.f32.mxu0 0.0
      %3621 = vmatmul.mubr.f32.gmra.mrb[0].mxu0 %v3536
      %v3622 = vpop.f32.mrb[0].mxu0
      %v3623 = vadd.f32 0.0, %v3622
      %v3624 = vpop.f32.mrb[0].mxu0
      %3625 = vmatprep.mubr.f32.mxu0 0.0
      %3626 = vmatmul.mubr.f32.gmra.mrb[0].mxu0 %v3539
      %v3627 = vpop.f32.mrb[0].mxu0
      %v3628 = vadd.f32 0.0, %v3627
      %v3629 = vpop.f32.mrb[0].mxu0
      %3630 = vdwg.mxu0
      %v3631 = vadd.f32 %v3492, %v3608
      %v3632 = vadd.f32 %v3497, %v3613
      %v3633 = vadd.f32 %v3502, %v3618
      %v3634 = vadd.f32 %v3507, %v3623
      %v3635 = vadd.f32 %v3512, %v3628
      %s3636 = scalar_lea.vmem [#allocation2], 10
      %v3637 = vld [vmem:[%s3636] ss:$2 sm:$0xff]
      %s3638 = scalar_lea.vmem [#allocation2], 26
      %v3639 = vld [vmem:[%s3638] ss:$2 sm:$0xff]
      %s3640 = scalar_lea.vmem [#allocation2], 42
      %v3641 = vld [vmem:[%s3640] ss:$2 sm:$0xff]
      %s3642 = scalar_lea.vmem [#allocation2], 58
      %v3643 = vld [vmem:[%s3642] ss:$2 sm:$0xff]
      %s3644 = scalar_lea.vmem [#allocation2], 74
      %v3645 = vld [vmem:[%s3644] ss:$2 sm:$0x3]
      %v3646 = vld [vmem:[%s3 + $0x18] sm:$0xff]
      %v3648 = vsel %vm734, %v3637, 0
      %v3651 = vsel %vm734, %v3639, 0
      %v3654 = vsel %vm734, %v3641, 0
      %v3657 = vsel %vm734, %v3643, 0
      %v3660 = vsel %vm734, %v3645, 0
      %3662 = vmatprep.subr.mxu0 0.0
      %3663 = vmatpush1.msra.mxu0 %v3646
      %3664 = vmatprep.subr.mxu0 0.0
      %3665 = vmatpush1.msra.mxu0 0.0
      %3666 = vmatprep.subr.mxu0 0.0
      %3667 = vmatpush1.msra.mxu0 0.0
      %3668 = vmatprep.subr.mxu0 0.0
      %3669 = vmatpush1.msra.mxu0 0.0
      %3670 = vmatprep.subr.mxu0 0.0
      %3671 = vmatpush1.msra.mxu0 0.0
      %3672 = vmatprep.subr.mxu0 0.0
      %3673 = vmatpush1.msra.mxu0 0.0
      %3674 = vmatprep.subr.mxu0 0.0
      %3675 = vmatpush1.msra.mxu0 0.0
      %3676 = vmatprep.subr.mxu0 0.0
      %3677 = vmatpush1.msra.mxu0 0.0
      %3678 = vmatprep.subr.mxu0 0.0
      %3679 = vmatpush1.msra.mxu0 0.0
      %3680 = vmatprep.subr.mxu0 0.0
      %3681 = vmatpush1.msra.mxu0 0.0
      %3682 = vmatprep.subr.mxu0 0.0
      %3683 = vmatpush1.msra.mxu0 0.0
      %3684 = vmatprep.subr.mxu0 0.0
      %3685 = vmatpush1.msra.mxu0 0.0
      %3686 = vmatprep.subr.mxu0 0.0
      %3687 = vmatpush1.msra.mxu0 0.0
      %3688 = vmatprep.subr.mxu0 0.0
      %3689 = vmatpush1.msra.mxu0 0.0
      %3690 = vmatprep.subr.mxu0 0.0
      %3691 = vmatpush1.msra.mxu0 0.0
      %3692 = vmatprep.subr.mxu0 0.0
      %3693 = vmatpush1.msra.mxu0 0.0
      %3694 = vmatprep.subr.mxu0 0.0
      %3695 = vmatpush1.msra.mxu0 0.0
      %3696 = vmatprep.subr.mxu0 0.0
      %3697 = vmatpush1.msra.mxu0 0.0
      %3698 = vmatprep.subr.mxu0 0.0
      %3699 = vmatpush1.msra.mxu0 0.0
      %3700 = vmatprep.subr.mxu0 0.0
      %3701 = vmatpush1.msra.mxu0 0.0
      %3702 = vmatprep.subr.mxu0 0.0
      %3703 = vmatpush1.msra.mxu0 0.0
      %3704 = vmatprep.subr.mxu0 0.0
      %3705 = vmatpush1.msra.mxu0 0.0
      %3706 = vmatprep.subr.mxu0 0.0
      %3707 = vmatpush1.msra.mxu0 0.0
      %3708 = vmatprep.subr.mxu0 0.0
      %3709 = vmatpush1.msra.mxu0 0.0
      %3710 = vmatprep.subr.mxu0 0.0
      %3711 = vmatpush1.msra.mxu0 0.0
      %3712 = vmatprep.subr.mxu0 0.0
      %3713 = vmatpush1.msra.mxu0 0.0
      %3714 = vmatprep.subr.mxu0 0.0
      %3715 = vmatpush1.msra.mxu0 0.0
      %3716 = vmatprep.subr.mxu0 0.0
      %3717 = vmatpush1.msra.mxu0 0.0
      %3718 = vmatprep.subr.mxu0 0.0
      %3719 = vmatpush1.msra.mxu0 0.0
      %3720 = vmatprep.subr.mxu0 0.0
      %3721 = vmatpush1.msra.mxu0 0.0
      %3722 = vmatprep.subr.mxu0 0.0
      %3723 = vmatpush1.msra.mxu0 0.0
      %3724 = vmatprep.subr.mxu0 0.0
      %3725 = vmatpush1.msra.mxu0 0.0
      %3726 = vmatprep.mubr.f32.mxu0 0.0
      %3727 = vmatmul.mubr.f32.gmra.mrb[0].mxu0 %v3648
      %v3728 = vpop.f32.mrb[0].mxu0
      %v3729 = vadd.f32 0.0, %v3728
      %v3730 = vpop.f32.mrb[0].mxu0
      %3731 = vmatprep.mubr.f32.mxu0 0.0
      %3732 = vmatmul.mubr.f32.gmra.mrb[0].mxu0 %v3651
      %v3733 = vpop.f32.mrb[0].mxu0
      %v3734 = vadd.f32 0.0, %v3733
      %v3735 = vpop.f32.mrb[0].mxu0
      %3736 = vmatprep.mubr.f32.mxu0 0.0
      %3737 = vmatmul.mubr.f32.gmra.mrb[0].mxu0 %v3654
      %v3738 = vpop.f32.mrb[0].mxu0
      %v3739 = vadd.f32 0.0, %v3738
      %v3740 = vpop.f32.mrb[0].mxu0
      %3741 = vmatprep.mubr.f32.mxu0 0.0
      %3742 = vmatmul.mubr.f32.gmra.mrb[0].mxu0 %v3657
      %v3743 = vpop.f32.mrb[0].mxu0
      %v3744 = vadd.f32 0.0, %v3743
      %v3745 = vpop.f32.mrb[0].mxu0
      %3746 = vmatprep.mubr.f32.mxu0 0.0
      %3747 = vmatmul.mubr.f32.gmra.mrb[0].mxu0 %v3660
      %v3748 = vpop.f32.mrb[0].mxu0
      %v3749 = vadd.f32 0.0, %v3748
      %v3750 = vpop.f32.mrb[0].mxu0
      %3751 = vdwg.mxu0
      %v3752 = vadd.f32 %v3631, %v3729
      %v3753 = vadd.f32 %v3632, %v3734
      %v3754 = vadd.f32 %v3633, %v3739
      %v3755 = vadd.f32 %v3634, %v3744
      %v3756 = vadd.f32 %v3635, %v3749
      %s3757 = scalar_lea.vmem [#allocation2], 11
      %v3758 = vld [vmem:[%s3757] ss:$2 sm:$0xff]
      %s3759 = scalar_lea.vmem [#allocation2], 27
      %v3760 = vld [vmem:[%s3759] ss:$2 sm:$0xff]
      %s3761 = scalar_lea.vmem [#allocation2], 43
      %v3762 = vld [vmem:[%s3761] ss:$2 sm:$0xff]
      %s3763 = scalar_lea.vmem [#allocation2], 59
      %v3764 = vld [vmem:[%s3763] ss:$2 sm:$0xff]
      %s3765 = scalar_lea.vmem [#allocation2], 75
      %v3766 = vld [vmem:[%s3765] ss:$2 sm:$0x3]
      %v3767 = vld [vmem:[%s3 + $0x20] sm:$0xff]
      %v3769 = vsel %vm734, %v3758, 0
      %v3772 = vsel %vm734, %v3760, 0
      %v3775 = vsel %vm734, %v3762, 0
      %v3778 = vsel %vm734, %v3764, 0
      %v3781 = vsel %vm734, %v3766, 0
      %3783 = vmatprep.subr.mxu0 0.0
      %3784 = vmatpush1.msra.mxu0 %v3767
      %3785 = vmatprep.subr.mxu0 0.0
      %3786 = vmatpush1.msra.mxu0 0.0
      %3787 = vmatprep.subr.mxu0 0.0
      %3788 = vmatpush1.msra.mxu0 0.0
      %3789 = vmatprep.subr.mxu0 0.0
      %3790 = vmatpush1.msra.mxu0 0.0
      %3791 = vmatprep.subr.mxu0 0.0
      %3792 = vmatpush1.msra.mxu0 0.0
      %3793 = vmatprep.subr.mxu0 0.0
      %3794 = vmatpush1.msra.mxu0 0.0
      %3795 = vmatprep.subr.mxu0 0.0
      %3796 = vmatpush1.msra.mxu0 0.0
      %3797 = vmatprep.subr.mxu0 0.0
      %3798 = vmatpush1.msra.mxu0 0.0
      %3799 = vmatprep.subr.mxu0 0.0
      %3800 = vmatpush1.msra.mxu0 0.0
      %3801 = vmatprep.subr.mxu0 0.0
      %3802 = vmatpush1.msra.mxu0 0.0
      %3803 = vmatprep.subr.mxu0 0.0
      %3804 = vmatpush1.msra.mxu0 0.0
      %3805 = vmatprep.subr.mxu0 0.0
      %3806 = vmatpush1.msra.mxu0 0.0
      %3807 = vmatprep.subr.mxu0 0.0
      %3808 = vmatpush1.msra.mxu0 0.0
      %3809 = vmatprep.subr.mxu0 0.0
      %3810 = vmatpush1.msra.mxu0 0.0
      %3811 = vmatprep.subr.mxu0 0.0
      %3812 = vmatpush1.msra.mxu0 0.0
      %3813 = vmatprep.subr.mxu0 0.0
      %3814 = vmatpush1.msra.mxu0 0.0
      %3815 = vmatprep.subr.mxu0 0.0
      %3816 = vmatpush1.msra.mxu0 0.0
      %3817 = vmatprep.subr.mxu0 0.0
      %3818 = vmatpush1.msra.mxu0 0.0
      %3819 = vmatprep.subr.mxu0 0.0
      %3820 = vmatpush1.msra.mxu0 0.0
      %3821 = vmatprep.subr.mxu0 0.0
      %3822 = vmatpush1.msra.mxu0 0.0
      %3823 = vmatprep.subr.mxu0 0.0
      %3824 = vmatpush1.msra.mxu0 0.0
      %3825 = vmatprep.subr.mxu0 0.0
      %3826 = vmatpush1.msra.mxu0 0.0
      %3827 = vmatprep.subr.mxu0 0.0
      %3828 = vmatpush1.msra.mxu0 0.0
      %3829 = vmatprep.subr.mxu0 0.0
      %3830 = vmatpush1.msra.mxu0 0.0
      %3831 = vmatprep.subr.mxu0 0.0
      %3832 = vmatpush1.msra.mxu0 0.0
      %3833 = vmatprep.subr.mxu0 0.0
      %3834 = vmatpush1.msra.mxu0 0.0
      %3835 = vmatprep.subr.mxu0 0.0
      %3836 = vmatpush1.msra.mxu0 0.0
      %3837 = vmatprep.subr.mxu0 0.0
      %3838 = vmatpush1.msra.mxu0 0.0
      %3839 = vmatprep.subr.mxu0 0.0
      %3840 = vmatpush1.msra.mxu0 0.0
      %3841 = vmatprep.subr.mxu0 0.0
      %3842 = vmatpush1.msra.mxu0 0.0
      %3843 = vmatprep.subr.mxu0 0.0
      %3844 = vmatpush1.msra.mxu0 0.0
      %3845 = vmatprep.subr.mxu0 0.0
      %3846 = vmatpush1.msra.mxu0 0.0
      %3847 = vmatprep.mubr.f32.mxu0 0.0
      %3848 = vmatmul.mubr.f32.gmra.mrb[0].mxu0 %v3769
      %v3849 = vpop.f32.mrb[0].mxu0
      %v3850 = vadd.f32 0.0, %v3849
      %v3851 = vpop.f32.mrb[0].mxu0
      %3852 = vmatprep.mubr.f32.mxu0 0.0
      %3853 = vmatmul.mubr.f32.gmra.mrb[0].mxu0 %v3772
      %v3854 = vpop.f32.mrb[0].mxu0
      %v3855 = vadd.f32 0.0, %v3854
      %v3856 = vpop.f32.mrb[0].mxu0
      %3857 = vmatprep.mubr.f32.mxu0 0.0
      %3858 = vmatmul.mubr.f32.gmra.mrb[0].mxu0 %v3775
      %v3859 = vpop.f32.mrb[0].mxu0
      %v3860 = vadd.f32 0.0, %v3859
      %v3861 = vpop.f32.mrb[0].mxu0
      %3862 = vmatprep.mubr.f32.mxu0 0.0
      %3863 = vmatmul.mubr.f32.gmra.mrb[0].mxu0 %v3778
      %v3864 = vpop.f32.mrb[0].mxu0
      %v3865 = vadd.f32 0.0, %v3864
      %v3866 = vpop.f32.mrb[0].mxu0
      %3867 = vmatprep.mubr.f32.mxu0 0.0
      %3868 = vmatmul.mubr.f32.gmra.mrb[0].mxu0 %v3781
      %v3869 = vpop.f32.mrb[0].mxu0
      %v3870 = vadd.f32 0.0, %v3869
      %v3871 = vpop.f32.mrb[0].mxu0
      %3872 = vdwg.mxu0
      %v3873 = vadd.f32 %v3752, %v3850
      %v3874 = vadd.f32 %v3753, %v3855
      %v3875 = vadd.f32 %v3754, %v3860
      %v3876 = vadd.f32 %v3755, %v3865
      %v3877 = vadd.f32 %v3756, %v3870
      %s3878 = scalar_lea.vmem [#allocation2], 12
      %v3879 = vld [vmem:[%s3878] ss:$2 sm:$0xff]
      %s3880 = scalar_lea.vmem [#allocation2], 28
      %v3881 = vld [vmem:[%s3880] ss:$2 sm:$0xff]
      %s3882 = scalar_lea.vmem [#allocation2], 44
      %v3883 = vld [vmem:[%s3882] ss:$2 sm:$0xff]
      %s3884 = scalar_lea.vmem [#allocation2], 60
      %v3885 = vld [vmem:[%s3884] ss:$2 sm:$0xff]
      %s3886 = scalar_lea.vmem [#allocation2], 76
      %v3887 = vld [vmem:[%s3886] ss:$2 sm:$0x3]
      %v3888 = vld [vmem:[%s3 + $0x28] sm:$0xff]
      %v3890 = vsel %vm734, %v3879, 0
      %v3893 = vsel %vm734, %v3881, 0
      %v3896 = vsel %vm734, %v3883, 0
      %v3899 = vsel %vm734, %v3885, 0
      %v3902 = vsel %vm734, %v3887, 0
      %3904 = vmatprep.subr.mxu0 0.0
      %3905 = vmatpush1.msra.mxu0 %v3888
      %3906 = vmatprep.subr.mxu0 0.0
      %3907 = vmatpush1.msra.mxu0 0.0
      %3908 = vmatprep.subr.mxu0 0.0
      %3909 = vmatpush1.msra.mxu0 0.0
      %3910 = vmatprep.subr.mxu0 0.0
      %3911 = vmatpush1.msra.mxu0 0.0
      %3912 = vmatprep.subr.mxu0 0.0
      %3913 = vmatpush1.msra.mxu0 0.0
      %3914 = vmatprep.subr.mxu0 0.0
      %3915 = vmatpush1.msra.mxu0 0.0
      %3916 = vmatprep.subr.mxu0 0.0
      %3917 = vmatpush1.msra.mxu0 0.0
      %3918 = vmatprep.subr.mxu0 0.0
      %3919 = vmatpush1.msra.mxu0 0.0
      %3920 = vmatprep.subr.mxu0 0.0
      %3921 = vmatpush1.msra.mxu0 0.0
      %3922 = vmatprep.subr.mxu0 0.0
      %3923 = vmatpush1.msra.mxu0 0.0
      %3924 = vmatprep.subr.mxu0 0.0
      %3925 = vmatpush1.msra.mxu0 0.0
      %3926 = vmatprep.subr.mxu0 0.0
      %3927 = vmatpush1.msra.mxu0 0.0
      %3928 = vmatprep.subr.mxu0 0.0
      %3929 = vmatpush1.msra.mxu0 0.0
      %3930 = vmatprep.subr.mxu0 0.0
      %3931 = vmatpush1.msra.mxu0 0.0
      %3932 = vmatprep.subr.mxu0 0.0
      %3933 = vmatpush1.msra.mxu0 0.0
      %3934 = vmatprep.subr.mxu0 0.0
      %3935 = vmatpush1.msra.mxu0 0.0
      %3936 = vmatprep.subr.mxu0 0.0
      %3937 = vmatpush1.msra.mxu0 0.0
      %3938 = vmatprep.subr.mxu0 0.0
      %3939 = vmatpush1.msra.mxu0 0.0
      %3940 = vmatprep.subr.mxu0 0.0
      %3941 = vmatpush1.msra.mxu0 0.0
      %3942 = vmatprep.subr.mxu0 0.0
      %3943 = vmatpush1.msra.mxu0 0.0
      %3944 = vmatprep.subr.mxu0 0.0
      %3945 = vmatpush1.msra.mxu0 0.0
      %3946 = vmatprep.subr.mxu0 0.0
      %3947 = vmatpush1.msra.mxu0 0.0
      %3948 = vmatprep.subr.mxu0 0.0
      %3949 = vmatpush1.msra.mxu0 0.0
      %3950 = vmatprep.subr.mxu0 0.0
      %3951 = vmatpush1.msra.mxu0 0.0
      %3952 = vmatprep.subr.mxu0 0.0
      %3953 = vmatpush1.msra.mxu0 0.0
      %3954 = vmatprep.subr.mxu0 0.0
      %3955 = vmatpush1.msra.mxu0 0.0
      %3956 = vmatprep.subr.mxu0 0.0
      %3957 = vmatpush1.msra.mxu0 0.0
      %3958 = vmatprep.subr.mxu0 0.0
      %3959 = vmatpush1.msra.mxu0 0.0
      %3960 = vmatprep.subr.mxu0 0.0
      %3961 = vmatpush1.msra.mxu0 0.0
      %3962 = vmatprep.subr.mxu0 0.0
      %3963 = vmatpush1.msra.mxu0 0.0
      %3964 = vmatprep.subr.mxu0 0.0
      %3965 = vmatpush1.msra.mxu0 0.0
      %3966 = vmatprep.subr.mxu0 0.0
      %3967 = vmatpush1.msra.mxu0 0.0
      %3968 = vmatprep.mubr.f32.mxu0 0.0
      %3969 = vmatmul.mubr.f32.gmra.mrb[0].mxu0 %v3890
      %v3970 = vpop.f32.mrb[0].mxu0
      %v3971 = vadd.f32 0.0, %v3970
      %v3972 = vpop.f32.mrb[0].mxu0
      %3973 = vmatprep.mubr.f32.mxu0 0.0
      %3974 = vmatmul.mubr.f32.gmra.mrb[0].mxu0 %v3893
      %v3975 = vpop.f32.mrb[0].mxu0
      %v3976 = vadd.f32 0.0, %v3975
      %v3977 = vpop.f32.mrb[0].mxu0
      %3978 = vmatprep.mubr.f32.mxu0 0.0
      %3979 = vmatmul.mubr.f32.gmra.mrb[0].mxu0 %v3896
      %v3980 = vpop.f32.mrb[0].mxu0
      %v3981 = vadd.f32 0.0, %v3980
      %v3982 = vpop.f32.mrb[0].mxu0
      %3983 = vmatprep.mubr.f32.mxu0 0.0
      %3984 = vmatmul.mubr.f32.gmra.mrb[0].mxu0 %v3899
      %v3985 = vpop.f32.mrb[0].mxu0
      %v3986 = vadd.f32 0.0, %v3985
      %v3987 = vpop.f32.mrb[0].mxu0
      %3988 = vmatprep.mubr.f32.mxu0 0.0
      %3989 = vmatmul.mubr.f32.gmra.mrb[0].mxu0 %v3902
      %v3990 = vpop.f32.mrb[0].mxu0
      %v3991 = vadd.f32 0.0, %v3990
      %v3992 = vpop.f32.mrb[0].mxu0
      %3993 = vdwg.mxu0
      %v3994 = vadd.f32 %v3873, %v3971
      %v3995 = vadd.f32 %v3874, %v3976
      %v3996 = vadd.f32 %v3875, %v3981
      %v3997 = vadd.f32 %v3876, %v3986
      %v3998 = vadd.f32 %v3877, %v3991
      %s3999 = scalar_lea.vmem [#allocation2], 20
      %v4000 = vld [vmem:[%s3999] ss:$2 sm:$0xff]
      %s4001 = scalar_lea.vmem [#allocation2], 36
      %v4002 = vld [vmem:[%s4001] ss:$2 sm:$0xff]
      %s4003 = scalar_lea.vmem [#allocation2], 52
      %v4004 = vld [vmem:[%s4003] ss:$2 sm:$0xff]
      %s4005 = scalar_lea.vmem [#allocation2], 68
      %v4006 = vld [vmem:[%s4005] ss:$2 sm:$0xff]
      %s4007 = scalar_lea.vmem [#allocation2], 84
      %v4008 = vld [vmem:[%s4007] ss:$2 sm:$0x3]
      %v4009 = vld [vmem:[%s3 + $0x30] sm:$0xff]
      %v4011 = vsel %vm734, %v4000, 0
      %v4014 = vsel %vm734, %v4002, 0
      %v4017 = vsel %vm734, %v4004, 0
      %v4020 = vsel %vm734, %v4006, 0
      %v4023 = vsel %vm734, %v4008, 0
      %4025 = vmatprep.subr.mxu0 0.0
      %4026 = vmatpush1.msra.mxu0 %v4009
      %4027 = vmatprep.subr.mxu0 0.0
      %4028 = vmatpush1.msra.mxu0 0.0
      %4029 = vmatprep.subr.mxu0 0.0
      %4030 = vmatpush1.msra.mxu0 0.0
      %4031 = vmatprep.subr.mxu0 0.0
      %4032 = vmatpush1.msra.mxu0 0.0
      %4033 = vmatprep.subr.mxu0 0.0
      %4034 = vmatpush1.msra.mxu0 0.0
      %4035 = vmatprep.subr.mxu0 0.0
      %4036 = vmatpush1.msra.mxu0 0.0
      %4037 = vmatprep.subr.mxu0 0.0
      %4038 = vmatpush1.msra.mxu0 0.0
      %4039 = vmatprep.subr.mxu0 0.0
      %4040 = vmatpush1.msra.mxu0 0.0
      %4041 = vmatprep.subr.mxu0 0.0
      %4042 = vmatpush1.msra.mxu0 0.0
      %4043 = vmatprep.subr.mxu0 0.0
      %4044 = vmatpush1.msra.mxu0 0.0
      %4045 = vmatprep.subr.mxu0 0.0
      %4046 = vmatpush1.msra.mxu0 0.0
      %4047 = vmatprep.subr.mxu0 0.0
      %4048 = vmatpush1.msra.mxu0 0.0
      %4049 = vmatprep.subr.mxu0 0.0
      %4050 = vmatpush1.msra.mxu0 0.0
      %4051 = vmatprep.subr.mxu0 0.0
      %4052 = vmatpush1.msra.mxu0 0.0
      %4053 = vmatprep.subr.mxu0 0.0
      %4054 = vmatpush1.msra.mxu0 0.0
      %4055 = vmatprep.subr.mxu0 0.0
      %4056 = vmatpush1.msra.mxu0 0.0
      %4057 = vmatprep.subr.mxu0 0.0
      %4058 = vmatpush1.msra.mxu0 0.0
      %4059 = vmatprep.subr.mxu0 0.0
      %4060 = vmatpush1.msra.mxu0 0.0
      %4061 = vmatprep.subr.mxu0 0.0
      %4062 = vmatpush1.msra.mxu0 0.0
      %4063 = vmatprep.subr.mxu0 0.0
      %4064 = vmatpush1.msra.mxu0 0.0
      %4065 = vmatprep.subr.mxu0 0.0
      %4066 = vmatpush1.msra.mxu0 0.0
      %4067 = vmatprep.subr.mxu0 0.0
      %4068 = vmatpush1.msra.mxu0 0.0
      %4069 = vmatprep.subr.mxu0 0.0
      %4070 = vmatpush1.msra.mxu0 0.0
      %4071 = vmatprep.subr.mxu0 0.0
      %4072 = vmatpush1.msra.mxu0 0.0
      %4073 = vmatprep.subr.mxu0 0.0
      %4074 = vmatpush1.msra.mxu0 0.0
      %4075 = vmatprep.subr.mxu0 0.0
      %4076 = vmatpush1.msra.mxu0 0.0
      %4077 = vmatprep.subr.mxu0 0.0
      %4078 = vmatpush1.msra.mxu0 0.0
      %4079 = vmatprep.subr.mxu0 0.0
      %4080 = vmatpush1.msra.mxu0 0.0
      %4081 = vmatprep.subr.mxu0 0.0
      %4082 = vmatpush1.msra.mxu0 0.0
      %4083 = vmatprep.subr.mxu0 0.0
      %4084 = vmatpush1.msra.mxu0 0.0
      %4085 = vmatprep.subr.mxu0 0.0
      %4086 = vmatpush1.msra.mxu0 0.0
      %4087 = vmatprep.subr.mxu0 0.0
      %4088 = vmatpush1.msra.mxu0 0.0
      %4089 = vmatprep.mubr.f32.mxu0 0.0
      %4090 = vmatmul.mubr.f32.gmra.mrb[0].mxu0 %v4011
      %v4091 = vpop.f32.mrb[0].mxu0
      %v4092 = vadd.f32 0.0, %v4091
      %v4093 = vpop.f32.mrb[0].mxu0
      %4094 = vmatprep.mubr.f32.mxu0 0.0
      %4095 = vmatmul.mubr.f32.gmra.mrb[0].mxu0 %v4014
      %v4096 = vpop.f32.mrb[0].mxu0
      %v4097 = vadd.f32 0.0, %v4096
      %v4098 = vpop.f32.mrb[0].mxu0
      %4099 = vmatprep.mubr.f32.mxu0 0.0
      %4100 = vmatmul.mubr.f32.gmra.mrb[0].mxu0 %v4017
      %v4101 = vpop.f32.mrb[0].mxu0
      %v4102 = vadd.f32 0.0, %v4101
      %v4103 = vpop.f32.mrb[0].mxu0
      %4104 = vmatprep.mubr.f32.mxu0 0.0
      %4105 = vmatmul.mubr.f32.gmra.mrb[0].mxu0 %v4020
      %v4106 = vpop.f32.mrb[0].mxu0
      %v4107 = vadd.f32 0.0, %v4106
      %v4108 = vpop.f32.mrb[0].mxu0
      %4109 = vmatprep.mubr.f32.mxu0 0.0
      %4110 = vmatmul.mubr.f32.gmra.mrb[0].mxu0 %v4023
      %v4111 = vpop.f32.mrb[0].mxu0
      %v4112 = vadd.f32 0.0, %v4111
      %v4113 = vpop.f32.mrb[0].mxu0
      %4114 = vdwg.mxu0
      %v4115 = vadd.f32 %v3994, %v4092
      %v4116 = vadd.f32 %v3995, %v4097
      %v4117 = vadd.f32 %v3996, %v4102
      %v4118 = vadd.f32 %v3997, %v4107
      %v4119 = vadd.f32 %v3998, %v4112
      %s4120 = scalar_lea.vmem [#allocation2], 21
      %v4121 = vld [vmem:[%s4120] ss:$2 sm:$0xff]
      %s4122 = scalar_lea.vmem [#allocation2], 37
      %v4123 = vld [vmem:[%s4122] ss:$2 sm:$0xff]
      %s4124 = scalar_lea.vmem [#allocation2], 53
      %v4125 = vld [vmem:[%s4124] ss:$2 sm:$0xff]
      %s4126 = scalar_lea.vmem [#allocation2], 69
      %v4127 = vld [vmem:[%s4126] ss:$2 sm:$0xff]
      %s4128 = scalar_lea.vmem [#allocation2], 85
      %v4129 = vld [vmem:[%s4128] ss:$2 sm:$0x3]
      %v4130 = vld [vmem:[%s3 + $0x38] sm:$0xff]
      %v4132 = vsel %vm734, %v4121, 0
      %v4135 = vsel %vm734, %v4123, 0
      %v4138 = vsel %vm734, %v4125, 0
      %v4141 = vsel %vm734, %v4127, 0
      %v4144 = vsel %vm734, %v4129, 0
      %4146 = vmatprep.subr.mxu0 0.0
      %4147 = vmatpush1.msra.mxu0 %v4130
      %4148 = vmatprep.subr.mxu0 0.0
      %4149 = vmatpush1.msra.mxu0 0.0
      %4150 = vmatprep.subr.mxu0 0.0
      %4151 = vmatpush1.msra.mxu0 0.0
      %4152 = vmatprep.subr.mxu0 0.0
      %4153 = vmatpush1.msra.mxu0 0.0
      %4154 = vmatprep.subr.mxu0 0.0
      %4155 = vmatpush1.msra.mxu0 0.0
      %4156 = vmatprep.subr.mxu0 0.0
      %4157 = vmatpush1.msra.mxu0 0.0
      %4158 = vmatprep.subr.mxu0 0.0
      %4159 = vmatpush1.msra.mxu0 0.0
      %4160 = vmatprep.subr.mxu0 0.0
      %4161 = vmatpush1.msra.mxu0 0.0
      %4162 = vmatprep.subr.mxu0 0.0
      %4163 = vmatpush1.msra.mxu0 0.0
      %4164 = vmatprep.subr.mxu0 0.0
      %4165 = vmatpush1.msra.mxu0 0.0
      %4166 = vmatprep.subr.mxu0 0.0
      %4167 = vmatpush1.msra.mxu0 0.0
      %4168 = vmatprep.subr.mxu0 0.0
      %4169 = vmatpush1.msra.mxu0 0.0
      %4170 = vmatprep.subr.mxu0 0.0
      %4171 = vmatpush1.msra.mxu0 0.0
      %4172 = vmatprep.subr.mxu0 0.0
      %4173 = vmatpush1.msra.mxu0 0.0
      %4174 = vmatprep.subr.mxu0 0.0
      %4175 = vmatpush1.msra.mxu0 0.0
      %4176 = vmatprep.subr.mxu0 0.0
      %4177 = vmatpush1.msra.mxu0 0.0
      %4178 = vmatprep.subr.mxu0 0.0
      %4179 = vmatpush1.msra.mxu0 0.0
      %4180 = vmatprep.subr.mxu0 0.0
      %4181 = vmatpush1.msra.mxu0 0.0
      %4182 = vmatprep.subr.mxu0 0.0
      %4183 = vmatpush1.msra.mxu0 0.0
      %4184 = vmatprep.subr.mxu0 0.0
      %4185 = vmatpush1.msra.mxu0 0.0
      %4186 = vmatprep.subr.mxu0 0.0
      %4187 = vmatpush1.msra.mxu0 0.0
      %4188 = vmatprep.subr.mxu0 0.0
      %4189 = vmatpush1.msra.mxu0 0.0
      %4190 = vmatprep.subr.mxu0 0.0
      %4191 = vmatpush1.msra.mxu0 0.0
      %4192 = vmatprep.subr.mxu0 0.0
      %4193 = vmatpush1.msra.mxu0 0.0
      %4194 = vmatprep.subr.mxu0 0.0
      %4195 = vmatpush1.msra.mxu0 0.0
      %4196 = vmatprep.subr.mxu0 0.0
      %4197 = vmatpush1.msra.mxu0 0.0
      %4198 = vmatprep.subr.mxu0 0.0
      %4199 = vmatpush1.msra.mxu0 0.0
      %4200 = vmatprep.subr.mxu0 0.0
      %4201 = vmatpush1.msra.mxu0 0.0
      %4202 = vmatprep.subr.mxu0 0.0
      %4203 = vmatpush1.msra.mxu0 0.0
      %4204 = vmatprep.subr.mxu0 0.0
      %4205 = vmatpush1.msra.mxu0 0.0
      %4206 = vmatprep.subr.mxu0 0.0
      %4207 = vmatpush1.msra.mxu0 0.0
      %4208 = vmatprep.subr.mxu0 0.0
      %4209 = vmatpush1.msra.mxu0 0.0
      %4210 = vmatprep.mubr.f32.mxu0 0.0
      %4211 = vmatmul.mubr.f32.gmra.mrb[0].mxu0 %v4132
      %v4212 = vpop.f32.mrb[0].mxu0
      %v4213 = vadd.f32 0.0, %v4212
      %v4214 = vpop.f32.mrb[0].mxu0
      %4215 = vmatprep.mubr.f32.mxu0 0.0
      %4216 = vmatmul.mubr.f32.gmra.mrb[0].mxu0 %v4135
      %v4217 = vpop.f32.mrb[0].mxu0
      %v4218 = vadd.f32 0.0, %v4217
      %v4219 = vpop.f32.mrb[0].mxu0
      %4220 = vmatprep.mubr.f32.mxu0 0.0
      %4221 = vmatmul.mubr.f32.gmra.mrb[0].mxu0 %v4138
      %v4222 = vpop.f32.mrb[0].mxu0
      %v4223 = vadd.f32 0.0, %v4222
      %v4224 = vpop.f32.mrb[0].mxu0
      %4225 = vmatprep.mubr.f32.mxu0 0.0
      %4226 = vmatmul.mubr.f32.gmra.mrb[0].mxu0 %v4141
      %v4227 = vpop.f32.mrb[0].mxu0
      %v4228 = vadd.f32 0.0, %v4227
      %v4229 = vpop.f32.mrb[0].mxu0
      %4230 = vmatprep.mubr.f32.mxu0 0.0
      %4231 = vmatmul.mubr.f32.gmra.mrb[0].mxu0 %v4144
      %v4232 = vpop.f32.mrb[0].mxu0
      %v4233 = vadd.f32 0.0, %v4232
      %v4234 = vpop.f32.mrb[0].mxu0
      %4235 = vdwg.mxu0
      %v4236 = vadd.f32 %v4115, %v4213
      %v4237 = vadd.f32 %v4116, %v4218
      %v4238 = vadd.f32 %v4117, %v4223
      %v4239 = vadd.f32 %v4118, %v4228
      %v4240 = vadd.f32 %v4119, %v4233
      %s4241 = scalar_lea.vmem [#allocation2], 22
      %v4242 = vld [vmem:[%s4241] ss:$2 sm:$0xff]
      %s4243 = scalar_lea.vmem [#allocation2], 38
      %v4244 = vld [vmem:[%s4243] ss:$2 sm:$0xff]
      %s4245 = scalar_lea.vmem [#allocation2], 54
      %v4246 = vld [vmem:[%s4245] ss:$2 sm:$0xff]
      %s4247 = scalar_lea.vmem [#allocation2], 70
      %v4248 = vld [vmem:[%s4247] ss:$2 sm:$0xff]
      %s4249 = scalar_lea.vmem [#allocation2], 86
      %v4250 = vld [vmem:[%s4249] ss:$2 sm:$0x3]
      %v4251 = vld [vmem:[%s3 + $0x40] sm:$0xff]
      %v4253 = vsel %vm734, %v4242, 0
      %v4256 = vsel %vm734, %v4244, 0
      %v4259 = vsel %vm734, %v4246, 0
      %v4262 = vsel %vm734, %v4248, 0
      %v4265 = vsel %vm734, %v4250, 0
      %4267 = vmatprep.subr.mxu0 0.0
      %4268 = vmatpush1.msra.mxu0 %v4251
      %4269 = vmatprep.subr.mxu0 0.0
      %4270 = vmatpush1.msra.mxu0 0.0
      %4271 = vmatprep.subr.mxu0 0.0
      %4272 = vmatpush1.msra.mxu0 0.0
      %4273 = vmatprep.subr.mxu0 0.0
      %4274 = vmatpush1.msra.mxu0 0.0
      %4275 = vmatprep.subr.mxu0 0.0
      %4276 = vmatpush1.msra.mxu0 0.0
      %4277 = vmatprep.subr.mxu0 0.0
      %4278 = vmatpush1.msra.mxu0 0.0
      %4279 = vmatprep.subr.mxu0 0.0
      %4280 = vmatpush1.msra.mxu0 0.0
      %4281 = vmatprep.subr.mxu0 0.0
      %4282 = vmatpush1.msra.mxu0 0.0
      %4283 = vmatprep.subr.mxu0 0.0
      %4284 = vmatpush1.msra.mxu0 0.0
      %4285 = vmatprep.subr.mxu0 0.0
      %4286 = vmatpush1.msra.mxu0 0.0
      %4287 = vmatprep.subr.mxu0 0.0
      %4288 = vmatpush1.msra.mxu0 0.0
      %4289 = vmatprep.subr.mxu0 0.0
      %4290 = vmatpush1.msra.mxu0 0.0
      %4291 = vmatprep.subr.mxu0 0.0
      %4292 = vmatpush1.msra.mxu0 0.0
      %4293 = vmatprep.subr.mxu0 0.0
      %4294 = vmatpush1.msra.mxu0 0.0
      %4295 = vmatprep.subr.mxu0 0.0
      %4296 = vmatpush1.msra.mxu0 0.0
      %4297 = vmatprep.subr.mxu0 0.0
      %4298 = vmatpush1.msra.mxu0 0.0
      %4299 = vmatprep.subr.mxu0 0.0
      %4300 = vmatpush1.msra.mxu0 0.0
      %4301 = vmatprep.subr.mxu0 0.0
      %4302 = vmatpush1.msra.mxu0 0.0
      %4303 = vmatprep.subr.mxu0 0.0
      %4304 = vmatpush1.msra.mxu0 0.0
      %4305 = vmatprep.subr.mxu0 0.0
      %4306 = vmatpush1.msra.mxu0 0.0
      %4307 = vmatprep.subr.mxu0 0.0
      %4308 = vmatpush1.msra.mxu0 0.0
      %4309 = vmatprep.subr.mxu0 0.0
      %4310 = vmatpush1.msra.mxu0 0.0
      %4311 = vmatprep.subr.mxu0 0.0
      %4312 = vmatpush1.msra.mxu0 0.0
      %4313 = vmatprep.subr.mxu0 0.0
      %4314 = vmatpush1.msra.mxu0 0.0
      %4315 = vmatprep.subr.mxu0 0.0
      %4316 = vmatpush1.msra.mxu0 0.0
      %4317 = vmatprep.subr.mxu0 0.0
      %4318 = vmatpush1.msra.mxu0 0.0
      %4319 = vmatprep.subr.mxu0 0.0
      %4320 = vmatpush1.msra.mxu0 0.0
      %4321 = vmatprep.subr.mxu0 0.0
      %4322 = vmatpush1.msra.mxu0 0.0
      %4323 = vmatprep.subr.mxu0 0.0
      %4324 = vmatpush1.msra.mxu0 0.0
      %4325 = vmatprep.subr.mxu0 0.0
      %4326 = vmatpush1.msra.mxu0 0.0
      %4327 = vmatprep.subr.mxu0 0.0
      %4328 = vmatpush1.msra.mxu0 0.0
      %4329 = vmatprep.subr.mxu0 0.0
      %4330 = vmatpush1.msra.mxu0 0.0
      %4331 = vmatprep.mubr.f32.mxu0 0.0
      %4332 = vmatmul.mubr.f32.gmra.mrb[0].mxu0 %v4253
      %v4333 = vpop.f32.mrb[0].mxu0
      %v4334 = vadd.f32 0.0, %v4333
      %v4335 = vpop.f32.mrb[0].mxu0
      %4336 = vmatprep.mubr.f32.mxu0 0.0
      %4337 = vmatmul.mubr.f32.gmra.mrb[0].mxu0 %v4256
      %v4338 = vpop.f32.mrb[0].mxu0
      %v4339 = vadd.f32 0.0, %v4338
      %v4340 = vpop.f32.mrb[0].mxu0
      %4341 = vmatprep.mubr.f32.mxu0 0.0
      %4342 = vmatmul.mubr.f32.gmra.mrb[0].mxu0 %v4259
      %v4343 = vpop.f32.mrb[0].mxu0
      %v4344 = vadd.f32 0.0, %v4343
      %v4345 = vpop.f32.mrb[0].mxu0
      %4346 = vmatprep.mubr.f32.mxu0 0.0
      %4347 = vmatmul.mubr.f32.gmra.mrb[0].mxu0 %v4262
      %v4348 = vpop.f32.mrb[0].mxu0
      %v4349 = vadd.f32 0.0, %v4348
      %v4350 = vpop.f32.mrb[0].mxu0
      %4351 = vmatprep.mubr.f32.mxu0 0.0
      %4352 = vmatmul.mubr.f32.gmra.mrb[0].mxu0 %v4265
      %v4353 = vpop.f32.mrb[0].mxu0
      %v4354 = vadd.f32 0.0, %v4353
      %v4355 = vpop.f32.mrb[0].mxu0
      %4356 = vdwg.mxu0
      %v4357 = vadd.f32 %v4236, %v4334
      %v4358 = vadd.f32 %v4237, %v4339
      %v4359 = vadd.f32 %v4238, %v4344
      %v4360 = vadd.f32 %v4239, %v4349
      %v4361 = vadd.f32 %v4240, %v4354
      %v4362 = vld [vmem:[%s4] sm:$0x1]
      %v4364 = vlaneseq
      %v4365 = vshrl.u32 %v4364, 7
      %v4366 = vsub.s32 0, %v4365
      %v4367 = vrot.slane %v4362, %v4366
      %v4369 = vadd.f32 %v4357, %v4367
      %v4370 = vadd.f32 %v4358, %v4367
      %v4371 = vadd.f32 %v4359, %v4367
      %v4372 = vadd.f32 %v4360, %v4367
      %v4373 = vadd.f32 %v4361, %v4367
      %v4374 = vmax.f32 %v4369, 0.0
      %v4375 = vmax.f32 %v4370, 0.0
      %v4376 = vmax.f32 %v4371, 0.0
      %v4377 = vmax.f32 %v4372, 0.0
      %v4378 = vmax.f32 %v4373, 0.0
      %4379 = vst.msk [vmem:[#allocation3 + $0x7] sm:$0xf] %vm754, %v4374
      %vm4380 = vcmask 128002
      %4381 = vst.msk [vmem:[#allocation3 + $0xb] sm:$0x3c] %vm4380, %v4375
      %vm4382 = vcmask 130052
      %4383 = vst.msk [vmem:[#allocation3 + $0xf] sm:$0xf0] %vm4382, %v4376
      %vm4384 = vcmask 130054
      %4385 = vst.msk [vmem:[#allocation3 + $0x13] sm:$0xc0] %vm4384, %v4377
      %4386 = vst.msk [vmem:[#allocation3 + $0x1b] sm:$0x3] %vm777, %v4378
      %v4387 = vld [vmem:[%s9] sm:$0xff]
      %v4388 = vld [vmem:[%s9 + $0x8] sm:$0xff]
      %v4389 = vld [vmem:[%s10] sm:$0x1]
      %v4391 = vlaneseq
      %v4392 = vshrl.u32 %v4391, 7
      %v4393 = vsub.s32 0, %v4392
      %v4394 = vrot.slane %v4389, %v4393
      %v4397 = vsel %vm749, %v4374, 0
      %v4400 = vsel %vm749, %v4375, 0
      %v4403 = vsel %vm749, %v4376, 0
      %v4406 = vsel %vm749, %v4377, 0
      %v4409 = vsel %vm749, %v4378, 0
      %4411 = vmatprep.subr.mxu0 0.0
      %4412 = vmatpush1.msra.mxu0 %v4387
      %4413 = vmatprep.subr.mxu0 0.0
      %4414 = vmatpush1.msra.mxu0 %v4388
      %4415 = vmatprep.subr.mxu0 0.0
      %4416 = vmatpush1.msra.mxu0 0.0
      %4417 = vmatprep.subr.mxu0 0.0
      %4418 = vmatpush1.msra.mxu0 0.0
      %4419 = vmatprep.subr.mxu0 0.0
      %4420 = vmatpush1.msra.mxu0 0.0
      %4421 = vmatprep.subr.mxu0 0.0
      %4422 = vmatpush1.msra.mxu0 0.0
      %4423 = vmatprep.subr.mxu0 0.0
      %4424 = vmatpush1.msra.mxu0 0.0
      %4425 = vmatprep.subr.mxu0 0.0
      %4426 = vmatpush1.msra.mxu0 0.0
      %4427 = vmatprep.subr.mxu0 0.0
      %4428 = vmatpush1.msra.mxu0 0.0
      %4429 = vmatprep.subr.mxu0 0.0
      %4430 = vmatpush1.msra.mxu0 0.0
      %4431 = vmatprep.subr.mxu0 0.0
      %4432 = vmatpush1.msra.mxu0 0.0
      %4433 = vmatprep.subr.mxu0 0.0
      %4434 = vmatpush1.msra.mxu0 0.0
      %4435 = vmatprep.subr.mxu0 0.0
      %4436 = vmatpush1.msra.mxu0 0.0
      %4437 = vmatprep.subr.mxu0 0.0
      %4438 = vmatpush1.msra.mxu0 0.0
      %4439 = vmatprep.subr.mxu0 0.0
      %4440 = vmatpush1.msra.mxu0 0.0
      %4441 = vmatprep.subr.mxu0 0.0
      %4442 = vmatpush1.msra.mxu0 0.0
      %4443 = vmatprep.subr.mxu0 0.0
      %4444 = vmatpush1.msra.mxu0 0.0
      %4445 = vmatprep.subr.mxu0 0.0
      %4446 = vmatpush1.msra.mxu0 0.0
      %4447 = vmatprep.subr.mxu0 0.0
      %4448 = vmatpush1.msra.mxu0 0.0
      %4449 = vmatprep.subr.mxu0 0.0
      %4450 = vmatpush1.msra.mxu0 0.0
      %4451 = vmatprep.subr.mxu0 0.0
      %4452 = vmatpush1.msra.mxu0 0.0
      %4453 = vmatprep.subr.mxu0 0.0
      %4454 = vmatpush1.msra.mxu0 0.0
      %4455 = vmatprep.subr.mxu0 0.0
      %4456 = vmatpush1.msra.mxu0 0.0
      %4457 = vmatprep.subr.mxu0 0.0
      %4458 = vmatpush1.msra.mxu0 0.0
      %4459 = vmatprep.subr.mxu0 0.0
      %4460 = vmatpush1.msra.mxu0 0.0
      %4461 = vmatprep.subr.mxu0 0.0
      %4462 = vmatpush1.msra.mxu0 0.0
      %4463 = vmatprep.subr.mxu0 0.0
      %4464 = vmatpush1.msra.mxu0 0.0
      %4465 = vmatprep.subr.mxu0 0.0
      %4466 = vmatpush1.msra.mxu0 0.0
      %4467 = vmatprep.subr.mxu0 0.0
      %4468 = vmatpush1.msra.mxu0 0.0
      %4469 = vmatprep.subr.mxu0 0.0
      %4470 = vmatpush1.msra.mxu0 0.0
      %4471 = vmatprep.subr.mxu0 0.0
      %4472 = vmatpush1.msra.mxu0 0.0
      %4473 = vmatprep.subr.mxu0 0.0
      %4474 = vmatpush1.msra.mxu0 0.0
      %4475 = vmatprep.mubr.f32.mxu0 0.0
      %4476 = vmatmul.mubr.f32.gmra.mrb[0].mxu0 %v4397
      %v4477 = vpop.f32.mrb[0].mxu0
      %v4478 = vadd.f32 %v4394, %v4477
      %v4479 = vpop.f32.mrb[0].mxu0
      %4480 = vmatprep.mubr.f32.mxu0 0.0
      %4481 = vmatmul.mubr.f32.gmra.mrb[0].mxu0 %v4400
      %v4482 = vpop.f32.mrb[0].mxu0
      %v4483 = vadd.f32 %v4394, %v4482
      %v4484 = vpop.f32.mrb[0].mxu0
      %4485 = vmatprep.mubr.f32.mxu0 0.0
      %4486 = vmatmul.mubr.f32.gmra.mrb[0].mxu0 %v4403
      %v4487 = vpop.f32.mrb[0].mxu0
      %v4488 = vadd.f32 %v4394, %v4487
      %v4489 = vpop.f32.mrb[0].mxu0
      %4490 = vmatprep.mubr.f32.mxu0 0.0
      %4491 = vmatmul.mubr.f32.gmra.mrb[0].mxu0 %v4406
      %v4492 = vpop.f32.mrb[0].mxu0
      %v4493 = vadd.f32 %v4394, %v4492
      %v4494 = vpop.f32.mrb[0].mxu0
      %4495 = vmatprep.mubr.f32.mxu0 0.0
      %4496 = vmatmul.mubr.f32.gmra.mrb[0].mxu0 %v4409
      %v4497 = vpop.f32.mrb[0].mxu0
      %v4498 = vadd.f32 %v4394, %v4497
      %v4499 = vpop.f32.mrb[0].mxu0
      %4500 = vdwg.mxu0
      %v4501 = vld [vmem:[#allocation3] ss:$2 sm:$0xff]
      %v4502 = vld [vmem:[%s5] sm:$0xff]
      %v4503 = vld [vmem:[%s5 + $0x8] sm:$0xff]
      %s4504 = scalar_lea.vmem [#allocation3], 1
      %v4505 = vld [vmem:[%s4504] ss:$2 sm:$0xff]
      %v4506 = vld [vmem:[%s5 + $0x10] sm:$0xff]
      %v4507 = vld [vmem:[%s5 + $0x18] sm:$0xff]
      %v4509 = vsel %vm749, %v4505, 0
      %4511 = vmatprep.subr.mxu0 0.0
      %4512 = vmatpush1.msra.mxu0 %v4506
      %4513 = vmatprep.subr.mxu0 0.0
      %4514 = vmatpush1.msra.mxu0 %v4507
      %4515 = vmatprep.subr.mxu0 0.0
      %4516 = vmatpush1.msra.mxu0 0.0
      %4517 = vmatprep.subr.mxu0 0.0
      %4518 = vmatpush1.msra.mxu0 0.0
      %4519 = vmatprep.subr.mxu0 0.0
      %4520 = vmatpush1.msra.mxu0 0.0
      %4521 = vmatprep.subr.mxu0 0.0
      %4522 = vmatpush1.msra.mxu0 0.0
      %4523 = vmatprep.subr.mxu0 0.0
      %4524 = vmatpush1.msra.mxu0 0.0
      %4525 = vmatprep.subr.mxu0 0.0
      %4526 = vmatpush1.msra.mxu0 0.0
      %4527 = vmatprep.subr.mxu0 0.0
      %4528 = vmatpush1.msra.mxu0 0.0
      %4529 = vmatprep.subr.mxu0 0.0
      %4530 = vmatpush1.msra.mxu0 0.0
      %4531 = vmatprep.subr.mxu0 0.0
      %4532 = vmatpush1.msra.mxu0 0.0
      %4533 = vmatprep.subr.mxu0 0.0
      %4534 = vmatpush1.msra.mxu0 0.0
      %4535 = vmatprep.subr.mxu0 0.0
      %4536 = vmatpush1.msra.mxu0 0.0
      %4537 = vmatprep.subr.mxu0 0.0
      %4538 = vmatpush1.msra.mxu0 0.0
      %4539 = vmatprep.subr.mxu0 0.0
      %4540 = vmatpush1.msra.mxu0 0.0
      %4541 = vmatprep.subr.mxu0 0.0
      %4542 = vmatpush1.msra.mxu0 0.0
      %4543 = vmatprep.subr.mxu0 0.0
      %4544 = vmatpush1.msra.mxu0 0.0
      %4545 = vmatprep.subr.mxu0 0.0
      %4546 = vmatpush1.msra.mxu0 0.0
      %4547 = vmatprep.subr.mxu0 0.0
      %4548 = vmatpush1.msra.mxu0 0.0
      %4549 = vmatprep.subr.mxu0 0.0
      %4550 = vmatpush1.msra.mxu0 0.0
      %4551 = vmatprep.subr.mxu0 0.0
      %4552 = vmatpush1.msra.mxu0 0.0
      %4553 = vmatprep.subr.mxu0 0.0
      %4554 = vmatpush1.msra.mxu0 0.0
      %4555 = vmatprep.subr.mxu0 0.0
      %4556 = vmatpush1.msra.mxu0 0.0
      %4557 = vmatprep.subr.mxu0 0.0
      %4558 = vmatpush1.msra.mxu0 0.0
      %4559 = vmatprep.subr.mxu0 0.0
      %4560 = vmatpush1.msra.mxu0 0.0
      %4561 = vmatprep.subr.mxu0 0.0
      %4562 = vmatpush1.msra.mxu0 0.0
      %4563 = vmatprep.subr.mxu0 0.0
      %4564 = vmatpush1.msra.mxu0 0.0
      %4565 = vmatprep.subr.mxu0 0.0
      %4566 = vmatpush1.msra.mxu0 0.0
      %4567 = vmatprep.subr.mxu0 0.0
      %4568 = vmatpush1.msra.mxu0 0.0
      %4569 = vmatprep.subr.mxu0 0.0
      %4570 = vmatpush1.msra.mxu0 0.0
      %4571 = vmatprep.subr.mxu0 0.0
      %4572 = vmatpush1.msra.mxu0 0.0
      %4573 = vmatprep.subr.mxu0 0.0
      %4574 = vmatpush1.msra.mxu0 0.0
      %4575 = vmatprep.mubr.f32.mxu0 0.0
      %4576 = vmatmul.mubr.f32.gmra.mrb[0].mxu0 %v4509
      %v4577 = vpop.f32.mrb[0].mxu0
      %v4578 = vadd.f32 0.0, %v4577
      %v4579 = vpop.f32.mrb[0].mxu0
      %4580 = vdwg.mxu0
      %v4582 = vsel %vm749, %v4501, 0
      %4584 = vmatprep.subr.mxu0 0.0
      %4585 = vmatpush1.msra.mxu0 %v4502
      %4586 = vmatprep.subr.mxu0 0.0
      %4587 = vmatpush1.msra.mxu0 %v4503
      %4588 = vmatprep.subr.mxu0 0.0
      %4589 = vmatpush1.msra.mxu0 0.0
      %4590 = vmatprep.subr.mxu0 0.0
      %4591 = vmatpush1.msra.mxu0 0.0
      %4592 = vmatprep.subr.mxu0 0.0
      %4593 = vmatpush1.msra.mxu0 0.0
      %4594 = vmatprep.subr.mxu0 0.0
      %4595 = vmatpush1.msra.mxu0 0.0
      %4596 = vmatprep.subr.mxu0 0.0
      %4597 = vmatpush1.msra.mxu0 0.0
      %4598 = vmatprep.subr.mxu0 0.0
      %4599 = vmatpush1.msra.mxu0 0.0
      %4600 = vmatprep.subr.mxu0 0.0
      %4601 = vmatpush1.msra.mxu0 0.0
      %4602 = vmatprep.subr.mxu0 0.0
      %4603 = vmatpush1.msra.mxu0 0.0
      %4604 = vmatprep.subr.mxu0 0.0
      %4605 = vmatpush1.msra.mxu0 0.0
      %4606 = vmatprep.subr.mxu0 0.0
      %4607 = vmatpush1.msra.mxu0 0.0
      %4608 = vmatprep.subr.mxu0 0.0
      %4609 = vmatpush1.msra.mxu0 0.0
      %4610 = vmatprep.subr.mxu0 0.0
      %4611 = vmatpush1.msra.mxu0 0.0
      %4612 = vmatprep.subr.mxu0 0.0
      %4613 = vmatpush1.msra.mxu0 0.0
      %4614 = vmatprep.subr.mxu0 0.0
      %4615 = vmatpush1.msra.mxu0 0.0
      %4616 = vmatprep.subr.mxu0 0.0
      %4617 = vmatpush1.msra.mxu0 0.0
      %4618 = vmatprep.subr.mxu0 0.0
      %4619 = vmatpush1.msra.mxu0 0.0
      %4620 = vmatprep.subr.mxu0 0.0
      %4621 = vmatpush1.msra.mxu0 0.0
      %4622 = vmatprep.subr.mxu0 0.0
      %4623 = vmatpush1.msra.mxu0 0.0
      %4624 = vmatprep.subr.mxu0 0.0
      %4625 = vmatpush1.msra.mxu0 0.0
      %4626 = vmatprep.subr.mxu0 0.0
      %4627 = vmatpush1.msra.mxu0 0.0
      %4628 = vmatprep.subr.mxu0 0.0
      %4629 = vmatpush1.msra.mxu0 0.0
      %4630 = vmatprep.subr.mxu0 0.0
      %4631 = vmatpush1.msra.mxu0 0.0
      %4632 = vmatprep.subr.mxu0 0.0
      %4633 = vmatpush1.msra.mxu0 0.0
      %4634 = vmatprep.subr.mxu0 0.0
      %4635 = vmatpush1.msra.mxu0 0.0
      %4636 = vmatprep.subr.mxu0 0.0
      %4637 = vmatpush1.msra.mxu0 0.0
      %4638 = vmatprep.subr.mxu0 0.0
      %4639 = vmatpush1.msra.mxu0 0.0
      %4640 = vmatprep.subr.mxu0 0.0
      %4641 = vmatpush1.msra.mxu0 0.0
      %4642 = vmatprep.subr.mxu0 0.0
      %4643 = vmatpush1.msra.mxu0 0.0
      %4644 = vmatprep.subr.mxu0 0.0
      %4645 = vmatpush1.msra.mxu0 0.0
      %4646 = vmatprep.subr.mxu0 0.0
      %4647 = vmatpush1.msra.mxu0 0.0
      %4648 = vmatprep.mubr.f32.mxu0 0.0
      %4649 = vmatmul.mubr.f32.gmra.mrb[0].mxu0 %v4582
      %v4650 = vpop.f32.mrb[0].mxu0
      %v4651 = vadd.f32 %v4578, %v4650
      %v4652 = vpop.f32.mrb[0].mxu0
      %4653 = vdwg.mxu0
      %s4654 = scalar_lea.vmem [#allocation3], 2
      %v4655 = vld [vmem:[%s4654] ss:$2 sm:$0xff]
      %v4656 = vld [vmem:[%s5 + $0x20] sm:$0xff]
      %v4657 = vld [vmem:[%s5 + $0x28] sm:$0xff]
      %v4659 = vsel %vm749, %v4655, 0
      %4661 = vmatprep.subr.mxu0 0.0
      %4662 = vmatpush1.msra.mxu0 %v4656
      %4663 = vmatprep.subr.mxu0 0.0
      %4664 = vmatpush1.msra.mxu0 %v4657
      %4665 = vmatprep.subr.mxu0 0.0
      %4666 = vmatpush1.msra.mxu0 0.0
      %4667 = vmatprep.subr.mxu0 0.0
      %4668 = vmatpush1.msra.mxu0 0.0
      %4669 = vmatprep.subr.mxu0 0.0
      %4670 = vmatpush1.msra.mxu0 0.0
      %4671 = vmatprep.subr.mxu0 0.0
      %4672 = vmatpush1.msra.mxu0 0.0
      %4673 = vmatprep.subr.mxu0 0.0
      %4674 = vmatpush1.msra.mxu0 0.0
      %4675 = vmatprep.subr.mxu0 0.0
      %4676 = vmatpush1.msra.mxu0 0.0
      %4677 = vmatprep.subr.mxu0 0.0
      %4678 = vmatpush1.msra.mxu0 0.0
      %4679 = vmatprep.subr.mxu0 0.0
      %4680 = vmatpush1.msra.mxu0 0.0
      %4681 = vmatprep.subr.mxu0 0.0
      %4682 = vmatpush1.msra.mxu0 0.0
      %4683 = vmatprep.subr.mxu0 0.0
      %4684 = vmatpush1.msra.mxu0 0.0
      %4685 = vmatprep.subr.mxu0 0.0
      %4686 = vmatpush1.msra.mxu0 0.0
      %4687 = vmatprep.subr.mxu0 0.0
      %4688 = vmatpush1.msra.mxu0 0.0
      %4689 = vmatprep.subr.mxu0 0.0
      %4690 = vmatpush1.msra.mxu0 0.0
      %4691 = vmatprep.subr.mxu0 0.0
      %4692 = vmatpush1.msra.mxu0 0.0
      %4693 = vmatprep.subr.mxu0 0.0
      %4694 = vmatpush1.msra.mxu0 0.0
      %4695 = vmatprep.subr.mxu0 0.0
      %4696 = vmatpush1.msra.mxu0 0.0
      %4697 = vmatprep.subr.mxu0 0.0
      %4698 = vmatpush1.msra.mxu0 0.0
      %4699 = vmatprep.subr.mxu0 0.0
      %4700 = vmatpush1.msra.mxu0 0.0
      %4701 = vmatprep.subr.mxu0 0.0
      %4702 = vmatpush1.msra.mxu0 0.0
      %4703 = vmatprep.subr.mxu0 0.0
      %4704 = vmatpush1.msra.mxu0 0.0
      %4705 = vmatprep.subr.mxu0 0.0
      %4706 = vmatpush1.msra.mxu0 0.0
      %4707 = vmatprep.subr.mxu0 0.0
      %4708 = vmatpush1.msra.mxu0 0.0
      %4709 = vmatprep.subr.mxu0 0.0
      %4710 = vmatpush1.msra.mxu0 0.0
      %4711 = vmatprep.subr.mxu0 0.0
      %4712 = vmatpush1.msra.mxu0 0.0
      %4713 = vmatprep.subr.mxu0 0.0
      %4714 = vmatpush1.msra.mxu0 0.0
      %4715 = vmatprep.subr.mxu0 0.0
      %4716 = vmatpush1.msra.mxu0 0.0
      %4717 = vmatprep.subr.mxu0 0.0
      %4718 = vmatpush1.msra.mxu0 0.0
      %4719 = vmatprep.subr.mxu0 0.0
      %4720 = vmatpush1.msra.mxu0 0.0
      %4721 = vmatprep.subr.mxu0 0.0
      %4722 = vmatpush1.msra.mxu0 0.0
      %4723 = vmatprep.subr.mxu0 0.0
      %4724 = vmatpush1.msra.mxu0 0.0
      %4725 = vmatprep.mubr.f32.mxu0 0.0
      %4726 = vmatmul.mubr.f32.gmra.mrb[0].mxu0 %v4659
      %v4727 = vpop.f32.mrb[0].mxu0
      %v4728 = vadd.f32 0.0, %v4727
      %v4729 = vpop.f32.mrb[0].mxu0
      %4730 = vdwg.mxu0
      %v4731 = vadd.f32 %v4651, %v4728
      %s4732 = scalar_lea.vmem [#allocation3], 6
      %v4733 = vld [vmem:[%s4732] ss:$2 sm:$0xff]
      %v4734 = vld [vmem:[%s5 + $0x30] sm:$0xff]
      %v4735 = vld [vmem:[%s5 + $0x38] sm:$0xff]
      %v4737 = vsel %vm749, %v4733, 0
      %4739 = vmatprep.subr.mxu0 0.0
      %4740 = vmatpush1.msra.mxu0 %v4734
      %4741 = vmatprep.subr.mxu0 0.0
      %4742 = vmatpush1.msra.mxu0 %v4735
      %4743 = vmatprep.subr.mxu0 0.0
      %4744 = vmatpush1.msra.mxu0 0.0
      %4745 = vmatprep.subr.mxu0 0.0
      %4746 = vmatpush1.msra.mxu0 0.0
      %4747 = vmatprep.subr.mxu0 0.0
      %4748 = vmatpush1.msra.mxu0 0.0
      %4749 = vmatprep.subr.mxu0 0.0
      %4750 = vmatpush1.msra.mxu0 0.0
      %4751 = vmatprep.subr.mxu0 0.0
      %4752 = vmatpush1.msra.mxu0 0.0
      %4753 = vmatprep.subr.mxu0 0.0
      %4754 = vmatpush1.msra.mxu0 0.0
      %4755 = vmatprep.subr.mxu0 0.0
      %4756 = vmatpush1.msra.mxu0 0.0
      %4757 = vmatprep.subr.mxu0 0.0
      %4758 = vmatpush1.msra.mxu0 0.0
      %4759 = vmatprep.subr.mxu0 0.0
      %4760 = vmatpush1.msra.mxu0 0.0
      %4761 = vmatprep.subr.mxu0 0.0
      %4762 = vmatpush1.msra.mxu0 0.0
      %4763 = vmatprep.subr.mxu0 0.0
      %4764 = vmatpush1.msra.mxu0 0.0
      %4765 = vmatprep.subr.mxu0 0.0
      %4766 = vmatpush1.msra.mxu0 0.0
      %4767 = vmatprep.subr.mxu0 0.0
      %4768 = vmatpush1.msra.mxu0 0.0
      %4769 = vmatprep.subr.mxu0 0.0
      %4770 = vmatpush1.msra.mxu0 0.0
      %4771 = vmatprep.subr.mxu0 0.0
      %4772 = vmatpush1.msra.mxu0 0.0
      %4773 = vmatprep.subr.mxu0 0.0
      %4774 = vmatpush1.msra.mxu0 0.0
      %4775 = vmatprep.subr.mxu0 0.0
      %4776 = vmatpush1.msra.mxu0 0.0
      %4777 = vmatprep.subr.mxu0 0.0
      %4778 = vmatpush1.msra.mxu0 0.0
      %4779 = vmatprep.subr.mxu0 0.0
      %4780 = vmatpush1.msra.mxu0 0.0
      %4781 = vmatprep.subr.mxu0 0.0
      %4782 = vmatpush1.msra.mxu0 0.0
      %4783 = vmatprep.subr.mxu0 0.0
      %4784 = vmatpush1.msra.mxu0 0.0
      %4785 = vmatprep.subr.mxu0 0.0
      %4786 = vmatpush1.msra.mxu0 0.0
      %4787 = vmatprep.subr.mxu0 0.0
      %4788 = vmatpush1.msra.mxu0 0.0
      %4789 = vmatprep.subr.mxu0 0.0
      %4790 = vmatpush1.msra.mxu0 0.0
      %4791 = vmatprep.subr.mxu0 0.0
      %4792 = vmatpush1.msra.mxu0 0.0
      %4793 = vmatprep.subr.mxu0 0.0
      %4794 = vmatpush1.msra.mxu0 0.0
      %4795 = vmatprep.subr.mxu0 0.0
      %4796 = vmatpush1.msra.mxu0 0.0
      %4797 = vmatprep.subr.mxu0 0.0
      %4798 = vmatpush1.msra.mxu0 0.0
      %4799 = vmatprep.subr.mxu0 0.0
      %4800 = vmatpush1.msra.mxu0 0.0
      %4801 = vmatprep.subr.mxu0 0.0
      %4802 = vmatpush1.msra.mxu0 0.0
      %4803 = vmatprep.mubr.f32.mxu0 0.0
      %4804 = vmatmul.mubr.f32.gmra.mrb[0].mxu0 %v4737
      %v4805 = vpop.f32.mrb[0].mxu0
      %v4806 = vadd.f32 0.0, %v4805
      %v4807 = vpop.f32.mrb[0].mxu0
      %4808 = vdwg.mxu0
      %v4809 = vadd.f32 %v4731, %v4806
      %s4810 = scalar_lea.vmem [#allocation3], 7
      %v4811 = vld [vmem:[%s4810] ss:$2 sm:$0xff]
      %v4812 = vld [vmem:[%s5 + $0x40] sm:$0xff]
      %v4813 = vld [vmem:[%s5 + $0x48] sm:$0xff]
      %v4815 = vsel %vm749, %v4811, 0
      %4817 = vmatprep.subr.mxu0 0.0
      %4818 = vmatpush1.msra.mxu0 %v4812
      %4819 = vmatprep.subr.mxu0 0.0
      %4820 = vmatpush1.msra.mxu0 %v4813
      %4821 = vmatprep.subr.mxu0 0.0
      %4822 = vmatpush1.msra.mxu0 0.0
      %4823 = vmatprep.subr.mxu0 0.0
      %4824 = vmatpush1.msra.mxu0 0.0
      %4825 = vmatprep.subr.mxu0 0.0
      %4826 = vmatpush1.msra.mxu0 0.0
      %4827 = vmatprep.subr.mxu0 0.0
      %4828 = vmatpush1.msra.mxu0 0.0
      %4829 = vmatprep.subr.mxu0 0.0
      %4830 = vmatpush1.msra.mxu0 0.0
      %4831 = vmatprep.subr.mxu0 0.0
      %4832 = vmatpush1.msra.mxu0 0.0
      %4833 = vmatprep.subr.mxu0 0.0
      %4834 = vmatpush1.msra.mxu0 0.0
      %4835 = vmatprep.subr.mxu0 0.0
      %4836 = vmatpush1.msra.mxu0 0.0
      %4837 = vmatprep.subr.mxu0 0.0
      %4838 = vmatpush1.msra.mxu0 0.0
      %4839 = vmatprep.subr.mxu0 0.0
      %4840 = vmatpush1.msra.mxu0 0.0
      %4841 = vmatprep.subr.mxu0 0.0
      %4842 = vmatpush1.msra.mxu0 0.0
      %4843 = vmatprep.subr.mxu0 0.0
      %4844 = vmatpush1.msra.mxu0 0.0
      %4845 = vmatprep.subr.mxu0 0.0
      %4846 = vmatpush1.msra.mxu0 0.0
      %4847 = vmatprep.subr.mxu0 0.0
      %4848 = vmatpush1.msra.mxu0 0.0
      %4849 = vmatprep.subr.mxu0 0.0
      %4850 = vmatpush1.msra.mxu0 0.0
      %4851 = vmatprep.subr.mxu0 0.0
      %4852 = vmatpush1.msra.mxu0 0.0
      %4853 = vmatprep.subr.mxu0 0.0
      %4854 = vmatpush1.msra.mxu0 0.0
      %4855 = vmatprep.subr.mxu0 0.0
      %4856 = vmatpush1.msra.mxu0 0.0
      %4857 = vmatprep.subr.mxu0 0.0
      %4858 = vmatpush1.msra.mxu0 0.0
      %4859 = vmatprep.subr.mxu0 0.0
      %4860 = vmatpush1.msra.mxu0 0.0
      %4861 = vmatprep.subr.mxu0 0.0
      %4862 = vmatpush1.msra.mxu0 0.0
      %4863 = vmatprep.subr.mxu0 0.0
      %4864 = vmatpush1.msra.mxu0 0.0
      %4865 = vmatprep.subr.mxu0 0.0
      %4866 = vmatpush1.msra.mxu0 0.0
      %4867 = vmatprep.subr.mxu0 0.0
      %4868 = vmatpush1.msra.mxu0 0.0
      %4869 = vmatprep.subr.mxu0 0.0
      %4870 = vmatpush1.msra.mxu0 0.0
      %4871 = vmatprep.subr.mxu0 0.0
      %4872 = vmatpush1.msra.mxu0 0.0
      %4873 = vmatprep.subr.mxu0 0.0
      %4874 = vmatpush1.msra.mxu0 0.0
      %4875 = vmatprep.subr.mxu0 0.0
      %4876 = vmatpush1.msra.mxu0 0.0
      %4877 = vmatprep.subr.mxu0 0.0
      %4878 = vmatpush1.msra.mxu0 0.0
      %4879 = vmatprep.subr.mxu0 0.0
      %4880 = vmatpush1.msra.mxu0 0.0
      %4881 = vmatprep.mubr.f32.mxu0 0.0
      %4882 = vmatmul.mubr.f32.gmra.mrb[0].mxu0 %v4815
      %v4883 = vpop.f32.mrb[0].mxu0
      %v4884 = vadd.f32 0.0, %v4883
      %v4885 = vpop.f32.mrb[0].mxu0
      %4886 = vdwg.mxu0
      %v4887 = vadd.f32 %v4809, %v4884
      %s4888 = scalar_lea.vmem [#allocation3], 8
      %v4889 = vld [vmem:[%s4888] ss:$2 sm:$0xff]
      %v4890 = vld [vmem:[%s5 + $0x50] sm:$0xff]
      %v4891 = vld [vmem:[%s5 + $0x58] sm:$0xff]
      %v4893 = vsel %vm749, %v4889, 0
      %4895 = vmatprep.subr.mxu0 0.0
      %4896 = vmatpush1.msra.mxu0 %v4890
      %4897 = vmatprep.subr.mxu0 0.0
      %4898 = vmatpush1.msra.mxu0 %v4891
      %4899 = vmatprep.subr.mxu0 0.0
      %4900 = vmatpush1.msra.mxu0 0.0
      %4901 = vmatprep.subr.mxu0 0.0
      %4902 = vmatpush1.msra.mxu0 0.0
      %4903 = vmatprep.subr.mxu0 0.0
      %4904 = vmatpush1.msra.mxu0 0.0
      %4905 = vmatprep.subr.mxu0 0.0
      %4906 = vmatpush1.msra.mxu0 0.0
      %4907 = vmatprep.subr.mxu0 0.0
      %4908 = vmatpush1.msra.mxu0 0.0
      %4909 = vmatprep.subr.mxu0 0.0
      %4910 = vmatpush1.msra.mxu0 0.0
      %4911 = vmatprep.subr.mxu0 0.0
      %4912 = vmatpush1.msra.mxu0 0.0
      %4913 = vmatprep.subr.mxu0 0.0
      %4914 = vmatpush1.msra.mxu0 0.0
      %4915 = vmatprep.subr.mxu0 0.0
      %4916 = vmatpush1.msra.mxu0 0.0
      %4917 = vmatprep.subr.mxu0 0.0
      %4918 = vmatpush1.msra.mxu0 0.0
      %4919 = vmatprep.subr.mxu0 0.0
      %4920 = vmatpush1.msra.mxu0 0.0
      %4921 = vmatprep.subr.mxu0 0.0
      %4922 = vmatpush1.msra.mxu0 0.0
      %4923 = vmatprep.subr.mxu0 0.0
      %4924 = vmatpush1.msra.mxu0 0.0
      %4925 = vmatprep.subr.mxu0 0.0
      %4926 = vmatpush1.msra.mxu0 0.0
      %4927 = vmatprep.subr.mxu0 0.0
      %4928 = vmatpush1.msra.mxu0 0.0
      %4929 = vmatprep.subr.mxu0 0.0
      %4930 = vmatpush1.msra.mxu0 0.0
      %4931 = vmatprep.subr.mxu0 0.0
      %4932 = vmatpush1.msra.mxu0 0.0
      %4933 = vmatprep.subr.mxu0 0.0
      %4934 = vmatpush1.msra.mxu0 0.0
      %4935 = vmatprep.subr.mxu0 0.0
      %4936 = vmatpush1.msra.mxu0 0.0
      %4937 = vmatprep.subr.mxu0 0.0
      %4938 = vmatpush1.msra.mxu0 0.0
      %4939 = vmatprep.subr.mxu0 0.0
      %4940 = vmatpush1.msra.mxu0 0.0
      %4941 = vmatprep.subr.mxu0 0.0
      %4942 = vmatpush1.msra.mxu0 0.0
      %4943 = vmatprep.subr.mxu0 0.0
      %4944 = vmatpush1.msra.mxu0 0.0
      %4945 = vmatprep.subr.mxu0 0.0
      %4946 = vmatpush1.msra.mxu0 0.0
      %4947 = vmatprep.subr.mxu0 0.0
      %4948 = vmatpush1.msra.mxu0 0.0
      %4949 = vmatprep.subr.mxu0 0.0
      %4950 = vmatpush1.msra.mxu0 0.0
      %4951 = vmatprep.subr.mxu0 0.0
      %4952 = vmatpush1.msra.mxu0 0.0
      %4953 = vmatprep.subr.mxu0 0.0
      %4954 = vmatpush1.msra.mxu0 0.0
      %4955 = vmatprep.subr.mxu0 0.0
      %4956 = vmatpush1.msra.mxu0 0.0
      %4957 = vmatprep.subr.mxu0 0.0
      %4958 = vmatpush1.msra.mxu0 0.0
      %4959 = vmatprep.mubr.f32.mxu0 0.0
      %4960 = vmatmul.mubr.f32.gmra.mrb[0].mxu0 %v4893
      %v4961 = vpop.f32.mrb[0].mxu0
      %v4962 = vadd.f32 0.0, %v4961
      %v4963 = vpop.f32.mrb[0].mxu0
      %4964 = vdwg.mxu0
      %v4965 = vadd.f32 %v4887, %v4962
      %s4966 = scalar_lea.vmem [#allocation3], 12
      %v4967 = vld [vmem:[%s4966] ss:$2 sm:$0xff]
      %v4968 = vld [vmem:[%s5 + $0x60] sm:$0xff]
      %v4969 = vld [vmem:[%s5 + $0x68] sm:$0xff]
      %v4971 = vsel %vm749, %v4967, 0
      %4973 = vmatprep.subr.mxu0 0.0
      %4974 = vmatpush1.msra.mxu0 %v4968
      %4975 = vmatprep.subr.mxu0 0.0
      %4976 = vmatpush1.msra.mxu0 %v4969
      %4977 = vmatprep.subr.mxu0 0.0
      %4978 = vmatpush1.msra.mxu0 0.0
      %4979 = vmatprep.subr.mxu0 0.0
      %4980 = vmatpush1.msra.mxu0 0.0
      %4981 = vmatprep.subr.mxu0 0.0
      %4982 = vmatpush1.msra.mxu0 0.0
      %4983 = vmatprep.subr.mxu0 0.0
      %4984 = vmatpush1.msra.mxu0 0.0
      %4985 = vmatprep.subr.mxu0 0.0
      %4986 = vmatpush1.msra.mxu0 0.0
      %4987 = vmatprep.subr.mxu0 0.0
      %4988 = vmatpush1.msra.mxu0 0.0
      %4989 = vmatprep.subr.mxu0 0.0
      %4990 = vmatpush1.msra.mxu0 0.0
      %4991 = vmatprep.subr.mxu0 0.0
      %4992 = vmatpush1.msra.mxu0 0.0
      %4993 = vmatprep.subr.mxu0 0.0
      %4994 = vmatpush1.msra.mxu0 0.0
      %4995 = vmatprep.subr.mxu0 0.0
      %4996 = vmatpush1.msra.mxu0 0.0
      %4997 = vmatprep.subr.mxu0 0.0
      %4998 = vmatpush1.msra.mxu0 0.0
      %4999 = vmatprep.subr.mxu0 0.0
      %5000 = vmatpush1.msra.mxu0 0.0
      %5001 = vmatprep.subr.mxu0 0.0
      %5002 = vmatpush1.msra.mxu0 0.0
      %5003 = vmatprep.subr.mxu0 0.0
      %5004 = vmatpush1.msra.mxu0 0.0
      %5005 = vmatprep.subr.mxu0 0.0
      %5006 = vmatpush1.msra.mxu0 0.0
      %5007 = vmatprep.subr.mxu0 0.0
      %5008 = vmatpush1.msra.mxu0 0.0
      %5009 = vmatprep.subr.mxu0 0.0
      %5010 = vmatpush1.msra.mxu0 0.0
      %5011 = vmatprep.subr.mxu0 0.0
      %5012 = vmatpush1.msra.mxu0 0.0
      %5013 = vmatprep.subr.mxu0 0.0
      %5014 = vmatpush1.msra.mxu0 0.0
      %5015 = vmatprep.subr.mxu0 0.0
      %5016 = vmatpush1.msra.mxu0 0.0
      %5017 = vmatprep.subr.mxu0 0.0
      %5018 = vmatpush1.msra.mxu0 0.0
      %5019 = vmatprep.subr.mxu0 0.0
      %5020 = vmatpush1.msra.mxu0 0.0
      %5021 = vmatprep.subr.mxu0 0.0
      %5022 = vmatpush1.msra.mxu0 0.0
      %5023 = vmatprep.subr.mxu0 0.0
      %5024 = vmatpush1.msra.mxu0 0.0
      %5025 = vmatprep.subr.mxu0 0.0
      %5026 = vmatpush1.msra.mxu0 0.0
      %5027 = vmatprep.subr.mxu0 0.0
      %5028 = vmatpush1.msra.mxu0 0.0
      %5029 = vmatprep.subr.mxu0 0.0
      %5030 = vmatpush1.msra.mxu0 0.0
      %5031 = vmatprep.subr.mxu0 0.0
      %5032 = vmatpush1.msra.mxu0 0.0
      %5033 = vmatprep.subr.mxu0 0.0
      %5034 = vmatpush1.msra.mxu0 0.0
      %5035 = vmatprep.subr.mxu0 0.0
      %5036 = vmatpush1.msra.mxu0 0.0
      %5037 = vmatprep.mubr.f32.mxu0 0.0
      %5038 = vmatmul.mubr.f32.gmra.mrb[0].mxu0 %v4971
      %v5039 = vpop.f32.mrb[0].mxu0
      %v5040 = vadd.f32 0.0, %v5039
      %v5041 = vpop.f32.mrb[0].mxu0
      %5042 = vdwg.mxu0
      %v5043 = vadd.f32 %v4965, %v5040
      %s5044 = scalar_lea.vmem [#allocation3], 13
      %v5045 = vld [vmem:[%s5044] ss:$2 sm:$0xff]
      %v5046 = vld [vmem:[%s5 + $0x70] sm:$0xff]
      %v5047 = vld [vmem:[%s5 + $0x78] sm:$0xff]
      %v5049 = vsel %vm749, %v5045, 0
      %5051 = vmatprep.subr.mxu0 0.0
      %5052 = vmatpush1.msra.mxu0 %v5046
      %5053 = vmatprep.subr.mxu0 0.0
      %5054 = vmatpush1.msra.mxu0 %v5047
      %5055 = vmatprep.subr.mxu0 0.0
      %5056 = vmatpush1.msra.mxu0 0.0
      %5057 = vmatprep.subr.mxu0 0.0
      %5058 = vmatpush1.msra.mxu0 0.0
      %5059 = vmatprep.subr.mxu0 0.0
      %5060 = vmatpush1.msra.mxu0 0.0
      %5061 = vmatprep.subr.mxu0 0.0
      %5062 = vmatpush1.msra.mxu0 0.0
      %5063 = vmatprep.subr.mxu0 0.0
      %5064 = vmatpush1.msra.mxu0 0.0
      %5065 = vmatprep.subr.mxu0 0.0
      %5066 = vmatpush1.msra.mxu0 0.0
      %5067 = vmatprep.subr.mxu0 0.0
      %5068 = vmatpush1.msra.mxu0 0.0
      %5069 = vmatprep.subr.mxu0 0.0
      %5070 = vmatpush1.msra.mxu0 0.0
      %5071 = vmatprep.subr.mxu0 0.0
      %5072 = vmatpush1.msra.mxu0 0.0
      %5073 = vmatprep.subr.mxu0 0.0
      %5074 = vmatpush1.msra.mxu0 0.0
      %5075 = vmatprep.subr.mxu0 0.0
      %5076 = vmatpush1.msra.mxu0 0.0
      %5077 = vmatprep.subr.mxu0 0.0
      %5078 = vmatpush1.msra.mxu0 0.0
      %5079 = vmatprep.subr.mxu0 0.0
      %5080 = vmatpush1.msra.mxu0 0.0
      %5081 = vmatprep.subr.mxu0 0.0
      %5082 = vmatpush1.msra.mxu0 0.0
      %5083 = vmatprep.subr.mxu0 0.0
      %5084 = vmatpush1.msra.mxu0 0.0
      %5085 = vmatprep.subr.mxu0 0.0
      %5086 = vmatpush1.msra.mxu0 0.0
      %5087 = vmatprep.subr.mxu0 0.0
      %5088 = vmatpush1.msra.mxu0 0.0
      %5089 = vmatprep.subr.mxu0 0.0
      %5090 = vmatpush1.msra.mxu0 0.0
      %5091 = vmatprep.subr.mxu0 0.0
      %5092 = vmatpush1.msra.mxu0 0.0
      %5093 = vmatprep.subr.mxu0 0.0
      %5094 = vmatpush1.msra.mxu0 0.0
      %5095 = vmatprep.subr.mxu0 0.0
      %5096 = vmatpush1.msra.mxu0 0.0
      %5097 = vmatprep.subr.mxu0 0.0
      %5098 = vmatpush1.msra.mxu0 0.0
      %5099 = vmatprep.subr.mxu0 0.0
      %5100 = vmatpush1.msra.mxu0 0.0
      %5101 = vmatprep.subr.mxu0 0.0
      %5102 = vmatpush1.msra.mxu0 0.0
      %5103 = vmatprep.subr.mxu0 0.0
      %5104 = vmatpush1.msra.mxu0 0.0
      %5105 = vmatprep.subr.mxu0 0.0
      %5106 = vmatpush1.msra.mxu0 0.0
      %5107 = vmatprep.subr.mxu0 0.0
      %5108 = vmatpush1.msra.mxu0 0.0
      %5109 = vmatprep.subr.mxu0 0.0
      %5110 = vmatpush1.msra.mxu0 0.0
      %5111 = vmatprep.subr.mxu0 0.0
      %5112 = vmatpush1.msra.mxu0 0.0
      %5113 = vmatprep.subr.mxu0 0.0
      %5114 = vmatpush1.msra.mxu0 0.0
      %5115 = vmatprep.mubr.f32.mxu0 0.0
      %5116 = vmatmul.mubr.f32.gmra.mrb[0].mxu0 %v5049
      %v5117 = vpop.f32.mrb[0].mxu0
      %v5118 = vadd.f32 0.0, %v5117
      %v5119 = vpop.f32.mrb[0].mxu0
      %5120 = vdwg.mxu0
      %v5121 = vadd.f32 %v5043, %v5118
      %s5122 = scalar_lea.vmem [#allocation3], 14
      %v5123 = vld [vmem:[%s5122] ss:$2 sm:$0xff]
      %v5124 = vld [vmem:[%s5 + $0x80] sm:$0xff]
      %v5125 = vld [vmem:[%s5 + $0x88] sm:$0xff]
      %v5127 = vsel %vm749, %v5123, 0
      %5129 = vmatprep.subr.mxu0 0.0
      %5130 = vmatpush1.msra.mxu0 %v5124
      %5131 = vmatprep.subr.mxu0 0.0
      %5132 = vmatpush1.msra.mxu0 %v5125
      %5133 = vmatprep.subr.mxu0 0.0
      %5134 = vmatpush1.msra.mxu0 0.0
      %5135 = vmatprep.subr.mxu0 0.0
      %5136 = vmatpush1.msra.mxu0 0.0
      %5137 = vmatprep.subr.mxu0 0.0
      %5138 = vmatpush1.msra.mxu0 0.0
      %5139 = vmatprep.subr.mxu0 0.0
      %5140 = vmatpush1.msra.mxu0 0.0
      %5141 = vmatprep.subr.mxu0 0.0
      %5142 = vmatpush1.msra.mxu0 0.0
      %5143 = vmatprep.subr.mxu0 0.0
      %5144 = vmatpush1.msra.mxu0 0.0
      %5145 = vmatprep.subr.mxu0 0.0
      %5146 = vmatpush1.msra.mxu0 0.0
      %5147 = vmatprep.subr.mxu0 0.0
      %5148 = vmatpush1.msra.mxu0 0.0
      %5149 = vmatprep.subr.mxu0 0.0
      %5150 = vmatpush1.msra.mxu0 0.0
      %5151 = vmatprep.subr.mxu0 0.0
      %5152 = vmatpush1.msra.mxu0 0.0
      %5153 = vmatprep.subr.mxu0 0.0
      %5154 = vmatpush1.msra.mxu0 0.0
      %5155 = vmatprep.subr.mxu0 0.0
      %5156 = vmatpush1.msra.mxu0 0.0
      %5157 = vmatprep.subr.mxu0 0.0
      %5158 = vmatpush1.msra.mxu0 0.0
      %5159 = vmatprep.subr.mxu0 0.0
      %5160 = vmatpush1.msra.mxu0 0.0
      %5161 = vmatprep.subr.mxu0 0.0
      %5162 = vmatpush1.msra.mxu0 0.0
      %5163 = vmatprep.subr.mxu0 0.0
      %5164 = vmatpush1.msra.mxu0 0.0
      %5165 = vmatprep.subr.mxu0 0.0
      %5166 = vmatpush1.msra.mxu0 0.0
      %5167 = vmatprep.subr.mxu0 0.0
      %5168 = vmatpush1.msra.mxu0 0.0
      %5169 = vmatprep.subr.mxu0 0.0
      %5170 = vmatpush1.msra.mxu0 0.0
      %5171 = vmatprep.subr.mxu0 0.0
      %5172 = vmatpush1.msra.mxu0 0.0
      %5173 = vmatprep.subr.mxu0 0.0
      %5174 = vmatpush1.msra.mxu0 0.0
      %5175 = vmatprep.subr.mxu0 0.0
      %5176 = vmatpush1.msra.mxu0 0.0
      %5177 = vmatprep.subr.mxu0 0.0
      %5178 = vmatpush1.msra.mxu0 0.0
      %5179 = vmatprep.subr.mxu0 0.0
      %5180 = vmatpush1.msra.mxu0 0.0
      %5181 = vmatprep.subr.mxu0 0.0
      %5182 = vmatpush1.msra.mxu0 0.0
      %5183 = vmatprep.subr.mxu0 0.0
      %5184 = vmatpush1.msra.mxu0 0.0
      %5185 = vmatprep.subr.mxu0 0.0
      %5186 = vmatpush1.msra.mxu0 0.0
      %5187 = vmatprep.subr.mxu0 0.0
      %5188 = vmatpush1.msra.mxu0 0.0
      %5189 = vmatprep.subr.mxu0 0.0
      %5190 = vmatpush1.msra.mxu0 0.0
      %5191 = vmatprep.subr.mxu0 0.0
      %5192 = vmatpush1.msra.mxu0 0.0
      %5193 = vmatprep.mubr.f32.mxu0 0.0
      %5194 = vmatmul.mubr.f32.gmra.mrb[0].mxu0 %v5127
      %v5195 = vpop.f32.mrb[0].mxu0
      %v5196 = vadd.f32 0.0, %v5195
      %v5197 = vpop.f32.mrb[0].mxu0
      %5198 = vdwg.mxu0
      %v5199 = vadd.f32 %v5121, %v5196
      %v5200 = vld [vmem:[%s6] sm:$0x1]
      %v5202 = vlaneseq
      %v5203 = vshrl.u32 %v5202, 7
      %v5204 = vsub.s32 0, %v5203
      %v5205 = vrot.slane %v5200, %v5204
      %v5207 = vadd.f32 %v5199, %v5205
      %v5208 = vmax.f32 %v5207, 0.0
      %v5209 = vld [vmem:[%s11] sm:$0xff]
      %v5210 = vld [vmem:[%s11 + $0x8] sm:$0xff]
      %v5211 = vld [vmem:[%s11 + $0x10] sm:$0xff]
      %v5212 = vld [vmem:[%s11 + $0x18] sm:$0xff]
      %v5213 = vld [vmem:[%s12] sm:$0x1]
      %v5215 = vlaneseq
      %v5216 = vshrl.u32 %v5215, 7
      %v5217 = vsub.s32 0, %v5216
      %v5218 = vrot.slane %v5213, %v5217
      %vm5220 = vcmask 261120
      %v5222 = vsel %vm5220, %v5208, 0
      %5224 = vmatprep.subr.mxu0 0.0
      %5225 = vmatpush1.msra.mxu0 %v5209
      %5226 = vmatprep.subr.mxu0 0.0
      %5227 = vmatpush1.msra.mxu0 %v5210
      %5228 = vmatprep.subr.mxu0 0.0
      %5229 = vmatpush1.msra.mxu0 %v5211
      %5230 = vmatprep.subr.mxu0 0.0
      %5231 = vmatpush1.msra.mxu0 %v5212
      %5232 = vmatprep.subr.mxu0 0.0
      %5233 = vmatpush1.msra.mxu0 0.0
      %5234 = vmatprep.subr.mxu0 0.0
      %5235 = vmatpush1.msra.mxu0 0.0
      %5236 = vmatprep.subr.mxu0 0.0
      %5237 = vmatpush1.msra.mxu0 0.0
      %5238 = vmatprep.subr.mxu0 0.0
      %5239 = vmatpush1.msra.mxu0 0.0
      %5240 = vmatprep.subr.mxu0 0.0
      %5241 = vmatpush1.msra.mxu0 0.0
      %5242 = vmatprep.subr.mxu0 0.0
      %5243 = vmatpush1.msra.mxu0 0.0
      %5244 = vmatprep.subr.mxu0 0.0
      %5245 = vmatpush1.msra.mxu0 0.0
      %5246 = vmatprep.subr.mxu0 0.0
      %5247 = vmatpush1.msra.mxu0 0.0
      %5248 = vmatprep.subr.mxu0 0.0
      %5249 = vmatpush1.msra.mxu0 0.0
      %5250 = vmatprep.subr.mxu0 0.0
      %5251 = vmatpush1.msra.mxu0 0.0
      %5252 = vmatprep.subr.mxu0 0.0
      %5253 = vmatpush1.msra.mxu0 0.0
      %5254 = vmatprep.subr.mxu0 0.0
      %5255 = vmatpush1.msra.mxu0 0.0
      %5256 = vmatprep.subr.mxu0 0.0
      %5257 = vmatpush1.msra.mxu0 0.0
      %5258 = vmatprep.subr.mxu0 0.0
      %5259 = vmatpush1.msra.mxu0 0.0
      %5260 = vmatprep.subr.mxu0 0.0
      %5261 = vmatpush1.msra.mxu0 0.0
      %5262 = vmatprep.subr.mxu0 0.0
      %5263 = vmatpush1.msra.mxu0 0.0
      %5264 = vmatprep.subr.mxu0 0.0
      %5265 = vmatpush1.msra.mxu0 0.0
      %5266 = vmatprep.subr.mxu0 0.0
      %5267 = vmatpush1.msra.mxu0 0.0
      %5268 = vmatprep.subr.mxu0 0.0
      %5269 = vmatpush1.msra.mxu0 0.0
      %5270 = vmatprep.subr.mxu0 0.0
      %5271 = vmatpush1.msra.mxu0 0.0
      %5272 = vmatprep.subr.mxu0 0.0
      %5273 = vmatpush1.msra.mxu0 0.0
      %5274 = vmatprep.subr.mxu0 0.0
      %5275 = vmatpush1.msra.mxu0 0.0
      %5276 = vmatprep.subr.mxu0 0.0
      %5277 = vmatpush1.msra.mxu0 0.0
      %5278 = vmatprep.subr.mxu0 0.0
      %5279 = vmatpush1.msra.mxu0 0.0
      %5280 = vmatprep.subr.mxu0 0.0
      %5281 = vmatpush1.msra.mxu0 0.0
      %5282 = vmatprep.subr.mxu0 0.0
      %5283 = vmatpush1.msra.mxu0 0.0
      %5284 = vmatprep.subr.mxu0 0.0
      %5285 = vmatpush1.msra.mxu0 0.0
      %5286 = vmatprep.subr.mxu0 0.0
      %5287 = vmatpush1.msra.mxu0 0.0
      %5288 = vmatprep.mubr.f32.mxu0 0.0
      %5289 = vmatmul.mubr.f32.gmra.mrb[0].mxu0 %v5222
      %v5290 = vpop.f32.mrb[0].mxu0
      %v5291 = vadd.f32 %v5218, %v5290
      %v5292 = vpop.f32.mrb[0].mxu0
      %5293 = vdwg.mxu0
      %5294 = vst.msk [vmem:[#allocation6 + $0x5] sm:$0x3] %vm777, %v5291
      %5295 = vst.msk [vmem:[#allocation6 + $0x3] sm:$0xc0] %vm4384, %v5291
      %v5296 = vld [vmem:[%s20] sm:$0xff]
      %v5297 = vld [vmem:[%s20 + $0x8] sm:$0xff]
      %v5298 = vld [vmem:[#allocation6] sm:$0xff]
      %v5299 = vld [vmem:[#allocation6 + $0x8] sm:$0xff]
      %v5300 = vld [vmem:[#allocation6 + $0x10] sm:$0x3]
      %vm5301 = vcmask 146432
      %v5303 = vsel %vm5301, %v5296, 0
      %v5306 = vsel %vm5301, %v5297, 0
      %vm5308 = vcmask 1041408
      %v5310 = vsel %vm5308, %v5300, 0
      %5312 = vmatprep.subr.mxu0 0.0
      %5313 = vmatpush1.msra.mxu0 %v5298
      %5314 = vmatprep.subr.mxu0 0.0
      %5315 = vmatpush1.msra.mxu0 %v5299
      %5316 = vmatprep.subr.mxu0 0.0
      %5317 = vmatpush1.msra.mxu0 %v5310
      %5318 = vmatprep.subr.mxu0 0.0
      %5319 = vmatpush1.msra.mxu0 0.0
      %5320 = vmatprep.subr.mxu0 0.0
      %5321 = vmatpush1.msra.mxu0 0.0
      %5322 = vmatprep.subr.mxu0 0.0
      %5323 = vmatpush1.msra.mxu0 0.0
      %5324 = vmatprep.subr.mxu0 0.0
      %5325 = vmatpush1.msra.mxu0 0.0
      %5326 = vmatprep.subr.mxu0 0.0
      %5327 = vmatpush1.msra.mxu0 0.0
      %5328 = vmatprep.subr.mxu0 0.0
      %5329 = vmatpush1.msra.mxu0 0.0
      %5330 = vmatprep.subr.mxu0 0.0
      %5331 = vmatpush1.msra.mxu0 0.0
      %5332 = vmatprep.subr.mxu0 0.0
      %5333 = vmatpush1.msra.mxu0 0.0
      %5334 = vmatprep.subr.mxu0 0.0
      %5335 = vmatpush1.msra.mxu0 0.0
      %5336 = vmatprep.subr.mxu0 0.0
      %5337 = vmatpush1.msra.mxu0 0.0
      %5338 = vmatprep.subr.mxu0 0.0
      %5339 = vmatpush1.msra.mxu0 0.0
      %5340 = vmatprep.subr.mxu0 0.0
      %5341 = vmatpush1.msra.mxu0 0.0
      %5342 = vmatprep.subr.mxu0 0.0
      %5343 = vmatpush1.msra.mxu0 0.0
      %5344 = vmatprep.subr.mxu0 0.0
      %5345 = vmatpush1.msra.mxu0 0.0
      %5346 = vmatprep.subr.mxu0 0.0
      %5347 = vmatpush1.msra.mxu0 0.0
      %5348 = vmatprep.subr.mxu0 0.0
      %5349 = vmatpush1.msra.mxu0 0.0
      %5350 = vmatprep.subr.mxu0 0.0
      %5351 = vmatpush1.msra.mxu0 0.0
      %5352 = vmatprep.subr.mxu0 0.0
      %5353 = vmatpush1.msra.mxu0 0.0
      %5354 = vmatprep.subr.mxu0 0.0
      %5355 = vmatpush1.msra.mxu0 0.0
      %5356 = vmatprep.subr.mxu0 0.0
      %5357 = vmatpush1.msra.mxu0 0.0
      %5358 = vmatprep.subr.mxu0 0.0
      %5359 = vmatpush1.msra.mxu0 0.0
      %5360 = vmatprep.subr.mxu0 0.0
      %5361 = vmatpush1.msra.mxu0 0.0
      %5362 = vmatprep.subr.mxu0 0.0
      %5363 = vmatpush1.msra.mxu0 0.0
      %5364 = vmatprep.subr.mxu0 0.0
      %5365 = vmatpush1.msra.mxu0 0.0
      %5366 = vmatprep.subr.mxu0 0.0
      %5367 = vmatpush1.msra.mxu0 0.0
      %5368 = vmatprep.subr.mxu0 0.0
      %5369 = vmatpush1.msra.mxu0 0.0
      %5370 = vmatprep.subr.mxu0 0.0
      %5371 = vmatpush1.msra.mxu0 0.0
      %5372 = vmatprep.subr.mxu0 0.0
      %5373 = vmatpush1.msra.mxu0 0.0
      %5374 = vmatprep.subr.mxu0 0.0
      %5375 = vmatpush1.msra.mxu0 0.0
      %5376 = vmatprep.mubr.f32.mxu0 0.0
      %5377 = vmatmul.mubr.f32.gmra.mrb[0].mxu0 %v5303
      %v5378 = vpop.f32.mrb[0].mxu0
      %v5379 = vadd.f32 0.0, %v5378
      %v5380 = vpop.f32.mrb[0].mxu0
      %5381 = vmatprep.mubr.f32.mxu0 0.0
      %5382 = vmatmul.mubr.f32.gmra.mrb[0].mxu0 %v5306
      %v5383 = vpop.f32.mrb[0].mxu0
      %v5384 = vadd.f32 0.0, %v5383
      %v5385 = vpop.f32.mrb[0].mxu0
      %5386 = vdwg.mxu0
      %v5387 = vadd.f32 %v4478, %v5379
      %5388 = vst.msk [vmem:[#allocation5 + $0x7] sm:$0xf] %vm754, %v5387
      %v5390 = vrot.slane %v5379, 2
      %v5392 = vadd.f32 %v4483, %v5390
      %5393 = vst.msk [vmem:[#allocation5 + $0xb] sm:$0x3c] %vm4380, %v5392
      %v5395 = vrot.slane %v5384, 4
      %v5397 = vadd.f32 %v4488, %v5395
      %5398 = vst.msk [vmem:[#allocation5 + $0xf] sm:$0xf0] %vm4382, %v5397
      %v5399 = vrot.slane %v5384, 6
      %v5401 = vadd.f32 %v4493, %v5399
      %v5402 = vadd.f32 %v4498, %v5399
      %5403 = vst.msk [vmem:[#allocation5 + $0x13] sm:$0xc0] %vm4384, %v5401
      %5404 = vst.msk [vmem:[#allocation5 + $0x1b] sm:$0x3] %vm777, %v5402
      %v5405 = vld [vmem:[%s19] sm:$0xff]
      %v5406 = vld [vmem:[%s19 + $0x8] sm:$0xff]
      %v5407 = vld [vmem:[%s19 + $0x10] sm:$0xff]
      %v5408 = vld [vmem:[%s19 + $0x18] sm:$0xff]
      %v5409 = vld [vmem:[%s19 + $0x20] sm:$0xff]
      %v5410 = vld [vmem:[%s19 + $0x28] sm:$0xff]
      %v5411 = vld [vmem:[%s19 + $0x30] sm:$0xff]
      %v5412 = vld [vmem:[%s19 + $0x38] sm:$0xff]
      %v5413 = vld [vmem:[#allocation5] sm:$0xff]
      %v5414 = vld [vmem:[#allocation5 + $0x8] sm:$0xff]
      %v5415 = vld [vmem:[#allocation5 + $0x10] sm:$0xff]
      %v5416 = vld [vmem:[#allocation5 + $0x18] sm:$0xff]
      %v5417 = vld [vmem:[#allocation5 + $0x20] sm:$0x3f]
      %vm5418 = vcmask 310272
      %v5420 = vsel %vm5418, %v5405, 0
      %v5423 = vsel %vm5418, %v5406, 0
      %v5426 = vsel %vm5418, %v5407, 0
      %v5429 = vsel %vm5418, %v5408, 0
      %v5432 = vsel %vm5418, %v5409, 0
      %v5435 = vsel %vm5418, %v5410, 0
      %v5438 = vsel %vm5418, %v5411, 0
      %v5441 = vsel %vm5418, %v5412, 0
      %vm5443 = vcmask 1045504
      %v5445 = vsel %vm5443, %v5417, 0
      %5447 = vmatprep.subr.mxu0 0.0
      %5448 = vmatpush1.msra.mxu0 %v5413
      %5449 = vmatprep.subr.mxu0 0.0
      %5450 = vmatpush1.msra.mxu0 %v5414
      %5451 = vmatprep.subr.mxu0 0.0
      %5452 = vmatpush1.msra.mxu0 %v5415
      %5453 = vmatprep.subr.mxu0 0.0
      %5454 = vmatpush1.msra.mxu0 %v5416
      %5455 = vmatprep.subr.mxu0 0.0
      %5456 = vmatpush1.msra.mxu0 %v5445
      %5457 = vmatprep.subr.mxu0 0.0
      %5458 = vmatpush1.msra.mxu0 0.0
      %5459 = vmatprep.subr.mxu0 0.0
      %5460 = vmatpush1.msra.mxu0 0.0
      %5461 = vmatprep.subr.mxu0 0.0
      %5462 = vmatpush1.msra.mxu0 0.0
      %5463 = vmatprep.subr.mxu0 0.0
      %5464 = vmatpush1.msra.mxu0 0.0
      %5465 = vmatprep.subr.mxu0 0.0
      %5466 = vmatpush1.msra.mxu0 0.0
      %5467 = vmatprep.subr.mxu0 0.0
      %5468 = vmatpush1.msra.mxu0 0.0
      %5469 = vmatprep.subr.mxu0 0.0
      %5470 = vmatpush1.msra.mxu0 0.0
      %5471 = vmatprep.subr.mxu0 0.0
      %5472 = vmatpush1.msra.mxu0 0.0
      %5473 = vmatprep.subr.mxu0 0.0
      %5474 = vmatpush1.msra.mxu0 0.0
      %5475 = vmatprep.subr.mxu0 0.0
      %5476 = vmatpush1.msra.mxu0 0.0
      %5477 = vmatprep.subr.mxu0 0.0
      %5478 = vmatpush1.msra.mxu0 0.0
      %5479 = vmatprep.subr.mxu0 0.0
      %5480 = vmatpush1.msra.mxu0 0.0
      %5481 = vmatprep.subr.mxu0 0.0
      %5482 = vmatpush1.msra.mxu0 0.0
      %5483 = vmatprep.subr.mxu0 0.0
      %5484 = vmatpush1.msra.mxu0 0.0
      %5485 = vmatprep.subr.mxu0 0.0
      %5486 = vmatpush1.msra.mxu0 0.0
      %5487 = vmatprep.subr.mxu0 0.0
      %5488 = vmatpush1.msra.mxu0 0.0
      %5489 = vmatprep.subr.mxu0 0.0
      %5490 = vmatpush1.msra.mxu0 0.0
      %5491 = vmatprep.subr.mxu0 0.0
      %5492 = vmatpush1.msra.mxu0 0.0
      %5493 = vmatprep.subr.mxu0 0.0
      %5494 = vmatpush1.msra.mxu0 0.0
      %5495 = vmatprep.subr.mxu0 0.0
      %5496 = vmatpush1.msra.mxu0 0.0
      %5497 = vmatprep.subr.mxu0 0.0
      %5498 = vmatpush1.msra.mxu0 0.0
      %5499 = vmatprep.subr.mxu0 0.0
      %5500 = vmatpush1.msra.mxu0 0.0
      %5501 = vmatprep.subr.mxu0 0.0
      %5502 = vmatpush1.msra.mxu0 0.0
      %5503 = vmatprep.subr.mxu0 0.0
      %5504 = vmatpush1.msra.mxu0 0.0
      %5505 = vmatprep.subr.mxu0 0.0
      %5506 = vmatpush1.msra.mxu0 0.0
      %5507 = vmatprep.subr.mxu0 0.0
      %5508 = vmatpush1.msra.mxu0 0.0
      %5509 = vmatprep.subr.mxu0 0.0
      %5510 = vmatpush1.msra.mxu0 0.0
      %5511 = vmatprep.mubr.f32.mxu0 0.0
      %5512 = vmatmul.mubr.f32.gmra.mrb[0].mxu0 %v5420
      %v5513 = vpop.f32.mrb[0].mxu0
      %v5514 = vadd.f32 0.0, %v5513
      %v5515 = vpop.f32.mrb[0].mxu0
      %5516 = vmatprep.mubr.f32.mxu0 0.0
      %5517 = vmatmul.mubr.f32.gmra.mrb[0].mxu0 %v5423
      %v5518 = vpop.f32.mrb[0].mxu0
      %v5519 = vadd.f32 0.0, %v5518
      %v5520 = vpop.f32.mrb[0].mxu0
      %5521 = vmatprep.mubr.f32.mxu0 0.0
      %5522 = vmatmul.mubr.f32.gmra.mrb[0].mxu0 %v5426
      %v5523 = vpop.f32.mrb[0].mxu0
      %v5524 = vadd.f32 0.0, %v5523
      %v5525 = vpop.f32.mrb[0].mxu0
      %5526 = vmatprep.mubr.f32.mxu0 0.0
      %5527 = vmatmul.mubr.f32.gmra.mrb[0].mxu0 %v5429
      %v5528 = vpop.f32.mrb[0].mxu0
      %v5529 = vadd.f32 0.0, %v5528
      %v5530 = vpop.f32.mrb[0].mxu0
      %5531 = vmatprep.mubr.f32.mxu0 0.0
      %5532 = vmatmul.mubr.f32.gmra.mrb[0].mxu0 %v5432
      %v5533 = vpop.f32.mrb[0].mxu0
      %v5534 = vadd.f32 0.0, %v5533
      %v5535 = vpop.f32.mrb[0].mxu0
      %5536 = vmatprep.mubr.f32.mxu0 0.0
      %5537 = vmatmul.mubr.f32.gmra.mrb[0].mxu0 %v5435
      %v5538 = vpop.f32.mrb[0].mxu0
      %v5539 = vadd.f32 0.0, %v5538
      %v5540 = vpop.f32.mrb[0].mxu0
      %5541 = vmatprep.mubr.f32.mxu0 0.0
      %5542 = vmatmul.mubr.f32.gmra.mrb[0].mxu0 %v5438
      %v5543 = vpop.f32.mrb[0].mxu0
      %v5544 = vadd.f32 0.0, %v5543
      %v5545 = vpop.f32.mrb[0].mxu0
      %5546 = vmatprep.mubr.f32.mxu0 0.0
      %5547 = vmatmul.mubr.f32.gmra.mrb[0].mxu0 %v5441
      %v5548 = vpop.f32.mrb[0].mxu0
      %v5549 = vadd.f32 0.0, %v5548
      %v5550 = vpop.f32.mrb[0].mxu0
      %5551 = vdwg.mxu0
      %v5552 = vadd.f32 %v3204, %v5514
      %5553 = vst.msk [vmem:[#allocation4 + $0xb] sm:$0xff] %vm749, %v5552
      %v5555 = vrot.slane %v5519, 6
      %v5557 = vadd.f32 %v3213, %v5555
      %v5558 = vadd.f32 %v3218, %v5555
      %vm5559 = vcmask 130050
      %5560 = vst.msk [vmem:[#allocation4 + $0x13] sm:$0xfc] %vm5559, %v5557
      %5561 = vst.msk [vmem:[#allocation4 + $0x1b] sm:$0x3] %vm777, %v5558
      %v5563 = vrot.slane %v5524, 4
      %v5565 = vadd.f32 %v3223, %v5563
      %v5566 = vadd.f32 %v3228, %v5563
      %5567 = vst.msk [vmem:[#allocation4 + $0x1b] sm:$0xf0] %vm4382, %v5565
      %5568 = vst.msk [vmem:[#allocation4 + $0x23] sm:$0xf] %vm754, %v5566
      %v5570 = vrot.slane %v5529, 2
      %v5572 = vadd.f32 %v3233, %v5570
      %v5573 = vadd.f32 %v3238, %v5570
      %5574 = vst.msk [vmem:[#allocation4 + $0x23] sm:$0xc0] %vm4384, %v5572
      %5575 = vst.msk [vmem:[#allocation4 + $0x2b] sm:$0x3f] %vm768, %v5573
      %v5576 = vadd.f32 %v3247, %v5534
      %5577 = vst.msk [vmem:[#allocation4 + $0x33] sm:$0xff] %vm749, %v5576
      %v5579 = vrot.slane %v5539, 6
      %v5581 = vadd.f32 %v3256, %v5579
      %v5582 = vadd.f32 %v3261, %v5579
      %5583 = vst.msk [vmem:[#allocation4 + $0x3b] sm:$0xfc] %vm5559, %v5581
      %5584 = vst.msk [vmem:[#allocation4 + $0x43] sm:$0x3] %vm777, %v5582
      %v5586 = vrot.slane %v5544, 4
      %v5588 = vadd.f32 %v3266, %v5586
      %v5589 = vadd.f32 %v3271, %v5586
      %5590 = vst.msk [vmem:[#allocation4 + $0x43] sm:$0xf0] %vm4382, %v5588
      %5591 = vst.msk [vmem:[#allocation4 + $0x4b] sm:$0xf] %vm754, %v5589
      %v5593 = vrot.slane %v5549, 2
      %v5595 = vadd.f32 %v3276, %v5593
      %v5596 = vadd.f32 %v3281, %v5593
      %5597 = vst.msk [vmem:[#allocation4 + $0x4b] sm:$0xc0] %vm4384, %v5595
      %5598 = vst.msk [vmem:[#allocation4 + $0x53] sm:$0x3f] %vm768, %v5596
      %v5599 = vld [vmem:[#allocation4] sm:$0xff]
      %v5600 = vld [vmem:[#allocation4 + $0x8] sm:$0xff]
      %v5601 = vld [vmem:[#allocation4 + $0x10] sm:$0xff]
      %v5602 = vld [vmem:[#allocation4 + $0x18] sm:$0xff]
      %v5603 = vld [vmem:[#allocation4 + $0x20] sm:$0xff]
      %v5604 = vld [vmem:[#allocation4 + $0x28] sm:$0xff]
      %v5605 = vld [vmem:[#allocation4 + $0x30] sm:$0xff]
      %v5606 = vld [vmem:[#allocation4 + $0x38] sm:$0xff]
      %v5607 = vld [vmem:[#allocation4 + $0x40] sm:$0xff]
      %v5608 = vld [vmem:[#allocation4 + $0x48] sm:$0xff]
      %v5609 = vld [vmem:[%s13] sm:$0xff]
      %v5610 = vld [vmem:[%s13 + $0x8] sm:$0xff]
      %v5611 = vld [vmem:[#allocation4 + $0x1] sm:$0xff]
      %v5612 = vld [vmem:[#allocation4 + $0x9] sm:$0xff]
      %v5613 = vld [vmem:[#allocation4 + $0x11] sm:$0xff]
      %v5614 = vld [vmem:[#allocation4 + $0x19] sm:$0xff]
      %v5615 = vld [vmem:[#allocation4 + $0x21] sm:$0xff]
      %v5616 = vld [vmem:[#allocation4 + $0x29] sm:$0xff]
      %v5617 = vld [vmem:[#allocation4 + $0x31] sm:$0xff]
      %v5618 = vld [vmem:[#allocation4 + $0x39] sm:$0xff]
      %v5619 = vld [vmem:[#allocation4 + $0x41] sm:$0xff]
      %v5620 = vld [vmem:[#allocation4 + $0x49] sm:$0xff]
      %v5621 = vld [vmem:[%s13 + $0x10] sm:$0xff]
      %v5622 = vld [vmem:[%s13 + $0x18] sm:$0xff]
      %v5624 = vsel %vm749, %v5611, 0
      %v5627 = vsel %vm749, %v5612, 0
      %v5630 = vsel %vm749, %v5613, 0
      %v5633 = vsel %vm749, %v5614, 0
      %v5636 = vsel %vm749, %v5615, 0
      %v5639 = vsel %vm749, %v5616, 0
      %v5642 = vsel %vm749, %v5617, 0
      %v5645 = vsel %vm749, %v5618, 0
      %v5648 = vsel %vm749, %v5619, 0
      %v5651 = vsel %vm749, %v5620, 0
      %5653 = vmatprep.subr.mxu0 0.0
      %5654 = vmatpush1.msra.mxu0 %v5621
      %5655 = vmatprep.subr.mxu0 0.0
      %5656 = vmatpush1.msra.mxu0 %v5622
      %5657 = vmatprep.subr.mxu0 0.0
      %5658 = vmatpush1.msra.mxu0 0.0
      %5659 = vmatprep.subr.mxu0 0.0
      %5660 = vmatpush1.msra.mxu0 0.0
      %5661 = vmatprep.subr.mxu0 0.0
      %5662 = vmatpush1.msra.mxu0 0.0
      %5663 = vmatprep.subr.mxu0 0.0
      %5664 = vmatpush1.msra.mxu0 0.0
      %5665 = vmatprep.subr.mxu0 0.0
      %5666 = vmatpush1.msra.mxu0 0.0
      %5667 = vmatprep.subr.mxu0 0.0
      %5668 = vmatpush1.msra.mxu0 0.0
      %5669 = vmatprep.subr.mxu0 0.0
      %5670 = vmatpush1.msra.mxu0 0.0
      %5671 = vmatprep.subr.mxu0 0.0
      %5672 = vmatpush1.msra.mxu0 0.0
      %5673 = vmatprep.subr.mxu0 0.0
      %5674 = vmatpush1.msra.mxu0 0.0
      %5675 = vmatprep.subr.mxu0 0.0
      %5676 = vmatpush1.msra.mxu0 0.0
      %5677 = vmatprep.subr.mxu0 0.0
      %5678 = vmatpush1.msra.mxu0 0.0
      %5679 = vmatprep.subr.mxu0 0.0
      %5680 = vmatpush1.msra.mxu0 0.0
      %5681 = vmatprep.subr.mxu0 0.0
      %5682 = vmatpush1.msra.mxu0 0.0
      %5683 = vmatprep.subr.mxu0 0.0
      %5684 = vmatpush1.msra.mxu0 0.0
      %5685 = vmatprep.subr.mxu0 0.0
      %5686 = vmatpush1.msra.mxu0 0.0
      %5687 = vmatprep.subr.mxu0 0.0
      %5688 = vmatpush1.msra.mxu0 0.0
      %5689 = vmatprep.subr.mxu0 0.0
      %5690 = vmatpush1.msra.mxu0 0.0
      %5691 = vmatprep.subr.mxu0 0.0
      %5692 = vmatpush1.msra.mxu0 0.0
      %5693 = vmatprep.subr.mxu0 0.0
      %5694 = vmatpush1.msra.mxu0 0.0
      %5695 = vmatprep.subr.mxu0 0.0
      %5696 = vmatpush1.msra.mxu0 0.0
      %5697 = vmatprep.subr.mxu0 0.0
      %5698 = vmatpush1.msra.mxu0 0.0
      %5699 = vmatprep.subr.mxu0 0.0
      %5700 = vmatpush1.msra.mxu0 0.0
      %5701 = vmatprep.subr.mxu0 0.0
      %5702 = vmatpush1.msra.mxu0 0.0
      %5703 = vmatprep.subr.mxu0 0.0
      %5704 = vmatpush1.msra.mxu0 0.0
      %5705 = vmatprep.subr.mxu0 0.0
      %5706 = vmatpush1.msra.mxu0 0.0
      %5707 = vmatprep.subr.mxu0 0.0
      %5708 = vmatpush1.msra.mxu0 0.0
      %5709 = vmatprep.subr.mxu0 0.0
      %5710 = vmatpush1.msra.mxu0 0.0
      %5711 = vmatprep.subr.mxu0 0.0
      %5712 = vmatpush1.msra.mxu0 0.0
      %5713 = vmatprep.subr.mxu0 0.0
      %5714 = vmatpush1.msra.mxu0 0.0
      %5715 = vmatprep.subr.mxu0 0.0
      %5716 = vmatpush1.msra.mxu0 0.0
      %5717 = vmatprep.mubr.f32.mxu0 0.0
      %5718 = vmatmul.mubr.f32.gmra.mrb[0].mxu0 %v5624
      %v5719 = vpop.f32.mrb[0].mxu0
      %v5720 = vadd.f32 0.0, %v5719
      %v5721 = vpop.f32.mrb[0].mxu0
      %5722 = vmatprep.mubr.f32.mxu0 0.0
      %5723 = vmatmul.mubr.f32.gmra.mrb[0].mxu0 %v5627
      %v5724 = vpop.f32.mrb[0].mxu0
      %v5725 = vadd.f32 0.0, %v5724
      %v5726 = vpop.f32.mrb[0].mxu0
      %5727 = vmatprep.mubr.f32.mxu0 0.0
      %5728 = vmatmul.mubr.f32.gmra.mrb[0].mxu0 %v5630
      %v5729 = vpop.f32.mrb[0].mxu0
      %v5730 = vadd.f32 0.0, %v5729
      %v5731 = vpop.f32.mrb[0].mxu0
      %5732 = vmatprep.mubr.f32.mxu0 0.0
      %5733 = vmatmul.mubr.f32.gmra.mrb[0].mxu0 %v5633
      %v5734 = vpop.f32.mrb[0].mxu0
      %v5735 = vadd.f32 0.0, %v5734
      %v5736 = vpop.f32.mrb[0].mxu0
      %5737 = vmatprep.mubr.f32.mxu0 0.0
      %5738 = vmatmul.mubr.f32.gmra.mrb[0].mxu0 %v5636
      %v5739 = vpop.f32.mrb[0].mxu0
      %v5740 = vadd.f32 0.0, %v5739
      %v5741 = vpop.f32.mrb[0].mxu0
      %5742 = vmatprep.mubr.f32.mxu0 0.0
      %5743 = vmatmul.mubr.f32.gmra.mrb[0].mxu0 %v5639
      %v5744 = vpop.f32.mrb[0].mxu0
      %v5745 = vadd.f32 0.0, %v5744
      %v5746 = vpop.f32.mrb[0].mxu0
      %5747 = vmatprep.mubr.f32.mxu0 0.0
      %5748 = vmatmul.mubr.f32.gmra.mrb[0].mxu0 %v5642
      %v5749 = vpop.f32.mrb[0].mxu0
      %v5750 = vadd.f32 0.0, %v5749
      %v5751 = vpop.f32.mrb[0].mxu0
      %5752 = vmatprep.mubr.f32.mxu0 0.0
      %5753 = vmatmul.mubr.f32.gmra.mrb[0].mxu0 %v5645
      %v5754 = vpop.f32.mrb[0].mxu0
      %v5755 = vadd.f32 0.0, %v5754
      %v5756 = vpop.f32.mrb[0].mxu0
      %5757 = vmatprep.mubr.f32.mxu0 0.0
      %5758 = vmatmul.mubr.f32.gmra.mrb[0].mxu0 %v5648
      %v5759 = vpop.f32.mrb[0].mxu0
      %v5760 = vadd.f32 0.0, %v5759
      %v5761 = vpop.f32.mrb[0].mxu0
      %5762 = vmatprep.mubr.f32.mxu0 0.0
      %5763 = vmatmul.mubr.f32.gmra.mrb[0].mxu0 %v5651
      %v5764 = vpop.f32.mrb[0].mxu0
      %v5765 = vadd.f32 0.0, %v5764
      %v5766 = vpop.f32.mrb[0].mxu0
      %5767 = vdwg.mxu0
      %v5769 = vsel %vm749, %v5599, 0
      %v5772 = vsel %vm749, %v5600, 0
      %v5775 = vsel %vm749, %v5601, 0
      %v5778 = vsel %vm749, %v5602, 0
      %v5781 = vsel %vm749, %v5603, 0
      %v5784 = vsel %vm749, %v5604, 0
      %v5787 = vsel %vm749, %v5605, 0
      %v5790 = vsel %vm749, %v5606, 0
      %v5793 = vsel %vm749, %v5607, 0
      %v5796 = vsel %vm749, %v5608, 0
      %5798 = vmatprep.subr.mxu0 0.0
      %5799 = vmatpush1.msra.mxu0 %v5609
      %5800 = vmatprep.subr.mxu0 0.0
      %5801 = vmatpush1.msra.mxu0 %v5610
      %5802 = vmatprep.subr.mxu0 0.0
      %5803 = vmatpush1.msra.mxu0 0.0
      %5804 = vmatprep.subr.mxu0 0.0
      %5805 = vmatpush1.msra.mxu0 0.0
      %5806 = vmatprep.subr.mxu0 0.0
      %5807 = vmatpush1.msra.mxu0 0.0
      %5808 = vmatprep.subr.mxu0 0.0
      %5809 = vmatpush1.msra.mxu0 0.0
      %5810 = vmatprep.subr.mxu0 0.0
      %5811 = vmatpush1.msra.mxu0 0.0
      %5812 = vmatprep.subr.mxu0 0.0
      %5813 = vmatpush1.msra.mxu0 0.0
      %5814 = vmatprep.subr.mxu0 0.0
      %5815 = vmatpush1.msra.mxu0 0.0
      %5816 = vmatprep.subr.mxu0 0.0
      %5817 = vmatpush1.msra.mxu0 0.0
      %5818 = vmatprep.subr.mxu0 0.0
      %5819 = vmatpush1.msra.mxu0 0.0
      %5820 = vmatprep.subr.mxu0 0.0
      %5821 = vmatpush1.msra.mxu0 0.0
      %5822 = vmatprep.subr.mxu0 0.0
      %5823 = vmatpush1.msra.mxu0 0.0
      %5824 = vmatprep.subr.mxu0 0.0
      %5825 = vmatpush1.msra.mxu0 0.0
      %5826 = vmatprep.subr.mxu0 0.0
      %5827 = vmatpush1.msra.mxu0 0.0
      %5828 = vmatprep.subr.mxu0 0.0
      %5829 = vmatpush1.msra.mxu0 0.0
      %5830 = vmatprep.subr.mxu0 0.0
      %5831 = vmatpush1.msra.mxu0 0.0
      %5832 = vmatprep.subr.mxu0 0.0
      %5833 = vmatpush1.msra.mxu0 0.0
      %5834 = vmatprep.subr.mxu0 0.0
      %5835 = vmatpush1.msra.mxu0 0.0
      %5836 = vmatprep.subr.mxu0 0.0
      %5837 = vmatpush1.msra.mxu0 0.0
      %5838 = vmatprep.subr.mxu0 0.0
      %5839 = vmatpush1.msra.mxu0 0.0
      %5840 = vmatprep.subr.mxu0 0.0
      %5841 = vmatpush1.msra.mxu0 0.0
      %5842 = vmatprep.subr.mxu0 0.0
      %5843 = vmatpush1.msra.mxu0 0.0
      %5844 = vmatprep.subr.mxu0 0.0
      %5845 = vmatpush1.msra.mxu0 0.0
      %5846 = vmatprep.subr.mxu0 0.0
      %5847 = vmatpush1.msra.mxu0 0.0
      %5848 = vmatprep.subr.mxu0 0.0
      %5849 = vmatpush1.msra.mxu0 0.0
      %5850 = vmatprep.subr.mxu0 0.0
      %5851 = vmatpush1.msra.mxu0 0.0
      %5852 = vmatprep.subr.mxu0 0.0
      %5853 = vmatpush1.msra.mxu0 0.0
      %5854 = vmatprep.subr.mxu0 0.0
      %5855 = vmatpush1.msra.mxu0 0.0
      %5856 = vmatprep.subr.mxu0 0.0
      %5857 = vmatpush1.msra.mxu0 0.0
      %5858 = vmatprep.subr.mxu0 0.0
      %5859 = vmatpush1.msra.mxu0 0.0
      %5860 = vmatprep.subr.mxu0 0.0
      %5861 = vmatpush1.msra.mxu0 0.0
      %5862 = vmatprep.mubr.f32.mxu0 0.0
      %5863 = vmatmul.mubr.f32.gmra.mrb[0].mxu0 %v5769
      %v5864 = vpop.f32.mrb[0].mxu0
      %v5865 = vadd.f32 %v5720, %v5864
      %v5866 = vpop.f32.mrb[0].mxu0
      %5867 = vmatprep.mubr.f32.mxu0 0.0
      %5868 = vmatmul.mubr.f32.gmra.mrb[0].mxu0 %v5772
      %v5869 = vpop.f32.mrb[0].mxu0
      %v5870 = vadd.f32 %v5725, %v5869
      %v5871 = vpop.f32.mrb[0].mxu0
      %5872 = vmatprep.mubr.f32.mxu0 0.0
      %5873 = vmatmul.mubr.f32.gmra.mrb[0].mxu0 %v5775
      %v5874 = vpop.f32.mrb[0].mxu0
      %v5875 = vadd.f32 %v5730, %v5874
      %v5876 = vpop.f32.mrb[0].mxu0
      %5877 = vmatprep.mubr.f32.mxu0 0.0
      %5878 = vmatmul.mubr.f32.gmra.mrb[0].mxu0 %v5778
      %v5879 = vpop.f32.mrb[0].mxu0
      %v5880 = vadd.f32 %v5735, %v5879
      %v5881 = vpop.f32.mrb[0].mxu0
      %5882 = vmatprep.mubr.f32.mxu0 0.0
      %5883 = vmatmul.mubr.f32.gmra.mrb[0].mxu0 %v5781
      %v5884 = vpop.f32.mrb[0].mxu0
      %v5885 = vadd.f32 %v5740, %v5884
      %v5886 = vpop.f32.mrb[0].mxu0
      %5887 = vmatprep.mubr.f32.mxu0 0.0
      %5888 = vmatmul.mubr.f32.gmra.mrb[0].mxu0 %v5784
      %v5889 = vpop.f32.mrb[0].mxu0
      %v5890 = vadd.f32 %v5745, %v5889
      %v5891 = vpop.f32.mrb[0].mxu0
      %5892 = vmatprep.mubr.f32.mxu0 0.0
      %5893 = vmatmul.mubr.f32.gmra.mrb[0].mxu0 %v5787
      %v5894 = vpop.f32.mrb[0].mxu0
      %v5895 = vadd.f32 %v5750, %v5894
      %v5896 = vpop.f32.mrb[0].mxu0
      %5897 = vmatprep.mubr.f32.mxu0 0.0
      %5898 = vmatmul.mubr.f32.gmra.mrb[0].mxu0 %v5790
      %v5899 = vpop.f32.mrb[0].mxu0
      %v5900 = vadd.f32 %v5755, %v5899
      %v5901 = vpop.f32.mrb[0].mxu0
      %5902 = vmatprep.mubr.f32.mxu0 0.0
      %5903 = vmatmul.mubr.f32.gmra.mrb[0].mxu0 %v5793
      %v5904 = vpop.f32.mrb[0].mxu0
      %v5905 = vadd.f32 %v5760, %v5904
      %v5906 = vpop.f32.mrb[0].mxu0
      %5907 = vmatprep.mubr.f32.mxu0 0.0
      %5908 = vmatmul.mubr.f32.gmra.mrb[0].mxu0 %v5796
      %v5909 = vpop.f32.mrb[0].mxu0
      %v5910 = vadd.f32 %v5765, %v5909
      %v5911 = vpop.f32.mrb[0].mxu0
      %5912 = vdwg.mxu0
      %v5913 = vld [vmem:[#allocation4 + $0x2] sm:$0xff]
      %v5914 = vld [vmem:[#allocation4 + $0xa] sm:$0xff]
      %v5915 = vld [vmem:[#allocation4 + $0x12] sm:$0xff]
      %v5916 = vld [vmem:[#allocation4 + $0x1a] sm:$0xff]
      %v5917 = vld [vmem:[#allocation4 + $0x22] sm:$0xff]
      %v5918 = vld [vmem:[#allocation4 + $0x2a] sm:$0xff]
      %v5919 = vld [vmem:[#allocation4 + $0x32] sm:$0xff]
      %v5920 = vld [vmem:[#allocation4 + $0x3a] sm:$0xff]
      %v5921 = vld [vmem:[#allocation4 + $0x42] sm:$0xff]
      %v5922 = vld [vmem:[#allocation4 + $0x4a] sm:$0xff]
      %v5923 = vld [vmem:[%s13 + $0x20] sm:$0xff]
      %v5924 = vld [vmem:[%s13 + $0x28] sm:$0xff]
      %v5926 = vsel %vm749, %v5913, 0
      %v5929 = vsel %vm749, %v5914, 0
      %v5932 = vsel %vm749, %v5915, 0
      %v5935 = vsel %vm749, %v5916, 0
      %v5938 = vsel %vm749, %v5917, 0
      %v5941 = vsel %vm749, %v5918, 0
      %v5944 = vsel %vm749, %v5919, 0
      %v5947 = vsel %vm749, %v5920, 0
      %v5950 = vsel %vm749, %v5921, 0
      %v5953 = vsel %vm749, %v5922, 0
      %5955 = vmatprep.subr.mxu0 0.0
      %5956 = vmatpush1.msra.mxu0 %v5923
      %5957 = vmatprep.subr.mxu0 0.0
      %5958 = vmatpush1.msra.mxu0 %v5924
      %5959 = vmatprep.subr.mxu0 0.0
      %5960 = vmatpush1.msra.mxu0 0.0
      %5961 = vmatprep.subr.mxu0 0.0
      %5962 = vmatpush1.msra.mxu0 0.0
      %5963 = vmatprep.subr.mxu0 0.0
      %5964 = vmatpush1.msra.mxu0 0.0
      %5965 = vmatprep.subr.mxu0 0.0
      %5966 = vmatpush1.msra.mxu0 0.0
      %5967 = vmatprep.subr.mxu0 0.0
      %5968 = vmatpush1.msra.mxu0 0.0
      %5969 = vmatprep.subr.mxu0 0.0
      %5970 = vmatpush1.msra.mxu0 0.0
      %5971 = vmatprep.subr.mxu0 0.0
      %5972 = vmatpush1.msra.mxu0 0.0
      %5973 = vmatprep.subr.mxu0 0.0
      %5974 = vmatpush1.msra.mxu0 0.0
      %5975 = vmatprep.subr.mxu0 0.0
      %5976 = vmatpush1.msra.mxu0 0.0
      %5977 = vmatprep.subr.mxu0 0.0
      %5978 = vmatpush1.msra.mxu0 0.0
      %5979 = vmatprep.subr.mxu0 0.0
      %5980 = vmatpush1.msra.mxu0 0.0
      %5981 = vmatprep.subr.mxu0 0.0
      %5982 = vmatpush1.msra.mxu0 0.0
      %5983 = vmatprep.subr.mxu0 0.0
      %5984 = vmatpush1.msra.mxu0 0.0
      %5985 = vmatprep.subr.mxu0 0.0
      %5986 = vmatpush1.msra.mxu0 0.0
      %5987 = vmatprep.subr.mxu0 0.0
      %5988 = vmatpush1.msra.mxu0 0.0
      %5989 = vmatprep.subr.mxu0 0.0
      %5990 = vmatpush1.msra.mxu0 0.0
      %5991 = vmatprep.subr.mxu0 0.0
      %5992 = vmatpush1.msra.mxu0 0.0
      %5993 = vmatprep.subr.mxu0 0.0
      %5994 = vmatpush1.msra.mxu0 0.0
      %5995 = vmatprep.subr.mxu0 0.0
      %5996 = vmatpush1.msra.mxu0 0.0
      %5997 = vmatprep.subr.mxu0 0.0
      %5998 = vmatpush1.msra.mxu0 0.0
      %5999 = vmatprep.subr.mxu0 0.0
      %6000 = vmatpush1.msra.mxu0 0.0
      %6001 = vmatprep.subr.mxu0 0.0
      %6002 = vmatpush1.msra.mxu0 0.0
      %6003 = vmatprep.subr.mxu0 0.0
      %6004 = vmatpush1.msra.mxu0 0.0
      %6005 = vmatprep.subr.mxu0 0.0
      %6006 = vmatpush1.msra.mxu0 0.0
      %6007 = vmatprep.subr.mxu0 0.0
      %6008 = vmatpush1.msra.mxu0 0.0
      %6009 = vmatprep.subr.mxu0 0.0
      %6010 = vmatpush1.msra.mxu0 0.0
      %6011 = vmatprep.subr.mxu0 0.0
      %6012 = vmatpush1.msra.mxu0 0.0
      %6013 = vmatprep.subr.mxu0 0.0
      %6014 = vmatpush1.msra.mxu0 0.0
      %6015 = vmatprep.subr.mxu0 0.0
      %6016 = vmatpush1.msra.mxu0 0.0
      %6017 = vmatprep.subr.mxu0 0.0
      %6018 = vmatpush1.msra.mxu0 0.0
      %6019 = vmatprep.mubr.f32.mxu0 0.0
      %6020 = vmatmul.mubr.f32.gmra.mrb[0].mxu0 %v5926
      %v6021 = vpop.f32.mrb[0].mxu0
      %v6022 = vadd.f32 0.0, %v6021
      %v6023 = vpop.f32.mrb[0].mxu0
      %6024 = vmatprep.mubr.f32.mxu0 0.0
      %6025 = vmatmul.mubr.f32.gmra.mrb[0].mxu0 %v5929
      %v6026 = vpop.f32.mrb[0].mxu0
      %v6027 = vadd.f32 0.0, %v6026
      %v6028 = vpop.f32.mrb[0].mxu0
      %6029 = vmatprep.mubr.f32.mxu0 0.0
      %6030 = vmatmul.mubr.f32.gmra.mrb[0].mxu0 %v5932
      %v6031 = vpop.f32.mrb[0].mxu0
      %v6032 = vadd.f32 0.0, %v6031
      %v6033 = vpop.f32.mrb[0].mxu0
      %6034 = vmatprep.mubr.f32.mxu0 0.0
      %6035 = vmatmul.mubr.f32.gmra.mrb[0].mxu0 %v5935
      %v6036 = vpop.f32.mrb[0].mxu0
      %v6037 = vadd.f32 0.0, %v6036
      %v6038 = vpop.f32.mrb[0].mxu0
      %6039 = vmatprep.mubr.f32.mxu0 0.0
      %6040 = vmatmul.mubr.f32.gmra.mrb[0].mxu0 %v5938
      %v6041 = vpop.f32.mrb[0].mxu0
      %v6042 = vadd.f32 0.0, %v6041
      %v6043 = vpop.f32.mrb[0].mxu0
      %6044 = vmatprep.mubr.f32.mxu0 0.0
      %6045 = vmatmul.mubr.f32.gmra.mrb[0].mxu0 %v5941
      %v6046 = vpop.f32.mrb[0].mxu0
      %v6047 = vadd.f32 0.0, %v6046
      %v6048 = vpop.f32.mrb[0].mxu0
      %6049 = vmatprep.mubr.f32.mxu0 0.0
      %6050 = vmatmul.mubr.f32.gmra.mrb[0].mxu0 %v5944
      %v6051 = vpop.f32.mrb[0].mxu0
      %v6052 = vadd.f32 0.0, %v6051
      %v6053 = vpop.f32.mrb[0].mxu0
      %6054 = vmatprep.mubr.f32.mxu0 0.0
      %6055 = vmatmul.mubr.f32.gmra.mrb[0].mxu0 %v5947
      %v6056 = vpop.f32.mrb[0].mxu0
      %v6057 = vadd.f32 0.0, %v6056
      %v6058 = vpop.f32.mrb[0].mxu0
      %6059 = vmatprep.mubr.f32.mxu0 0.0
      %6060 = vmatmul.mubr.f32.gmra.mrb[0].mxu0 %v5950
      %v6061 = vpop.f32.mrb[0].mxu0
      %v6062 = vadd.f32 0.0, %v6061
      %v6063 = vpop.f32.mrb[0].mxu0
      %6064 = vmatprep.mubr.f32.mxu0 0.0
      %6065 = vmatmul.mubr.f32.gmra.mrb[0].mxu0 %v5953
      %v6066 = vpop.f32.mrb[0].mxu0
      %v6067 = vadd.f32 0.0, %v6066
      %v6068 = vpop.f32.mrb[0].mxu0
      %6069 = vdwg.mxu0
      %v6070 = vadd.f32 %v5865, %v6022
      %v6071 = vadd.f32 %v5870, %v6027
      %v6072 = vadd.f32 %v5875, %v6032
      %v6073 = vadd.f32 %v5880, %v6037
      %v6074 = vadd.f32 %v5885, %v6042
      %v6075 = vadd.f32 %v5890, %v6047
      %v6076 = vadd.f32 %v5895, %v6052
      %v6077 = vadd.f32 %v5900, %v6057
      %v6078 = vadd.f32 %v5905, %v6062
      %v6079 = vadd.f32 %v5910, %v6067
      %v6080 = vld [vmem:[#allocation4 + $0xa] sm:$0xff]
      %v6081 = vld [vmem:[#allocation4 + $0x12] sm:$0xff]
      %v6082 = vld [vmem:[#allocation4 + $0x1a] sm:$0xff]
      %v6083 = vld [vmem:[#allocation4 + $0x22] sm:$0xff]
      %v6084 = vld [vmem:[#allocation4 + $0x2a] sm:$0xff]
      %v6085 = vld [vmem:[#allocation4 + $0x32] sm:$0xff]
      %v6086 = vld [vmem:[#allocation4 + $0x3a] sm:$0xff]
      %v6087 = vld [vmem:[#allocation4 + $0x42] sm:$0xff]
      %v6088 = vld [vmem:[#allocation4 + $0x4a] sm:$0xff]
      %v6089 = vld [vmem:[#allocation4 + $0x52] sm:$0xff]
      %v6090 = vld [vmem:[%s13 + $0x30] sm:$0xff]
      %v6091 = vld [vmem:[%s13 + $0x38] sm:$0xff]
      %v6093 = vsel %vm749, %v6080, 0
      %v6096 = vsel %vm749, %v6081, 0
      %v6099 = vsel %vm749, %v6082, 0
      %v6102 = vsel %vm749, %v6083, 0
      %v6105 = vsel %vm749, %v6084, 0
      %v6108 = vsel %vm749, %v6085, 0
      %v6111 = vsel %vm749, %v6086, 0
      %v6114 = vsel %vm749, %v6087, 0
      %v6117 = vsel %vm749, %v6088, 0
      %v6120 = vsel %vm749, %v6089, 0
      %6122 = vmatprep.subr.mxu0 0.0
      %6123 = vmatpush1.msra.mxu0 %v6090
      %6124 = vmatprep.subr.mxu0 0.0
      %6125 = vmatpush1.msra.mxu0 %v6091
      %6126 = vmatprep.subr.mxu0 0.0
      %6127 = vmatpush1.msra.mxu0 0.0
      %6128 = vmatprep.subr.mxu0 0.0
      %6129 = vmatpush1.msra.mxu0 0.0
      %6130 = vmatprep.subr.mxu0 0.0
      %6131 = vmatpush1.msra.mxu0 0.0
      %6132 = vmatprep.subr.mxu0 0.0
      %6133 = vmatpush1.msra.mxu0 0.0
      %6134 = vmatprep.subr.mxu0 0.0
      %6135 = vmatpush1.msra.mxu0 0.0
      %6136 = vmatprep.subr.mxu0 0.0
      %6137 = vmatpush1.msra.mxu0 0.0
      %6138 = vmatprep.subr.mxu0 0.0
      %6139 = vmatpush1.msra.mxu0 0.0
      %6140 = vmatprep.subr.mxu0 0.0
      %6141 = vmatpush1.msra.mxu0 0.0
      %6142 = vmatprep.subr.mxu0 0.0
      %6143 = vmatpush1.msra.mxu0 0.0
      %6144 = vmatprep.subr.mxu0 0.0
      %6145 = vmatpush1.msra.mxu0 0.0
      %6146 = vmatprep.subr.mxu0 0.0
      %6147 = vmatpush1.msra.mxu0 0.0
      %6148 = vmatprep.subr.mxu0 0.0
      %6149 = vmatpush1.msra.mxu0 0.0
      %6150 = vmatprep.subr.mxu0 0.0
      %6151 = vmatpush1.msra.mxu0 0.0
      %6152 = vmatprep.subr.mxu0 0.0
      %6153 = vmatpush1.msra.mxu0 0.0
      %6154 = vmatprep.subr.mxu0 0.0
      %6155 = vmatpush1.msra.mxu0 0.0
      %6156 = vmatprep.subr.mxu0 0.0
      %6157 = vmatpush1.msra.mxu0 0.0
      %6158 = vmatprep.subr.mxu0 0.0
      %6159 = vmatpush1.msra.mxu0 0.0
      %6160 = vmatprep.subr.mxu0 0.0
      %6161 = vmatpush1.msra.mxu0 0.0
      %6162 = vmatprep.subr.mxu0 0.0
      %6163 = vmatpush1.msra.mxu0 0.0
      %6164 = vmatprep.subr.mxu0 0.0
      %6165 = vmatpush1.msra.mxu0 0.0
      %6166 = vmatprep.subr.mxu0 0.0
      %6167 = vmatpush1.msra.mxu0 0.0
      %6168 = vmatprep.subr.mxu0 0.0
      %6169 = vmatpush1.msra.mxu0 0.0
      %6170 = vmatprep.subr.mxu0 0.0
      %6171 = vmatpush1.msra.mxu0 0.0
      %6172 = vmatprep.subr.mxu0 0.0
      %6173 = vmatpush1.msra.mxu0 0.0
      %6174 = vmatprep.subr.mxu0 0.0
      %6175 = vmatpush1.msra.mxu0 0.0
      %6176 = vmatprep.subr.mxu0 0.0
      %6177 = vmatpush1.msra.mxu0 0.0
      %6178 = vmatprep.subr.mxu0 0.0
      %6179 = vmatpush1.msra.mxu0 0.0
      %6180 = vmatprep.subr.mxu0 0.0
      %6181 = vmatpush1.msra.mxu0 0.0
      %6182 = vmatprep.subr.mxu0 0.0
      %6183 = vmatpush1.msra.mxu0 0.0
      %6184 = vmatprep.subr.mxu0 0.0
      %6185 = vmatpush1.msra.mxu0 0.0
      %6186 = vmatprep.mubr.f32.mxu0 0.0
      %6187 = vmatmul.mubr.f32.gmra.mrb[0].mxu0 %v6093
      %v6188 = vpop.f32.mrb[0].mxu0
      %v6189 = vadd.f32 0.0, %v6188
      %v6190 = vpop.f32.mrb[0].mxu0
      %6191 = vmatprep.mubr.f32.mxu0 0.0
      %6192 = vmatmul.mubr.f32.gmra.mrb[0].mxu0 %v6096
      %v6193 = vpop.f32.mrb[0].mxu0
      %v6194 = vadd.f32 0.0, %v6193
      %v6195 = vpop.f32.mrb[0].mxu0
      %6196 = vmatprep.mubr.f32.mxu0 0.0
      %6197 = vmatmul.mubr.f32.gmra.mrb[0].mxu0 %v6099
      %v6198 = vpop.f32.mrb[0].mxu0
      %v6199 = vadd.f32 0.0, %v6198
      %v6200 = vpop.f32.mrb[0].mxu0
      %6201 = vmatprep.mubr.f32.mxu0 0.0
      %6202 = vmatmul.mubr.f32.gmra.mrb[0].mxu0 %v6102
      %v6203 = vpop.f32.mrb[0].mxu0
      %v6204 = vadd.f32 0.0, %v6203
      %v6205 = vpop.f32.mrb[0].mxu0
      %6206 = vmatprep.mubr.f32.mxu0 0.0
      %6207 = vmatmul.mubr.f32.gmra.mrb[0].mxu0 %v6105
      %v6208 = vpop.f32.mrb[0].mxu0
      %v6209 = vadd.f32 0.0, %v6208
      %v6210 = vpop.f32.mrb[0].mxu0
      %6211 = vmatprep.mubr.f32.mxu0 0.0
      %6212 = vmatmul.mubr.f32.gmra.mrb[0].mxu0 %v6108
      %v6213 = vpop.f32.mrb[0].mxu0
      %v6214 = vadd.f32 0.0, %v6213
      %v6215 = vpop.f32.mrb[0].mxu0
      %6216 = vmatprep.mubr.f32.mxu0 0.0
      %6217 = vmatmul.mubr.f32.gmra.mrb[0].mxu0 %v6111
      %v6218 = vpop.f32.mrb[0].mxu0
      %v6219 = vadd.f32 0.0, %v6218
      %v6220 = vpop.f32.mrb[0].mxu0
      %6221 = vmatprep.mubr.f32.mxu0 0.0
      %6222 = vmatmul.mubr.f32.gmra.mrb[0].mxu0 %v6114
      %v6223 = vpop.f32.mrb[0].mxu0
      %v6224 = vadd.f32 0.0, %v6223
      %v6225 = vpop.f32.mrb[0].mxu0
      %6226 = vmatprep.mubr.f32.mxu0 0.0
      %6227 = vmatmul.mubr.f32.gmra.mrb[0].mxu0 %v6117
      %v6228 = vpop.f32.mrb[0].mxu0
      %v6229 = vadd.f32 0.0, %v6228
      %v6230 = vpop.f32.mrb[0].mxu0
      %6231 = vmatprep.mubr.f32.mxu0 0.0
      %6232 = vmatmul.mubr.f32.gmra.mrb[0].mxu0 %v6120
      %v6233 = vpop.f32.mrb[0].mxu0
      %v6234 = vadd.f32 0.0, %v6233
      %v6235 = vpop.f32.mrb[0].mxu0
      %6236 = vdwg.mxu0
      %v6237 = vadd.f32 %v6070, %v6189
      %v6238 = vadd.f32 %v6071, %v6194
      %v6239 = vadd.f32 %v6072, %v6199
      %v6240 = vadd.f32 %v6073, %v6204
      %v6241 = vadd.f32 %v6074, %v6209
      %v6242 = vadd.f32 %v6075, %v6214
      %v6243 = vadd.f32 %v6076, %v6219
      %v6244 = vadd.f32 %v6077, %v6224
      %v6245 = vadd.f32 %v6078, %v6229
      %v6246 = vadd.f32 %v6079, %v6234
      %v6247 = vld [vmem:[#allocation4 + $0xb] sm:$0xff]
      %v6248 = vld [vmem:[#allocation4 + $0x13] sm:$0xff]
      %v6249 = vld [vmem:[#allocation4 + $0x1b] sm:$0xff]
      %v6250 = vld [vmem:[#allocation4 + $0x23] sm:$0xff]
      %v6251 = vld [vmem:[#allocation4 + $0x2b] sm:$0xff]
      %v6252 = vld [vmem:[#allocation4 + $0x33] sm:$0xff]
      %v6253 = vld [vmem:[#allocation4 + $0x3b] sm:$0xff]
      %v6254 = vld [vmem:[#allocation4 + $0x43] sm:$0xff]
      %v6255 = vld [vmem:[#allocation4 + $0x4b] sm:$0xff]
      %v6256 = vld [vmem:[#allocation4 + $0x53] sm:$0xff]
      %v6257 = vld [vmem:[%s13 + $0x40] sm:$0xff]
      %v6258 = vld [vmem:[%s13 + $0x48] sm:$0xff]
      %v6260 = vsel %vm749, %v6247, 0
      %v6263 = vsel %vm749, %v6248, 0
      %v6266 = vsel %vm749, %v6249, 0
      %v6269 = vsel %vm749, %v6250, 0
      %v6272 = vsel %vm749, %v6251, 0
      %v6275 = vsel %vm749, %v6252, 0
      %v6278 = vsel %vm749, %v6253, 0
      %v6281 = vsel %vm749, %v6254, 0
      %v6284 = vsel %vm749, %v6255, 0
      %v6287 = vsel %vm749, %v6256, 0
      %6289 = vmatprep.subr.mxu0 0.0
      %6290 = vmatpush1.msra.mxu0 %v6257
      %6291 = vmatprep.subr.mxu0 0.0
      %6292 = vmatpush1.msra.mxu0 %v6258
      %6293 = vmatprep.subr.mxu0 0.0
      %6294 = vmatpush1.msra.mxu0 0.0
      %6295 = vmatprep.subr.mxu0 0.0
      %6296 = vmatpush1.msra.mxu0 0.0
      %6297 = vmatprep.subr.mxu0 0.0
      %6298 = vmatpush1.msra.mxu0 0.0
      %6299 = vmatprep.subr.mxu0 0.0
      %6300 = vmatpush1.msra.mxu0 0.0
      %6301 = vmatprep.subr.mxu0 0.0
      %6302 = vmatpush1.msra.mxu0 0.0
      %6303 = vmatprep.subr.mxu0 0.0
      %6304 = vmatpush1.msra.mxu0 0.0
      %6305 = vmatprep.subr.mxu0 0.0
      %6306 = vmatpush1.msra.mxu0 0.0
      %6307 = vmatprep.subr.mxu0 0.0
      %6308 = vmatpush1.msra.mxu0 0.0
      %6309 = vmatprep.subr.mxu0 0.0
      %6310 = vmatpush1.msra.mxu0 0.0
      %6311 = vmatprep.subr.mxu0 0.0
      %6312 = vmatpush1.msra.mxu0 0.0
      %6313 = vmatprep.subr.mxu0 0.0
      %6314 = vmatpush1.msra.mxu0 0.0
      %6315 = vmatprep.subr.mxu0 0.0
      %6316 = vmatpush1.msra.mxu0 0.0
      %6317 = vmatprep.subr.mxu0 0.0
      %6318 = vmatpush1.msra.mxu0 0.0
      %6319 = vmatprep.subr.mxu0 0.0
      %6320 = vmatpush1.msra.mxu0 0.0
      %6321 = vmatprep.subr.mxu0 0.0
      %6322 = vmatpush1.msra.mxu0 0.0
      %6323 = vmatprep.subr.mxu0 0.0
      %6324 = vmatpush1.msra.mxu0 0.0
      %6325 = vmatprep.subr.mxu0 0.0
      %6326 = vmatpush1.msra.mxu0 0.0
      %6327 = vmatprep.subr.mxu0 0.0
      %6328 = vmatpush1.msra.mxu0 0.0
      %6329 = vmatprep.subr.mxu0 0.0
      %6330 = vmatpush1.msra.mxu0 0.0
      %6331 = vmatprep.subr.mxu0 0.0
      %6332 = vmatpush1.msra.mxu0 0.0
      %6333 = vmatprep.subr.mxu0 0.0
      %6334 = vmatpush1.msra.mxu0 0.0
      %6335 = vmatprep.subr.mxu0 0.0
      %6336 = vmatpush1.msra.mxu0 0.0
      %6337 = vmatprep.subr.mxu0 0.0
      %6338 = vmatpush1.msra.mxu0 0.0
      %6339 = vmatprep.subr.mxu0 0.0
      %6340 = vmatpush1.msra.mxu0 0.0
      %6341 = vmatprep.subr.mxu0 0.0
      %6342 = vmatpush1.msra.mxu0 0.0
      %6343 = vmatprep.subr.mxu0 0.0
      %6344 = vmatpush1.msra.mxu0 0.0
      %6345 = vmatprep.subr.mxu0 0.0
      %6346 = vmatpush1.msra.mxu0 0.0
      %6347 = vmatprep.subr.mxu0 0.0
      %6348 = vmatpush1.msra.mxu0 0.0
      %6349 = vmatprep.subr.mxu0 0.0
      %6350 = vmatpush1.msra.mxu0 0.0
      %6351 = vmatprep.subr.mxu0 0.0
      %6352 = vmatpush1.msra.mxu0 0.0
      %6353 = vmatprep.mubr.f32.mxu0 0.0
      %6354 = vmatmul.mubr.f32.gmra.mrb[0].mxu0 %v6260
      %v6355 = vpop.f32.mrb[0].mxu0
      %v6356 = vadd.f32 0.0, %v6355
      %v6357 = vpop.f32.mrb[0].mxu0
      %6358 = vmatprep.mubr.f32.mxu0 0.0
      %6359 = vmatmul.mubr.f32.gmra.mrb[0].mxu0 %v6263
      %v6360 = vpop.f32.mrb[0].mxu0
      %v6361 = vadd.f32 0.0, %v6360
      %v6362 = vpop.f32.mrb[0].mxu0
      %6363 = vmatprep.mubr.f32.mxu0 0.0
      %6364 = vmatmul.mubr.f32.gmra.mrb[0].mxu0 %v6266
      %v6365 = vpop.f32.mrb[0].mxu0
      %v6366 = vadd.f32 0.0, %v6365
      %v6367 = vpop.f32.mrb[0].mxu0
      %6368 = vmatprep.mubr.f32.mxu0 0.0
      %6369 = vmatmul.mubr.f32.gmra.mrb[0].mxu0 %v6269
      %v6370 = vpop.f32.mrb[0].mxu0
      %v6371 = vadd.f32 0.0, %v6370
      %v6372 = vpop.f32.mrb[0].mxu0
      %6373 = vmatprep.mubr.f32.mxu0 0.0
      %6374 = vmatmul.mubr.f32.gmra.mrb[0].mxu0 %v6272
      %v6375 = vpop.f32.mrb[0].mxu0
      %v6376 = vadd.f32 0.0, %v6375
      %v6377 = vpop.f32.mrb[0].mxu0
      %6378 = vmatprep.mubr.f32.mxu0 0.0
      %6379 = vmatmul.mubr.f32.gmra.mrb[0].mxu0 %v6275
      %v6380 = vpop.f32.mrb[0].mxu0
      %v6381 = vadd.f32 0.0, %v6380
      %v6382 = vpop.f32.mrb[0].mxu0
      %6383 = vmatprep.mubr.f32.mxu0 0.0
      %6384 = vmatmul.mubr.f32.gmra.mrb[0].mxu0 %v6278
      %v6385 = vpop.f32.mrb[0].mxu0
      %v6386 = vadd.f32 0.0, %v6385
      %v6387 = vpop.f32.mrb[0].mxu0
      %6388 = vmatprep.mubr.f32.mxu0 0.0
      %6389 = vmatmul.mubr.f32.gmra.mrb[0].mxu0 %v6281
      %v6390 = vpop.f32.mrb[0].mxu0
      %v6391 = vadd.f32 0.0, %v6390
      %v6392 = vpop.f32.mrb[0].mxu0
      %6393 = vmatprep.mubr.f32.mxu0 0.0
      %6394 = vmatmul.mubr.f32.gmra.mrb[0].mxu0 %v6284
      %v6395 = vpop.f32.mrb[0].mxu0
      %v6396 = vadd.f32 0.0, %v6395
      %v6397 = vpop.f32.mrb[0].mxu0
      %6398 = vmatprep.mubr.f32.mxu0 0.0
      %6399 = vmatmul.mubr.f32.gmra.mrb[0].mxu0 %v6287
      %v6400 = vpop.f32.mrb[0].mxu0
      %v6401 = vadd.f32 0.0, %v6400
      %v6402 = vpop.f32.mrb[0].mxu0
      %6403 = vdwg.mxu0
      %v6404 = vadd.f32 %v6237, %v6356
      %v6405 = vadd.f32 %v6238, %v6361
      %v6406 = vadd.f32 %v6239, %v6366
      %v6407 = vadd.f32 %v6240, %v6371
      %v6408 = vadd.f32 %v6241, %v6376
      %v6409 = vadd.f32 %v6242, %v6381
      %v6410 = vadd.f32 %v6243, %v6386
      %v6411 = vadd.f32 %v6244, %v6391
      %v6412 = vadd.f32 %v6245, %v6396
      %v6413 = vadd.f32 %v6246, %v6401
      %v6414 = vld [vmem:[#allocation4 + $0xc] sm:$0xff]
      %v6415 = vld [vmem:[#allocation4 + $0x14] sm:$0xff]
      %v6416 = vld [vmem:[#allocation4 + $0x1c] sm:$0xff]
      %v6417 = vld [vmem:[#allocation4 + $0x24] sm:$0xff]
      %v6418 = vld [vmem:[#allocation4 + $0x2c] sm:$0xff]
      %v6419 = vld [vmem:[#allocation4 + $0x34] sm:$0xff]
      %v6420 = vld [vmem:[#allocation4 + $0x3c] sm:$0xff]
      %v6421 = vld [vmem:[#allocation4 + $0x44] sm:$0xff]
      %v6422 = vld [vmem:[#allocation4 + $0x4c] sm:$0xff]
      %v6423 = vld [vmem:[#allocation4 + $0x54] sm:$0xff]
      %v6424 = vld [vmem:[%s13 + $0x50] sm:$0xff]
      %v6425 = vld [vmem:[%s13 + $0x58] sm:$0xff]
      %v6427 = vsel %vm749, %v6414, 0
      %v6430 = vsel %vm749, %v6415, 0
      %v6433 = vsel %vm749, %v6416, 0
      %v6436 = vsel %vm749, %v6417, 0
      %v6439 = vsel %vm749, %v6418, 0
      %v6442 = vsel %vm749, %v6419, 0
      %v6445 = vsel %vm749, %v6420, 0
      %v6448 = vsel %vm749, %v6421, 0
      %v6451 = vsel %vm749, %v6422, 0
      %v6454 = vsel %vm749, %v6423, 0
      %6456 = vmatprep.subr.mxu0 0.0
      %6457 = vmatpush1.msra.mxu0 %v6424
      %6458 = vmatprep.subr.mxu0 0.0
      %6459 = vmatpush1.msra.mxu0 %v6425
      %6460 = vmatprep.subr.mxu0 0.0
      %6461 = vmatpush1.msra.mxu0 0.0
      %6462 = vmatprep.subr.mxu0 0.0
      %6463 = vmatpush1.msra.mxu0 0.0
      %6464 = vmatprep.subr.mxu0 0.0
      %6465 = vmatpush1.msra.mxu0 0.0
      %6466 = vmatprep.subr.mxu0 0.0
      %6467 = vmatpush1.msra.mxu0 0.0
      %6468 = vmatprep.subr.mxu0 0.0
      %6469 = vmatpush1.msra.mxu0 0.0
      %6470 = vmatprep.subr.mxu0 0.0
      %6471 = vmatpush1.msra.mxu0 0.0
      %6472 = vmatprep.subr.mxu0 0.0
      %6473 = vmatpush1.msra.mxu0 0.0
      %6474 = vmatprep.subr.mxu0 0.0
      %6475 = vmatpush1.msra.mxu0 0.0
      %6476 = vmatprep.subr.mxu0 0.0
      %6477 = vmatpush1.msra.mxu0 0.0
      %6478 = vmatprep.subr.mxu0 0.0
      %6479 = vmatpush1.msra.mxu0 0.0
      %6480 = vmatprep.subr.mxu0 0.0
      %6481 = vmatpush1.msra.mxu0 0.0
      %6482 = vmatprep.subr.mxu0 0.0
      %6483 = vmatpush1.msra.mxu0 0.0
      %6484 = vmatprep.subr.mxu0 0.0
      %6485 = vmatpush1.msra.mxu0 0.0
      %6486 = vmatprep.subr.mxu0 0.0
      %6487 = vmatpush1.msra.mxu0 0.0
      %6488 = vmatprep.subr.mxu0 0.0
      %6489 = vmatpush1.msra.mxu0 0.0
      %6490 = vmatprep.subr.mxu0 0.0
      %6491 = vmatpush1.msra.mxu0 0.0
      %6492 = vmatprep.subr.mxu0 0.0
      %6493 = vmatpush1.msra.mxu0 0.0
      %6494 = vmatprep.subr.mxu0 0.0
      %6495 = vmatpush1.msra.mxu0 0.0
      %6496 = vmatprep.subr.mxu0 0.0
      %6497 = vmatpush1.msra.mxu0 0.0
      %6498 = vmatprep.subr.mxu0 0.0
      %6499 = vmatpush1.msra.mxu0 0.0
      %6500 = vmatprep.subr.mxu0 0.0
      %6501 = vmatpush1.msra.mxu0 0.0
      %6502 = vmatprep.subr.mxu0 0.0
      %6503 = vmatpush1.msra.mxu0 0.0
      %6504 = vmatprep.subr.mxu0 0.0
      %6505 = vmatpush1.msra.mxu0 0.0
      %6506 = vmatprep.subr.mxu0 0.0
      %6507 = vmatpush1.msra.mxu0 0.0
      %6508 = vmatprep.subr.mxu0 0.0
      %6509 = vmatpush1.msra.mxu0 0.0
      %6510 = vmatprep.subr.mxu0 0.0
      %6511 = vmatpush1.msra.mxu0 0.0
      %6512 = vmatprep.subr.mxu0 0.0
      %6513 = vmatpush1.msra.mxu0 0.0
      %6514 = vmatprep.subr.mxu0 0.0
      %6515 = vmatpush1.msra.mxu0 0.0
      %6516 = vmatprep.subr.mxu0 0.0
      %6517 = vmatpush1.msra.mxu0 0.0
      %6518 = vmatprep.subr.mxu0 0.0
      %6519 = vmatpush1.msra.mxu0 0.0
      %6520 = vmatprep.mubr.f32.mxu0 0.0
      %6521 = vmatmul.mubr.f32.gmra.mrb[0].mxu0 %v6427
      %v6522 = vpop.f32.mrb[0].mxu0
      %v6523 = vadd.f32 0.0, %v6522
      %v6524 = vpop.f32.mrb[0].mxu0
      %6525 = vmatprep.mubr.f32.mxu0 0.0
      %6526 = vmatmul.mubr.f32.gmra.mrb[0].mxu0 %v6430
      %v6527 = vpop.f32.mrb[0].mxu0
      %v6528 = vadd.f32 0.0, %v6527
      %v6529 = vpop.f32.mrb[0].mxu0
      %6530 = vmatprep.mubr.f32.mxu0 0.0
      %6531 = vmatmul.mubr.f32.gmra.mrb[0].mxu0 %v6433
      %v6532 = vpop.f32.mrb[0].mxu0
      %v6533 = vadd.f32 0.0, %v6532
      %v6534 = vpop.f32.mrb[0].mxu0
      %6535 = vmatprep.mubr.f32.mxu0 0.0
      %6536 = vmatmul.mubr.f32.gmra.mrb[0].mxu0 %v6436
      %v6537 = vpop.f32.mrb[0].mxu0
      %v6538 = vadd.f32 0.0, %v6537
      %v6539 = vpop.f32.mrb[0].mxu0
      %6540 = vmatprep.mubr.f32.mxu0 0.0
      %6541 = vmatmul.mubr.f32.gmra.mrb[0].mxu0 %v6439
      %v6542 = vpop.f32.mrb[0].mxu0
      %v6543 = vadd.f32 0.0, %v6542
      %v6544 = vpop.f32.mrb[0].mxu0
      %6545 = vmatprep.mubr.f32.mxu0 0.0
      %6546 = vmatmul.mubr.f32.gmra.mrb[0].mxu0 %v6442
      %v6547 = vpop.f32.mrb[0].mxu0
      %v6548 = vadd.f32 0.0, %v6547
      %v6549 = vpop.f32.mrb[0].mxu0
      %6550 = vmatprep.mubr.f32.mxu0 0.0
      %6551 = vmatmul.mubr.f32.gmra.mrb[0].mxu0 %v6445
      %v6552 = vpop.f32.mrb[0].mxu0
      %v6553 = vadd.f32 0.0, %v6552
      %v6554 = vpop.f32.mrb[0].mxu0
      %6555 = vmatprep.mubr.f32.mxu0 0.0
      %6556 = vmatmul.mubr.f32.gmra.mrb[0].mxu0 %v6448
      %v6557 = vpop.f32.mrb[0].mxu0
      %v6558 = vadd.f32 0.0, %v6557
      %v6559 = vpop.f32.mrb[0].mxu0
      %6560 = vmatprep.mubr.f32.mxu0 0.0
      %6561 = vmatmul.mubr.f32.gmra.mrb[0].mxu0 %v6451
      %v6562 = vpop.f32.mrb[0].mxu0
      %v6563 = vadd.f32 0.0, %v6562
      %v6564 = vpop.f32.mrb[0].mxu0
      %6565 = vmatprep.mubr.f32.mxu0 0.0
      %6566 = vmatmul.mubr.f32.gmra.mrb[0].mxu0 %v6454
      %v6567 = vpop.f32.mrb[0].mxu0
      %v6568 = vadd.f32 0.0, %v6567
      %v6569 = vpop.f32.mrb[0].mxu0
      %6570 = vdwg.mxu0
      %v6571 = vadd.f32 %v6404, %v6523
      %v6572 = vadd.f32 %v6405, %v6528
      %v6573 = vadd.f32 %v6406, %v6533
      %v6574 = vadd.f32 %v6407, %v6538
      %v6575 = vadd.f32 %v6408, %v6543
      %v6576 = vadd.f32 %v6409, %v6548
      %v6577 = vadd.f32 %v6410, %v6553
      %v6578 = vadd.f32 %v6411, %v6558
      %v6579 = vadd.f32 %v6412, %v6563
      %v6580 = vadd.f32 %v6413, %v6568
      %v6581 = vld [vmem:[#allocation4 + $0x14] sm:$0xff]
      %v6582 = vld [vmem:[#allocation4 + $0x1c] sm:$0xff]
      %v6583 = vld [vmem:[#allocation4 + $0x24] sm:$0xff]
      %v6584 = vld [vmem:[#allocation4 + $0x2c] sm:$0xff]
      %v6585 = vld [vmem:[#allocation4 + $0x34] sm:$0xff]
      %v6586 = vld [vmem:[#allocation4 + $0x3c] sm:$0xff]
      %v6587 = vld [vmem:[#allocation4 + $0x44] sm:$0xff]
      %v6588 = vld [vmem:[#allocation4 + $0x4c] sm:$0xff]
      %v6589 = vld [vmem:[#allocation4 + $0x54] sm:$0xff]
      %v6590 = vld [vmem:[#allocation4 + $0x5c] sm:$0xff]
      %v6591 = vld [vmem:[%s13 + $0x60] sm:$0xff]
      %v6592 = vld [vmem:[%s13 + $0x68] sm:$0xff]
      %v6594 = vsel %vm749, %v6581, 0
      %v6597 = vsel %vm749, %v6582, 0
      %v6600 = vsel %vm749, %v6583, 0
      %v6603 = vsel %vm749, %v6584, 0
      %v6606 = vsel %vm749, %v6585, 0
      %v6609 = vsel %vm749, %v6586, 0
      %v6612 = vsel %vm749, %v6587, 0
      %v6615 = vsel %vm749, %v6588, 0
      %v6618 = vsel %vm749, %v6589, 0
      %v6621 = vsel %vm749, %v6590, 0
      %6623 = vmatprep.subr.mxu0 0.0
      %6624 = vmatpush1.msra.mxu0 %v6591
      %6625 = vmatprep.subr.mxu0 0.0
      %6626 = vmatpush1.msra.mxu0 %v6592
      %6627 = vmatprep.subr.mxu0 0.0
      %6628 = vmatpush1.msra.mxu0 0.0
      %6629 = vmatprep.subr.mxu0 0.0
      %6630 = vmatpush1.msra.mxu0 0.0
      %6631 = vmatprep.subr.mxu0 0.0
      %6632 = vmatpush1.msra.mxu0 0.0
      %6633 = vmatprep.subr.mxu0 0.0
      %6634 = vmatpush1.msra.mxu0 0.0
      %6635 = vmatprep.subr.mxu0 0.0
      %6636 = vmatpush1.msra.mxu0 0.0
      %6637 = vmatprep.subr.mxu0 0.0
      %6638 = vmatpush1.msra.mxu0 0.0
      %6639 = vmatprep.subr.mxu0 0.0
      %6640 = vmatpush1.msra.mxu0 0.0
      %6641 = vmatprep.subr.mxu0 0.0
      %6642 = vmatpush1.msra.mxu0 0.0
      %6643 = vmatprep.subr.mxu0 0.0
      %6644 = vmatpush1.msra.mxu0 0.0
      %6645 = vmatprep.subr.mxu0 0.0
      %6646 = vmatpush1.msra.mxu0 0.0
      %6647 = vmatprep.subr.mxu0 0.0
      %6648 = vmatpush1.msra.mxu0 0.0
      %6649 = vmatprep.subr.mxu0 0.0
      %6650 = vmatpush1.msra.mxu0 0.0
      %6651 = vmatprep.subr.mxu0 0.0
      %6652 = vmatpush1.msra.mxu0 0.0
      %6653 = vmatprep.subr.mxu0 0.0
      %6654 = vmatpush1.msra.mxu0 0.0
      %6655 = vmatprep.subr.mxu0 0.0
      %6656 = vmatpush1.msra.mxu0 0.0
      %6657 = vmatprep.subr.mxu0 0.0
      %6658 = vmatpush1.msra.mxu0 0.0
      %6659 = vmatprep.subr.mxu0 0.0
      %6660 = vmatpush1.msra.mxu0 0.0
      %6661 = vmatprep.subr.mxu0 0.0
      %6662 = vmatpush1.msra.mxu0 0.0
      %6663 = vmatprep.subr.mxu0 0.0
      %6664 = vmatpush1.msra.mxu0 0.0
      %6665 = vmatprep.subr.mxu0 0.0
      %6666 = vmatpush1.msra.mxu0 0.0
      %6667 = vmatprep.subr.mxu0 0.0
      %6668 = vmatpush1.msra.mxu0 0.0
      %6669 = vmatprep.subr.mxu0 0.0
      %6670 = vmatpush1.msra.mxu0 0.0
      %6671 = vmatprep.subr.mxu0 0.0
      %6672 = vmatpush1.msra.mxu0 0.0
      %6673 = vmatprep.subr.mxu0 0.0
      %6674 = vmatpush1.msra.mxu0 0.0
      %6675 = vmatprep.subr.mxu0 0.0
      %6676 = vmatpush1.msra.mxu0 0.0
      %6677 = vmatprep.subr.mxu0 0.0
      %6678 = vmatpush1.msra.mxu0 0.0
      %6679 = vmatprep.subr.mxu0 0.0
      %6680 = vmatpush1.msra.mxu0 0.0
      %6681 = vmatprep.subr.mxu0 0.0
      %6682 = vmatpush1.msra.mxu0 0.0
      %6683 = vmatprep.subr.mxu0 0.0
      %6684 = vmatpush1.msra.mxu0 0.0
      %6685 = vmatprep.subr.mxu0 0.0
      %6686 = vmatpush1.msra.mxu0 0.0
      %6687 = vmatprep.mubr.f32.mxu0 0.0
      %6688 = vmatmul.mubr.f32.gmra.mrb[0].mxu0 %v6594
      %v6689 = vpop.f32.mrb[0].mxu0
      %v6690 = vadd.f32 0.0, %v6689
      %v6691 = vpop.f32.mrb[0].mxu0
      %6692 = vmatprep.mubr.f32.mxu0 0.0
      %6693 = vmatmul.mubr.f32.gmra.mrb[0].mxu0 %v6597
      %v6694 = vpop.f32.mrb[0].mxu0
      %v6695 = vadd.f32 0.0, %v6694
      %v6696 = vpop.f32.mrb[0].mxu0
      %6697 = vmatprep.mubr.f32.mxu0 0.0
      %6698 = vmatmul.mubr.f32.gmra.mrb[0].mxu0 %v6600
      %v6699 = vpop.f32.mrb[0].mxu0
      %v6700 = vadd.f32 0.0, %v6699
      %v6701 = vpop.f32.mrb[0].mxu0
      %6702 = vmatprep.mubr.f32.mxu0 0.0
      %6703 = vmatmul.mubr.f32.gmra.mrb[0].mxu0 %v6603
      %v6704 = vpop.f32.mrb[0].mxu0
      %v6705 = vadd.f32 0.0, %v6704
      %v6706 = vpop.f32.mrb[0].mxu0
      %6707 = vmatprep.mubr.f32.mxu0 0.0
      %6708 = vmatmul.mubr.f32.gmra.mrb[0].mxu0 %v6606
      %v6709 = vpop.f32.mrb[0].mxu0
      %v6710 = vadd.f32 0.0, %v6709
      %v6711 = vpop.f32.mrb[0].mxu0
      %6712 = vmatprep.mubr.f32.mxu0 0.0
      %6713 = vmatmul.mubr.f32.gmra.mrb[0].mxu0 %v6609
      %v6714 = vpop.f32.mrb[0].mxu0
      %v6715 = vadd.f32 0.0, %v6714
      %v6716 = vpop.f32.mrb[0].mxu0
      %6717 = vmatprep.mubr.f32.mxu0 0.0
      %6718 = vmatmul.mubr.f32.gmra.mrb[0].mxu0 %v6612
      %v6719 = vpop.f32.mrb[0].mxu0
      %v6720 = vadd.f32 0.0, %v6719
      %v6721 = vpop.f32.mrb[0].mxu0
      %6722 = vmatprep.mubr.f32.mxu0 0.0
      %6723 = vmatmul.mubr.f32.gmra.mrb[0].mxu0 %v6615
      %v6724 = vpop.f32.mrb[0].mxu0
      %v6725 = vadd.f32 0.0, %v6724
      %v6726 = vpop.f32.mrb[0].mxu0
      %6727 = vmatprep.mubr.f32.mxu0 0.0
      %6728 = vmatmul.mubr.f32.gmra.mrb[0].mxu0 %v6618
      %v6729 = vpop.f32.mrb[0].mxu0
      %v6730 = vadd.f32 0.0, %v6729
      %v6731 = vpop.f32.mrb[0].mxu0
      %6732 = vmatprep.mubr.f32.mxu0 0.0
      %6733 = vmatmul.mubr.f32.gmra.mrb[0].mxu0 %v6621
      %v6734 = vpop.f32.mrb[0].mxu0
      %v6735 = vadd.f32 0.0, %v6734
      %v6736 = vpop.f32.mrb[0].mxu0
      %6737 = vdwg.mxu0
      %v6738 = vadd.f32 %v6571, %v6690
      %v6739 = vadd.f32 %v6572, %v6695
      %v6740 = vadd.f32 %v6573, %v6700
      %v6741 = vadd.f32 %v6574, %v6705
      %v6742 = vadd.f32 %v6575, %v6710
      %v6743 = vadd.f32 %v6576, %v6715
      %v6744 = vadd.f32 %v6577, %v6720
      %v6745 = vadd.f32 %v6578, %v6725
      %v6746 = vadd.f32 %v6579, %v6730
      %v6747 = vadd.f32 %v6580, %v6735
      %v6748 = vld [vmem:[#allocation4 + $0x15] sm:$0xff]
      %v6749 = vld [vmem:[#allocation4 + $0x1d] sm:$0xff]
      %v6750 = vld [vmem:[#allocation4 + $0x25] sm:$0xff]
      %v6751 = vld [vmem:[#allocation4 + $0x2d] sm:$0xff]
      %v6752 = vld [vmem:[#allocation4 + $0x35] sm:$0xff]
      %v6753 = vld [vmem:[#allocation4 + $0x3d] sm:$0xff]
      %v6754 = vld [vmem:[#allocation4 + $0x45] sm:$0xff]
      %v6755 = vld [vmem:[#allocation4 + $0x4d] sm:$0xff]
      %v6756 = vld [vmem:[#allocation4 + $0x55] sm:$0xff]
      %v6757 = vld [vmem:[#allocation4 + $0x5d] sm:$0xff]
      %v6758 = vld [vmem:[%s13 + $0x70] sm:$0xff]
      %v6759 = vld [vmem:[%s13 + $0x78] sm:$0xff]
      %v6761 = vsel %vm749, %v6748, 0
      %v6764 = vsel %vm749, %v6749, 0
      %v6767 = vsel %vm749, %v6750, 0
      %v6770 = vsel %vm749, %v6751, 0
      %v6773 = vsel %vm749, %v6752, 0
      %v6776 = vsel %vm749, %v6753, 0
      %v6779 = vsel %vm749, %v6754, 0
      %v6782 = vsel %vm749, %v6755, 0
      %v6785 = vsel %vm749, %v6756, 0
      %v6788 = vsel %vm749, %v6757, 0
      %6790 = vmatprep.subr.mxu0 0.0
      %6791 = vmatpush1.msra.mxu0 %v6758
      %6792 = vmatprep.subr.mxu0 0.0
      %6793 = vmatpush1.msra.mxu0 %v6759
      %6794 = vmatprep.subr.mxu0 0.0
      %6795 = vmatpush1.msra.mxu0 0.0
      %6796 = vmatprep.subr.mxu0 0.0
      %6797 = vmatpush1.msra.mxu0 0.0
      %6798 = vmatprep.subr.mxu0 0.0
      %6799 = vmatpush1.msra.mxu0 0.0
      %6800 = vmatprep.subr.mxu0 0.0
      %6801 = vmatpush1.msra.mxu0 0.0
      %6802 = vmatprep.subr.mxu0 0.0
      %6803 = vmatpush1.msra.mxu0 0.0
      %6804 = vmatprep.subr.mxu0 0.0
      %6805 = vmatpush1.msra.mxu0 0.0
      %6806 = vmatprep.subr.mxu0 0.0
      %6807 = vmatpush1.msra.mxu0 0.0
      %6808 = vmatprep.subr.mxu0 0.0
      %6809 = vmatpush1.msra.mxu0 0.0
      %6810 = vmatprep.subr.mxu0 0.0
      %6811 = vmatpush1.msra.mxu0 0.0
      %6812 = vmatprep.subr.mxu0 0.0
      %6813 = vmatpush1.msra.mxu0 0.0
      %6814 = vmatprep.subr.mxu0 0.0
      %6815 = vmatpush1.msra.mxu0 0.0
      %6816 = vmatprep.subr.mxu0 0.0
      %6817 = vmatpush1.msra.mxu0 0.0
      %6818 = vmatprep.subr.mxu0 0.0
      %6819 = vmatpush1.msra.mxu0 0.0
      %6820 = vmatprep.subr.mxu0 0.0
      %6821 = vmatpush1.msra.mxu0 0.0
      %6822 = vmatprep.subr.mxu0 0.0
      %6823 = vmatpush1.msra.mxu0 0.0
      %6824 = vmatprep.subr.mxu0 0.0
      %6825 = vmatpush1.msra.mxu0 0.0
      %6826 = vmatprep.subr.mxu0 0.0
      %6827 = vmatpush1.msra.mxu0 0.0
      %6828 = vmatprep.subr.mxu0 0.0
      %6829 = vmatpush1.msra.mxu0 0.0
      %6830 = vmatprep.subr.mxu0 0.0
      %6831 = vmatpush1.msra.mxu0 0.0
      %6832 = vmatprep.subr.mxu0 0.0
      %6833 = vmatpush1.msra.mxu0 0.0
      %6834 = vmatprep.subr.mxu0 0.0
      %6835 = vmatpush1.msra.mxu0 0.0
      %6836 = vmatprep.subr.mxu0 0.0
      %6837 = vmatpush1.msra.mxu0 0.0
      %6838 = vmatprep.subr.mxu0 0.0
      %6839 = vmatpush1.msra.mxu0 0.0
      %6840 = vmatprep.subr.mxu0 0.0
      %6841 = vmatpush1.msra.mxu0 0.0
      %6842 = vmatprep.subr.mxu0 0.0
      %6843 = vmatpush1.msra.mxu0 0.0
      %6844 = vmatprep.subr.mxu0 0.0
      %6845 = vmatpush1.msra.mxu0 0.0
      %6846 = vmatprep.subr.mxu0 0.0
      %6847 = vmatpush1.msra.mxu0 0.0
      %6848 = vmatprep.subr.mxu0 0.0
      %6849 = vmatpush1.msra.mxu0 0.0
      %6850 = vmatprep.subr.mxu0 0.0
      %6851 = vmatpush1.msra.mxu0 0.0
      %6852 = vmatprep.subr.mxu0 0.0
      %6853 = vmatpush1.msra.mxu0 0.0
      %6854 = vmatprep.mubr.f32.mxu0 0.0
      %6855 = vmatmul.mubr.f32.gmra.mrb[0].mxu0 %v6761
      %v6856 = vpop.f32.mrb[0].mxu0
      %v6857 = vadd.f32 0.0, %v6856
      %v6858 = vpop.f32.mrb[0].mxu0
      %6859 = vmatprep.mubr.f32.mxu0 0.0
      %6860 = vmatmul.mubr.f32.gmra.mrb[0].mxu0 %v6764
      %v6861 = vpop.f32.mrb[0].mxu0
      %v6862 = vadd.f32 0.0, %v6861
      %v6863 = vpop.f32.mrb[0].mxu0
      %6864 = vmatprep.mubr.f32.mxu0 0.0
      %6865 = vmatmul.mubr.f32.gmra.mrb[0].mxu0 %v6767
      %v6866 = vpop.f32.mrb[0].mxu0
      %v6867 = vadd.f32 0.0, %v6866
      %v6868 = vpop.f32.mrb[0].mxu0
      %6869 = vmatprep.mubr.f32.mxu0 0.0
      %6870 = vmatmul.mubr.f32.gmra.mrb[0].mxu0 %v6770
      %v6871 = vpop.f32.mrb[0].mxu0
      %v6872 = vadd.f32 0.0, %v6871
      %v6873 = vpop.f32.mrb[0].mxu0
      %6874 = vmatprep.mubr.f32.mxu0 0.0
      %6875 = vmatmul.mubr.f32.gmra.mrb[0].mxu0 %v6773
      %v6876 = vpop.f32.mrb[0].mxu0
      %v6877 = vadd.f32 0.0, %v6876
      %v6878 = vpop.f32.mrb[0].mxu0
      %6879 = vmatprep.mubr.f32.mxu0 0.0
      %6880 = vmatmul.mubr.f32.gmra.mrb[0].mxu0 %v6776
      %v6881 = vpop.f32.mrb[0].mxu0
      %v6882 = vadd.f32 0.0, %v6881
      %v6883 = vpop.f32.mrb[0].mxu0
      %6884 = vmatprep.mubr.f32.mxu0 0.0
      %6885 = vmatmul.mubr.f32.gmra.mrb[0].mxu0 %v6779
      %v6886 = vpop.f32.mrb[0].mxu0
      %v6887 = vadd.f32 0.0, %v6886
      %v6888 = vpop.f32.mrb[0].mxu0
      %6889 = vmatprep.mubr.f32.mxu0 0.0
      %6890 = vmatmul.mubr.f32.gmra.mrb[0].mxu0 %v6782
      %v6891 = vpop.f32.mrb[0].mxu0
      %v6892 = vadd.f32 0.0, %v6891
      %v6893 = vpop.f32.mrb[0].mxu0
      %6894 = vmatprep.mubr.f32.mxu0 0.0
      %6895 = vmatmul.mubr.f32.gmra.mrb[0].mxu0 %v6785
      %v6896 = vpop.f32.mrb[0].mxu0
      %v6897 = vadd.f32 0.0, %v6896
      %v6898 = vpop.f32.mrb[0].mxu0
      %6899 = vmatprep.mubr.f32.mxu0 0.0
      %6900 = vmatmul.mubr.f32.gmra.mrb[0].mxu0 %v6788
      %v6901 = vpop.f32.mrb[0].mxu0
      %v6902 = vadd.f32 0.0, %v6901
      %v6903 = vpop.f32.mrb[0].mxu0
      %6904 = vdwg.mxu0
      %v6905 = vadd.f32 %v6738, %v6857
      %v6906 = vadd.f32 %v6739, %v6862
      %v6907 = vadd.f32 %v6740, %v6867
      %v6908 = vadd.f32 %v6741, %v6872
      %v6909 = vadd.f32 %v6742, %v6877
      %v6910 = vadd.f32 %v6743, %v6882
      %v6911 = vadd.f32 %v6744, %v6887
      %v6912 = vadd.f32 %v6745, %v6892
      %v6913 = vadd.f32 %v6746, %v6897
      %v6914 = vadd.f32 %v6747, %v6902
      %v6915 = vld [vmem:[#allocation4 + $0x16] sm:$0xff]
      %v6916 = vld [vmem:[#allocation4 + $0x1e] sm:$0xff]
      %v6917 = vld [vmem:[#allocation4 + $0x26] sm:$0xff]
      %v6918 = vld [vmem:[#allocation4 + $0x2e] sm:$0xff]
      %v6919 = vld [vmem:[#allocation4 + $0x36] sm:$0xff]
      %v6920 = vld [vmem:[#allocation4 + $0x3e] sm:$0xff]
      %v6921 = vld [vmem:[#allocation4 + $0x46] sm:$0xff]
      %v6922 = vld [vmem:[#allocation4 + $0x4e] sm:$0xff]
      %v6923 = vld [vmem:[#allocation4 + $0x56] sm:$0xff]
      %v6924 = vld [vmem:[#allocation4 + $0x5e] sm:$0xff]
      %v6925 = vld [vmem:[%s13 + $0x80] sm:$0xff]
      %v6926 = vld [vmem:[%s13 + $0x88] sm:$0xff]
      %v6928 = vsel %vm749, %v6915, 0
      %v6931 = vsel %vm749, %v6916, 0
      %v6934 = vsel %vm749, %v6917, 0
      %v6937 = vsel %vm749, %v6918, 0
      %v6940 = vsel %vm749, %v6919, 0
      %v6943 = vsel %vm749, %v6920, 0
      %v6946 = vsel %vm749, %v6921, 0
      %v6949 = vsel %vm749, %v6922, 0
      %v6952 = vsel %vm749, %v6923, 0
      %v6955 = vsel %vm749, %v6924, 0
      %6957 = vmatprep.subr.mxu0 0.0
      %6958 = vmatpush1.msra.mxu0 %v6925
      %6959 = vmatprep.subr.mxu0 0.0
      %6960 = vmatpush1.msra.mxu0 %v6926
      %6961 = vmatprep.subr.mxu0 0.0
      %6962 = vmatpush1.msra.mxu0 0.0
      %6963 = vmatprep.subr.mxu0 0.0
      %6964 = vmatpush1.msra.mxu0 0.0
      %6965 = vmatprep.subr.mxu0 0.0
      %6966 = vmatpush1.msra.mxu0 0.0
      %6967 = vmatprep.subr.mxu0 0.0
      %6968 = vmatpush1.msra.mxu0 0.0
      %6969 = vmatprep.subr.mxu0 0.0
      %6970 = vmatpush1.msra.mxu0 0.0
      %6971 = vmatprep.subr.mxu0 0.0
      %6972 = vmatpush1.msra.mxu0 0.0
      %6973 = vmatprep.subr.mxu0 0.0
      %6974 = vmatpush1.msra.mxu0 0.0
      %6975 = vmatprep.subr.mxu0 0.0
      %6976 = vmatpush1.msra.mxu0 0.0
      %6977 = vmatprep.subr.mxu0 0.0
      %6978 = vmatpush1.msra.mxu0 0.0
      %6979 = vmatprep.subr.mxu0 0.0
      %6980 = vmatpush1.msra.mxu0 0.0
      %6981 = vmatprep.subr.mxu0 0.0
      %6982 = vmatpush1.msra.mxu0 0.0
      %6983 = vmatprep.subr.mxu0 0.0
      %6984 = vmatpush1.msra.mxu0 0.0
      %6985 = vmatprep.subr.mxu0 0.0
      %6986 = vmatpush1.msra.mxu0 0.0
      %6987 = vmatprep.subr.mxu0 0.0
      %6988 = vmatpush1.msra.mxu0 0.0
      %6989 = vmatprep.subr.mxu0 0.0
      %6990 = vmatpush1.msra.mxu0 0.0
      %6991 = vmatprep.subr.mxu0 0.0
      %6992 = vmatpush1.msra.mxu0 0.0
      %6993 = vmatprep.subr.mxu0 0.0
      %6994 = vmatpush1.msra.mxu0 0.0
      %6995 = vmatprep.subr.mxu0 0.0
      %6996 = vmatpush1.msra.mxu0 0.0
      %6997 = vmatprep.subr.mxu0 0.0
      %6998 = vmatpush1.msra.mxu0 0.0
      %6999 = vmatprep.subr.mxu0 0.0
      %7000 = vmatpush1.msra.mxu0 0.0
      %7001 = vmatprep.subr.mxu0 0.0
      %7002 = vmatpush1.msra.mxu0 0.0
      %7003 = vmatprep.subr.mxu0 0.0
      %7004 = vmatpush1.msra.mxu0 0.0
      %7005 = vmatprep.subr.mxu0 0.0
      %7006 = vmatpush1.msra.mxu0 0.0
      %7007 = vmatprep.subr.mxu0 0.0
      %7008 = vmatpush1.msra.mxu0 0.0
      %7009 = vmatprep.subr.mxu0 0.0
      %7010 = vmatpush1.msra.mxu0 0.0
      %7011 = vmatprep.subr.mxu0 0.0
      %7012 = vmatpush1.msra.mxu0 0.0
      %7013 = vmatprep.subr.mxu0 0.0
      %7014 = vmatpush1.msra.mxu0 0.0
      %7015 = vmatprep.subr.mxu0 0.0
      %7016 = vmatpush1.msra.mxu0 0.0
      %7017 = vmatprep.subr.mxu0 0.0
      %7018 = vmatpush1.msra.mxu0 0.0
      %7019 = vmatprep.subr.mxu0 0.0
      %7020 = vmatpush1.msra.mxu0 0.0
      %7021 = vmatprep.mubr.f32.mxu0 0.0
      %7022 = vmatmul.mubr.f32.gmra.mrb[0].mxu0 %v6928
      %v7023 = vpop.f32.mrb[0].mxu0
      %v7024 = vadd.f32 0.0, %v7023
      %v7025 = vpop.f32.mrb[0].mxu0
      %7026 = vmatprep.mubr.f32.mxu0 0.0
      %7027 = vmatmul.mubr.f32.gmra.mrb[0].mxu0 %v6931
      %v7028 = vpop.f32.mrb[0].mxu0
      %v7029 = vadd.f32 0.0, %v7028
      %v7030 = vpop.f32.mrb[0].mxu0
      %7031 = vmatprep.mubr.f32.mxu0 0.0
      %7032 = vmatmul.mubr.f32.gmra.mrb[0].mxu0 %v6934
      %v7033 = vpop.f32.mrb[0].mxu0
      %v7034 = vadd.f32 0.0, %v7033
      %v7035 = vpop.f32.mrb[0].mxu0
      %7036 = vmatprep.mubr.f32.mxu0 0.0
      %7037 = vmatmul.mubr.f32.gmra.mrb[0].mxu0 %v6937
      %v7038 = vpop.f32.mrb[0].mxu0
      %v7039 = vadd.f32 0.0, %v7038
      %v7040 = vpop.f32.mrb[0].mxu0
      %7041 = vmatprep.mubr.f32.mxu0 0.0
      %7042 = vmatmul.mubr.f32.gmra.mrb[0].mxu0 %v6940
      %v7043 = vpop.f32.mrb[0].mxu0
      %v7044 = vadd.f32 0.0, %v7043
      %v7045 = vpop.f32.mrb[0].mxu0
      %7046 = vmatprep.mubr.f32.mxu0 0.0
      %7047 = vmatmul.mubr.f32.gmra.mrb[0].mxu0 %v6943
      %v7048 = vpop.f32.mrb[0].mxu0
      %v7049 = vadd.f32 0.0, %v7048
      %v7050 = vpop.f32.mrb[0].mxu0
      %7051 = vmatprep.mubr.f32.mxu0 0.0
      %7052 = vmatmul.mubr.f32.gmra.mrb[0].mxu0 %v6946
      %v7053 = vpop.f32.mrb[0].mxu0
      %v7054 = vadd.f32 0.0, %v7053
      %v7055 = vpop.f32.mrb[0].mxu0
      %7056 = vmatprep.mubr.f32.mxu0 0.0
      %7057 = vmatmul.mubr.f32.gmra.mrb[0].mxu0 %v6949
      %v7058 = vpop.f32.mrb[0].mxu0
      %v7059 = vadd.f32 0.0, %v7058
      %v7060 = vpop.f32.mrb[0].mxu0
      %7061 = vmatprep.mubr.f32.mxu0 0.0
      %7062 = vmatmul.mubr.f32.gmra.mrb[0].mxu0 %v6952
      %v7063 = vpop.f32.mrb[0].mxu0
      %v7064 = vadd.f32 0.0, %v7063
      %v7065 = vpop.f32.mrb[0].mxu0
      %7066 = vmatprep.mubr.f32.mxu0 0.0
      %7067 = vmatmul.mubr.f32.gmra.mrb[0].mxu0 %v6955
      %v7068 = vpop.f32.mrb[0].mxu0
      %v7069 = vadd.f32 0.0, %v7068
      %v7070 = vpop.f32.mrb[0].mxu0
      %7071 = vdwg.mxu0
      %v7072 = vadd.f32 %v6905, %v7024
      %v7073 = vadd.f32 %v6906, %v7029
      %v7074 = vadd.f32 %v6907, %v7034
      %v7075 = vadd.f32 %v6908, %v7039
      %v7076 = vadd.f32 %v6909, %v7044
      %v7077 = vadd.f32 %v6910, %v7049
      %v7078 = vadd.f32 %v6911, %v7054
      %v7079 = vadd.f32 %v6912, %v7059
      %v7080 = vadd.f32 %v6913, %v7064
      %v7081 = vadd.f32 %v6914, %v7069
      %v7082 = vld [vmem:[%s14] sm:$0x1]
      %v7084 = vlaneseq
      %v7085 = vshrl.u32 %v7084, 7
      %v7086 = vsub.s32 0, %v7085
      %v7087 = vrot.slane %v7082, %v7086
      %v7089 = vadd.f32 %v7072, %v7087
      %v7090 = vadd.f32 %v7073, %v7087
      %v7091 = vadd.f32 %v7074, %v7087
      %v7092 = vadd.f32 %v7075, %v7087
      %v7093 = vadd.f32 %v7076, %v7087
      %v7094 = vadd.f32 %v7077, %v7087
      %v7095 = vadd.f32 %v7078, %v7087
      %v7096 = vadd.f32 %v7079, %v7087
      %v7097 = vadd.f32 %v7080, %v7087
      %v7098 = vadd.f32 %v7081, %v7087
      %v7099 = vmax.f32 %v7089, 0.0
      %v7100 = vmax.f32 %v7090, 0.0
      %v7101 = vmax.f32 %v7091, 0.0
      %v7102 = vmax.f32 %v7092, 0.0
      %v7103 = vmax.f32 %v7093, 0.0
      %v7104 = vmax.f32 %v7094, 0.0
      %v7105 = vmax.f32 %v7095, 0.0
      %v7106 = vmax.f32 %v7096, 0.0
      %v7107 = vmax.f32 %v7097, 0.0
      %v7108 = vmax.f32 %v7098, 0.0
      %7109 = vst.msk [vmem:[%s724] sm:$0xff] %vm749, %v7099
      %7110 = vst.msk [vmem:[%s724 + $0x8] sm:$0xff] %vm749, %v7100
      %7111 = vst.msk [vmem:[%s724 + $0x10] sm:$0xff] %vm749, %v7101
      %7112 = vst.msk [vmem:[%s724 + $0x18] sm:$0xff] %vm749, %v7102
      %7113 = vst.msk [vmem:[%s724 + $0x20] sm:$0xff] %vm749, %v7103
      %7114 = vst.msk [vmem:[%s724 + $0x28] sm:$0xff] %vm749, %v7104
      %7115 = vst.msk [vmem:[%s724 + $0x30] sm:$0xff] %vm749, %v7105
      %7116 = vst.msk [vmem:[%s724 + $0x38] sm:$0xff] %vm749, %v7106
      %7117 = vst.msk [vmem:[%s724 + $0x40] sm:$0xff] %vm749, %v7107
      %7118 = vst.msk [vmem:[%s724 + $0x48] sm:$0xff] %vm749, %v7108
      %v7119 = vld [vmem:[#allocation5] sm:$0xff]
      %v7120 = vld [vmem:[#allocation5 + $0x8] sm:$0xff]
      %v7121 = vld [vmem:[#allocation5 + $0x10] sm:$0xff]
      %v7122 = vld [vmem:[%s15] sm:$0xff]
      %v7123 = vld [vmem:[%s15 + $0x8] sm:$0xff]
      %v7124 = vld [vmem:[#allocation5 + $0x1] sm:$0xff]
      %v7125 = vld [vmem:[#allocation5 + $0x9] sm:$0xff]
      %v7126 = vld [vmem:[#allocation5 + $0x11] sm:$0xff]
      %v7127 = vld [vmem:[%s15 + $0x10] sm:$0xff]
      %v7128 = vld [vmem:[%s15 + $0x18] sm:$0xff]
      %v7130 = vsel %vm749, %v7124, 0
      %v7133 = vsel %vm749, %v7125, 0
      %v7136 = vsel %vm749, %v7126, 0
      %7138 = vmatprep.subr.mxu0 0.0
      %7139 = vmatpush1.msra.mxu0 %v7127
      %7140 = vmatprep.subr.mxu0 0.0
      %7141 = vmatpush1.msra.mxu0 %v7128
      %7142 = vmatprep.subr.mxu0 0.0
      %7143 = vmatpush1.msra.mxu0 0.0
      %7144 = vmatprep.subr.mxu0 0.0
      %7145 = vmatpush1.msra.mxu0 0.0
      %7146 = vmatprep.subr.mxu0 0.0
      %7147 = vmatpush1.msra.mxu0 0.0
      %7148 = vmatprep.subr.mxu0 0.0
      %7149 = vmatpush1.msra.mxu0 0.0
      %7150 = vmatprep.subr.mxu0 0.0
      %7151 = vmatpush1.msra.mxu0 0.0
      %7152 = vmatprep.subr.mxu0 0.0
      %7153 = vmatpush1.msra.mxu0 0.0
      %7154 = vmatprep.subr.mxu0 0.0
      %7155 = vmatpush1.msra.mxu0 0.0
      %7156 = vmatprep.subr.mxu0 0.0
      %7157 = vmatpush1.msra.mxu0 0.0
      %7158 = vmatprep.subr.mxu0 0.0
      %7159 = vmatpush1.msra.mxu0 0.0
      %7160 = vmatprep.subr.mxu0 0.0
      %7161 = vmatpush1.msra.mxu0 0.0
      %7162 = vmatprep.subr.mxu0 0.0
      %7163 = vmatpush1.msra.mxu0 0.0
      %7164 = vmatprep.subr.mxu0 0.0
      %7165 = vmatpush1.msra.mxu0 0.0
      %7166 = vmatprep.subr.mxu0 0.0
      %7167 = vmatpush1.msra.mxu0 0.0
      %7168 = vmatprep.subr.mxu0 0.0
      %7169 = vmatpush1.msra.mxu0 0.0
      %7170 = vmatprep.subr.mxu0 0.0
      %7171 = vmatpush1.msra.mxu0 0.0
      %7172 = vmatprep.subr.mxu0 0.0
      %7173 = vmatpush1.msra.mxu0 0.0
      %7174 = vmatprep.subr.mxu0 0.0
      %7175 = vmatpush1.msra.mxu0 0.0
      %7176 = vmatprep.subr.mxu0 0.0
      %7177 = vmatpush1.msra.mxu0 0.0
      %7178 = vmatprep.subr.mxu0 0.0
      %7179 = vmatpush1.msra.mxu0 0.0
      %7180 = vmatprep.subr.mxu0 0.0
      %7181 = vmatpush1.msra.mxu0 0.0
      %7182 = vmatprep.subr.mxu0 0.0
      %7183 = vmatpush1.msra.mxu0 0.0
      %7184 = vmatprep.subr.mxu0 0.0
      %7185 = vmatpush1.msra.mxu0 0.0
      %7186 = vmatprep.subr.mxu0 0.0
      %7187 = vmatpush1.msra.mxu0 0.0
      %7188 = vmatprep.subr.mxu0 0.0
      %7189 = vmatpush1.msra.mxu0 0.0
      %7190 = vmatprep.subr.mxu0 0.0
      %7191 = vmatpush1.msra.mxu0 0.0
      %7192 = vmatprep.subr.mxu0 0.0
      %7193 = vmatpush1.msra.mxu0 0.0
      %7194 = vmatprep.subr.mxu0 0.0
      %7195 = vmatpush1.msra.mxu0 0.0
      %7196 = vmatprep.subr.mxu0 0.0
      %7197 = vmatpush1.msra.mxu0 0.0
      %7198 = vmatprep.subr.mxu0 0.0
      %7199 = vmatpush1.msra.mxu0 0.0
      %7200 = vmatprep.subr.mxu0 0.0
      %7201 = vmatpush1.msra.mxu0 0.0
      %7202 = vmatprep.mubr.f32.mxu0 0.0
      %7203 = vmatmul.mubr.f32.gmra.mrb[0].mxu0 %v7130
      %v7204 = vpop.f32.mrb[0].mxu0
      %v7205 = vadd.f32 0.0, %v7204
      %v7206 = vpop.f32.mrb[0].mxu0
      %7207 = vmatprep.mubr.f32.mxu0 0.0
      %7208 = vmatmul.mubr.f32.gmra.mrb[0].mxu0 %v7133
      %v7209 = vpop.f32.mrb[0].mxu0
      %v7210 = vadd.f32 0.0, %v7209
      %v7211 = vpop.f32.mrb[0].mxu0
      %7212 = vmatprep.mubr.f32.mxu0 0.0
      %7213 = vmatmul.mubr.f32.gmra.mrb[0].mxu0 %v7136
      %v7214 = vpop.f32.mrb[0].mxu0
      %v7215 = vadd.f32 0.0, %v7214
      %v7216 = vpop.f32.mrb[0].mxu0
      %7217 = vdwg.mxu0
      %v7219 = vsel %vm749, %v7119, 0
      %v7222 = vsel %vm749, %v7120, 0
      %v7225 = vsel %vm749, %v7121, 0
      %7227 = vmatprep.subr.mxu0 0.0
      %7228 = vmatpush1.msra.mxu0 %v7122
      %7229 = vmatprep.subr.mxu0 0.0
      %7230 = vmatpush1.msra.mxu0 %v7123
      %7231 = vmatprep.subr.mxu0 0.0
      %7232 = vmatpush1.msra.mxu0 0.0
      %7233 = vmatprep.subr.mxu0 0.0
      %7234 = vmatpush1.msra.mxu0 0.0
      %7235 = vmatprep.subr.mxu0 0.0
      %7236 = vmatpush1.msra.mxu0 0.0
      %7237 = vmatprep.subr.mxu0 0.0
      %7238 = vmatpush1.msra.mxu0 0.0
      %7239 = vmatprep.subr.mxu0 0.0
      %7240 = vmatpush1.msra.mxu0 0.0
      %7241 = vmatprep.subr.mxu0 0.0
      %7242 = vmatpush1.msra.mxu0 0.0
      %7243 = vmatprep.subr.mxu0 0.0
      %7244 = vmatpush1.msra.mxu0 0.0
      %7245 = vmatprep.subr.mxu0 0.0
      %7246 = vmatpush1.msra.mxu0 0.0
      %7247 = vmatprep.subr.mxu0 0.0
      %7248 = vmatpush1.msra.mxu0 0.0
      %7249 = vmatprep.subr.mxu0 0.0
      %7250 = vmatpush1.msra.mxu0 0.0
      %7251 = vmatprep.subr.mxu0 0.0
      %7252 = vmatpush1.msra.mxu0 0.0
      %7253 = vmatprep.subr.mxu0 0.0
      %7254 = vmatpush1.msra.mxu0 0.0
      %7255 = vmatprep.subr.mxu0 0.0
      %7256 = vmatpush1.msra.mxu0 0.0
      %7257 = vmatprep.subr.mxu0 0.0
      %7258 = vmatpush1.msra.mxu0 0.0
      %7259 = vmatprep.subr.mxu0 0.0
      %7260 = vmatpush1.msra.mxu0 0.0
      %7261 = vmatprep.subr.mxu0 0.0
      %7262 = vmatpush1.msra.mxu0 0.0
      %7263 = vmatprep.subr.mxu0 0.0
      %7264 = vmatpush1.msra.mxu0 0.0
      %7265 = vmatprep.subr.mxu0 0.0
      %7266 = vmatpush1.msra.mxu0 0.0
      %7267 = vmatprep.subr.mxu0 0.0
      %7268 = vmatpush1.msra.mxu0 0.0
      %7269 = vmatprep.subr.mxu0 0.0
      %7270 = vmatpush1.msra.mxu0 0.0
      %7271 = vmatprep.subr.mxu0 0.0
      %7272 = vmatpush1.msra.mxu0 0.0
      %7273 = vmatprep.subr.mxu0 0.0
      %7274 = vmatpush1.msra.mxu0 0.0
      %7275 = vmatprep.subr.mxu0 0.0
      %7276 = vmatpush1.msra.mxu0 0.0
      %7277 = vmatprep.subr.mxu0 0.0
      %7278 = vmatpush1.msra.mxu0 0.0
      %7279 = vmatprep.subr.mxu0 0.0
      %7280 = vmatpush1.msra.mxu0 0.0
      %7281 = vmatprep.subr.mxu0 0.0
      %7282 = vmatpush1.msra.mxu0 0.0
      %7283 = vmatprep.subr.mxu0 0.0
      %7284 = vmatpush1.msra.mxu0 0.0
      %7285 = vmatprep.subr.mxu0 0.0
      %7286 = vmatpush1.msra.mxu0 0.0
      %7287 = vmatprep.subr.mxu0 0.0
      %7288 = vmatpush1.msra.mxu0 0.0
      %7289 = vmatprep.subr.mxu0 0.0
      %7290 = vmatpush1.msra.mxu0 0.0
      %7291 = vmatprep.mubr.f32.mxu0 0.0
      %7292 = vmatmul.mubr.f32.gmra.mrb[0].mxu0 %v7219
      %v7293 = vpop.f32.mrb[0].mxu0
      %v7294 = vadd.f32 %v7205, %v7293
      %v7295 = vpop.f32.mrb[0].mxu0
      %7296 = vmatprep.mubr.f32.mxu0 0.0
      %7297 = vmatmul.mubr.f32.gmra.mrb[0].mxu0 %v7222
      %v7298 = vpop.f32.mrb[0].mxu0
      %v7299 = vadd.f32 %v7210, %v7298
      %v7300 = vpop.f32.mrb[0].mxu0
      %7301 = vmatprep.mubr.f32.mxu0 0.0
      %7302 = vmatmul.mubr.f32.gmra.mrb[0].mxu0 %v7225
      %v7303 = vpop.f32.mrb[0].mxu0
      %v7304 = vadd.f32 %v7215, %v7303
      %v7305 = vpop.f32.mrb[0].mxu0
      %7306 = vdwg.mxu0
      %v7307 = vld [vmem:[#allocation5 + $0x2] sm:$0xff]
      %v7308 = vld [vmem:[#allocation5 + $0xa] sm:$0xff]
      %v7309 = vld [vmem:[#allocation5 + $0x12] sm:$0xff]
      %v7310 = vld [vmem:[%s15 + $0x20] sm:$0xff]
      %v7311 = vld [vmem:[%s15 + $0x28] sm:$0xff]
      %v7313 = vsel %vm749, %v7307, 0
      %v7316 = vsel %vm749, %v7308, 0
      %v7319 = vsel %vm749, %v7309, 0
      %7321 = vmatprep.subr.mxu0 0.0
      %7322 = vmatpush1.msra.mxu0 %v7310
      %7323 = vmatprep.subr.mxu0 0.0
      %7324 = vmatpush1.msra.mxu0 %v7311
      %7325 = vmatprep.subr.mxu0 0.0
      %7326 = vmatpush1.msra.mxu0 0.0
      %7327 = vmatprep.subr.mxu0 0.0
      %7328 = vmatpush1.msra.mxu0 0.0
      %7329 = vmatprep.subr.mxu0 0.0
      %7330 = vmatpush1.msra.mxu0 0.0
      %7331 = vmatprep.subr.mxu0 0.0
      %7332 = vmatpush1.msra.mxu0 0.0
      %7333 = vmatprep.subr.mxu0 0.0
      %7334 = vmatpush1.msra.mxu0 0.0
      %7335 = vmatprep.subr.mxu0 0.0
      %7336 = vmatpush1.msra.mxu0 0.0
      %7337 = vmatprep.subr.mxu0 0.0
      %7338 = vmatpush1.msra.mxu0 0.0
      %7339 = vmatprep.subr.mxu0 0.0
      %7340 = vmatpush1.msra.mxu0 0.0
      %7341 = vmatprep.subr.mxu0 0.0
      %7342 = vmatpush1.msra.mxu0 0.0
      %7343 = vmatprep.subr.mxu0 0.0
      %7344 = vmatpush1.msra.mxu0 0.0
      %7345 = vmatprep.subr.mxu0 0.0
      %7346 = vmatpush1.msra.mxu0 0.0
      %7347 = vmatprep.subr.mxu0 0.0
      %7348 = vmatpush1.msra.mxu0 0.0
      %7349 = vmatprep.subr.mxu0 0.0
      %7350 = vmatpush1.msra.mxu0 0.0
      %7351 = vmatprep.subr.mxu0 0.0
      %7352 = vmatpush1.msra.mxu0 0.0
      %7353 = vmatprep.subr.mxu0 0.0
      %7354 = vmatpush1.msra.mxu0 0.0
      %7355 = vmatprep.subr.mxu0 0.0
      %7356 = vmatpush1.msra.mxu0 0.0
      %7357 = vmatprep.subr.mxu0 0.0
      %7358 = vmatpush1.msra.mxu0 0.0
      %7359 = vmatprep.subr.mxu0 0.0
      %7360 = vmatpush1.msra.mxu0 0.0
      %7361 = vmatprep.subr.mxu0 0.0
      %7362 = vmatpush1.msra.mxu0 0.0
      %7363 = vmatprep.subr.mxu0 0.0
      %7364 = vmatpush1.msra.mxu0 0.0
      %7365 = vmatprep.subr.mxu0 0.0
      %7366 = vmatpush1.msra.mxu0 0.0
      %7367 = vmatprep.subr.mxu0 0.0
      %7368 = vmatpush1.msra.mxu0 0.0
      %7369 = vmatprep.subr.mxu0 0.0
      %7370 = vmatpush1.msra.mxu0 0.0
      %7371 = vmatprep.subr.mxu0 0.0
      %7372 = vmatpush1.msra.mxu0 0.0
      %7373 = vmatprep.subr.mxu0 0.0
      %7374 = vmatpush1.msra.mxu0 0.0
      %7375 = vmatprep.subr.mxu0 0.0
      %7376 = vmatpush1.msra.mxu0 0.0
      %7377 = vmatprep.subr.mxu0 0.0
      %7378 = vmatpush1.msra.mxu0 0.0
      %7379 = vmatprep.subr.mxu0 0.0
      %7380 = vmatpush1.msra.mxu0 0.0
      %7381 = vmatprep.subr.mxu0 0.0
      %7382 = vmatpush1.msra.mxu0 0.0
      %7383 = vmatprep.subr.mxu0 0.0
      %7384 = vmatpush1.msra.mxu0 0.0
      %7385 = vmatprep.mubr.f32.mxu0 0.0
      %7386 = vmatmul.mubr.f32.gmra.mrb[0].mxu0 %v7313
      %v7387 = vpop.f32.mrb[0].mxu0
      %v7388 = vadd.f32 0.0, %v7387
      %v7389 = vpop.f32.mrb[0].mxu0
      %7390 = vmatprep.mubr.f32.mxu0 0.0
      %7391 = vmatmul.mubr.f32.gmra.mrb[0].mxu0 %v7316
      %v7392 = vpop.f32.mrb[0].mxu0
      %v7393 = vadd.f32 0.0, %v7392
      %v7394 = vpop.f32.mrb[0].mxu0
      %7395 = vmatprep.mubr.f32.mxu0 0.0
      %7396 = vmatmul.mubr.f32.gmra.mrb[0].mxu0 %v7319
      %v7397 = vpop.f32.mrb[0].mxu0
      %v7398 = vadd.f32 0.0, %v7397
      %v7399 = vpop.f32.mrb[0].mxu0
      %7400 = vdwg.mxu0
      %v7401 = vadd.f32 %v7294, %v7388
      %v7402 = vadd.f32 %v7299, %v7393
      %v7403 = vadd.f32 %v7304, %v7398
      %v7404 = vld [vmem:[#allocation5 + $0x6] sm:$0xff]
      %v7405 = vld [vmem:[#allocation5 + $0xe] sm:$0xff]
      %v7406 = vld [vmem:[#allocation5 + $0x16] sm:$0xff]
      %v7407 = vld [vmem:[%s15 + $0x30] sm:$0xff]
      %v7408 = vld [vmem:[%s15 + $0x38] sm:$0xff]
      %v7410 = vsel %vm749, %v7404, 0
      %v7413 = vsel %vm749, %v7405, 0
      %v7416 = vsel %vm749, %v7406, 0
      %7418 = vmatprep.subr.mxu0 0.0
      %7419 = vmatpush1.msra.mxu0 %v7407
      %7420 = vmatprep.subr.mxu0 0.0
      %7421 = vmatpush1.msra.mxu0 %v7408
      %7422 = vmatprep.subr.mxu0 0.0
      %7423 = vmatpush1.msra.mxu0 0.0
      %7424 = vmatprep.subr.mxu0 0.0
      %7425 = vmatpush1.msra.mxu0 0.0
      %7426 = vmatprep.subr.mxu0 0.0
      %7427 = vmatpush1.msra.mxu0 0.0
      %7428 = vmatprep.subr.mxu0 0.0
      %7429 = vmatpush1.msra.mxu0 0.0
      %7430 = vmatprep.subr.mxu0 0.0
      %7431 = vmatpush1.msra.mxu0 0.0
      %7432 = vmatprep.subr.mxu0 0.0
      %7433 = vmatpush1.msra.mxu0 0.0
      %7434 = vmatprep.subr.mxu0 0.0
      %7435 = vmatpush1.msra.mxu0 0.0
      %7436 = vmatprep.subr.mxu0 0.0
      %7437 = vmatpush1.msra.mxu0 0.0
      %7438 = vmatprep.subr.mxu0 0.0
      %7439 = vmatpush1.msra.mxu0 0.0
      %7440 = vmatprep.subr.mxu0 0.0
      %7441 = vmatpush1.msra.mxu0 0.0
      %7442 = vmatprep.subr.mxu0 0.0
      %7443 = vmatpush1.msra.mxu0 0.0
      %7444 = vmatprep.subr.mxu0 0.0
      %7445 = vmatpush1.msra.mxu0 0.0
      %7446 = vmatprep.subr.mxu0 0.0
      %7447 = vmatpush1.msra.mxu0 0.0
      %7448 = vmatprep.subr.mxu0 0.0
      %7449 = vmatpush1.msra.mxu0 0.0
      %7450 = vmatprep.subr.mxu0 0.0
      %7451 = vmatpush1.msra.mxu0 0.0
      %7452 = vmatprep.subr.mxu0 0.0
      %7453 = vmatpush1.msra.mxu0 0.0
      %7454 = vmatprep.subr.mxu0 0.0
      %7455 = vmatpush1.msra.mxu0 0.0
      %7456 = vmatprep.subr.mxu0 0.0
      %7457 = vmatpush1.msra.mxu0 0.0
      %7458 = vmatprep.subr.mxu0 0.0
      %7459 = vmatpush1.msra.mxu0 0.0
      %7460 = vmatprep.subr.mxu0 0.0
      %7461 = vmatpush1.msra.mxu0 0.0
      %7462 = vmatprep.subr.mxu0 0.0
      %7463 = vmatpush1.msra.mxu0 0.0
      %7464 = vmatprep.subr.mxu0 0.0
      %7465 = vmatpush1.msra.mxu0 0.0
      %7466 = vmatprep.subr.mxu0 0.0
      %7467 = vmatpush1.msra.mxu0 0.0
      %7468 = vmatprep.subr.mxu0 0.0
      %7469 = vmatpush1.msra.mxu0 0.0
      %7470 = vmatprep.subr.mxu0 0.0
      %7471 = vmatpush1.msra.mxu0 0.0
      %7472 = vmatprep.subr.mxu0 0.0
      %7473 = vmatpush1.msra.mxu0 0.0
      %7474 = vmatprep.subr.mxu0 0.0
      %7475 = vmatpush1.msra.mxu0 0.0
      %7476 = vmatprep.subr.mxu0 0.0
      %7477 = vmatpush1.msra.mxu0 0.0
      %7478 = vmatprep.subr.mxu0 0.0
      %7479 = vmatpush1.msra.mxu0 0.0
      %7480 = vmatprep.subr.mxu0 0.0
      %7481 = vmatpush1.msra.mxu0 0.0
      %7482 = vmatprep.mubr.f32.mxu0 0.0
      %7483 = vmatmul.mubr.f32.gmra.mrb[0].mxu0 %v7410
      %v7484 = vpop.f32.mrb[0].mxu0
      %v7485 = vadd.f32 0.0, %v7484
      %v7486 = vpop.f32.mrb[0].mxu0
      %7487 = vmatprep.mubr.f32.mxu0 0.0
      %7488 = vmatmul.mubr.f32.gmra.mrb[0].mxu0 %v7413
      %v7489 = vpop.f32.mrb[0].mxu0
      %v7490 = vadd.f32 0.0, %v7489
      %v7491 = vpop.f32.mrb[0].mxu0
      %7492 = vmatprep.mubr.f32.mxu0 0.0
      %7493 = vmatmul.mubr.f32.gmra.mrb[0].mxu0 %v7416
      %v7494 = vpop.f32.mrb[0].mxu0
      %v7495 = vadd.f32 0.0, %v7494
      %v7496 = vpop.f32.mrb[0].mxu0
      %7497 = vdwg.mxu0
      %v7498 = vadd.f32 %v7401, %v7485
      %v7499 = vadd.f32 %v7402, %v7490
      %v7500 = vadd.f32 %v7403, %v7495
      %v7501 = vld [vmem:[#allocation5 + $0x7] sm:$0xff]
      %v7502 = vld [vmem:[#allocation5 + $0xf] sm:$0xff]
      %v7503 = vld [vmem:[#allocation5 + $0x17] sm:$0xff]
      %v7504 = vld [vmem:[%s15 + $0x40] sm:$0xff]
      %v7505 = vld [vmem:[%s15 + $0x48] sm:$0xff]
      %v7507 = vsel %vm749, %v7501, 0
      %v7510 = vsel %vm749, %v7502, 0
      %v7513 = vsel %vm749, %v7503, 0
      %7515 = vmatprep.subr.mxu0 0.0
      %7516 = vmatpush1.msra.mxu0 %v7504
      %7517 = vmatprep.subr.mxu0 0.0
      %7518 = vmatpush1.msra.mxu0 %v7505
      %7519 = vmatprep.subr.mxu0 0.0
      %7520 = vmatpush1.msra.mxu0 0.0
      %7521 = vmatprep.subr.mxu0 0.0
      %7522 = vmatpush1.msra.mxu0 0.0
      %7523 = vmatprep.subr.mxu0 0.0
      %7524 = vmatpush1.msra.mxu0 0.0
      %7525 = vmatprep.subr.mxu0 0.0
      %7526 = vmatpush1.msra.mxu0 0.0
      %7527 = vmatprep.subr.mxu0 0.0
      %7528 = vmatpush1.msra.mxu0 0.0
      %7529 = vmatprep.subr.mxu0 0.0
      %7530 = vmatpush1.msra.mxu0 0.0
      %7531 = vmatprep.subr.mxu0 0.0
      %7532 = vmatpush1.msra.mxu0 0.0
      %7533 = vmatprep.subr.mxu0 0.0
      %7534 = vmatpush1.msra.mxu0 0.0
      %7535 = vmatprep.subr.mxu0 0.0
      %7536 = vmatpush1.msra.mxu0 0.0
      %7537 = vmatprep.subr.mxu0 0.0
      %7538 = vmatpush1.msra.mxu0 0.0
      %7539 = vmatprep.subr.mxu0 0.0
      %7540 = vmatpush1.msra.mxu0 0.0
      %7541 = vmatprep.subr.mxu0 0.0
      %7542 = vmatpush1.msra.mxu0 0.0
      %7543 = vmatprep.subr.mxu0 0.0
      %7544 = vmatpush1.msra.mxu0 0.0
      %7545 = vmatprep.subr.mxu0 0.0
      %7546 = vmatpush1.msra.mxu0 0.0
      %7547 = vmatprep.subr.mxu0 0.0
      %7548 = vmatpush1.msra.mxu0 0.0
      %7549 = vmatprep.subr.mxu0 0.0
      %7550 = vmatpush1.msra.mxu0 0.0
      %7551 = vmatprep.subr.mxu0 0.0
      %7552 = vmatpush1.msra.mxu0 0.0
      %7553 = vmatprep.subr.mxu0 0.0
      %7554 = vmatpush1.msra.mxu0 0.0
      %7555 = vmatprep.subr.mxu0 0.0
      %7556 = vmatpush1.msra.mxu0 0.0
      %7557 = vmatprep.subr.mxu0 0.0
      %7558 = vmatpush1.msra.mxu0 0.0
      %7559 = vmatprep.subr.mxu0 0.0
      %7560 = vmatpush1.msra.mxu0 0.0
      %7561 = vmatprep.subr.mxu0 0.0
      %7562 = vmatpush1.msra.mxu0 0.0
      %7563 = vmatprep.subr.mxu0 0.0
      %7564 = vmatpush1.msra.mxu0 0.0
      %7565 = vmatprep.subr.mxu0 0.0
      %7566 = vmatpush1.msra.mxu0 0.0
      %7567 = vmatprep.subr.mxu0 0.0
      %7568 = vmatpush1.msra.mxu0 0.0
      %7569 = vmatprep.subr.mxu0 0.0
      %7570 = vmatpush1.msra.mxu0 0.0
      %7571 = vmatprep.subr.mxu0 0.0
      %7572 = vmatpush1.msra.mxu0 0.0
      %7573 = vmatprep.subr.mxu0 0.0
      %7574 = vmatpush1.msra.mxu0 0.0
      %7575 = vmatprep.subr.mxu0 0.0
      %7576 = vmatpush1.msra.mxu0 0.0
      %7577 = vmatprep.subr.mxu0 0.0
      %7578 = vmatpush1.msra.mxu0 0.0
      %7579 = vmatprep.mubr.f32.mxu0 0.0
      %7580 = vmatmul.mubr.f32.gmra.mrb[0].mxu0 %v7507
      %v7581 = vpop.f32.mrb[0].mxu0
      %v7582 = vadd.f32 0.0, %v7581
      %v7583 = vpop.f32.mrb[0].mxu0
      %7584 = vmatprep.mubr.f32.mxu0 0.0
      %7585 = vmatmul.mubr.f32.gmra.mrb[0].mxu0 %v7510
      %v7586 = vpop.f32.mrb[0].mxu0
      %v7587 = vadd.f32 0.0, %v7586
      %v7588 = vpop.f32.mrb[0].mxu0
      %7589 = vmatprep.mubr.f32.mxu0 0.0
      %7590 = vmatmul.mubr.f32.gmra.mrb[0].mxu0 %v7513
      %v7591 = vpop.f32.mrb[0].mxu0
      %v7592 = vadd.f32 0.0, %v7591
      %v7593 = vpop.f32.mrb[0].mxu0
      %7594 = vdwg.mxu0
      %v7595 = vadd.f32 %v7498, %v7582
      %v7596 = vadd.f32 %v7499, %v7587
      %v7597 = vadd.f32 %v7500, %v7592
      %v7598 = vld [vmem:[#allocation5 + $0x8] sm:$0xff]
      %v7599 = vld [vmem:[#allocation5 + $0x10] sm:$0xff]
      %v7600 = vld [vmem:[#allocation5 + $0x18] sm:$0xff]
      %v7601 = vld [vmem:[%s15 + $0x50] sm:$0xff]
      %v7602 = vld [vmem:[%s15 + $0x58] sm:$0xff]
      %v7604 = vsel %vm749, %v7598, 0
      %v7607 = vsel %vm749, %v7599, 0
      %v7610 = vsel %vm749, %v7600, 0
      %7612 = vmatprep.subr.mxu0 0.0
      %7613 = vmatpush1.msra.mxu0 %v7601
      %7614 = vmatprep.subr.mxu0 0.0
      %7615 = vmatpush1.msra.mxu0 %v7602
      %7616 = vmatprep.subr.mxu0 0.0
      %7617 = vmatpush1.msra.mxu0 0.0
      %7618 = vmatprep.subr.mxu0 0.0
      %7619 = vmatpush1.msra.mxu0 0.0
      %7620 = vmatprep.subr.mxu0 0.0
      %7621 = vmatpush1.msra.mxu0 0.0
      %7622 = vmatprep.subr.mxu0 0.0
      %7623 = vmatpush1.msra.mxu0 0.0
      %7624 = vmatprep.subr.mxu0 0.0
      %7625 = vmatpush1.msra.mxu0 0.0
      %7626 = vmatprep.subr.mxu0 0.0
      %7627 = vmatpush1.msra.mxu0 0.0
      %7628 = vmatprep.subr.mxu0 0.0
      %7629 = vmatpush1.msra.mxu0 0.0
      %7630 = vmatprep.subr.mxu0 0.0
      %7631 = vmatpush1.msra.mxu0 0.0
      %7632 = vmatprep.subr.mxu0 0.0
      %7633 = vmatpush1.msra.mxu0 0.0
      %7634 = vmatprep.subr.mxu0 0.0
      %7635 = vmatpush1.msra.mxu0 0.0
      %7636 = vmatprep.subr.mxu0 0.0
      %7637 = vmatpush1.msra.mxu0 0.0
      %7638 = vmatprep.subr.mxu0 0.0
      %7639 = vmatpush1.msra.mxu0 0.0
      %7640 = vmatprep.subr.mxu0 0.0
      %7641 = vmatpush1.msra.mxu0 0.0
      %7642 = vmatprep.subr.mxu0 0.0
      %7643 = vmatpush1.msra.mxu0 0.0
      %7644 = vmatprep.subr.mxu0 0.0
      %7645 = vmatpush1.msra.mxu0 0.0
      %7646 = vmatprep.subr.mxu0 0.0
      %7647 = vmatpush1.msra.mxu0 0.0
      %7648 = vmatprep.subr.mxu0 0.0
      %7649 = vmatpush1.msra.mxu0 0.0
      %7650 = vmatprep.subr.mxu0 0.0
      %7651 = vmatpush1.msra.mxu0 0.0
      %7652 = vmatprep.subr.mxu0 0.0
      %7653 = vmatpush1.msra.mxu0 0.0
      %7654 = vmatprep.subr.mxu0 0.0
      %7655 = vmatpush1.msra.mxu0 0.0
      %7656 = vmatprep.subr.mxu0 0.0
      %7657 = vmatpush1.msra.mxu0 0.0
      %7658 = vmatprep.subr.mxu0 0.0
      %7659 = vmatpush1.msra.mxu0 0.0
      %7660 = vmatprep.subr.mxu0 0.0
      %7661 = vmatpush1.msra.mxu0 0.0
      %7662 = vmatprep.subr.mxu0 0.0
      %7663 = vmatpush1.msra.mxu0 0.0
      %7664 = vmatprep.subr.mxu0 0.0
      %7665 = vmatpush1.msra.mxu0 0.0
      %7666 = vmatprep.subr.mxu0 0.0
      %7667 = vmatpush1.msra.mxu0 0.0
      %7668 = vmatprep.subr.mxu0 0.0
      %7669 = vmatpush1.msra.mxu0 0.0
      %7670 = vmatprep.subr.mxu0 0.0
      %7671 = vmatpush1.msra.mxu0 0.0
      %7672 = vmatprep.subr.mxu0 0.0
      %7673 = vmatpush1.msra.mxu0 0.0
      %7674 = vmatprep.subr.mxu0 0.0
      %7675 = vmatpush1.msra.mxu0 0.0
      %7676 = vmatprep.mubr.f32.mxu0 0.0
      %7677 = vmatmul.mubr.f32.gmra.mrb[0].mxu0 %v7604
      %v7678 = vpop.f32.mrb[0].mxu0
      %v7679 = vadd.f32 0.0, %v7678
      %v7680 = vpop.f32.mrb[0].mxu0
      %7681 = vmatprep.mubr.f32.mxu0 0.0
      %7682 = vmatmul.mubr.f32.gmra.mrb[0].mxu0 %v7607
      %v7683 = vpop.f32.mrb[0].mxu0
      %v7684 = vadd.f32 0.0, %v7683
      %v7685 = vpop.f32.mrb[0].mxu0
      %7686 = vmatprep.mubr.f32.mxu0 0.0
      %7687 = vmatmul.mubr.f32.gmra.mrb[0].mxu0 %v7610
      %v7688 = vpop.f32.mrb[0].mxu0
      %v7689 = vadd.f32 0.0, %v7688
      %v7690 = vpop.f32.mrb[0].mxu0
      %7691 = vdwg.mxu0
      %v7692 = vadd.f32 %v7595, %v7679
      %v7693 = vadd.f32 %v7596, %v7684
      %v7694 = vadd.f32 %v7597, %v7689
      %v7695 = vld [vmem:[#allocation5 + $0xc] sm:$0xff]
      %v7696 = vld [vmem:[#allocation5 + $0x14] sm:$0xff]
      %v7697 = vld [vmem:[#allocation5 + $0x1c] sm:$0xff]
      %v7698 = vld [vmem:[%s15 + $0x60] sm:$0xff]
      %v7699 = vld [vmem:[%s15 + $0x68] sm:$0xff]
      %v7701 = vsel %vm749, %v7695, 0
      %v7704 = vsel %vm749, %v7696, 0
      %v7707 = vsel %vm749, %v7697, 0
      %7709 = vmatprep.subr.mxu0 0.0
      %7710 = vmatpush1.msra.mxu0 %v7698
      %7711 = vmatprep.subr.mxu0 0.0
      %7712 = vmatpush1.msra.mxu0 %v7699
      %7713 = vmatprep.subr.mxu0 0.0
      %7714 = vmatpush1.msra.mxu0 0.0
      %7715 = vmatprep.subr.mxu0 0.0
      %7716 = vmatpush1.msra.mxu0 0.0
      %7717 = vmatprep.subr.mxu0 0.0
      %7718 = vmatpush1.msra.mxu0 0.0
      %7719 = vmatprep.subr.mxu0 0.0
      %7720 = vmatpush1.msra.mxu0 0.0
      %7721 = vmatprep.subr.mxu0 0.0
      %7722 = vmatpush1.msra.mxu0 0.0
      %7723 = vmatprep.subr.mxu0 0.0
      %7724 = vmatpush1.msra.mxu0 0.0
      %7725 = vmatprep.subr.mxu0 0.0
      %7726 = vmatpush1.msra.mxu0 0.0
      %7727 = vmatprep.subr.mxu0 0.0
      %7728 = vmatpush1.msra.mxu0 0.0
      %7729 = vmatprep.subr.mxu0 0.0
      %7730 = vmatpush1.msra.mxu0 0.0
      %7731 = vmatprep.subr.mxu0 0.0
      %7732 = vmatpush1.msra.mxu0 0.0
      %7733 = vmatprep.subr.mxu0 0.0
      %7734 = vmatpush1.msra.mxu0 0.0
      %7735 = vmatprep.subr.mxu0 0.0
      %7736 = vmatpush1.msra.mxu0 0.0
      %7737 = vmatprep.subr.mxu0 0.0
      %7738 = vmatpush1.msra.mxu0 0.0
      %7739 = vmatprep.subr.mxu0 0.0
      %7740 = vmatpush1.msra.mxu0 0.0
      %7741 = vmatprep.subr.mxu0 0.0
      %7742 = vmatpush1.msra.mxu0 0.0
      %7743 = vmatprep.subr.mxu0 0.0
      %7744 = vmatpush1.msra.mxu0 0.0
      %7745 = vmatprep.subr.mxu0 0.0
      %7746 = vmatpush1.msra.mxu0 0.0
      %7747 = vmatprep.subr.mxu0 0.0
      %7748 = vmatpush1.msra.mxu0 0.0
      %7749 = vmatprep.subr.mxu0 0.0
      %7750 = vmatpush1.msra.mxu0 0.0
      %7751 = vmatprep.subr.mxu0 0.0
      %7752 = vmatpush1.msra.mxu0 0.0
      %7753 = vmatprep.subr.mxu0 0.0
      %7754 = vmatpush1.msra.mxu0 0.0
      %7755 = vmatprep.subr.mxu0 0.0
      %7756 = vmatpush1.msra.mxu0 0.0
      %7757 = vmatprep.subr.mxu0 0.0
      %7758 = vmatpush1.msra.mxu0 0.0
      %7759 = vmatprep.subr.mxu0 0.0
      %7760 = vmatpush1.msra.mxu0 0.0
      %7761 = vmatprep.subr.mxu0 0.0
      %7762 = vmatpush1.msra.mxu0 0.0
      %7763 = vmatprep.subr.mxu0 0.0
      %7764 = vmatpush1.msra.mxu0 0.0
      %7765 = vmatprep.subr.mxu0 0.0
      %7766 = vmatpush1.msra.mxu0 0.0
      %7767 = vmatprep.subr.mxu0 0.0
      %7768 = vmatpush1.msra.mxu0 0.0
      %7769 = vmatprep.subr.mxu0 0.0
      %7770 = vmatpush1.msra.mxu0 0.0
      %7771 = vmatprep.subr.mxu0 0.0
      %7772 = vmatpush1.msra.mxu0 0.0
      %7773 = vmatprep.mubr.f32.mxu0 0.0
      %7774 = vmatmul.mubr.f32.gmra.mrb[0].mxu0 %v7701
      %v7775 = vpop.f32.mrb[0].mxu0
      %v7776 = vadd.f32 0.0, %v7775
      %v7777 = vpop.f32.mrb[0].mxu0
      %7778 = vmatprep.mubr.f32.mxu0 0.0
      %7779 = vmatmul.mubr.f32.gmra.mrb[0].mxu0 %v7704
      %v7780 = vpop.f32.mrb[0].mxu0
      %v7781 = vadd.f32 0.0, %v7780
      %v7782 = vpop.f32.mrb[0].mxu0
      %7783 = vmatprep.mubr.f32.mxu0 0.0
      %7784 = vmatmul.mubr.f32.gmra.mrb[0].mxu0 %v7707
      %v7785 = vpop.f32.mrb[0].mxu0
      %v7786 = vadd.f32 0.0, %v7785
      %v7787 = vpop.f32.mrb[0].mxu0
      %7788 = vdwg.mxu0
      %v7789 = vadd.f32 %v7692, %v7776
      %v7790 = vadd.f32 %v7693, %v7781
      %v7791 = vadd.f32 %v7694, %v7786
      %v7792 = vld [vmem:[#allocation5 + $0xd] sm:$0xff]
      %v7793 = vld [vmem:[#allocation5 + $0x15] sm:$0xff]
      %v7794 = vld [vmem:[#allocation5 + $0x1d] sm:$0xff]
      %v7795 = vld [vmem:[%s15 + $0x70] sm:$0xff]
      %v7796 = vld [vmem:[%s15 + $0x78] sm:$0xff]
      %v7798 = vsel %vm749, %v7792, 0
      %v7801 = vsel %vm749, %v7793, 0
      %v7804 = vsel %vm749, %v7794, 0
      %7806 = vmatprep.subr.mxu0 0.0
      %7807 = vmatpush1.msra.mxu0 %v7795
      %7808 = vmatprep.subr.mxu0 0.0
      %7809 = vmatpush1.msra.mxu0 %v7796
      %7810 = vmatprep.subr.mxu0 0.0
      %7811 = vmatpush1.msra.mxu0 0.0
      %7812 = vmatprep.subr.mxu0 0.0
      %7813 = vmatpush1.msra.mxu0 0.0
      %7814 = vmatprep.subr.mxu0 0.0
      %7815 = vmatpush1.msra.mxu0 0.0
      %7816 = vmatprep.subr.mxu0 0.0
      %7817 = vmatpush1.msra.mxu0 0.0
      %7818 = vmatprep.subr.mxu0 0.0
      %7819 = vmatpush1.msra.mxu0 0.0
      %7820 = vmatprep.subr.mxu0 0.0
      %7821 = vmatpush1.msra.mxu0 0.0
      %7822 = vmatprep.subr.mxu0 0.0
      %7823 = vmatpush1.msra.mxu0 0.0
      %7824 = vmatprep.subr.mxu0 0.0
      %7825 = vmatpush1.msra.mxu0 0.0
      %7826 = vmatprep.subr.mxu0 0.0
      %7827 = vmatpush1.msra.mxu0 0.0
      %7828 = vmatprep.subr.mxu0 0.0
      %7829 = vmatpush1.msra.mxu0 0.0
      %7830 = vmatprep.subr.mxu0 0.0
      %7831 = vmatpush1.msra.mxu0 0.0
      %7832 = vmatprep.subr.mxu0 0.0
      %7833 = vmatpush1.msra.mxu0 0.0
      %7834 = vmatprep.subr.mxu0 0.0
      %7835 = vmatpush1.msra.mxu0 0.0
      %7836 = vmatprep.subr.mxu0 0.0
      %7837 = vmatpush1.msra.mxu0 0.0
      %7838 = vmatprep.subr.mxu0 0.0
      %7839 = vmatpush1.msra.mxu0 0.0
      %7840 = vmatprep.subr.mxu0 0.0
      %7841 = vmatpush1.msra.mxu0 0.0
      %7842 = vmatprep.subr.mxu0 0.0
      %7843 = vmatpush1.msra.mxu0 0.0
      %7844 = vmatprep.subr.mxu0 0.0
      %7845 = vmatpush1.msra.mxu0 0.0
      %7846 = vmatprep.subr.mxu0 0.0
      %7847 = vmatpush1.msra.mxu0 0.0
      %7848 = vmatprep.subr.mxu0 0.0
      %7849 = vmatpush1.msra.mxu0 0.0
      %7850 = vmatprep.subr.mxu0 0.0
      %7851 = vmatpush1.msra.mxu0 0.0
      %7852 = vmatprep.subr.mxu0 0.0
      %7853 = vmatpush1.msra.mxu0 0.0
      %7854 = vmatprep.subr.mxu0 0.0
      %7855 = vmatpush1.msra.mxu0 0.0
      %7856 = vmatprep.subr.mxu0 0.0
      %7857 = vmatpush1.msra.mxu0 0.0
      %7858 = vmatprep.subr.mxu0 0.0
      %7859 = vmatpush1.msra.mxu0 0.0
      %7860 = vmatprep.subr.mxu0 0.0
      %7861 = vmatpush1.msra.mxu0 0.0
      %7862 = vmatprep.subr.mxu0 0.0
      %7863 = vmatpush1.msra.mxu0 0.0
      %7864 = vmatprep.subr.mxu0 0.0
      %7865 = vmatpush1.msra.mxu0 0.0
      %7866 = vmatprep.subr.mxu0 0.0
      %7867 = vmatpush1.msra.mxu0 0.0
      %7868 = vmatprep.subr.mxu0 0.0
      %7869 = vmatpush1.msra.mxu0 0.0
      %7870 = vmatprep.mubr.f32.mxu0 0.0
      %7871 = vmatmul.mubr.f32.gmra.mrb[0].mxu0 %v7798
      %v7872 = vpop.f32.mrb[0].mxu0
      %v7873 = vadd.f32 0.0, %v7872
      %v7874 = vpop.f32.mrb[0].mxu0
      %7875 = vmatprep.mubr.f32.mxu0 0.0
      %7876 = vmatmul.mubr.f32.gmra.mrb[0].mxu0 %v7801
      %v7877 = vpop.f32.mrb[0].mxu0
      %v7878 = vadd.f32 0.0, %v7877
      %v7879 = vpop.f32.mrb[0].mxu0
      %7880 = vmatprep.mubr.f32.mxu0 0.0
      %7881 = vmatmul.mubr.f32.gmra.mrb[0].mxu0 %v7804
      %v7882 = vpop.f32.mrb[0].mxu0
      %v7883 = vadd.f32 0.0, %v7882
      %v7884 = vpop.f32.mrb[0].mxu0
      %7885 = vdwg.mxu0
      %v7886 = vadd.f32 %v7789, %v7873
      %v7887 = vadd.f32 %v7790, %v7878
      %v7888 = vadd.f32 %v7791, %v7883
      %v7889 = vld [vmem:[#allocation5 + $0xe] sm:$0xff]
      %v7890 = vld [vmem:[#allocation5 + $0x16] sm:$0xff]
      %v7891 = vld [vmem:[#allocation5 + $0x1e] sm:$0xff]
      %v7892 = vld [vmem:[%s15 + $0x80] sm:$0xff]
      %v7893 = vld [vmem:[%s15 + $0x88] sm:$0xff]
      %v7895 = vsel %vm749, %v7889, 0
      %v7898 = vsel %vm749, %v7890, 0
      %v7901 = vsel %vm749, %v7891, 0
      %7903 = vmatprep.subr.mxu0 0.0
      %7904 = vmatpush1.msra.mxu0 %v7892
      %7905 = vmatprep.subr.mxu0 0.0
      %7906 = vmatpush1.msra.mxu0 %v7893
      %7907 = vmatprep.subr.mxu0 0.0
      %7908 = vmatpush1.msra.mxu0 0.0
      %7909 = vmatprep.subr.mxu0 0.0
      %7910 = vmatpush1.msra.mxu0 0.0
      %7911 = vmatprep.subr.mxu0 0.0
      %7912 = vmatpush1.msra.mxu0 0.0
      %7913 = vmatprep.subr.mxu0 0.0
      %7914 = vmatpush1.msra.mxu0 0.0
      %7915 = vmatprep.subr.mxu0 0.0
      %7916 = vmatpush1.msra.mxu0 0.0
      %7917 = vmatprep.subr.mxu0 0.0
      %7918 = vmatpush1.msra.mxu0 0.0
      %7919 = vmatprep.subr.mxu0 0.0
      %7920 = vmatpush1.msra.mxu0 0.0
      %7921 = vmatprep.subr.mxu0 0.0
      %7922 = vmatpush1.msra.mxu0 0.0
      %7923 = vmatprep.subr.mxu0 0.0
      %7924 = vmatpush1.msra.mxu0 0.0
      %7925 = vmatprep.subr.mxu0 0.0
      %7926 = vmatpush1.msra.mxu0 0.0
      %7927 = vmatprep.subr.mxu0 0.0
      %7928 = vmatpush1.msra.mxu0 0.0
      %7929 = vmatprep.subr.mxu0 0.0
      %7930 = vmatpush1.msra.mxu0 0.0
      %7931 = vmatprep.subr.mxu0 0.0
      %7932 = vmatpush1.msra.mxu0 0.0
      %7933 = vmatprep.subr.mxu0 0.0
      %7934 = vmatpush1.msra.mxu0 0.0
      %7935 = vmatprep.subr.mxu0 0.0
      %7936 = vmatpush1.msra.mxu0 0.0
      %7937 = vmatprep.subr.mxu0 0.0
      %7938 = vmatpush1.msra.mxu0 0.0
      %7939 = vmatprep.subr.mxu0 0.0
      %7940 = vmatpush1.msra.mxu0 0.0
      %7941 = vmatprep.subr.mxu0 0.0
      %7942 = vmatpush1.msra.mxu0 0.0
      %7943 = vmatprep.subr.mxu0 0.0
      %7944 = vmatpush1.msra.mxu0 0.0
      %7945 = vmatprep.subr.mxu0 0.0
      %7946 = vmatpush1.msra.mxu0 0.0
      %7947 = vmatprep.subr.mxu0 0.0
      %7948 = vmatpush1.msra.mxu0 0.0
      %7949 = vmatprep.subr.mxu0 0.0
      %7950 = vmatpush1.msra.mxu0 0.0
      %7951 = vmatprep.subr.mxu0 0.0
      %7952 = vmatpush1.msra.mxu0 0.0
      %7953 = vmatprep.subr.mxu0 0.0
      %7954 = vmatpush1.msra.mxu0 0.0
      %7955 = vmatprep.subr.mxu0 0.0
      %7956 = vmatpush1.msra.mxu0 0.0
      %7957 = vmatprep.subr.mxu0 0.0
      %7958 = vmatpush1.msra.mxu0 0.0
      %7959 = vmatprep.subr.mxu0 0.0
      %7960 = vmatpush1.msra.mxu0 0.0
      %7961 = vmatprep.subr.mxu0 0.0
      %7962 = vmatpush1.msra.mxu0 0.0
      %7963 = vmatprep.subr.mxu0 0.0
      %7964 = vmatpush1.msra.mxu0 0.0
      %7965 = vmatprep.subr.mxu0 0.0
      %7966 = vmatpush1.msra.mxu0 0.0
      %7967 = vmatprep.mubr.f32.mxu0 0.0
      %7968 = vmatmul.mubr.f32.gmra.mrb[0].mxu0 %v7895
      %v7969 = vpop.f32.mrb[0].mxu0
      %v7970 = vadd.f32 0.0, %v7969
      %v7971 = vpop.f32.mrb[0].mxu0
      %7972 = vmatprep.mubr.f32.mxu0 0.0
      %7973 = vmatmul.mubr.f32.gmra.mrb[0].mxu0 %v7898
      %v7974 = vpop.f32.mrb[0].mxu0
      %v7975 = vadd.f32 0.0, %v7974
      %v7976 = vpop.f32.mrb[0].mxu0
      %7977 = vmatprep.mubr.f32.mxu0 0.0
      %7978 = vmatmul.mubr.f32.gmra.mrb[0].mxu0 %v7901
      %v7979 = vpop.f32.mrb[0].mxu0
      %v7980 = vadd.f32 0.0, %v7979
      %v7981 = vpop.f32.mrb[0].mxu0
      %7982 = vdwg.mxu0
      %v7983 = vadd.f32 %v7886, %v7970
      %v7984 = vadd.f32 %v7887, %v7975
      %v7985 = vadd.f32 %v7888, %v7980
      %v7986 = vld [vmem:[%s16] sm:$0x1]
      %v7988 = vlaneseq
      %v7989 = vshrl.u32 %v7988, 7
      %v7990 = vsub.s32 0, %v7989
      %v7991 = vrot.slane %v7986, %v7990
      %v7993 = vadd.f32 %v7983, %v7991
      %v7994 = vadd.f32 %v7984, %v7991
      %v7995 = vadd.f32 %v7985, %v7991
      %v7996 = vmax.f32 %v7993, 0.0
      %v7997 = vmax.f32 %v7994, 0.0
      %v7998 = vmax.f32 %v7995, 0.0
      %7999 = vst.msk [vmem:[%s729] sm:$0xff] %vm749, %v7996
      %8000 = vst.msk [vmem:[%s729 + $0x8] sm:$0xff] %vm749, %v7997
      %8001 = vst.msk [vmem:[%s729 + $0x10] sm:$0xff] %vm749, %v7998
      %v8002 = vld [vmem:[#allocation6] sm:$0xff]
      %v8003 = vld [vmem:[%s17] sm:$0xff]
      %v8004 = vld [vmem:[%s17 + $0x8] sm:$0xff]
      %v8005 = vld [vmem:[#allocation6 + $0x1] sm:$0xff]
      %v8006 = vld [vmem:[%s17 + $0x10] sm:$0xff]
      %v8007 = vld [vmem:[%s17 + $0x18] sm:$0xff]
      %v8009 = vsel %vm749, %v8005, 0
      %8011 = vmatprep.subr.mxu0 0.0
      %8012 = vmatpush1.msra.mxu0 %v8006
      %8013 = vmatprep.subr.mxu0 0.0
      %8014 = vmatpush1.msra.mxu0 %v8007
      %8015 = vmatprep.subr.mxu0 0.0
      %8016 = vmatpush1.msra.mxu0 0.0
      %8017 = vmatprep.subr.mxu0 0.0
      %8018 = vmatpush1.msra.mxu0 0.0
      %8019 = vmatprep.subr.mxu0 0.0
      %8020 = vmatpush1.msra.mxu0 0.0
      %8021 = vmatprep.subr.mxu0 0.0
      %8022 = vmatpush1.msra.mxu0 0.0
      %8023 = vmatprep.subr.mxu0 0.0
      %8024 = vmatpush1.msra.mxu0 0.0
      %8025 = vmatprep.subr.mxu0 0.0
      %8026 = vmatpush1.msra.mxu0 0.0
      %8027 = vmatprep.subr.mxu0 0.0
      %8028 = vmatpush1.msra.mxu0 0.0
      %8029 = vmatprep.subr.mxu0 0.0
      %8030 = vmatpush1.msra.mxu0 0.0
      %8031 = vmatprep.subr.mxu0 0.0
      %8032 = vmatpush1.msra.mxu0 0.0
      %8033 = vmatprep.subr.mxu0 0.0
      %8034 = vmatpush1.msra.mxu0 0.0
      %8035 = vmatprep.subr.mxu0 0.0
      %8036 = vmatpush1.msra.mxu0 0.0
      %8037 = vmatprep.subr.mxu0 0.0
      %8038 = vmatpush1.msra.mxu0 0.0
      %8039 = vmatprep.subr.mxu0 0.0
      %8040 = vmatpush1.msra.mxu0 0.0
      %8041 = vmatprep.subr.mxu0 0.0
      %8042 = vmatpush1.msra.mxu0 0.0
      %8043 = vmatprep.subr.mxu0 0.0
      %8044 = vmatpush1.msra.mxu0 0.0
      %8045 = vmatprep.subr.mxu0 0.0
      %8046 = vmatpush1.msra.mxu0 0.0
      %8047 = vmatprep.subr.mxu0 0.0
      %8048 = vmatpush1.msra.mxu0 0.0
      %8049 = vmatprep.subr.mxu0 0.0
      %8050 = vmatpush1.msra.mxu0 0.0
      %8051 = vmatprep.subr.mxu0 0.0
      %8052 = vmatpush1.msra.mxu0 0.0
      %8053 = vmatprep.subr.mxu0 0.0
      %8054 = vmatpush1.msra.mxu0 0.0
      %8055 = vmatprep.subr.mxu0 0.0
      %8056 = vmatpush1.msra.mxu0 0.0
      %8057 = vmatprep.subr.mxu0 0.0
      %8058 = vmatpush1.msra.mxu0 0.0
      %8059 = vmatprep.subr.mxu0 0.0
      %8060 = vmatpush1.msra.mxu0 0.0
      %8061 = vmatprep.subr.mxu0 0.0
      %8062 = vmatpush1.msra.mxu0 0.0
      %8063 = vmatprep.subr.mxu0 0.0
      %8064 = vmatpush1.msra.mxu0 0.0
      %8065 = vmatprep.subr.mxu0 0.0
      %8066 = vmatpush1.msra.mxu0 0.0
      %8067 = vmatprep.subr.mxu0 0.0
      %8068 = vmatpush1.msra.mxu0 0.0
      %8069 = vmatprep.subr.mxu0 0.0
      %8070 = vmatpush1.msra.mxu0 0.0
      %8071 = vmatprep.subr.mxu0 0.0
      %8072 = vmatpush1.msra.mxu0 0.0
      %8073 = vmatprep.subr.mxu0 0.0
      %8074 = vmatpush1.msra.mxu0 0.0
      %8075 = vmatprep.mubr.f32.mxu0 0.0
      %8076 = vmatmul.mubr.f32.gmra.mrb[0].mxu0 %v8009
      %v8077 = vpop.f32.mrb[0].mxu0
      %v8078 = vadd.f32 0.0, %v8077
      %v8079 = vpop.f32.mrb[0].mxu0
      %8080 = vdwg.mxu0
      %v8082 = vsel %vm749, %v8002, 0
      %8084 = vmatprep.subr.mxu0 0.0
      %8085 = vmatpush1.msra.mxu0 %v8003
      %8086 = vmatprep.subr.mxu0 0.0
      %8087 = vmatpush1.msra.mxu0 %v8004
      %8088 = vmatprep.subr.mxu0 0.0
      %8089 = vmatpush1.msra.mxu0 0.0
      %8090 = vmatprep.subr.mxu0 0.0
      %8091 = vmatpush1.msra.mxu0 0.0
      %8092 = vmatprep.subr.mxu0 0.0
      %8093 = vmatpush1.msra.mxu0 0.0
      %8094 = vmatprep.subr.mxu0 0.0
      %8095 = vmatpush1.msra.mxu0 0.0
      %8096 = vmatprep.subr.mxu0 0.0
      %8097 = vmatpush1.msra.mxu0 0.0
      %8098 = vmatprep.subr.mxu0 0.0
      %8099 = vmatpush1.msra.mxu0 0.0
      %8100 = vmatprep.subr.mxu0 0.0
      %8101 = vmatpush1.msra.mxu0 0.0
      %8102 = vmatprep.subr.mxu0 0.0
      %8103 = vmatpush1.msra.mxu0 0.0
      %8104 = vmatprep.subr.mxu0 0.0
      %8105 = vmatpush1.msra.mxu0 0.0
      %8106 = vmatprep.subr.mxu0 0.0
      %8107 = vmatpush1.msra.mxu0 0.0
      %8108 = vmatprep.subr.mxu0 0.0
      %8109 = vmatpush1.msra.mxu0 0.0
      %8110 = vmatprep.subr.mxu0 0.0
      %8111 = vmatpush1.msra.mxu0 0.0
      %8112 = vmatprep.subr.mxu0 0.0
      %8113 = vmatpush1.msra.mxu0 0.0
      %8114 = vmatprep.subr.mxu0 0.0
      %8115 = vmatpush1.msra.mxu0 0.0
      %8116 = vmatprep.subr.mxu0 0.0
      %8117 = vmatpush1.msra.mxu0 0.0
      %8118 = vmatprep.subr.mxu0 0.0
      %8119 = vmatpush1.msra.mxu0 0.0
      %8120 = vmatprep.subr.mxu0 0.0
      %8121 = vmatpush1.msra.mxu0 0.0
      %8122 = vmatprep.subr.mxu0 0.0
      %8123 = vmatpush1.msra.mxu0 0.0
      %8124 = vmatprep.subr.mxu0 0.0
      %8125 = vmatpush1.msra.mxu0 0.0
      %8126 = vmatprep.subr.mxu0 0.0
      %8127 = vmatpush1.msra.mxu0 0.0
      %8128 = vmatprep.subr.mxu0 0.0
      %8129 = vmatpush1.msra.mxu0 0.0
      %8130 = vmatprep.subr.mxu0 0.0
      %8131 = vmatpush1.msra.mxu0 0.0
      %8132 = vmatprep.subr.mxu0 0.0
      %8133 = vmatpush1.msra.mxu0 0.0
      %8134 = vmatprep.subr.mxu0 0.0
      %8135 = vmatpush1.msra.mxu0 0.0
      %8136 = vmatprep.subr.mxu0 0.0
      %8137 = vmatpush1.msra.mxu0 0.0
      %8138 = vmatprep.subr.mxu0 0.0
      %8139 = vmatpush1.msra.mxu0 0.0
      %8140 = vmatprep.subr.mxu0 0.0
      %8141 = vmatpush1.msra.mxu0 0.0
      %8142 = vmatprep.subr.mxu0 0.0
      %8143 = vmatpush1.msra.mxu0 0.0
      %8144 = vmatprep.subr.mxu0 0.0
      %8145 = vmatpush1.msra.mxu0 0.0
      %8146 = vmatprep.subr.mxu0 0.0
      %8147 = vmatpush1.msra.mxu0 0.0
      %8148 = vmatprep.mubr.f32.mxu0 0.0
      %8149 = vmatmul.mubr.f32.gmra.mrb[0].mxu0 %v8082
      %v8150 = vpop.f32.mrb[0].mxu0
      %v8151 = vadd.f32 %v8078, %v8150
      %v8152 = vpop.f32.mrb[0].mxu0
      %8153 = vdwg.mxu0
      %v8154 = vld [vmem:[#allocation6 + $0x2] sm:$0xff]
      %v8155 = vld [vmem:[%s17 + $0x20] sm:$0xff]
      %v8156 = vld [vmem:[%s17 + $0x28] sm:$0xff]
      %v8158 = vsel %vm749, %v8154, 0
      %8160 = vmatprep.subr.mxu0 0.0
      %8161 = vmatpush1.msra.mxu0 %v8155
      %8162 = vmatprep.subr.mxu0 0.0
      %8163 = vmatpush1.msra.mxu0 %v8156
      %8164 = vmatprep.subr.mxu0 0.0
      %8165 = vmatpush1.msra.mxu0 0.0
      %8166 = vmatprep.subr.mxu0 0.0
      %8167 = vmatpush1.msra.mxu0 0.0
      %8168 = vmatprep.subr.mxu0 0.0
      %8169 = vmatpush1.msra.mxu0 0.0
      %8170 = vmatprep.subr.mxu0 0.0
      %8171 = vmatpush1.msra.mxu0 0.0
      %8172 = vmatprep.subr.mxu0 0.0
      %8173 = vmatpush1.msra.mxu0 0.0
      %8174 = vmatprep.subr.mxu0 0.0
      %8175 = vmatpush1.msra.mxu0 0.0
      %8176 = vmatprep.subr.mxu0 0.0
      %8177 = vmatpush1.msra.mxu0 0.0
      %8178 = vmatprep.subr.mxu0 0.0
      %8179 = vmatpush1.msra.mxu0 0.0
      %8180 = vmatprep.subr.mxu0 0.0
      %8181 = vmatpush1.msra.mxu0 0.0
      %8182 = vmatprep.subr.mxu0 0.0
      %8183 = vmatpush1.msra.mxu0 0.0
      %8184 = vmatprep.subr.mxu0 0.0
      %8185 = vmatpush1.msra.mxu0 0.0
      %8186 = vmatprep.subr.mxu0 0.0
      %8187 = vmatpush1.msra.mxu0 0.0
      %8188 = vmatprep.subr.mxu0 0.0
      %8189 = vmatpush1.msra.mxu0 0.0
      %8190 = vmatprep.subr.mxu0 0.0
      %8191 = vmatpush1.msra.mxu0 0.0
      %8192 = vmatprep.subr.mxu0 0.0
      %8193 = vmatpush1.msra.mxu0 0.0
      %8194 = vmatprep.subr.mxu0 0.0
      %8195 = vmatpush1.msra.mxu0 0.0
      %8196 = vmatprep.subr.mxu0 0.0
      %8197 = vmatpush1.msra.mxu0 0.0
      %8198 = vmatprep.subr.mxu0 0.0
      %8199 = vmatpush1.msra.mxu0 0.0
      %8200 = vmatprep.subr.mxu0 0.0
      %8201 = vmatpush1.msra.mxu0 0.0
      %8202 = vmatprep.subr.mxu0 0.0
      %8203 = vmatpush1.msra.mxu0 0.0
      %8204 = vmatprep.subr.mxu0 0.0
      %8205 = vmatpush1.msra.mxu0 0.0
      %8206 = vmatprep.subr.mxu0 0.0
      %8207 = vmatpush1.msra.mxu0 0.0
      %8208 = vmatprep.subr.mxu0 0.0
      %8209 = vmatpush1.msra.mxu0 0.0
      %8210 = vmatprep.subr.mxu0 0.0
      %8211 = vmatpush1.msra.mxu0 0.0
      %8212 = vmatprep.subr.mxu0 0.0
      %8213 = vmatpush1.msra.mxu0 0.0
      %8214 = vmatprep.subr.mxu0 0.0
      %8215 = vmatpush1.msra.mxu0 0.0
      %8216 = vmatprep.subr.mxu0 0.0
      %8217 = vmatpush1.msra.mxu0 0.0
      %8218 = vmatprep.subr.mxu0 0.0
      %8219 = vmatpush1.msra.mxu0 0.0
      %8220 = vmatprep.subr.mxu0 0.0
      %8221 = vmatpush1.msra.mxu0 0.0
      %8222 = vmatprep.subr.mxu0 0.0
      %8223 = vmatpush1.msra.mxu0 0.0
      %8224 = vmatprep.mubr.f32.mxu0 0.0
      %8225 = vmatmul.mubr.f32.gmra.mrb[0].mxu0 %v8158
      %v8226 = vpop.f32.mrb[0].mxu0
      %v8227 = vadd.f32 0.0, %v8226
      %v8228 = vpop.f32.mrb[0].mxu0
      %8229 = vdwg.mxu0
      %v8230 = vadd.f32 %v8151, %v8227
      %v8231 = vld [vmem:[#allocation6 + $0x4] sm:$0xff]
      %v8232 = vld [vmem:[%s17 + $0x30] sm:$0xff]
      %v8233 = vld [vmem:[%s17 + $0x38] sm:$0xff]
      %v8235 = vsel %vm749, %v8231, 0
      %8237 = vmatprep.subr.mxu0 0.0
      %8238 = vmatpush1.msra.mxu0 %v8232
      %8239 = vmatprep.subr.mxu0 0.0
      %8240 = vmatpush1.msra.mxu0 %v8233
      %8241 = vmatprep.subr.mxu0 0.0
      %8242 = vmatpush1.msra.mxu0 0.0
      %8243 = vmatprep.subr.mxu0 0.0
      %8244 = vmatpush1.msra.mxu0 0.0
      %8245 = vmatprep.subr.mxu0 0.0
      %8246 = vmatpush1.msra.mxu0 0.0
      %8247 = vmatprep.subr.mxu0 0.0
      %8248 = vmatpush1.msra.mxu0 0.0
      %8249 = vmatprep.subr.mxu0 0.0
      %8250 = vmatpush1.msra.mxu0 0.0
      %8251 = vmatprep.subr.mxu0 0.0
      %8252 = vmatpush1.msra.mxu0 0.0
      %8253 = vmatprep.subr.mxu0 0.0
      %8254 = vmatpush1.msra.mxu0 0.0
      %8255 = vmatprep.subr.mxu0 0.0
      %8256 = vmatpush1.msra.mxu0 0.0
      %8257 = vmatprep.subr.mxu0 0.0
      %8258 = vmatpush1.msra.mxu0 0.0
      %8259 = vmatprep.subr.mxu0 0.0
      %8260 = vmatpush1.msra.mxu0 0.0
      %8261 = vmatprep.subr.mxu0 0.0
      %8262 = vmatpush1.msra.mxu0 0.0
      %8263 = vmatprep.subr.mxu0 0.0
      %8264 = vmatpush1.msra.mxu0 0.0
      %8265 = vmatprep.subr.mxu0 0.0
      %8266 = vmatpush1.msra.mxu0 0.0
      %8267 = vmatprep.subr.mxu0 0.0
      %8268 = vmatpush1.msra.mxu0 0.0
      %8269 = vmatprep.subr.mxu0 0.0
      %8270 = vmatpush1.msra.mxu0 0.0
      %8271 = vmatprep.subr.mxu0 0.0
      %8272 = vmatpush1.msra.mxu0 0.0
      %8273 = vmatprep.subr.mxu0 0.0
      %8274 = vmatpush1.msra.mxu0 0.0
      %8275 = vmatprep.subr.mxu0 0.0
      %8276 = vmatpush1.msra.mxu0 0.0
      %8277 = vmatprep.subr.mxu0 0.0
      %8278 = vmatpush1.msra.mxu0 0.0
      %8279 = vmatprep.subr.mxu0 0.0
      %8280 = vmatpush1.msra.mxu0 0.0
      %8281 = vmatprep.subr.mxu0 0.0
      %8282 = vmatpush1.msra.mxu0 0.0
      %8283 = vmatprep.subr.mxu0 0.0
      %8284 = vmatpush1.msra.mxu0 0.0
      %8285 = vmatprep.subr.mxu0 0.0
      %8286 = vmatpush1.msra.mxu0 0.0
      %8287 = vmatprep.subr.mxu0 0.0
      %8288 = vmatpush1.msra.mxu0 0.0
      %8289 = vmatprep.subr.mxu0 0.0
      %8290 = vmatpush1.msra.mxu0 0.0
      %8291 = vmatprep.subr.mxu0 0.0
      %8292 = vmatpush1.msra.mxu0 0.0
      %8293 = vmatprep.subr.mxu0 0.0
      %8294 = vmatpush1.msra.mxu0 0.0
      %8295 = vmatprep.subr.mxu0 0.0
      %8296 = vmatpush1.msra.mxu0 0.0
      %8297 = vmatprep.subr.mxu0 0.0
      %8298 = vmatpush1.msra.mxu0 0.0
      %8299 = vmatprep.subr.mxu0 0.0
      %8300 = vmatpush1.msra.mxu0 0.0
      %8301 = vmatprep.mubr.f32.mxu0 0.0
      %8302 = vmatmul.mubr.f32.gmra.mrb[0].mxu0 %v8235
      %v8303 = vpop.f32.mrb[0].mxu0
      %v8304 = vadd.f32 0.0, %v8303
      %v8305 = vpop.f32.mrb[0].mxu0
      %8306 = vdwg.mxu0
      %v8307 = vadd.f32 %v8230, %v8304
      %v8308 = vld [vmem:[#allocation6 + $0x5] sm:$0xff]
      %v8309 = vld [vmem:[%s17 + $0x40] sm:$0xff]
      %v8310 = vld [vmem:[%s17 + $0x48] sm:$0xff]
      %v8312 = vsel %vm749, %v8308, 0
      %8314 = vmatprep.subr.mxu0 0.0
      %8315 = vmatpush1.msra.mxu0 %v8309
      %8316 = vmatprep.subr.mxu0 0.0
      %8317 = vmatpush1.msra.mxu0 %v8310
      %8318 = vmatprep.subr.mxu0 0.0
      %8319 = vmatpush1.msra.mxu0 0.0
      %8320 = vmatprep.subr.mxu0 0.0
      %8321 = vmatpush1.msra.mxu0 0.0
      %8322 = vmatprep.subr.mxu0 0.0
      %8323 = vmatpush1.msra.mxu0 0.0
      %8324 = vmatprep.subr.mxu0 0.0
      %8325 = vmatpush1.msra.mxu0 0.0
      %8326 = vmatprep.subr.mxu0 0.0
      %8327 = vmatpush1.msra.mxu0 0.0
      %8328 = vmatprep.subr.mxu0 0.0
      %8329 = vmatpush1.msra.mxu0 0.0
      %8330 = vmatprep.subr.mxu0 0.0
      %8331 = vmatpush1.msra.mxu0 0.0
      %8332 = vmatprep.subr.mxu0 0.0
      %8333 = vmatpush1.msra.mxu0 0.0
      %8334 = vmatprep.subr.mxu0 0.0
      %8335 = vmatpush1.msra.mxu0 0.0
      %8336 = vmatprep.subr.mxu0 0.0
      %8337 = vmatpush1.msra.mxu0 0.0
      %8338 = vmatprep.subr.mxu0 0.0
      %8339 = vmatpush1.msra.mxu0 0.0
      %8340 = vmatprep.subr.mxu0 0.0
      %8341 = vmatpush1.msra.mxu0 0.0
      %8342 = vmatprep.subr.mxu0 0.0
      %8343 = vmatpush1.msra.mxu0 0.0
      %8344 = vmatprep.subr.mxu0 0.0
      %8345 = vmatpush1.msra.mxu0 0.0
      %8346 = vmatprep.subr.mxu0 0.0
      %8347 = vmatpush1.msra.mxu0 0.0
      %8348 = vmatprep.subr.mxu0 0.0
      %8349 = vmatpush1.msra.mxu0 0.0
      %8350 = vmatprep.subr.mxu0 0.0
      %8351 = vmatpush1.msra.mxu0 0.0
      %8352 = vmatprep.subr.mxu0 0.0
      %8353 = vmatpush1.msra.mxu0 0.0
      %8354 = vmatprep.subr.mxu0 0.0
      %8355 = vmatpush1.msra.mxu0 0.0
      %8356 = vmatprep.subr.mxu0 0.0
      %8357 = vmatpush1.msra.mxu0 0.0
      %8358 = vmatprep.subr.mxu0 0.0
      %8359 = vmatpush1.msra.mxu0 0.0
      %8360 = vmatprep.subr.mxu0 0.0
      %8361 = vmatpush1.msra.mxu0 0.0
      %8362 = vmatprep.subr.mxu0 0.0
      %8363 = vmatpush1.msra.mxu0 0.0
      %8364 = vmatprep.subr.mxu0 0.0
      %8365 = vmatpush1.msra.mxu0 0.0
      %8366 = vmatprep.subr.mxu0 0.0
      %8367 = vmatpush1.msra.mxu0 0.0
      %8368 = vmatprep.subr.mxu0 0.0
      %8369 = vmatpush1.msra.mxu0 0.0
      %8370 = vmatprep.subr.mxu0 0.0
      %8371 = vmatpush1.msra.mxu0 0.0
      %8372 = vmatprep.subr.mxu0 0.0
      %8373 = vmatpush1.msra.mxu0 0.0
      %8374 = vmatprep.subr.mxu0 0.0
      %8375 = vmatpush1.msra.mxu0 0.0
      %8376 = vmatprep.subr.mxu0 0.0
      %8377 = vmatpush1.msra.mxu0 0.0
      %8378 = vmatprep.mubr.f32.mxu0 0.0
      %8379 = vmatmul.mubr.f32.gmra.mrb[0].mxu0 %v8312
      %v8380 = vpop.f32.mrb[0].mxu0
      %v8381 = vadd.f32 0.0, %v8380
      %v8382 = vpop.f32.mrb[0].mxu0
      %8383 = vdwg.mxu0
      %v8384 = vadd.f32 %v8307, %v8381
      %v8385 = vld [vmem:[#allocation6 + $0x6] sm:$0xff]
      %v8386 = vld [vmem:[%s17 + $0x50] sm:$0xff]
      %v8387 = vld [vmem:[%s17 + $0x58] sm:$0xff]
      %v8389 = vsel %vm749, %v8385, 0
      %8391 = vmatprep.subr.mxu0 0.0
      %8392 = vmatpush1.msra.mxu0 %v8386
      %8393 = vmatprep.subr.mxu0 0.0
      %8394 = vmatpush1.msra.mxu0 %v8387
      %8395 = vmatprep.subr.mxu0 0.0
      %8396 = vmatpush1.msra.mxu0 0.0
      %8397 = vmatprep.subr.mxu0 0.0
      %8398 = vmatpush1.msra.mxu0 0.0
      %8399 = vmatprep.subr.mxu0 0.0
      %8400 = vmatpush1.msra.mxu0 0.0
      %8401 = vmatprep.subr.mxu0 0.0
      %8402 = vmatpush1.msra.mxu0 0.0
      %8403 = vmatprep.subr.mxu0 0.0
      %8404 = vmatpush1.msra.mxu0 0.0
      %8405 = vmatprep.subr.mxu0 0.0
      %8406 = vmatpush1.msra.mxu0 0.0
      %8407 = vmatprep.subr.mxu0 0.0
      %8408 = vmatpush1.msra.mxu0 0.0
      %8409 = vmatprep.subr.mxu0 0.0
      %8410 = vmatpush1.msra.mxu0 0.0
      %8411 = vmatprep.subr.mxu0 0.0
      %8412 = vmatpush1.msra.mxu0 0.0
      %8413 = vmatprep.subr.mxu0 0.0
      %8414 = vmatpush1.msra.mxu0 0.0
      %8415 = vmatprep.subr.mxu0 0.0
      %8416 = vmatpush1.msra.mxu0 0.0
      %8417 = vmatprep.subr.mxu0 0.0
      %8418 = vmatpush1.msra.mxu0 0.0
      %8419 = vmatprep.subr.mxu0 0.0
      %8420 = vmatpush1.msra.mxu0 0.0
      %8421 = vmatprep.subr.mxu0 0.0
      %8422 = vmatpush1.msra.mxu0 0.0
      %8423 = vmatprep.subr.mxu0 0.0
      %8424 = vmatpush1.msra.mxu0 0.0
      %8425 = vmatprep.subr.mxu0 0.0
      %8426 = vmatpush1.msra.mxu0 0.0
      %8427 = vmatprep.subr.mxu0 0.0
      %8428 = vmatpush1.msra.mxu0 0.0
      %8429 = vmatprep.subr.mxu0 0.0
      %8430 = vmatpush1.msra.mxu0 0.0
      %8431 = vmatprep.subr.mxu0 0.0
      %8432 = vmatpush1.msra.mxu0 0.0
      %8433 = vmatprep.subr.mxu0 0.0
      %8434 = vmatpush1.msra.mxu0 0.0
      %8435 = vmatprep.subr.mxu0 0.0
      %8436 = vmatpush1.msra.mxu0 0.0
      %8437 = vmatprep.subr.mxu0 0.0
      %8438 = vmatpush1.msra.mxu0 0.0
      %8439 = vmatprep.subr.mxu0 0.0
      %8440 = vmatpush1.msra.mxu0 0.0
      %8441 = vmatprep.subr.mxu0 0.0
      %8442 = vmatpush1.msra.mxu0 0.0
      %8443 = vmatprep.subr.mxu0 0.0
      %8444 = vmatpush1.msra.mxu0 0.0
      %8445 = vmatprep.subr.mxu0 0.0
      %8446 = vmatpush1.msra.mxu0 0.0
      %8447 = vmatprep.subr.mxu0 0.0
      %8448 = vmatpush1.msra.mxu0 0.0
      %8449 = vmatprep.subr.mxu0 0.0
      %8450 = vmatpush1.msra.mxu0 0.0
      %8451 = vmatprep.subr.mxu0 0.0
      %8452 = vmatpush1.msra.mxu0 0.0
      %8453 = vmatprep.subr.mxu0 0.0
      %8454 = vmatpush1.msra.mxu0 0.0
      %8455 = vmatprep.mubr.f32.mxu0 0.0
      %8456 = vmatmul.mubr.f32.gmra.mrb[0].mxu0 %v8389
      %v8457 = vpop.f32.mrb[0].mxu0
      %v8458 = vadd.f32 0.0, %v8457
      %v8459 = vpop.f32.mrb[0].mxu0
      %8460 = vdwg.mxu0
      %v8461 = vadd.f32 %v8384, %v8458
      %v8462 = vld [vmem:[#allocation6 + $0x8] sm:$0xff]
      %v8463 = vld [vmem:[%s17 + $0x60] sm:$0xff]
      %v8464 = vld [vmem:[%s17 + $0x68] sm:$0xff]
      %v8466 = vsel %vm749, %v8462, 0
      %8468 = vmatprep.subr.mxu0 0.0
      %8469 = vmatpush1.msra.mxu0 %v8463
      %8470 = vmatprep.subr.mxu0 0.0
      %8471 = vmatpush1.msra.mxu0 %v8464
      %8472 = vmatprep.subr.mxu0 0.0
      %8473 = vmatpush1.msra.mxu0 0.0
      %8474 = vmatprep.subr.mxu0 0.0
      %8475 = vmatpush1.msra.mxu0 0.0
      %8476 = vmatprep.subr.mxu0 0.0
      %8477 = vmatpush1.msra.mxu0 0.0
      %8478 = vmatprep.subr.mxu0 0.0
      %8479 = vmatpush1.msra.mxu0 0.0
      %8480 = vmatprep.subr.mxu0 0.0
      %8481 = vmatpush1.msra.mxu0 0.0
      %8482 = vmatprep.subr.mxu0 0.0
      %8483 = vmatpush1.msra.mxu0 0.0
      %8484 = vmatprep.subr.mxu0 0.0
      %8485 = vmatpush1.msra.mxu0 0.0
      %8486 = vmatprep.subr.mxu0 0.0
      %8487 = vmatpush1.msra.mxu0 0.0
      %8488 = vmatprep.subr.mxu0 0.0
      %8489 = vmatpush1.msra.mxu0 0.0
      %8490 = vmatprep.subr.mxu0 0.0
      %8491 = vmatpush1.msra.mxu0 0.0
      %8492 = vmatprep.subr.mxu0 0.0
      %8493 = vmatpush1.msra.mxu0 0.0
      %8494 = vmatprep.subr.mxu0 0.0
      %8495 = vmatpush1.msra.mxu0 0.0
      %8496 = vmatprep.subr.mxu0 0.0
      %8497 = vmatpush1.msra.mxu0 0.0
      %8498 = vmatprep.subr.mxu0 0.0
      %8499 = vmatpush1.msra.mxu0 0.0
      %8500 = vmatprep.subr.mxu0 0.0
      %8501 = vmatpush1.msra.mxu0 0.0
      %8502 = vmatprep.subr.mxu0 0.0
      %8503 = vmatpush1.msra.mxu0 0.0
      %8504 = vmatprep.subr.mxu0 0.0
      %8505 = vmatpush1.msra.mxu0 0.0
      %8506 = vmatprep.subr.mxu0 0.0
      %8507 = vmatpush1.msra.mxu0 0.0
      %8508 = vmatprep.subr.mxu0 0.0
      %8509 = vmatpush1.msra.mxu0 0.0
      %8510 = vmatprep.subr.mxu0 0.0
      %8511 = vmatpush1.msra.mxu0 0.0
      %8512 = vmatprep.subr.mxu0 0.0
      %8513 = vmatpush1.msra.mxu0 0.0
      %8514 = vmatprep.subr.mxu0 0.0
      %8515 = vmatpush1.msra.mxu0 0.0
      %8516 = vmatprep.subr.mxu0 0.0
      %8517 = vmatpush1.msra.mxu0 0.0
      %8518 = vmatprep.subr.mxu0 0.0
      %8519 = vmatpush1.msra.mxu0 0.0
      %8520 = vmatprep.subr.mxu0 0.0
      %8521 = vmatpush1.msra.mxu0 0.0
      %8522 = vmatprep.subr.mxu0 0.0
      %8523 = vmatpush1.msra.mxu0 0.0
      %8524 = vmatprep.subr.mxu0 0.0
      %8525 = vmatpush1.msra.mxu0 0.0
      %8526 = vmatprep.subr.mxu0 0.0
      %8527 = vmatpush1.msra.mxu0 0.0
      %8528 = vmatprep.subr.mxu0 0.0
      %8529 = vmatpush1.msra.mxu0 0.0
      %8530 = vmatprep.subr.mxu0 0.0
      %8531 = vmatpush1.msra.mxu0 0.0
      %8532 = vmatprep.mubr.f32.mxu0 0.0
      %8533 = vmatmul.mubr.f32.gmra.mrb[0].mxu0 %v8466
      %v8534 = vpop.f32.mrb[0].mxu0
      %v8535 = vadd.f32 0.0, %v8534
      %v8536 = vpop.f32.mrb[0].mxu0
      %8537 = vdwg.mxu0
      %v8538 = vadd.f32 %v8461, %v8535
      %v8539 = vld [vmem:[#allocation6 + $0x9] sm:$0xff]
      %v8540 = vld [vmem:[%s17 + $0x70] sm:$0xff]
      %v8541 = vld [vmem:[%s17 + $0x78] sm:$0xff]
      %v8543 = vsel %vm749, %v8539, 0
      %8545 = vmatprep.subr.mxu0 0.0
      %8546 = vmatpush1.msra.mxu0 %v8540
      %8547 = vmatprep.subr.mxu0 0.0
      %8548 = vmatpush1.msra.mxu0 %v8541
      %8549 = vmatprep.subr.mxu0 0.0
      %8550 = vmatpush1.msra.mxu0 0.0
      %8551 = vmatprep.subr.mxu0 0.0
      %8552 = vmatpush1.msra.mxu0 0.0
      %8553 = vmatprep.subr.mxu0 0.0
      %8554 = vmatpush1.msra.mxu0 0.0
      %8555 = vmatprep.subr.mxu0 0.0
      %8556 = vmatpush1.msra.mxu0 0.0
      %8557 = vmatprep.subr.mxu0 0.0
      %8558 = vmatpush1.msra.mxu0 0.0
      %8559 = vmatprep.subr.mxu0 0.0
      %8560 = vmatpush1.msra.mxu0 0.0
      %8561 = vmatprep.subr.mxu0 0.0
      %8562 = vmatpush1.msra.mxu0 0.0
      %8563 = vmatprep.subr.mxu0 0.0
      %8564 = vmatpush1.msra.mxu0 0.0
      %8565 = vmatprep.subr.mxu0 0.0
      %8566 = vmatpush1.msra.mxu0 0.0
      %8567 = vmatprep.subr.mxu0 0.0
      %8568 = vmatpush1.msra.mxu0 0.0
      %8569 = vmatprep.subr.mxu0 0.0
      %8570 = vmatpush1.msra.mxu0 0.0
      %8571 = vmatprep.subr.mxu0 0.0
      %8572 = vmatpush1.msra.mxu0 0.0
      %8573 = vmatprep.subr.mxu0 0.0
      %8574 = vmatpush1.msra.mxu0 0.0
      %8575 = vmatprep.subr.mxu0 0.0
      %8576 = vmatpush1.msra.mxu0 0.0
      %8577 = vmatprep.subr.mxu0 0.0
      %8578 = vmatpush1.msra.mxu0 0.0
      %8579 = vmatprep.subr.mxu0 0.0
      %8580 = vmatpush1.msra.mxu0 0.0
      %8581 = vmatprep.subr.mxu0 0.0
      %8582 = vmatpush1.msra.mxu0 0.0
      %8583 = vmatprep.subr.mxu0 0.0
      %8584 = vmatpush1.msra.mxu0 0.0
      %8585 = vmatprep.subr.mxu0 0.0
      %8586 = vmatpush1.msra.mxu0 0.0
      %8587 = vmatprep.subr.mxu0 0.0
      %8588 = vmatpush1.msra.mxu0 0.0
      %8589 = vmatprep.subr.mxu0 0.0
      %8590 = vmatpush1.msra.mxu0 0.0
      %8591 = vmatprep.subr.mxu0 0.0
      %8592 = vmatpush1.msra.mxu0 0.0
      %8593 = vmatprep.subr.mxu0 0.0
      %8594 = vmatpush1.msra.mxu0 0.0
      %8595 = vmatprep.subr.mxu0 0.0
      %8596 = vmatpush1.msra.mxu0 0.0
      %8597 = vmatprep.subr.mxu0 0.0
      %8598 = vmatpush1.msra.mxu0 0.0
      %8599 = vmatprep.subr.mxu0 0.0
      %8600 = vmatpush1.msra.mxu0 0.0
      %8601 = vmatprep.subr.mxu0 0.0
      %8602 = vmatpush1.msra.mxu0 0.0
      %8603 = vmatprep.subr.mxu0 0.0
      %8604 = vmatpush1.msra.mxu0 0.0
      %8605 = vmatprep.subr.mxu0 0.0
      %8606 = vmatpush1.msra.mxu0 0.0
      %8607 = vmatprep.subr.mxu0 0.0
      %8608 = vmatpush1.msra.mxu0 0.0
      %8609 = vmatprep.mubr.f32.mxu0 0.0
      %8610 = vmatmul.mubr.f32.gmra.mrb[0].mxu0 %v8543
      %v8611 = vpop.f32.mrb[0].mxu0
      %v8612 = vadd.f32 0.0, %v8611
      %v8613 = vpop.f32.mrb[0].mxu0
      %8614 = vdwg.mxu0
      %v8615 = vadd.f32 %v8538, %v8612
      %v8616 = vld [vmem:[#allocation6 + $0xa] sm:$0xff]
      %v8617 = vld [vmem:[%s17 + $0x80] sm:$0xff]
      %v8618 = vld [vmem:[%s17 + $0x88] sm:$0xff]
      %v8620 = vsel %vm749, %v8616, 0
      %8622 = vmatprep.subr.mxu0 0.0
      %8623 = vmatpush1.msra.mxu0 %v8617
      %8624 = vmatprep.subr.mxu0 0.0
      %8625 = vmatpush1.msra.mxu0 %v8618
      %8626 = vmatprep.subr.mxu0 0.0
      %8627 = vmatpush1.msra.mxu0 0.0
      %8628 = vmatprep.subr.mxu0 0.0
      %8629 = vmatpush1.msra.mxu0 0.0
      %8630 = vmatprep.subr.mxu0 0.0
      %8631 = vmatpush1.msra.mxu0 0.0
      %8632 = vmatprep.subr.mxu0 0.0
      %8633 = vmatpush1.msra.mxu0 0.0
      %8634 = vmatprep.subr.mxu0 0.0
      %8635 = vmatpush1.msra.mxu0 0.0
      %8636 = vmatprep.subr.mxu0 0.0
      %8637 = vmatpush1.msra.mxu0 0.0
      %8638 = vmatprep.subr.mxu0 0.0
      %8639 = vmatpush1.msra.mxu0 0.0
      %8640 = vmatprep.subr.mxu0 0.0
      %8641 = vmatpush1.msra.mxu0 0.0
      %8642 = vmatprep.subr.mxu0 0.0
      %8643 = vmatpush1.msra.mxu0 0.0
      %8644 = vmatprep.subr.mxu0 0.0
      %8645 = vmatpush1.msra.mxu0 0.0
      %8646 = vmatprep.subr.mxu0 0.0
      %8647 = vmatpush1.msra.mxu0 0.0
      %8648 = vmatprep.subr.mxu0 0.0
      %8649 = vmatpush1.msra.mxu0 0.0
      %8650 = vmatprep.subr.mxu0 0.0
      %8651 = vmatpush1.msra.mxu0 0.0
      %8652 = vmatprep.subr.mxu0 0.0
      %8653 = vmatpush1.msra.mxu0 0.0
      %8654 = vmatprep.subr.mxu0 0.0
      %8655 = vmatpush1.msra.mxu0 0.0
      %8656 = vmatprep.subr.mxu0 0.0
      %8657 = vmatpush1.msra.mxu0 0.0
      %8658 = vmatprep.subr.mxu0 0.0
      %8659 = vmatpush1.msra.mxu0 0.0
      %8660 = vmatprep.subr.mxu0 0.0
      %8661 = vmatpush1.msra.mxu0 0.0
      %8662 = vmatprep.subr.mxu0 0.0
      %8663 = vmatpush1.msra.mxu0 0.0
      %8664 = vmatprep.subr.mxu0 0.0
      %8665 = vmatpush1.msra.mxu0 0.0
      %8666 = vmatprep.subr.mxu0 0.0
      %8667 = vmatpush1.msra.mxu0 0.0
      %8668 = vmatprep.subr.mxu0 0.0
      %8669 = vmatpush1.msra.mxu0 0.0
      %8670 = vmatprep.subr.mxu0 0.0
      %8671 = vmatpush1.msra.mxu0 0.0
      %8672 = vmatprep.subr.mxu0 0.0
      %8673 = vmatpush1.msra.mxu0 0.0
      %8674 = vmatprep.subr.mxu0 0.0
      %8675 = vmatpush1.msra.mxu0 0.0
      %8676 = vmatprep.subr.mxu0 0.0
      %8677 = vmatpush1.msra.mxu0 0.0
      %8678 = vmatprep.subr.mxu0 0.0
      %8679 = vmatpush1.msra.mxu0 0.0
      %8680 = vmatprep.subr.mxu0 0.0
      %8681 = vmatpush1.msra.mxu0 0.0
      %8682 = vmatprep.subr.mxu0 0.0
      %8683 = vmatpush1.msra.mxu0 0.0
      %8684 = vmatprep.subr.mxu0 0.0
      %8685 = vmatpush1.msra.mxu0 0.0
      %8686 = vmatprep.mubr.f32.mxu0 0.0
      %8687 = vmatmul.mubr.f32.gmra.mrb[0].mxu0 %v8620
      %v8688 = vpop.f32.mrb[0].mxu0
      %v8689 = vadd.f32 0.0, %v8688
      %v8690 = vpop.f32.mrb[0].mxu0
      %8691 = vdwg.mxu0
      %v8692 = vadd.f32 %v8615, %v8689
      %v8693 = vld [vmem:[%s18] sm:$0x1]
      %v8695 = vlaneseq
      %v8696 = vshrl.u32 %v8695, 7
      %v8697 = vsub.s32 0, %v8696
      %v8698 = vrot.slane %v8693, %v8697
      %v8700 = vadd.f32 %v8692, %v8698
      %v8701 = vmax.f32 %v8700, 0.0
      %8702 = vst.msk [vmem:[%s733] sm:$0xff] %vm749, %v8701
      %p8703 = scmp.lt.s32.totalorder %s35, 1
      %s8704 = scalar_select %p8703, %s35, 1
      %s8705 = smul.addr %s8704, 10
      %s8706 = smul.addr %s8705, 8
      %s8707 = scalar_lea.vmem %s21, %s8706
      %p8708 = scmp.lt.s32.totalorder %s35, 1
      %s8709 = scalar_select %p8708, %s35, 1
      %s8710 = smul.addr %s8709, 3
      %s8711 = smul.addr %s8710, 8
      %s8712 = scalar_lea.vmem %s22, %s8711
      %p8713 = scmp.lt.s32.totalorder %s35, 1
      %s8714 = scalar_select %p8713, %s35, 1
      %s8715 = smul.addr %s8714, 8
      %s8716 = scalar_lea.vmem %s23, %s8715
      // Predicated region
      $region105: #{backbone_neck_forward.1} parent=103 // pred_check
        %p8717 = pneg %p499
      $region106: #{backbone_neck_forward.1} parent=103 // pred_check_branch
        %8719 = sbr.rel (%p8717) target = $region108
      $region107: #{backbone_neck_forward.1} parent=103 // pred_region
        _
      $region108: #{backbone_neck_forward.1} parent=103 // pred_fallthru
        _
      // Predicated region
      $region109: #{backbone_neck_forward.1} parent=103 // pred_check
        %p8720 = pneg %p525
      $region110: #{backbone_neck_forward.1} parent=103 // pred_check_branch
        %8722 = sbr.rel (%p8720) target = $region112
      $region111: #{backbone_neck_forward.1} parent=103 // pred_region
        _
      $region112: #{backbone_neck_forward.1} parent=103 // pred_fallthru
        _
      // Predicated region
      $region113: #{backbone_neck_forward.1} parent=103 // pred_check
        %p8723 = pneg %p551
      $region114: #{backbone_neck_forward.1} parent=103 // pred_check_branch
        %8725 = sbr.rel (%p8723) target = $region116
      $region115: #{backbone_neck_forward.1} parent=103 // pred_region
        _
      $region116: #{backbone_neck_forward.1} parent=103 // pred_fallthru
        _
    $region104: #{backbone_neck_forward.1} parent=5 // pred_fallthru
      _
    %p8726 = scmp.le.s32.totalorder 2, %s30
    // Predicated region
    $region117: #{backbone_neck_forward.1} parent=5 // pred_check
      %p8727 = pneg %p8726
    $region118: #{backbone_neck_forward.1} parent=5 // pred_check_branch
      %8729 = sbr.rel (%p8727) target = $region120
    $region119: #{backbone_neck_forward.1} parent=5 // pred_region
      %s8730 = ssub.s32 %s30, 2
      // Predicated region
      $region121: #{backbone_neck_forward.1} parent=119 // pred_check
        %p8731 = pneg %p505
      $region122: #{backbone_neck_forward.1} parent=119 // pred_check_branch
        %8733 = sbr.rel (%p8731) target = $region124
      $region123: #{backbone_neck_forward.1} parent=119 // pred_region
        %p8734 = scmp.lt.s32.totalorder %s36, 1
        %s8735 = scalar_select %p8734, %s36, 1
        %s8736 = smul.addr %s8735, 10
        %s8737 = smul.addr %s8736, 8
        %s8738 = scalar_lea.vmem %s21, %s8737
      $region124: #{backbone_neck_forward.1} parent=119 // pred_fallthru
        _
      // Predicated region
      $region125: #{backbone_neck_forward.1} parent=119 // pred_check
        %p8739 = pneg %p531
      $region126: #{backbone_neck_forward.1} parent=119 // pred_check_branch
        %8741 = sbr.rel (%p8739) target = $region128
      $region127: #{backbone_neck_forward.1} parent=119 // pred_region
        %p8742 = scmp.lt.s32.totalorder %s36, 1
        %s8743 = scalar_select %p8742, %s36, 1
        %s8744 = smul.addr %s8743, 3
        %s8745 = smul.addr %s8744, 8
        %s8746 = scalar_lea.vmem %s22, %s8745
      $region128: #{backbone_neck_forward.1} parent=119 // pred_fallthru
        _
      // Predicated region
      $region129: #{backbone_neck_forward.1} parent=119 // pred_check
        %p8747 = pneg %p557
      $region130: #{backbone_neck_forward.1} parent=119 // pred_check_branch
        %8749 = sbr.rel (%p8747) target = $region132
      $region131: #{backbone_neck_forward.1} parent=119 // pred_region
        %p8750 = scmp.lt.s32.totalorder %s36, 1
        %s8751 = scalar_select %p8750, %s36, 1
        %s8752 = smul.addr %s8751, 8
        %s8753 = scalar_lea.vmem %s23, %s8752
      $region132: #{backbone_neck_forward.1} parent=119 // pred_fallthru
        _
    $region120: #{backbone_neck_forward.1} parent=5 // pred_fallthru
      _
  $region6: #{backbone_neck_forward.1} parent=0 // loop_footer
    %s34 = sadd.s32 1, %s30
  $region7: #{backbone_neck_forward.1} parent=0 // loop_footer_branch
    %29 = sbr.rel target = $region3
  $region8: #{backbone_neck_forward.1} parent=0 // loop_exit
    _

</llo_original>
